<compile_context>
chip_gen: v5e
topology: v5e:2x2
jax: 0.10.0
libtpu: 0.0.40
codegen_flags: <defaults>
</compile_context>

<pallas_src>
import functools

import jax
import jax.numpy as jnp
from jax import lax
from jax.experimental import pallas as pl
from jax.experimental.pallas import tpu as pltpu


def _sepconv_kernel(x_ref, w_dw1_ref, w_pw1_ref, w_dw2_ref, w_pw2_ref, o_ref,
                    xp1_ref, y1_ref, xp2_ref, y2_ref, *,
                    K, stride, pad, H, W, H1, W1, H2, W2):
    # x_ref : (C, H, W)          one image (batch dim squeezed by BlockSpec)
    # w_dw* : (C, K*K)           depthwise taps, channels on sublanes
    # w_pw1 : (C, C), w_pw2 : (C_out, C)
    # o_ref : (C_out, H2*W2)     flat-NCHW output block (lane dense)
    # xp1/xp2: zero-padded 2-D scratch, y1/y2: flat (C, H*W) scratch
    f32 = jnp.float32
    C = x_ref.shape[0]

    def depthwise(xp_ref, taps, s, h_out, w_out, y_flat_ref):
        # Per output row: load the K padded input rows once, then K*K VPU
        # FMAs with the per-channel tap broadcast; write the row directly
        # into its lane-contiguous slot of the flat buffer.
        for ho in range(h_out):
            rows = [xp_ref[:, ho * s + kh, :] for kh in range(K)]  # (C, W_pad)
            acc = jnp.zeros((C, w_out), f32)
            for kh in range(K):
                r = rows[kh]
                for kw in range(K):
                    win = r[:, kw:kw + (w_out - 1) * s + 1:s]      # (C, w_out)
                    acc = acc + taps[kh * K + kw] * win
            y_flat_ref[:, ho * w_out:(ho + 1) * w_out] = acc

    # --- Stage 1: ReLU + zero-pad into VMEM scratch (pad-after-ReLU is exact).
    xp1_ref[...] = jnp.zeros_like(xp1_ref)
    xp1_ref[:, pad:pad + H, pad:pad + W] = jnp.maximum(
        x_ref[...].astype(f32), 0.0)

    # --- Stage 2: depthwise conv #1 (stride = s), pure VPU.
    w1 = w_dw1_ref[...].astype(f32)                      # hoisted, loaded once
    taps1 = [w1[:, t:t + 1] for t in range(K * K)]       # each (C, 1)
    depthwise(xp1_ref, taps1, stride, H1, W1, y1_ref)

    # --- Stage 3: pointwise 1x1 conv #1 as a lane-dense matmul, fused ReLU.
    z1 = jnp.dot(w_pw1_ref[...].astype(f32), y1_ref[...],
                 preferred_element_type=f32)             # (C, H1*W1)
    z1 = jnp.maximum(z1, 0.0)

    # --- Stage 4: re-pad for the second depthwise (row scatter, stays in VMEM).
    xp2_ref[...] = jnp.zeros_like(xp2_ref)
    for h in range(H1):
        xp2_ref[:, pad + h, pad:pad + W1] = z1[:, h * W1:(h + 1) * W1]

    # --- Stage 5: depthwise conv #2 (stride 1), pure VPU.
    w3 = w_dw2_ref[...].astype(f32)
    taps2 = [w3[:, t:t + 1] for t in range(K * K)]
    depthwise(xp2_ref, taps2, 1, H2, W2, y2_ref)

    # --- Stage 6: pointwise 1x1 conv #2 -> single unmasked lane-dense store.
    out = jnp.dot(w_pw2_ref[...].astype(f32), y2_ref[...],
                  preferred_element_type=f32)            # (C_out, H2*W2)
    o_ref[...] = out.astype(o_ref.dtype)


def sep_conv(x, w_dw1, w_pw1, w_dw2, w_pw2, *, kernel_size, stride, padding):
    """SepConv forward: NCHW in / NCHW out, PyTorch weight layouts."""
    N, C, H, W = x.shape
    K = kernel_size
    assert w_dw1.shape == (C, 1, K, K)
    assert w_pw1.shape == (C, C, 1, 1)
    assert w_dw2.shape == (C, 1, K, K)
    C_out = w_pw2.shape[0]
    assert w_pw2.shape[1] == C

    H_pad, W_pad = H + 2 * padding, W + 2 * padding
    H1 = (H_pad - K) // stride + 1          # after depthwise #1 (stride s)
    W1 = (W_pad - K) // stride + 1
    H1p, W1p = H1 + 2 * padding, W1 + 2 * padding
    H2 = H1p - K + 1                        # after depthwise #2 (stride 1)
    W2 = W1p - K + 1

    # Tiny one-off weight re-layouts (channels on sublanes, taps on lanes).
    w1 = w_dw1.reshape(C, K * K)
    w2 = w_pw1.reshape(C, C)
    w3 = w_dw2.reshape(C, K * K)
    w4 = w_pw2.reshape(C_out, C)

    kernel = functools.partial(
        _sepconv_kernel, K=K, stride=stride, pad=padding,
        H=H, W=W, H1=H1, W1=W1, H2=H2, W2=W2)

    out_flat = pl.pallas_call(
        kernel,
        out_shape=jax.ShapeDtypeStruct((N, C_out, H2 * W2), x.dtype),
        grid=(N,),
        in_specs=[
            pl.BlockSpec((None, C, H, W), lambda n: (n, 0, 0, 0)),
            pl.BlockSpec((C, K * K), lambda n: (0, 0)),
            pl.BlockSpec((C, C), lambda n: (0, 0)),
            pl.BlockSpec((C, K * K), lambda n: (0, 0)),
            pl.BlockSpec((C_out, C), lambda n: (0, 0)),
        ],
        out_specs=pl.BlockSpec((None, C_out, H2 * W2), lambda n: (n, 0, 0)),
        scratch_shapes=[
            pltpu.VMEM((C, H_pad, W_pad), jnp.float32),   # padded input
            pltpu.VMEM((C, H1 * W1), jnp.float32),        # flat dw1 output
            pltpu.VMEM((C, H1p, W1p), jnp.float32),       # padded mid act
            pltpu.VMEM((C, H2 * W2), jnp.float32),        # flat dw2 output
        ],
        compiler_params=pltpu.CompilerParams(
            dimension_semantics=("parallel",)),
    )(x, w1, w2, w3, w4)

    # Metadata-only reshape: (N, C_out, H2*W2) is bit-identical to NCHW.
    return out_flat.reshape(N, C_out, H2, W2)


def _reference(x, w_dw1, w_pw1, w_dw2, w_pw2, *, stride, padding):
    """Plain-JAX reference for the SepConv forward pass."""
    C = x.shape[1]
    dn = ("NCHW", "OIHW", "NCHW")
    hp = lax.Precision.HIGHEST
    y = jnp.maximum(x, 0.0)
    y = lax.conv_general_dilated(y, w_dw1, (stride, stride),
                                 [(padding, padding)] * 2,
                                 dimension_numbers=dn, feature_group_count=C,
                                 precision=hp)
    y = lax.conv_general_dilated(y, w_pw1, (1, 1), [(0, 0)] * 2,
                                 dimension_numbers=dn, precision=hp)
    y = jnp.maximum(y, 0.0)
    y = lax.conv_general_dilated(y, w_dw2, (1, 1), [(padding, padding)] * 2,
                                 dimension_numbers=dn, feature_group_count=C,
                                 precision=hp)
    y = lax.conv_general_dilated(y, w_pw2, (1, 1), [(0, 0)] * 2,
                                 dimension_numbers=dn, precision=hp)
    return y


if __name__ == "__main__":
    # SepConv(C_in=8, C_out=8, kernel_size=3, stride=1, padding=1)
    N, C_in, C_out, H, W = 2, 8, 8, 16, 16
    kernel_size, stride, padding = 3, 1, 1

    key = jax.random.PRNGKey(0)
    kx, k1, k2, k3, k4 = jax.random.split(key, 5)
    x = jax.random.normal(kx, (N, C_in, H, W), dtype=jnp.float32)

    def conv_weight(k, shape):
        # Kaiming-uniform-style scale, PyTorch OIHW layout.
        fan_in = shape[1] * shape[2] * shape[3]
        bound = 1.0 / (fan_in ** 0.5)
        return jax.random.uniform(k, shape, dtype=jnp.float32,
                                  minval=-bound, maxval=bound)

    w_dw1 = conv_weight(k1, (C_in, 1, kernel_size, kernel_size))
    w_pw1 = conv_weight(k2, (C_in, C_in, 1, 1))
    w_dw2 = conv_weight(k3, (C_in, 1, kernel_size, kernel_size))
    w_pw2 = conv_weight(k4, (C_out, C_in, 1, 1))

    out = sep_conv(x, w_dw1, w_pw1, w_dw2, w_pw2,
                   kernel_size=kernel_size, stride=stride, padding=padding)
    out = jax.block_until_ready(out)

    ref = _reference(x, w_dw1, w_pw1, w_dw2, w_pw2,
                     stride=stride, padding=padding)
    assert out.shape == ref.shape, (out.shape, ref.shape)
    assert jnp.allclose(out, ref, rtol=1e-4, atol=1e-4), "mismatch vs reference"

    print("KERNEL_OK")
</pallas_src>

<mosaic_0001>
module attributes {stable_mosaic.version = 11 : i64} {
  func.func @_sepconv_kernel(%arg0: i32, %arg1: memref<1x8x16x16xf32, #tpu.memory_space<vmem>>, %arg2: memref<8x9xf32, #tpu.memory_space<vmem>>, %arg3: memref<8x8xf32, #tpu.memory_space<vmem>>, %arg4: memref<8x9xf32, #tpu.memory_space<vmem>>, %arg5: memref<8x8xf32, #tpu.memory_space<vmem>>, %arg6: memref<1x8x256xf32, #tpu.memory_space<vmem>>, %arg7: memref<8x18x18xf32, #tpu.memory_space<vmem>>, %arg8: memref<8x256xf32, #tpu.memory_space<vmem>>, %arg9: memref<8x18x18xf32, #tpu.memory_space<vmem>>, %arg10: memref<8x256xf32, #tpu.memory_space<vmem>>) attributes {dimension_semantics = [#tpu.dimension_semantics<parallel>], iteration_bounds = array<i64: 2>, scalar_prefetch = 0 : i64, scratch_operands = 4 : i64, tpu.core_type = #tpu.core_type<tc>, window_params = [{transform_indices = @transform_0, window_bounds = array<i64: 1, 8, 16, 16>}, {pipeline_mode = #tpu.pipeline_mode<synchronous>, transform_indices = @transform_1, window_bounds = array<i64: 8, 9>}, {pipeline_mode = #tpu.pipeline_mode<synchronous>, transform_indices = @transform_2, window_bounds = array<i64: 8, 8>}, {pipeline_mode = #tpu.pipeline_mode<synchronous>, transform_indices = @transform_3, window_bounds = array<i64: 8, 9>}, {pipeline_mode = #tpu.pipeline_mode<synchronous>, transform_indices = @transform_4, window_bounds = array<i64: 8, 8>}, {transform_indices = @transform_5, window_bounds = array<i64: 1, 8, 256>}]} {
    %cst = arith.constant 0.000000e+00 : f32
    %0 = vector.broadcast %cst : f32 to vector<8x18x18xf32>
    %c0 = arith.constant 0 : index
    %c0_0 = arith.constant 0 : index
    %c0_1 = arith.constant 0 : index
    %1 = vector.load %arg7[%c0, %c0_0, %c0_1] : memref<8x18x18xf32, #tpu.memory_space<vmem>>, vector<8x18x18xf32>
    tpu.vector_store %arg7[%c0, %c0_0, %c0_1], %0 {strides = array<i32>} : memref<8x18x18xf32, #tpu.memory_space<vmem>>, vector<8x18x18xf32>,
    %c0_2 = arith.constant 0 : index
    %c0_3 = arith.constant 0 : index
    %c0_4 = arith.constant 0 : index
    %c0_5 = arith.constant 0 : index
    %2 = vector.load %arg1[%c0_2, %c0_3, %c0_4, %c0_5] : memref<1x8x16x16xf32, #tpu.memory_space<vmem>>, vector<1x8x16x16xf32>
    %3 = vector.shape_cast %2 : vector<1x8x16x16xf32> to vector<8x16x16xf32>
    %cst_6 = arith.constant 0.000000e+00 : f32
    %4 = vector.broadcast %cst_6 : f32 to vector<8x16x16xf32>
    %5 = arith.maximumf %3, %4 : vector<8x16x16xf32>
    %c0_7 = arith.constant 0 : index
    %c1 = arith.constant 1 : index
    %c1_8 = arith.constant 1 : index
    %6 = vector.load %arg7[%c0_7, %c1, %c1_8] : memref<8x18x18xf32, #tpu.memory_space<vmem>>, vector<8x16x16xf32>
    tpu.vector_store %arg7[%c0_7, %c1, %c1_8], %5 {strides = array<i32>} : memref<8x18x18xf32, #tpu.memory_space<vmem>>, vector<8x16x16xf32>,
    %c0_9 = arith.constant 0 : index
    %c0_10 = arith.constant 0 : index
    %7 = vector.load %arg2[%c0_9, %c0_10] : memref<8x9xf32, #tpu.memory_space<vmem>>, vector<8x9xf32>
    %8 = vector.extract_strided_slice %7 {offsets = [0, 0], sizes = [8, 1], strides = [1, 1]} : vector<8x9xf32> to vector<8x1xf32>
    %9 = vector.extract_strided_slice %7 {offsets = [0, 1], sizes = [8, 1], strides = [1, 1]} : vector<8x9xf32> to vector<8x1xf32>
    %10 = vector.extract_strided_slice %7 {offsets = [0, 2], sizes = [8, 1], strides = [1, 1]} : vector<8x9xf32> to vector<8x1xf32>
    %11 = vector.extract_strided_slice %7 {offsets = [0, 3], sizes = [8, 1], strides = [1, 1]} : vector<8x9xf32> to vector<8x1xf32>
    %12 = vector.extract_strided_slice %7 {offsets = [0, 4], sizes = [8, 1], strides = [1, 1]} : vector<8x9xf32> to vector<8x1xf32>
    %13 = vector.extract_strided_slice %7 {offsets = [0, 5], sizes = [8, 1], strides = [1, 1]} : vector<8x9xf32> to vector<8x1xf32>
    %14 = vector.extract_strided_slice %7 {offsets = [0, 6], sizes = [8, 1], strides = [1, 1]} : vector<8x9xf32> to vector<8x1xf32>
    %15 = vector.extract_strided_slice %7 {offsets = [0, 7], sizes = [8, 1], strides = [1, 1]} : vector<8x9xf32> to vector<8x1xf32>
    %16 = vector.extract_strided_slice %7 {offsets = [0, 8], sizes = [8, 1], strides = [1, 1]} : vector<8x9xf32> to vector<8x1xf32>
    %c0_11 = arith.constant 0 : index
    %c0_12 = arith.constant 0 : index
    %c0_13 = arith.constant 0 : index
    %17 = vector.load %arg7[%c0_11, %c0_12, %c0_13] : memref<8x18x18xf32, #tpu.memory_space<vmem>>, vector<8x1x18xf32>
    %18 = vector.shape_cast %17 : vector<8x1x18xf32> to vector<8x18xf32>
    %c0_14 = arith.constant 0 : index
    %c1_15 = arith.constant 1 : index
    %c0_16 = arith.constant 0 : index
    %19 = vector.load %arg7[%c0_14, %c1_15, %c0_16] : memref<8x18x18xf32, #tpu.memory_space<vmem>>, vector<8x1x18xf32>
    %20 = vector.shape_cast %19 : vector<8x1x18xf32> to vector<8x18xf32>
    %c0_17 = arith.constant 0 : index
    %c2 = arith.constant 2 : index
    %c0_18 = arith.constant 0 : index
    %21 = vector.load %arg7[%c0_17, %c2, %c0_18] : memref<8x18x18xf32, #tpu.memory_space<vmem>>, vector<8x1x18xf32>
    %22 = vector.shape_cast %21 : vector<8x1x18xf32> to vector<8x18xf32>
    %cst_19 = arith.constant 0.000000e+00 : f32
    %23 = vector.broadcast %cst_19 : f32 to vector<8x16xf32>
    %24 = vector.extract_strided_slice %18 {offsets = [0, 0], sizes = [8, 16], strides = [1, 1]} : vector<8x18xf32> to vector<8x16xf32>
    %25 = vector.broadcast %8 : vector<8x1xf32> to vector<8x16xf32>
    %26 = arith.mulf %25, %24 : vector<8x16xf32>
    %27 = arith.addf %23, %26 : vector<8x16xf32>
    %28 = vector.extract_strided_slice %18 {offsets = [0, 1], sizes = [8, 16], strides = [1, 1]} : vector<8x18xf32> to vector<8x16xf32>
    %29 = vector.broadcast %9 : vector<8x1xf32> to vector<8x16xf32>
    %30 = arith.mulf %29, %28 : vector<8x16xf32>
    %31 = arith.addf %27, %30 : vector<8x16xf32>
    %32 = vector.extract_strided_slice %18 {offsets = [0, 2], sizes = [8, 16], strides = [1, 1]} : vector<8x18xf32> to vector<8x16xf32>
    %33 = vector.broadcast %10 : vector<8x1xf32> to vector<8x16xf32>
    %34 = arith.mulf %33, %32 : vector<8x16xf32>
    %35 = arith.addf %31, %34 : vector<8x16xf32>
    %36 = vector.extract_strided_slice %20 {offsets = [0, 0], sizes = [8, 16], strides = [1, 1]} : vector<8x18xf32> to vector<8x16xf32>
    %37 = vector.broadcast %11 : vector<8x1xf32> to vector<8x16xf32>
    %38 = arith.mulf %37, %36 : vector<8x16xf32>
    %39 = arith.addf %35, %38 : vector<8x16xf32>
    %40 = vector.extract_strided_slice %20 {offsets = [0, 1], sizes = [8, 16], strides = [1, 1]} : vector<8x18xf32> to vector<8x16xf32>
    %41 = vector.broadcast %12 : vector<8x1xf32> to vector<8x16xf32>
    %42 = arith.mulf %41, %40 : vector<8x16xf32>
    %43 = arith.addf %39, %42 : vector<8x16xf32>
    %44 = vector.extract_strided_slice %20 {offsets = [0, 2], sizes = [8, 16], strides = [1, 1]} : vector<8x18xf32> to vector<8x16xf32>
    %45 = vector.broadcast %13 : vector<8x1xf32> to vector<8x16xf32>
    %46 = arith.mulf %45, %44 : vector<8x16xf32>
    %47 = arith.addf %43, %46 : vector<8x16xf32>
    %48 = vector.extract_strided_slice %22 {offsets = [0, 0], sizes = [8, 16], strides = [1, 1]} : vector<8x18xf32> to vector<8x16xf32>
    %49 = vector.broadcast %14 : vector<8x1xf32> to vector<8x16xf32>
    %50 = arith.mulf %49, %48 : vector<8x16xf32>
    %51 = arith.addf %47, %50 : vector<8x16xf32>
    %52 = vector.extract_strided_slice %22 {offsets = [0, 1], sizes = [8, 16], strides = [1, 1]} : vector<8x18xf32> to vector<8x16xf32>
    %53 = vector.broadcast %15 : vector<8x1xf32> to vector<8x16xf32>
    %54 = arith.mulf %53, %52 : vector<8x16xf32>
    %55 = arith.addf %51, %54 : vector<8x16xf32>
    %56 = vector.extract_strided_slice %22 {offsets = [0, 2], sizes = [8, 16], strides = [1, 1]} : vector<8x18xf32> to vector<8x16xf32>
    %57 = vector.broadcast %16 : vector<8x1xf32> to vector<8x16xf32>
    %58 = arith.mulf %57, %56 : vector<8x16xf32>
    %59 = arith.addf %55, %58 : vector<8x16xf32>
    %c0_20 = arith.constant 0 : index
    %c0_21 = arith.constant 0 : index
    %60 = vector.load %arg8[%c0_20, %c0_21] : memref<8x256xf32, #tpu.memory_space<vmem>>, vector<8x16xf32>
    tpu.vector_store %arg8[%c0_20, %c0_21], %59 {strides = array<i32>} : memref<8x256xf32, #tpu.memory_space<vmem>>, vector<8x16xf32>,
    %c0_22 = arith.constant 0 : index
    %c1_23 = arith.constant 1 : index
    %c0_24 = arith.constant 0 : index
    %61 = vector.load %arg7[%c0_22, %c1_23, %c0_24] : memref<8x18x18xf32, #tpu.memory_space<vmem>>, vector<8x1x18xf32>
    %62 = vector.shape_cast %61 : vector<8x1x18xf32> to vector<8x18xf32>
    %c0_25 = arith.constant 0 : index
    %c2_26 = arith.constant 2 : index
    %c0_27 = arith.constant 0 : index
    %63 = vector.load %arg7[%c0_25, %c2_26, %c0_27] : memref<8x18x18xf32, #tpu.memory_space<vmem>>, vector<8x1x18xf32>
    %64 = vector.shape_cast %63 : vector<8x1x18xf32> to vector<8x18xf32>
    %c0_28 = arith.constant 0 : index
    %c3 = arith.constant 3 : index
    %c0_29 = arith.constant 0 : index
    %65 = vector.load %arg7[%c0_28, %c3, %c0_29] : memref<8x18x18xf32, #tpu.memory_space<vmem>>, vector<8x1x18xf32>
    %66 = vector.shape_cast %65 : vector<8x1x18xf32> to vector<8x18xf32>
    %cst_30 = arith.constant 0.000000e+00 : f32
    %67 = vector.broadcast %cst_30 : f32 to vector<8x16xf32>
    %68 = vector.extract_strided_slice %62 {offsets = [0, 0], sizes = [8, 16], strides = [1, 1]} : vector<8x18xf32> to vector<8x16xf32>
    %69 = vector.broadcast %8 : vector<8x1xf32> to vector<8x16xf32>
    %70 = arith.mulf %69, %68 : vector<8x16xf32>
    %71 = arith.addf %67, %70 : vector<8x16xf32>
    %72 = vector.extract_strided_slice %62 {offsets = [0, 1], sizes = [8, 16], strides = [1, 1]} : vector<8x18xf32> to vector<8x16xf32>
    %73 = vector.broadcast %9 : vector<8x1xf32> to vector<8x16xf32>
    %74 = arith.mulf %73, %72 : vector<8x16xf32>
    %75 = arith.addf %71, %74 : vector<8x16xf32>
    %76 = vector.extract_strided_slice %62 {offsets = [0, 2], sizes = [8, 16], strides = [1, 1]} : vector<8x18xf32> to vector<8x16xf32>
    %77 = vector.broadcast %10 : vector<8x1xf32> to vector<8x16xf32>
    %78 = arith.mulf %77, %76 : vector<8x16xf32>
    %79 = arith.addf %75, %78 : vector<8x16xf32>
    %80 = vector.extract_strided_slice %64 {offsets = [0, 0], sizes = [8, 16], strides = [1, 1]} : vector<8x18xf32> to vector<8x16xf32>
    %81 = vector.broadcast %11 : vector<8x1xf32> to vector<8x16xf32>
    %82 = arith.mulf %81, %80 : vector<8x16xf32>
    %83 = arith.addf %79, %82 : vector<8x16xf32>
    %84 = vector.extract_strided_slice %64 {offsets = [0, 1], sizes = [8, 16], strides = [1, 1]} : vector<8x18xf32> to vector<8x16xf32>
    %85 = vector.broadcast %12 : vector<8x1xf32> to vector<8x16xf32>
    %86 = arith.mulf %85, %84 : vector<8x16xf32>
    %87 = arith.addf %83, %86 : vector<8x16xf32>
    %88 = vector.extract_strided_slice %64 {offsets = [0, 2], sizes = [8, 16], strides = [1, 1]} : vector<8x18xf32> to vector<8x16xf32>
    %89 = vector.broadcast %13 : vector<8x1xf32> to vector<8x16xf32>
    %90 = arith.mulf %89, %88 : vector<8x16xf32>
    %91 = arith.addf %87, %90 : vector<8x16xf32>
    %92 = vector.extract_strided_slice %66 {offsets = [0, 0], sizes = [8, 16], strides = [1, 1]} : vector<8x18xf32> to vector<8x16xf32>
    %93 = vector.broadcast %14 : vector<8x1xf32> to vector<8x16xf32>
    %94 = arith.mulf %93, %92 : vector<8x16xf32>
    %95 = arith.addf %91, %94 : vector<8x16xf32>
    %96 = vector.extract_strided_slice %66 {offsets = [0, 1], sizes = [8, 16], strides = [1, 1]} : vector<8x18xf32> to vector<8x16xf32>
    %97 = vector.broadcast %15 : vector<8x1xf32> to vector<8x16xf32>
    %98 = arith.mulf %97, %96 : vector<8x16xf32>
    %99 = arith.addf %95, %98 : vector<8x16xf32>
    %100 = vector.extract_strided_slice %66 {offsets = [0, 2], sizes = [8, 16], strides = [1, 1]} : vector<8x18xf32> to vector<8x16xf32>
    %101 = vector.broadcast %16 : vector<8x1xf32> to vector<8x16xf32>
    %102 = arith.mulf %101, %100 : vector<8x16xf32>
    %103 = arith.addf %99, %102 : vector<8x16xf32>
    %c0_31 = arith.constant 0 : index
    %c16 = arith.constant 16 : index
    %104 = vector.load %arg8[%c0_31, %c16] : memref<8x256xf32, #tpu.memory_space<vmem>>, vector<8x16xf32>
    tpu.vector_store %arg8[%c0_31, %c16], %103 {strides = array<i32>} : memref<8x256xf32, #tpu.memory_space<vmem>>, vector<8x16xf32>,
    %c0_32 = arith.constant 0 : index
    %c2_33 = arith.constant 2 : index
    %c0_34 = arith.constant 0 : index
    %105 = vector.load %arg7[%c0_32, %c2_33, %c0_34] : memref<8x18x18xf32, #tpu.memory_space<vmem>>, vector<8x1x18xf32>
    %106 = vector.shape_cast %105 : vector<8x1x18xf32> to vector<8x18xf32>
    %c0_35 = arith.constant 0 : index
    %c3_36 = arith.constant 3 : index
    %c0_37 = arith.constant 0 : index
    %107 = vector.load %arg7[%c0_35, %c3_36, %c0_37] : memref<8x18x18xf32, #tpu.memory_space<vmem>>, vector<8x1x18xf32>
    %108 = vector.shape_cast %107 : vector<8x1x18xf32> to vector<8x18xf32>
    %c0_38 = arith.constant 0 : index
    %c4 = arith.constant 4 : index
    %c0_39 = arith.constant 0 : index
    %109 = vector.load %arg7[%c0_38, %c4, %c0_39] : memref<8x18x18xf32, #tpu.memory_space<vmem>>, vector<8x1x18xf32>
    %110 = vector.shape_cast %109 : vector<8x1x18xf32> to vector<8x18xf32>
    %cst_40 = arith.constant 0.000000e+00 : f32
    %111 = vector.broadcast %cst_40 : f32 to vector<8x16xf32>
    %112 = vector.extract_strided_slice %106 {offsets = [0, 0], sizes = [8, 16], strides = [1, 1]} : vector<8x18xf32> to vector<8x16xf32>
    %113 = vector.broadcast %8 : vector<8x1xf32> to vector<8x16xf32>
    %114 = arith.mulf %113, %112 : vector<8x16xf32>
    %115 = arith.addf %111, %114 : vector<8x16xf32>
    %116 = vector.extract_strided_slice %106 {offsets = [0, 1], sizes = [8, 16], strides = [1, 1]} : vector<8x18xf32> to vector<8x16xf32>
    %117 = vector.broadcast %9 : vector<8x1xf32> to vector<8x16xf32>
    %118 = arith.mulf %117, %116 : vector<8x16xf32>
    %119 = arith.addf %115, %118 : vector<8x16xf32>
    %120 = vector.extract_strided_slice %106 {offsets = [0, 2], sizes = [8, 16], strides = [1, 1]} : vector<8x18xf32> to vector<8x16xf32>
    %121 = vector.broadcast %10 : vector<8x1xf32> to vector<8x16xf32>
    %122 = arith.mulf %121, %120 : vector<8x16xf32>
    %123 = arith.addf %119, %122 : vector<8x16xf32>
    %124 = vector.extract_strided_slice %108 {offsets = [0, 0], sizes = [8, 16], strides = [1, 1]} : vector<8x18xf32> to vector<8x16xf32>
    %125 = vector.broadcast %11 : vector<8x1xf32> to vector<8x16xf32>
    %126 = arith.mulf %125, %124 : vector<8x16xf32>
    %127 = arith.addf %123, %126 : vector<8x16xf32>
    %128 = vector.extract_strided_slice %108 {offsets = [0, 1], sizes = [8, 16], strides = [1, 1]} : vector<8x18xf32> to vector<8x16xf32>
    %129 = vector.broadcast %12 : vector<8x1xf32> to vector<8x16xf32>
    %130 = arith.mulf %129, %128 : vector<8x16xf32>
    %131 = arith.addf %127, %130 : vector<8x16xf32>
    %132 = vector.extract_strided_slice %108 {offsets = [0, 2], sizes = [8, 16], strides = [1, 1]} : vector<8x18xf32> to vector<8x16xf32>
    %133 = vector.broadcast %13 : vector<8x1xf32> to vector<8x16xf32>
    %134 = arith.mulf %133, %132 : vector<8x16xf32>
    %135 = arith.addf %131, %134 : vector<8x16xf32>
    %136 = vector.extract_strided_slice %110 {offsets = [0, 0], sizes = [8, 16], strides = [1, 1]} : vector<8x18xf32> to vector<8x16xf32>
    %137 = vector.broadcast %14 : vector<8x1xf32> to vector<8x16xf32>
    %138 = arith.mulf %137, %136 : vector<8x16xf32>
    %139 = arith.addf %135, %138 : vector<8x16xf32>
    %140 = vector.extract_strided_slice %110 {offsets = [0, 1], sizes = [8, 16], strides = [1, 1]} : vector<8x18xf32> to vector<8x16xf32>
    %141 = vector.broadcast %15 : vector<8x1xf32> to vector<8x16xf32>
    %142 = arith.mulf %141, %140 : vector<8x16xf32>
    %143 = arith.addf %139, %142 : vector<8x16xf32>
    %144 = vector.extract_strided_slice %110 {offsets = [0, 2], sizes = [8, 16], strides = [1, 1]} : vector<8x18xf32> to vector<8x16xf32>
    %145 = vector.broadcast %16 : vector<8x1xf32> to vector<8x16xf32>
    %146 = arith.mulf %145, %144 : vector<8x16xf32>
    %147 = arith.addf %143, %146 : vector<8x16xf32>
    %c0_41 = arith.constant 0 : index
    %c32 = arith.constant 32 : index
    %148 = vector.load %arg8[%c0_41, %c32] : memref<8x256xf32, #tpu.memory_space<vmem>>, vector<8x16xf32>
    tpu.vector_store %arg8[%c0_41, %c32], %147 {strides = array<i32>} : memref<8x256xf32, #tpu.memory_space<vmem>>, vector<8x16xf32>,
    %c0_42 = arith.constant 0 : index
    %c3_43 = arith.constant 3 : index
    %c0_44 = arith.constant 0 : index
    %149 = vector.load %arg7[%c0_42, %c3_43, %c0_44] : memref<8x18x18xf32, #tpu.memory_space<vmem>>, vector<8x1x18xf32>
    %150 = vector.shape_cast %149 : vector<8x1x18xf32> to vector<8x18xf32>
    %c0_45 = arith.constant 0 : index
    %c4_46 = arith.constant 4 : index
    %c0_47 = arith.constant 0 : index
    %151 = vector.load %arg7[%c0_45, %c4_46, %c0_47] : memref<8x18x18xf32, #tpu.memory_space<vmem>>, vector<8x1x18xf32>
    %152 = vector.shape_cast %151 : vector<8x1x18xf32> to vector<8x18xf32>
    %c0_48 = arith.constant 0 : index
    %c5 = arith.constant 5 : index
    %c0_49 = arith.constant 0 : index
    %153 = vector.load %arg7[%c0_48, %c5, %c0_49] : memref<8x18x18xf32, #tpu.memory_space<vmem>>, vector<8x1x18xf32>
    %154 = vector.shape_cast %153 : vector<8x1x18xf32> to vector<8x18xf32>
    %cst_50 = arith.constant 0.000000e+00 : f32
    %155 = vector.broadcast %cst_50 : f32 to vector<8x16xf32>
    %156 = vector.extract_strided_slice %150 {offsets = [0, 0], sizes = [8, 16], strides = [1, 1]} : vector<8x18xf32> to vector<8x16xf32>
    %157 = vector.broadcast %8 : vector<8x1xf32> to vector<8x16xf32>
    %158 = arith.mulf %157, %156 : vector<8x16xf32>
    %159 = arith.addf %155, %158 : vector<8x16xf32>
    %160 = vector.extract_strided_slice %150 {offsets = [0, 1], sizes = [8, 16], strides = [1, 1]} : vector<8x18xf32> to vector<8x16xf32>
    %161 = vector.broadcast %9 : vector<8x1xf32> to vector<8x16xf32>
    %162 = arith.mulf %161, %160 : vector<8x16xf32>
    %163 = arith.addf %159, %162 : vector<8x16xf32>
    %164 = vector.extract_strided_slice %150 {offsets = [0, 2], sizes = [8, 16], strides = [1, 1]} : vector<8x18xf32> to vector<8x16xf32>
    %165 = vector.broadcast %10 : vector<8x1xf32> to vector<8x16xf32>
    %166 = arith.mulf %165, %164 : vector<8x16xf32>
    %167 = arith.addf %163, %166 : vector<8x16xf32>
    %168 = vector.extract_strided_slice %152 {offsets = [0, 0], sizes = [8, 16], strides = [1, 1]} : vector<8x18xf32> to vector<8x16xf32>
    %169 = vector.broadcast %11 : vector<8x1xf32> to vector<8x16xf32>
    %170 = arith.mulf %169, %168 : vector<8x16xf32>
    %171 = arith.addf %167, %170 : vector<8x16xf32>
    %172 = vector.extract_strided_slice %152 {offsets = [0, 1], sizes = [8, 16], strides = [1, 1]} : vector<8x18xf32> to vector<8x16xf32>
    %173 = vector.broadcast %12 : vector<8x1xf32> to vector<8x16xf32>
    %174 = arith.mulf %173, %172 : vector<8x16xf32>
    %175 = arith.addf %171, %174 : vector<8x16xf32>
    %176 = vector.extract_strided_slice %152 {offsets = [0, 2], sizes = [8, 16], strides = [1, 1]} : vector<8x18xf32> to vector<8x16xf32>
    %177 = vector.broadcast %13 : vector<8x1xf32> to vector<8x16xf32>
    %178 = arith.mulf %177, %176 : vector<8x16xf32>
    %179 = arith.addf %175, %178 : vector<8x16xf32>
    %180 = vector.extract_strided_slice %154 {offsets = [0, 0], sizes = [8, 16], strides = [1, 1]} : vector<8x18xf32> to vector<8x16xf32>
    %181 = vector.broadcast %14 : vector<8x1xf32> to vector<8x16xf32>
    %182 = arith.mulf %181, %180 : vector<8x16xf32>
    %183 = arith.addf %179, %182 : vector<8x16xf32>
    %184 = vector.extract_strided_slice %154 {offsets = [0, 1], sizes = [8, 16], strides = [1, 1]} : vector<8x18xf32> to vector<8x16xf32>
    %185 = vector.broadcast %15 : vector<8x1xf32> to vector<8x16xf32>
    %186 = arith.mulf %185, %184 : vector<8x16xf32>
    %187 = arith.addf %183, %186 : vector<8x16xf32>
    %188 = vector.extract_strided_slice %154 {offsets = [0, 2], sizes = [8, 16], strides = [1, 1]} : vector<8x18xf32> to vector<8x16xf32>
    %189 = vector.broadcast %16 : vector<8x1xf32> to vector<8x16xf32>
    %190 = arith.mulf %189, %188 : vector<8x16xf32>
    %191 = arith.addf %187, %190 : vector<8x16xf32>
    %c0_51 = arith.constant 0 : index
    %c48 = arith.constant 48 : index
    %192 = vector.load %arg8[%c0_51, %c48] : memref<8x256xf32, #tpu.memory_space<vmem>>, vector<8x16xf32>
    tpu.vector_store %arg8[%c0_51, %c48], %191 {strides = array<i32>} : memref<8x256xf32, #tpu.memory_space<vmem>>, vector<8x16xf32>,
    %c0_52 = arith.constant 0 : index
    %c4_53 = arith.constant 4 : index
    %c0_54 = arith.constant 0 : index
    %193 = vector.load %arg7[%c0_52, %c4_53, %c0_54] : memref<8x18x18xf32, #tpu.memory_space<vmem>>, vector<8x1x18xf32>
    %194 = vector.shape_cast %193 : vector<8x1x18xf32> to vector<8x18xf32>
    %c0_55 = arith.constant 0 : index
    %c5_56 = arith.constant 5 : index
    %c0_57 = arith.constant 0 : index
    %195 = vector.load %arg7[%c0_55, %c5_56, %c0_57] : memref<8x18x18xf32, #tpu.memory_space<vmem>>, vector<8x1x18xf32>
    %196 = vector.shape_cast %195 : vector<8x1x18xf32> to vector<8x18xf32>
    %c0_58 = arith.constant 0 : index
    %c6 = arith.constant 6 : index
    %c0_59 = arith.constant 0 : index
    %197 = vector.load %arg7[%c0_58, %c6, %c0_59] : memref<8x18x18xf32, #tpu.memory_space<vmem>>, vector<8x1x18xf32>
    %198 = vector.shape_cast %197 : vector<8x1x18xf32> to vector<8x18xf32>
    %cst_60 = arith.constant 0.000000e+00 : f32
    %199 = vector.broadcast %cst_60 : f32 to vector<8x16xf32>
    %200 = vector.extract_strided_slice %194 {offsets = [0, 0], sizes = [8, 16], strides = [1, 1]} : vector<8x18xf32> to vector<8x16xf32>
    %201 = vector.broadcast %8 : vector<8x1xf32> to vector<8x16xf32>
    %202 = arith.mulf %201, %200 : vector<8x16xf32>
    %203 = arith.addf %199, %202 : vector<8x16xf32>
    %204 = vector.extract_strided_slice %194 {offsets = [0, 1], sizes = [8, 16], strides = [1, 1]} : vector<8x18xf32> to vector<8x16xf32>
    %205 = vector.broadcast %9 : vector<8x1xf32> to vector<8x16xf32>
    %206 = arith.mulf %205, %204 : vector<8x16xf32>
    %207 = arith.addf %203, %206 : vector<8x16xf32>
    %208 = vector.extract_strided_slice %194 {offsets = [0, 2], sizes = [8, 16], strides = [1, 1]} : vector<8x18xf32> to vector<8x16xf32>
    %209 = vector.broadcast %10 : vector<8x1xf32> to vector<8x16xf32>
    %210 = arith.mulf %209, %208 : vector<8x16xf32>
    %211 = arith.addf %207, %210 : vector<8x16xf32>
    %212 = vector.extract_strided_slice %196 {offsets = [0, 0], sizes = [8, 16], strides = [1, 1]} : vector<8x18xf32> to vector<8x16xf32>
    %213 = vector.broadcast %11 : vector<8x1xf32> to vector<8x16xf32>
    %214 = arith.mulf %213, %212 : vector<8x16xf32>
    %215 = arith.addf %211, %214 : vector<8x16xf32>
    %216 = vector.extract_strided_slice %196 {offsets = [0, 1], sizes = [8, 16], strides = [1, 1]} : vector<8x18xf32> to vector<8x16xf32>
    %217 = vector.broadcast %12 : vector<8x1xf32> to vector<8x16xf32>
    %218 = arith.mulf %217, %216 : vector<8x16xf32>
    %219 = arith.addf %215, %218 : vector<8x16xf32>
    %220 = vector.extract_strided_slice %196 {offsets = [0, 2], sizes = [8, 16], strides = [1, 1]} : vector<8x18xf32> to vector<8x16xf32>
    %221 = vector.broadcast %13 : vector<8x1xf32> to vector<8x16xf32>
    %222 = arith.mulf %221, %220 : vector<8x16xf32>
    %223 = arith.addf %219, %222 : vector<8x16xf32>
    %224 = vector.extract_strided_slice %198 {offsets = [0, 0], sizes = [8, 16], strides = [1, 1]} : vector<8x18xf32> to vector<8x16xf32>
    %225 = vector.broadcast %14 : vector<8x1xf32> to vector<8x16xf32>
    %226 = arith.mulf %225, %224 : vector<8x16xf32>
    %227 = arith.addf %223, %226 : vector<8x16xf32>
    %228 = vector.extract_strided_slice %198 {offsets = [0, 1], sizes = [8, 16], strides = [1, 1]} : vector<8x18xf32> to vector<8x16xf32>
    %229 = vector.broadcast %15 : vector<8x1xf32> to vector<8x16xf32>
    %230 = arith.mulf %229, %228 : vector<8x16xf32>
    %231 = arith.addf %227, %230 : vector<8x16xf32>
    %232 = vector.extract_strided_slice %198 {offsets = [0, 2], sizes = [8, 16], strides = [1, 1]} : vector<8x18xf32> to vector<8x16xf32>
    %233 = vector.broadcast %16 : vector<8x1xf32> to vector<8x16xf32>
    %234 = arith.mulf %233, %232 : vector<8x16xf32>
    %235 = arith.addf %231, %234 : vector<8x16xf32>
    %c0_61 = arith.constant 0 : index
    %c64 = arith.constant 64 : index
    %236 = vector.load %arg8[%c0_61, %c64] : memref<8x256xf32, #tpu.memory_space<vmem>>, vector<8x16xf32>
    tpu.vector_store %arg8[%c0_61, %c64], %235 {strides = array<i32>} : memref<8x256xf32, #tpu.memory_space<vmem>>, vector<8x16xf32>,
    %c0_62 = arith.constant 0 : index
    %c5_63 = arith.constant 5 : index
    %c0_64 = arith.constant 0 : index
    %237 = vector.load %arg7[%c0_62, %c5_63, %c0_64] : memref<8x18x18xf32, #tpu.memory_space<vmem>>, vector<8x1x18xf32>
    %238 = vector.shape_cast %237 : vector<8x1x18xf32> to vector<8x18xf32>
    %c0_65 = arith.constant 0 : index
    %c6_66 = arith.constant 6 : index
    %c0_67 = arith.constant 0 : index
    %239 = vector.load %arg7[%c0_65, %c6_66, %c0_67] : memref<8x18x18xf32, #tpu.memory_space<vmem>>, vector<8x1x18xf32>
    %240 = vector.shape_cast %239 : vector<8x1x18xf32> to vector<8x18xf32>
    %c0_68 = arith.constant 0 : index
    %c7 = arith.constant 7 : index
    %c0_69 = arith.constant 0 : index
    %241 = vector.load %arg7[%c0_68, %c7, %c0_69] : memref<8x18x18xf32, #tpu.memory_space<vmem>>, vector<8x1x18xf32>
    %242 = vector.shape_cast %241 : vector<8x1x18xf32> to vector<8x18xf32>
    %cst_70 = arith.constant 0.000000e+00 : f32
    %243 = vector.broadcast %cst_70 : f32 to vector<8x16xf32>
    %244 = vector.extract_strided_slice %238 {offsets = [0, 0], sizes = [8, 16], strides = [1, 1]} : vector<8x18xf32> to vector<8x16xf32>
    %245 = vector.broadcast %8 : vector<8x1xf32> to vector<8x16xf32>
    %246 = arith.mulf %245, %244 : vector<8x16xf32>
    %247 = arith.addf %243, %246 : vector<8x16xf32>
    %248 = vector.extract_strided_slice %238 {offsets = [0, 1], sizes = [8, 16], strides = [1, 1]} : vector<8x18xf32> to vector<8x16xf32>
    %249 = vector.broadcast %9 : vector<8x1xf32> to vector<8x16xf32>
    %250 = arith.mulf %249, %248 : vector<8x16xf32>
    %251 = arith.addf %247, %250 : vector<8x16xf32>
    %252 = vector.extract_strided_slice %238 {offsets = [0, 2], sizes = [8, 16], strides = [1, 1]} : vector<8x18xf32> to vector<8x16xf32>
    %253 = vector.broadcast %10 : vector<8x1xf32> to vector<8x16xf32>
    %254 = arith.mulf %253, %252 : vector<8x16xf32>
    %255 = arith.addf %251, %254 : vector<8x16xf32>
    %256 = vector.extract_strided_slice %240 {offsets = [0, 0], sizes = [8, 16], strides = [1, 1]} : vector<8x18xf32> to vector<8x16xf32>
    %257 = vector.broadcast %11 : vector<8x1xf32> to vector<8x16xf32>
    %258 = arith.mulf %257, %256 : vector<8x16xf32>
    %259 = arith.addf %255, %258 : vector<8x16xf32>
    %260 = vector.extract_strided_slice %240 {offsets = [0, 1], sizes = [8, 16], strides = [1, 1]} : vector<8x18xf32> to vector<8x16xf32>
    %261 = vector.broadcast %12 : vector<8x1xf32> to vector<8x16xf32>
    %262 = arith.mulf %261, %260 : vector<8x16xf32>
    %263 = arith.addf %259, %262 : vector<8x16xf32>
    %264 = vector.extract_strided_slice %240 {offsets = [0, 2], sizes = [8, 16], strides = [1, 1]} : vector<8x18xf32> to vector<8x16xf32>
    %265 = vector.broadcast %13 : vector<8x1xf32> to vector<8x16xf32>
    %266 = arith.mulf %265, %264 : vector<8x16xf32>
    %267 = arith.addf %263, %266 : vector<8x16xf32>
    %268 = vector.extract_strided_slice %242 {offsets = [0, 0], sizes = [8, 16], strides = [1, 1]} : vector<8x18xf32> to vector<8x16xf32>
    %269 = vector.broadcast %14 : vector<8x1xf32> to vector<8x16xf32>
    %270 = arith.mulf %269, %268 : vector<8x16xf32>
    %271 = arith.addf %267, %270 : vector<8x16xf32>
    %272 = vector.extract_strided_slice %242 {offsets = [0, 1], sizes = [8, 16], strides = [1, 1]} : vector<8x18xf32> to vector<8x16xf32>
    %273 = vector.broadcast %15 : vector<8x1xf32> to vector<8x16xf32>
    %274 = arith.mulf %273, %272 : vector<8x16xf32>
    %275 = arith.addf %271, %274 : vector<8x16xf32>
    %276 = vector.extract_strided_slice %242 {offsets = [0, 2], sizes = [8, 16], strides = [1, 1]} : vector<8x18xf32> to vector<8x16xf32>
    %277 = vector.broadcast %16 : vector<8x1xf32> to vector<8x16xf32>
    %278 = arith.mulf %277, %276 : vector<8x16xf32>
    %279 = arith.addf %275, %278 : vector<8x16xf32>
    %c0_71 = arith.constant 0 : index
    %c80 = arith.constant 80 : index
    %280 = vector.load %arg8[%c0_71, %c80] : memref<8x256xf32, #tpu.memory_space<vmem>>, vector<8x16xf32>
    tpu.vector_store %arg8[%c0_71, %c80], %279 {strides = array<i32>} : memref<8x256xf32, #tpu.memory_space<vmem>>, vector<8x16xf32>,
    %c0_72 = arith.constant 0 : index
    %c6_73 = arith.constant 6 : index
    %c0_74 = arith.constant 0 : index
    %281 = vector.load %arg7[%c0_72, %c6_73, %c0_74] : memref<8x18x18xf32, #tpu.memory_space<vmem>>, vector<8x1x18xf32>
    %282 = vector.shape_cast %281 : vector<8x1x18xf32> to vector<8x18xf32>
    %c0_75 = arith.constant 0 : index
    %c7_76 = arith.constant 7 : index
    %c0_77 = arith.constant 0 : index
    %283 = vector.load %arg7[%c0_75, %c7_76, %c0_77] : memref<8x18x18xf32, #tpu.memory_space<vmem>>, vector<8x1x18xf32>
    %284 = vector.shape_cast %283 : vector<8x1x18xf32> to vector<8x18xf32>
    %c0_78 = arith.constant 0 : index
    %c8 = arith.constant 8 : index
    %c0_79 = arith.constant 0 : index
    %285 = vector.load %arg7[%c0_78, %c8, %c0_79] : memref<8x18x18xf32, #tpu.memory_space<vmem>>, vector<8x1x18xf32>
    %286 = vector.shape_cast %285 : vector<8x1x18xf32> to vector<8x18xf32>
    %cst_80 = arith.constant 0.000000e+00 : f32
    %287 = vector.broadcast %cst_80 : f32 to vector<8x16xf32>
    %288 = vector.extract_strided_slice %282 {offsets = [0, 0], sizes = [8, 16], strides = [1, 1]} : vector<8x18xf32> to vector<8x16xf32>
    %289 = vector.broadcast %8 : vector<8x1xf32> to vector<8x16xf32>
    %290 = arith.mulf %289, %288 : vector<8x16xf32>
    %291 = arith.addf %287, %290 : vector<8x16xf32>
    %292 = vector.extract_strided_slice %282 {offsets = [0, 1], sizes = [8, 16], strides = [1, 1]} : vector<8x18xf32> to vector<8x16xf32>
    %293 = vector.broadcast %9 : vector<8x1xf32> to vector<8x16xf32>
    %294 = arith.mulf %293, %292 : vector<8x16xf32>
    %295 = arith.addf %291, %294 : vector<8x16xf32>
    %296 = vector.extract_strided_slice %282 {offsets = [0, 2], sizes = [8, 16], strides = [1, 1]} : vector<8x18xf32> to vector<8x16xf32>
    %297 = vector.broadcast %10 : vector<8x1xf32> to vector<8x16xf32>
    %298 = arith.mulf %297, %296 : vector<8x16xf32>
    %299 = arith.addf %295, %298 : vector<8x16xf32>
    %300 = vector.extract_strided_slice %284 {offsets = [0, 0], sizes = [8, 16], strides = [1, 1]} : vector<8x18xf32> to vector<8x16xf32>
    %301 = vector.broadcast %11 : vector<8x1xf32> to vector<8x16xf32>
    %302 = arith.mulf %301, %300 : vector<8x16xf32>
    %303 = arith.addf %299, %302 : vector<8x16xf32>
    %304 = vector.extract_strided_slice %284 {offsets = [0, 1], sizes = [8, 16], strides = [1, 1]} : vector<8x18xf32> to vector<8x16xf32>
    %305 = vector.broadcast %12 : vector<8x1xf32> to vector<8x16xf32>
    %306 = arith.mulf %305, %304 : vector<8x16xf32>
    %307 = arith.addf %303, %306 : vector<8x16xf32>
    %308 = vector.extract_strided_slice %284 {offsets = [0, 2], sizes = [8, 16], strides = [1, 1]} : vector<8x18xf32> to vector<8x16xf32>
    %309 = vector.broadcast %13 : vector<8x1xf32> to vector<8x16xf32>
    %310 = arith.mulf %309, %308 : vector<8x16xf32>
    %311 = arith.addf %307, %310 : vector<8x16xf32>
    %312 = vector.extract_strided_slice %286 {offsets = [0, 0], sizes = [8, 16], strides = [1, 1]} : vector<8x18xf32> to vector<8x16xf32>
    %313 = vector.broadcast %14 : vector<8x1xf32> to vector<8x16xf32>
    %314 = arith.mulf %313, %312 : vector<8x16xf32>
    %315 = arith.addf %311, %314 : vector<8x16xf32>
    %316 = vector.extract_strided_slice %286 {offsets = [0, 1], sizes = [8, 16], strides = [1, 1]} : vector<8x18xf32> to vector<8x16xf32>
    %317 = vector.broadcast %15 : vector<8x1xf32> to vector<8x16xf32>
    %318 = arith.mulf %317, %316 : vector<8x16xf32>
    %319 = arith.addf %315, %318 : vector<8x16xf32>
    %320 = vector.extract_strided_slice %286 {offsets = [0, 2], sizes = [8, 16], strides = [1, 1]} : vector<8x18xf32> to vector<8x16xf32>
    %321 = vector.broadcast %16 : vector<8x1xf32> to vector<8x16xf32>
    %322 = arith.mulf %321, %320 : vector<8x16xf32>
    %323 = arith.addf %319, %322 : vector<8x16xf32>
    %c0_81 = arith.constant 0 : index
    %c96 = arith.constant 96 : index
    %324 = vector.load %arg8[%c0_81, %c96] : memref<8x256xf32, #tpu.memory_space<vmem>>, vector<8x16xf32>
    tpu.vector_store %arg8[%c0_81, %c96], %323 {strides = array<i32>} : memref<8x256xf32, #tpu.memory_space<vmem>>, vector<8x16xf32>,
    %c0_82 = arith.constant 0 : index
    %c7_83 = arith.constant 7 : index
    %c0_84 = arith.constant 0 : index
    %325 = vector.load %arg7[%c0_82, %c7_83, %c0_84] : memref<8x18x18xf32, #tpu.memory_space<vmem>>, vector<8x1x18xf32>
    %326 = vector.shape_cast %325 : vector<8x1x18xf32> to vector<8x18xf32>
    %c0_85 = arith.constant 0 : index
    %c8_86 = arith.constant 8 : index
    %c0_87 = arith.constant 0 : index
    %327 = vector.load %arg7[%c0_85, %c8_86, %c0_87] : memref<8x18x18xf32, #tpu.memory_space<vmem>>, vector<8x1x18xf32>
    %328 = vector.shape_cast %327 : vector<8x1x18xf32> to vector<8x18xf32>
    %c0_88 = arith.constant 0 : index
    %c9 = arith.constant 9 : index
    %c0_89 = arith.constant 0 : index
    %329 = vector.load %arg7[%c0_88, %c9, %c0_89] : memref<8x18x18xf32, #tpu.memory_space<vmem>>, vector<8x1x18xf32>
    %330 = vector.shape_cast %329 : vector<8x1x18xf32> to vector<8x18xf32>
    %cst_90 = arith.constant 0.000000e+00 : f32
    %331 = vector.broadcast %cst_90 : f32 to vector<8x16xf32>
    %332 = vector.extract_strided_slice %326 {offsets = [0, 0], sizes = [8, 16], strides = [1, 1]} : vector<8x18xf32> to vector<8x16xf32>
    %333 = vector.broadcast %8 : vector<8x1xf32> to vector<8x16xf32>
    %334 = arith.mulf %333, %332 : vector<8x16xf32>
    %335 = arith.addf %331, %334 : vector<8x16xf32>
    %336 = vector.extract_strided_slice %326 {offsets = [0, 1], sizes = [8, 16], strides = [1, 1]} : vector<8x18xf32> to vector<8x16xf32>
    %337 = vector.broadcast %9 : vector<8x1xf32> to vector<8x16xf32>
    %338 = arith.mulf %337, %336 : vector<8x16xf32>
    %339 = arith.addf %335, %338 : vector<8x16xf32>
    %340 = vector.extract_strided_slice %326 {offsets = [0, 2], sizes = [8, 16], strides = [1, 1]} : vector<8x18xf32> to vector<8x16xf32>
    %341 = vector.broadcast %10 : vector<8x1xf32> to vector<8x16xf32>
    %342 = arith.mulf %341, %340 : vector<8x16xf32>
    %343 = arith.addf %339, %342 : vector<8x16xf32>
    %344 = vector.extract_strided_slice %328 {offsets = [0, 0], sizes = [8, 16], strides = [1, 1]} : vector<8x18xf32> to vector<8x16xf32>
    %345 = vector.broadcast %11 : vector<8x1xf32> to vector<8x16xf32>
    %346 = arith.mulf %345, %344 : vector<8x16xf32>
    %347 = arith.addf %343, %346 : vector<8x16xf32>
    %348 = vector.extract_strided_slice %328 {offsets = [0, 1], sizes = [8, 16], strides = [1, 1]} : vector<8x18xf32> to vector<8x16xf32>
    %349 = vector.broadcast %12 : vector<8x1xf32> to vector<8x16xf32>
    %350 = arith.mulf %349, %348 : vector<8x16xf32>
    %351 = arith.addf %347, %350 : vector<8x16xf32>
    %352 = vector.extract_strided_slice %328 {offsets = [0, 2], sizes = [8, 16], strides = [1, 1]} : vector<8x18xf32> to vector<8x16xf32>
    %353 = vector.broadcast %13 : vector<8x1xf32> to vector<8x16xf32>
    %354 = arith.mulf %353, %352 : vector<8x16xf32>
    %355 = arith.addf %351, %354 : vector<8x16xf32>
    %356 = vector.extract_strided_slice %330 {offsets = [0, 0], sizes = [8, 16], strides = [1, 1]} : vector<8x18xf32> to vector<8x16xf32>
    %357 = vector.broadcast %14 : vector<8x1xf32> to vector<8x16xf32>
    %358 = arith.mulf %357, %356 : vector<8x16xf32>
    %359 = arith.addf %355, %358 : vector<8x16xf32>
    %360 = vector.extract_strided_slice %330 {offsets = [0, 1], sizes = [8, 16], strides = [1, 1]} : vector<8x18xf32> to vector<8x16xf32>
    %361 = vector.broadcast %15 : vector<8x1xf32> to vector<8x16xf32>
    %362 = arith.mulf %361, %360 : vector<8x16xf32>
    %363 = arith.addf %359, %362 : vector<8x16xf32>
    %364 = vector.extract_strided_slice %330 {offsets = [0, 2], sizes = [8, 16], strides = [1, 1]} : vector<8x18xf32> to vector<8x16xf32>
    %365 = vector.broadcast %16 : vector<8x1xf32> to vector<8x16xf32>
    %366 = arith.mulf %365, %364 : vector<8x16xf32>
    %367 = arith.addf %363, %366 : vector<8x16xf32>
    %c0_91 = arith.constant 0 : index
    %c112 = arith.constant 112 : index
    %368 = vector.load %arg8[%c0_91, %c112] : memref<8x256xf32, #tpu.memory_space<vmem>>, vector<8x16xf32>
    tpu.vector_store %arg8[%c0_91, %c112], %367 {strides = array<i32>} : memref<8x256xf32, #tpu.memory_space<vmem>>, vector<8x16xf32>,
    %c0_92 = arith.constant 0 : index
    %c8_93 = arith.constant 8 : index
    %c0_94 = arith.constant 0 : index
    %369 = vector.load %arg7[%c0_92, %c8_93, %c0_94] : memref<8x18x18xf32, #tpu.memory_space<vmem>>, vector<8x1x18xf32>
    %370 = vector.shape_cast %369 : vector<8x1x18xf32> to vector<8x18xf32>
    %c0_95 = arith.constant 0 : index
    %c9_96 = arith.constant 9 : index
    %c0_97 = arith.constant 0 : index
    %371 = vector.load %arg7[%c0_95, %c9_96, %c0_97] : memref<8x18x18xf32, #tpu.memory_space<vmem>>, vector<8x1x18xf32>
    %372 = vector.shape_cast %371 : vector<8x1x18xf32> to vector<8x18xf32>
    %c0_98 = arith.constant 0 : index
    %c10 = arith.constant 10 : index
    %c0_99 = arith.constant 0 : index
    %373 = vector.load %arg7[%c0_98, %c10, %c0_99] : memref<8x18x18xf32, #tpu.memory_space<vmem>>, vector<8x1x18xf32>
    %374 = vector.shape_cast %373 : vector<8x1x18xf32> to vector<8x18xf32>
    %cst_100 = arith.constant 0.000000e+00 : f32
    %375 = vector.broadcast %cst_100 : f32 to vector<8x16xf32>
    %376 = vector.extract_strided_slice %370 {offsets = [0, 0], sizes = [8, 16], strides = [1, 1]} : vector<8x18xf32> to vector<8x16xf32>
    %377 = vector.broadcast %8 : vector<8x1xf32> to vector<8x16xf32>
    %378 = arith.mulf %377, %376 : vector<8x16xf32>
    %379 = arith.addf %375, %378 : vector<8x16xf32>
    %380 = vector.extract_strided_slice %370 {offsets = [0, 1], sizes = [8, 16], strides = [1, 1]} : vector<8x18xf32> to vector<8x16xf32>
    %381 = vector.broadcast %9 : vector<8x1xf32> to vector<8x16xf32>
    %382 = arith.mulf %381, %380 : vector<8x16xf32>
    %383 = arith.addf %379, %382 : vector<8x16xf32>
    %384 = vector.extract_strided_slice %370 {offsets = [0, 2], sizes = [8, 16], strides = [1, 1]} : vector<8x18xf32> to vector<8x16xf32>
    %385 = vector.broadcast %10 : vector<8x1xf32> to vector<8x16xf32>
    %386 = arith.mulf %385, %384 : vector<8x16xf32>
    %387 = arith.addf %383, %386 : vector<8x16xf32>
    %388 = vector.extract_strided_slice %372 {offsets = [0, 0], sizes = [8, 16], strides = [1, 1]} : vector<8x18xf32> to vector<8x16xf32>
    %389 = vector.broadcast %11 : vector<8x1xf32> to vector<8x16xf32>
    %390 = arith.mulf %389, %388 : vector<8x16xf32>
    %391 = arith.addf %387, %390 : vector<8x16xf32>
    %392 = vector.extract_strided_slice %372 {offsets = [0, 1], sizes = [8, 16], strides = [1, 1]} : vector<8x18xf32> to vector<8x16xf32>
    %393 = vector.broadcast %12 : vector<8x1xf32> to vector<8x16xf32>
    %394 = arith.mulf %393, %392 : vector<8x16xf32>
    %395 = arith.addf %391, %394 : vector<8x16xf32>
    %396 = vector.extract_strided_slice %372 {offsets = [0, 2], sizes = [8, 16], strides = [1, 1]} : vector<8x18xf32> to vector<8x16xf32>
    %397 = vector.broadcast %13 : vector<8x1xf32> to vector<8x16xf32>
    %398 = arith.mulf %397, %396 : vector<8x16xf32>
    %399 = arith.addf %395, %398 : vector<8x16xf32>
    %400 = vector.extract_strided_slice %374 {offsets = [0, 0], sizes = [8, 16], strides = [1, 1]} : vector<8x18xf32> to vector<8x16xf32>
    %401 = vector.broadcast %14 : vector<8x1xf32> to vector<8x16xf32>
    %402 = arith.mulf %401, %400 : vector<8x16xf32>
    %403 = arith.addf %399, %402 : vector<8x16xf32>
    %404 = vector.extract_strided_slice %374 {offsets = [0, 1], sizes = [8, 16], strides = [1, 1]} : vector<8x18xf32> to vector<8x16xf32>
    %405 = vector.broadcast %15 : vector<8x1xf32> to vector<8x16xf32>
    %406 = arith.mulf %405, %404 : vector<8x16xf32>
    %407 = arith.addf %403, %406 : vector<8x16xf32>
    %408 = vector.extract_strided_slice %374 {offsets = [0, 2], sizes = [8, 16], strides = [1, 1]} : vector<8x18xf32> to vector<8x16xf32>
    %409 = vector.broadcast %16 : vector<8x1xf32> to vector<8x16xf32>
    %410 = arith.mulf %409, %408 : vector<8x16xf32>
    %411 = arith.addf %407, %410 : vector<8x16xf32>
    %c0_101 = arith.constant 0 : index
    %c128 = arith.constant 128 : index
    %412 = vector.load %arg8[%c0_101, %c128] : memref<8x256xf32, #tpu.memory_space<vmem>>, vector<8x16xf32>
    tpu.vector_store %arg8[%c0_101, %c128], %411 {strides = array<i32>} : memref<8x256xf32, #tpu.memory_space<vmem>>, vector<8x16xf32>,
    %c0_102 = arith.constant 0 : index
    %c9_103 = arith.constant 9 : index
    %c0_104 = arith.constant 0 : index
    %413 = vector.load %arg7[%c0_102, %c9_103, %c0_104] : memref<8x18x18xf32, #tpu.memory_space<vmem>>, vector<8x1x18xf32>
    %414 = vector.shape_cast %413 : vector<8x1x18xf32> to vector<8x18xf32>
    %c0_105 = arith.constant 0 : index
    %c10_106 = arith.constant 10 : index
    %c0_107 = arith.constant 0 : index
    %415 = vector.load %arg7[%c0_105, %c10_106, %c0_107] : memref<8x18x18xf32, #tpu.memory_space<vmem>>, vector<8x1x18xf32>
    %416 = vector.shape_cast %415 : vector<8x1x18xf32> to vector<8x18xf32>
    %c0_108 = arith.constant 0 : index
    %c11 = arith.constant 11 : index
    %c0_109 = arith.constant 0 : index
    %417 = vector.load %arg7[%c0_108, %c11, %c0_109] : memref<8x18x18xf32, #tpu.memory_space<vmem>>, vector<8x1x18xf32>
    %418 = vector.shape_cast %417 : vector<8x1x18xf32> to vector<8x18xf32>
    %cst_110 = arith.constant 0.000000e+00 : f32
    %419 = vector.broadcast %cst_110 : f32 to vector<8x16xf32>
    %420 = vector.extract_strided_slice %414 {offsets = [0, 0], sizes = [8, 16], strides = [1, 1]} : vector<8x18xf32> to vector<8x16xf32>
    %421 = vector.broadcast %8 : vector<8x1xf32> to vector<8x16xf32>
    %422 = arith.mulf %421, %420 : vector<8x16xf32>
    %423 = arith.addf %419, %422 : vector<8x16xf32>
    %424 = vector.extract_strided_slice %414 {offsets = [0, 1], sizes = [8, 16], strides = [1, 1]} : vector<8x18xf32> to vector<8x16xf32>
    %425 = vector.broadcast %9 : vector<8x1xf32> to vector<8x16xf32>
    %426 = arith.mulf %425, %424 : vector<8x16xf32>
    %427 = arith.addf %423, %426 : vector<8x16xf32>
    %428 = vector.extract_strided_slice %414 {offsets = [0, 2], sizes = [8, 16], strides = [1, 1]} : vector<8x18xf32> to vector<8x16xf32>
    %429 = vector.broadcast %10 : vector<8x1xf32> to vector<8x16xf32>
    %430 = arith.mulf %429, %428 : vector<8x16xf32>
    %431 = arith.addf %427, %430 : vector<8x16xf32>
    %432 = vector.extract_strided_slice %416 {offsets = [0, 0], sizes = [8, 16], strides = [1, 1]} : vector<8x18xf32> to vector<8x16xf32>
    %433 = vector.broadcast %11 : vector<8x1xf32> to vector<8x16xf32>
    %434 = arith.mulf %433, %432 : vector<8x16xf32>
    %435 = arith.addf %431, %434 : vector<8x16xf32>
    %436 = vector.extract_strided_slice %416 {offsets = [0, 1], sizes = [8, 16], strides = [1, 1]} : vector<8x18xf32> to vector<8x16xf32>
    %437 = vector.broadcast %12 : vector<8x1xf32> to vector<8x16xf32>
    %438 = arith.mulf %437, %436 : vector<8x16xf32>
    %439 = arith.addf %435, %438 : vector<8x16xf32>
    %440 = vector.extract_strided_slice %416 {offsets = [0, 2], sizes = [8, 16], strides = [1, 1]} : vector<8x18xf32> to vector<8x16xf32>
    %441 = vector.broadcast %13 : vector<8x1xf32> to vector<8x16xf32>
    %442 = arith.mulf %441, %440 : vector<8x16xf32>
    %443 = arith.addf %439, %442 : vector<8x16xf32>
    %444 = vector.extract_strided_slice %418 {offsets = [0, 0], sizes = [8, 16], strides = [1, 1]} : vector<8x18xf32> to vector<8x16xf32>
    %445 = vector.broadcast %14 : vector<8x1xf32> to vector<8x16xf32>
    %446 = arith.mulf %445, %444 : vector<8x16xf32>
    %447 = arith.addf %443, %446 : vector<8x16xf32>
    %448 = vector.extract_strided_slice %418 {offsets = [0, 1], sizes = [8, 16], strides = [1, 1]} : vector<8x18xf32> to vector<8x16xf32>
    %449 = vector.broadcast %15 : vector<8x1xf32> to vector<8x16xf32>
    %450 = arith.mulf %449, %448 : vector<8x16xf32>
    %451 = arith.addf %447, %450 : vector<8x16xf32>
    %452 = vector.extract_strided_slice %418 {offsets = [0, 2], sizes = [8, 16], strides = [1, 1]} : vector<8x18xf32> to vector<8x16xf32>
    %453 = vector.broadcast %16 : vector<8x1xf32> to vector<8x16xf32>
    %454 = arith.mulf %453, %452 : vector<8x16xf32>
    %455 = arith.addf %451, %454 : vector<8x16xf32>
    %c0_111 = arith.constant 0 : index
    %c144 = arith.constant 144 : index
    %456 = vector.load %arg8[%c0_111, %c144] : memref<8x256xf32, #tpu.memory_space<vmem>>, vector<8x16xf32>
    tpu.vector_store %arg8[%c0_111, %c144], %455 {strides = array<i32>} : memref<8x256xf32, #tpu.memory_space<vmem>>, vector<8x16xf32>,
    %c0_112 = arith.constant 0 : index
    %c10_113 = arith.constant 10 : index
    %c0_114 = arith.constant 0 : index
    %457 = vector.load %arg7[%c0_112, %c10_113, %c0_114] : memref<8x18x18xf32, #tpu.memory_space<vmem>>, vector<8x1x18xf32>
    %458 = vector.shape_cast %457 : vector<8x1x18xf32> to vector<8x18xf32>
    %c0_115 = arith.constant 0 : index
    %c11_116 = arith.constant 11 : index
    %c0_117 = arith.constant 0 : index
    %459 = vector.load %arg7[%c0_115, %c11_116, %c0_117] : memref<8x18x18xf32, #tpu.memory_space<vmem>>, vector<8x1x18xf32>
    %460 = vector.shape_cast %459 : vector<8x1x18xf32> to vector<8x18xf32>
    %c0_118 = arith.constant 0 : index
    %c12 = arith.constant 12 : index
    %c0_119 = arith.constant 0 : index
    %461 = vector.load %arg7[%c0_118, %c12, %c0_119] : memref<8x18x18xf32, #tpu.memory_space<vmem>>, vector<8x1x18xf32>
    %462 = vector.shape_cast %461 : vector<8x1x18xf32> to vector<8x18xf32>
    %cst_120 = arith.constant 0.000000e+00 : f32
    %463 = vector.broadcast %cst_120 : f32 to vector<8x16xf32>
    %464 = vector.extract_strided_slice %458 {offsets = [0, 0], sizes = [8, 16], strides = [1, 1]} : vector<8x18xf32> to vector<8x16xf32>
    %465 = vector.broadcast %8 : vector<8x1xf32> to vector<8x16xf32>
    %466 = arith.mulf %465, %464 : vector<8x16xf32>
    %467 = arith.addf %463, %466 : vector<8x16xf32>
    %468 = vector.extract_strided_slice %458 {offsets = [0, 1], sizes = [8, 16], strides = [1, 1]} : vector<8x18xf32> to vector<8x16xf32>
    %469 = vector.broadcast %9 : vector<8x1xf32> to vector<8x16xf32>
    %470 = arith.mulf %469, %468 : vector<8x16xf32>
    %471 = arith.addf %467, %470 : vector<8x16xf32>
    %472 = vector.extract_strided_slice %458 {offsets = [0, 2], sizes = [8, 16], strides = [1, 1]} : vector<8x18xf32> to vector<8x16xf32>
    %473 = vector.broadcast %10 : vector<8x1xf32> to vector<8x16xf32>
    %474 = arith.mulf %473, %472 : vector<8x16xf32>
    %475 = arith.addf %471, %474 : vector<8x16xf32>
    %476 = vector.extract_strided_slice %460 {offsets = [0, 0], sizes = [8, 16], strides = [1, 1]} : vector<8x18xf32> to vector<8x16xf32>
    %477 = vector.broadcast %11 : vector<8x1xf32> to vector<8x16xf32>
    %478 = arith.mulf %477, %476 : vector<8x16xf32>
    %479 = arith.addf %475, %478 : vector<8x16xf32>
    %480 = vector.extract_strided_slice %460 {offsets = [0, 1], sizes = [8, 16], strides = [1, 1]} : vector<8x18xf32> to vector<8x16xf32>
    %481 = vector.broadcast %12 : vector<8x1xf32> to vector<8x16xf32>
    %482 = arith.mulf %481, %480 : vector<8x16xf32>
    %483 = arith.addf %479, %482 : vector<8x16xf32>
    %484 = vector.extract_strided_slice %460 {offsets = [0, 2], sizes = [8, 16], strides = [1, 1]} : vector<8x18xf32> to vector<8x16xf32>
    %485 = vector.broadcast %13 : vector<8x1xf32> to vector<8x16xf32>
    %486 = arith.mulf %485, %484 : vector<8x16xf32>
    %487 = arith.addf %483, %486 : vector<8x16xf32>
    %488 = vector.extract_strided_slice %462 {offsets = [0, 0], sizes = [8, 16], strides = [1, 1]} : vector<8x18xf32> to vector<8x16xf32>
    %489 = vector.broadcast %14 : vector<8x1xf32> to vector<8x16xf32>
    %490 = arith.mulf %489, %488 : vector<8x16xf32>
    %491 = arith.addf %487, %490 : vector<8x16xf32>
    %492 = vector.extract_strided_slice %462 {offsets = [0, 1], sizes = [8, 16], strides = [1, 1]} : vector<8x18xf32> to vector<8x16xf32>
    %493 = vector.broadcast %15 : vector<8x1xf32> to vector<8x16xf32>
    %494 = arith.mulf %493, %492 : vector<8x16xf32>
    %495 = arith.addf %491, %494 : vector<8x16xf32>
    %496 = vector.extract_strided_slice %462 {offsets = [0, 2], sizes = [8, 16], strides = [1, 1]} : vector<8x18xf32> to vector<8x16xf32>
    %497 = vector.broadcast %16 : vector<8x1xf32> to vector<8x16xf32>
    %498 = arith.mulf %497, %496 : vector<8x16xf32>
    %499 = arith.addf %495, %498 : vector<8x16xf32>
    %c0_121 = arith.constant 0 : index
    %c160 = arith.constant 160 : index
    %500 = vector.load %arg8[%c0_121, %c160] : memref<8x256xf32, #tpu.memory_space<vmem>>, vector<8x16xf32>
    tpu.vector_store %arg8[%c0_121, %c160], %499 {strides = array<i32>} : memref<8x256xf32, #tpu.memory_space<vmem>>, vector<8x16xf32>,
    %c0_122 = arith.constant 0 : index
    %c11_123 = arith.constant 11 : index
    %c0_124 = arith.constant 0 : index
    %501 = vector.load %arg7[%c0_122, %c11_123, %c0_124] : memref<8x18x18xf32, #tpu.memory_space<vmem>>, vector<8x1x18xf32>
    %502 = vector.shape_cast %501 : vector<8x1x18xf32> to vector<8x18xf32>
    %c0_125 = arith.constant 0 : index
    %c12_126 = arith.constant 12 : index
    %c0_127 = arith.constant 0 : index
    %503 = vector.load %arg7[%c0_125, %c12_126, %c0_127] : memref<8x18x18xf32, #tpu.memory_space<vmem>>, vector<8x1x18xf32>
    %504 = vector.shape_cast %503 : vector<8x1x18xf32> to vector<8x18xf32>
    %c0_128 = arith.constant 0 : index
    %c13 = arith.constant 13 : index
    %c0_129 = arith.constant 0 : index
    %505 = vector.load %arg7[%c0_128, %c13, %c0_129] : memref<8x18x18xf32, #tpu.memory_space<vmem>>, vector<8x1x18xf32>
    %506 = vector.shape_cast %505 : vector<8x1x18xf32> to vector<8x18xf32>
    %cst_130 = arith.constant 0.000000e+00 : f32
    %507 = vector.broadcast %cst_130 : f32 to vector<8x16xf32>
    %508 = vector.extract_strided_slice %502 {offsets = [0, 0], sizes = [8, 16], strides = [1, 1]} : vector<8x18xf32> to vector<8x16xf32>
    %509 = vector.broadcast %8 : vector<8x1xf32> to vector<8x16xf32>
    %510 = arith.mulf %509, %508 : vector<8x16xf32>
    %511 = arith.addf %507, %510 : vector<8x16xf32>
    %512 = vector.extract_strided_slice %502 {offsets = [0, 1], sizes = [8, 16], strides = [1, 1]} : vector<8x18xf32> to vector<8x16xf32>
    %513 = vector.broadcast %9 : vector<8x1xf32> to vector<8x16xf32>
    %514 = arith.mulf %513, %512 : vector<8x16xf32>
    %515 = arith.addf %511, %514 : vector<8x16xf32>
    %516 = vector.extract_strided_slice %502 {offsets = [0, 2], sizes = [8, 16], strides = [1, 1]} : vector<8x18xf32> to vector<8x16xf32>
    %517 = vector.broadcast %10 : vector<8x1xf32> to vector<8x16xf32>
    %518 = arith.mulf %517, %516 : vector<8x16xf32>
    %519 = arith.addf %515, %518 : vector<8x16xf32>
    %520 = vector.extract_strided_slice %504 {offsets = [0, 0], sizes = [8, 16], strides = [1, 1]} : vector<8x18xf32> to vector<8x16xf32>
    %521 = vector.broadcast %11 : vector<8x1xf32> to vector<8x16xf32>
    %522 = arith.mulf %521, %520 : vector<8x16xf32>
    %523 = arith.addf %519, %522 : vector<8x16xf32>
    %524 = vector.extract_strided_slice %504 {offsets = [0, 1], sizes = [8, 16], strides = [1, 1]} : vector<8x18xf32> to vector<8x16xf32>
    %525 = vector.broadcast %12 : vector<8x1xf32> to vector<8x16xf32>
    %526 = arith.mulf %525, %524 : vector<8x16xf32>
    %527 = arith.addf %523, %526 : vector<8x16xf32>
    %528 = vector.extract_strided_slice %504 {offsets = [0, 2], sizes = [8, 16], strides = [1, 1]} : vector<8x18xf32> to vector<8x16xf32>
    %529 = vector.broadcast %13 : vector<8x1xf32> to vector<8x16xf32>
    %530 = arith.mulf %529, %528 : vector<8x16xf32>
    %531 = arith.addf %527, %530 : vector<8x16xf32>
    %532 = vector.extract_strided_slice %506 {offsets = [0, 0], sizes = [8, 16], strides = [1, 1]} : vector<8x18xf32> to vector<8x16xf32>
    %533 = vector.broadcast %14 : vector<8x1xf32> to vector<8x16xf32>
    %534 = arith.mulf %533, %532 : vector<8x16xf32>
    %535 = arith.addf %531, %534 : vector<8x16xf32>
    %536 = vector.extract_strided_slice %506 {offsets = [0, 1], sizes = [8, 16], strides = [1, 1]} : vector<8x18xf32> to vector<8x16xf32>
    %537 = vector.broadcast %15 : vector<8x1xf32> to vector<8x16xf32>
    %538 = arith.mulf %537, %536 : vector<8x16xf32>
    %539 = arith.addf %535, %538 : vector<8x16xf32>
    %540 = vector.extract_strided_slice %506 {offsets = [0, 2], sizes = [8, 16], strides = [1, 1]} : vector<8x18xf32> to vector<8x16xf32>
    %541 = vector.broadcast %16 : vector<8x1xf32> to vector<8x16xf32>
    %542 = arith.mulf %541, %540 : vector<8x16xf32>
    %543 = arith.addf %539, %542 : vector<8x16xf32>
    %c0_131 = arith.constant 0 : index
    %c176 = arith.constant 176 : index
    %544 = vector.load %arg8[%c0_131, %c176] : memref<8x256xf32, #tpu.memory_space<vmem>>, vector<8x16xf32>
    tpu.vector_store %arg8[%c0_131, %c176], %543 {strides = array<i32>} : memref<8x256xf32, #tpu.memory_space<vmem>>, vector<8x16xf32>,
    %c0_132 = arith.constant 0 : index
    %c12_133 = arith.constant 12 : index
    %c0_134 = arith.constant 0 : index
    %545 = vector.load %arg7[%c0_132, %c12_133, %c0_134] : memref<8x18x18xf32, #tpu.memory_space<vmem>>, vector<8x1x18xf32>
    %546 = vector.shape_cast %545 : vector<8x1x18xf32> to vector<8x18xf32>
    %c0_135 = arith.constant 0 : index
    %c13_136 = arith.constant 13 : index
    %c0_137 = arith.constant 0 : index
    %547 = vector.load %arg7[%c0_135, %c13_136, %c0_137] : memref<8x18x18xf32, #tpu.memory_space<vmem>>, vector<8x1x18xf32>
    %548 = vector.shape_cast %547 : vector<8x1x18xf32> to vector<8x18xf32>
    %c0_138 = arith.constant 0 : index
    %c14 = arith.constant 14 : index
    %c0_139 = arith.constant 0 : index
    %549 = vector.load %arg7[%c0_138, %c14, %c0_139] : memref<8x18x18xf32, #tpu.memory_space<vmem>>, vector<8x1x18xf32>
    %550 = vector.shape_cast %549 : vector<8x1x18xf32> to vector<8x18xf32>
    %cst_140 = arith.constant 0.000000e+00 : f32
    %551 = vector.broadcast %cst_140 : f32 to vector<8x16xf32>
    %552 = vector.extract_strided_slice %546 {offsets = [0, 0], sizes = [8, 16], strides = [1, 1]} : vector<8x18xf32> to vector<8x16xf32>
    %553 = vector.broadcast %8 : vector<8x1xf32> to vector<8x16xf32>
    %554 = arith.mulf %553, %552 : vector<8x16xf32>
    %555 = arith.addf %551, %554 : vector<8x16xf32>
    %556 = vector.extract_strided_slice %546 {offsets = [0, 1], sizes = [8, 16], strides = [1, 1]} : vector<8x18xf32> to vector<8x16xf32>
    %557 = vector.broadcast %9 : vector<8x1xf32> to vector<8x16xf32>
    %558 = arith.mulf %557, %556 : vector<8x16xf32>
    %559 = arith.addf %555, %558 : vector<8x16xf32>
    %560 = vector.extract_strided_slice %546 {offsets = [0, 2], sizes = [8, 16], strides = [1, 1]} : vector<8x18xf32> to vector<8x16xf32>
    %561 = vector.broadcast %10 : vector<8x1xf32> to vector<8x16xf32>
    %562 = arith.mulf %561, %560 : vector<8x16xf32>
    %563 = arith.addf %559, %562 : vector<8x16xf32>
    %564 = vector.extract_strided_slice %548 {offsets = [0, 0], sizes = [8, 16], strides = [1, 1]} : vector<8x18xf32> to vector<8x16xf32>
    %565 = vector.broadcast %11 : vector<8x1xf32> to vector<8x16xf32>
    %566 = arith.mulf %565, %564 : vector<8x16xf32>
    %567 = arith.addf %563, %566 : vector<8x16xf32>
    %568 = vector.extract_strided_slice %548 {offsets = [0, 1], sizes = [8, 16], strides = [1, 1]} : vector<8x18xf32> to vector<8x16xf32>
    %569 = vector.broadcast %12 : vector<8x1xf32> to vector<8x16xf32>
    %570 = arith.mulf %569, %568 : vector<8x16xf32>
    %571 = arith.addf %567, %570 : vector<8x16xf32>
    %572 = vector.extract_strided_slice %548 {offsets = [0, 2], sizes = [8, 16], strides = [1, 1]} : vector<8x18xf32> to vector<8x16xf32>
    %573 = vector.broadcast %13 : vector<8x1xf32> to vector<8x16xf32>
    %574 = arith.mulf %573, %572 : vector<8x16xf32>
    %575 = arith.addf %571, %574 : vector<8x16xf32>
    %576 = vector.extract_strided_slice %550 {offsets = [0, 0], sizes = [8, 16], strides = [1, 1]} : vector<8x18xf32> to vector<8x16xf32>
    %577 = vector.broadcast %14 : vector<8x1xf32> to vector<8x16xf32>
    %578 = arith.mulf %577, %576 : vector<8x16xf32>
    %579 = arith.addf %575, %578 : vector<8x16xf32>
    %580 = vector.extract_strided_slice %550 {offsets = [0, 1], sizes = [8, 16], strides = [1, 1]} : vector<8x18xf32> to vector<8x16xf32>
    %581 = vector.broadcast %15 : vector<8x1xf32> to vector<8x16xf32>
    %582 = arith.mulf %581, %580 : vector<8x16xf32>
    %583 = arith.addf %579, %582 : vector<8x16xf32>
    %584 = vector.extract_strided_slice %550 {offsets = [0, 2], sizes = [8, 16], strides = [1, 1]} : vector<8x18xf32> to vector<8x16xf32>
    %585 = vector.broadcast %16 : vector<8x1xf32> to vector<8x16xf32>
    %586 = arith.mulf %585, %584 : vector<8x16xf32>
    %587 = arith.addf %583, %586 : vector<8x16xf32>
    %c0_141 = arith.constant 0 : index
    %c192 = arith.constant 192 : index
    %588 = vector.load %arg8[%c0_141, %c192] : memref<8x256xf32, #tpu.memory_space<vmem>>, vector<8x16xf32>
    tpu.vector_store %arg8[%c0_141, %c192], %587 {strides = array<i32>} : memref<8x256xf32, #tpu.memory_space<vmem>>, vector<8x16xf32>,
    %c0_142 = arith.constant 0 : index
    %c13_143 = arith.constant 13 : index
    %c0_144 = arith.constant 0 : index
    %589 = vector.load %arg7[%c0_142, %c13_143, %c0_144] : memref<8x18x18xf32, #tpu.memory_space<vmem>>, vector<8x1x18xf32>
    %590 = vector.shape_cast %589 : vector<8x1x18xf32> to vector<8x18xf32>
    %c0_145 = arith.constant 0 : index
    %c14_146 = arith.constant 14 : index
    %c0_147 = arith.constant 0 : index
    %591 = vector.load %arg7[%c0_145, %c14_146, %c0_147] : memref<8x18x18xf32, #tpu.memory_space<vmem>>, vector<8x1x18xf32>
    %592 = vector.shape_cast %591 : vector<8x1x18xf32> to vector<8x18xf32>
    %c0_148 = arith.constant 0 : index
    %c15 = arith.constant 15 : index
    %c0_149 = arith.constant 0 : index
    %593 = vector.load %arg7[%c0_148, %c15, %c0_149] : memref<8x18x18xf32, #tpu.memory_space<vmem>>, vector<8x1x18xf32>
    %594 = vector.shape_cast %593 : vector<8x1x18xf32> to vector<8x18xf32>
    %cst_150 = arith.constant 0.000000e+00 : f32
    %595 = vector.broadcast %cst_150 : f32 to vector<8x16xf32>
    %596 = vector.extract_strided_slice %590 {offsets = [0, 0], sizes = [8, 16], strides = [1, 1]} : vector<8x18xf32> to vector<8x16xf32>
    %597 = vector.broadcast %8 : vector<8x1xf32> to vector<8x16xf32>
    %598 = arith.mulf %597, %596 : vector<8x16xf32>
    %599 = arith.addf %595, %598 : vector<8x16xf32>
    %600 = vector.extract_strided_slice %590 {offsets = [0, 1], sizes = [8, 16], strides = [1, 1]} : vector<8x18xf32> to vector<8x16xf32>
    %601 = vector.broadcast %9 : vector<8x1xf32> to vector<8x16xf32>
    %602 = arith.mulf %601, %600 : vector<8x16xf32>
    %603 = arith.addf %599, %602 : vector<8x16xf32>
    %604 = vector.extract_strided_slice %590 {offsets = [0, 2], sizes = [8, 16], strides = [1, 1]} : vector<8x18xf32> to vector<8x16xf32>
    %605 = vector.broadcast %10 : vector<8x1xf32> to vector<8x16xf32>
    %606 = arith.mulf %605, %604 : vector<8x16xf32>
    %607 = arith.addf %603, %606 : vector<8x16xf32>
    %608 = vector.extract_strided_slice %592 {offsets = [0, 0], sizes = [8, 16], strides = [1, 1]} : vector<8x18xf32> to vector<8x16xf32>
    %609 = vector.broadcast %11 : vector<8x1xf32> to vector<8x16xf32>
    %610 = arith.mulf %609, %608 : vector<8x16xf32>
    %611 = arith.addf %607, %610 : vector<8x16xf32>
    %612 = vector.extract_strided_slice %592 {offsets = [0, 1], sizes = [8, 16], strides = [1, 1]} : vector<8x18xf32> to vector<8x16xf32>
    %613 = vector.broadcast %12 : vector<8x1xf32> to vector<8x16xf32>
    %614 = arith.mulf %613, %612 : vector<8x16xf32>
    %615 = arith.addf %611, %614 : vector<8x16xf32>
    %616 = vector.extract_strided_slice %592 {offsets = [0, 2], sizes = [8, 16], strides = [1, 1]} : vector<8x18xf32> to vector<8x16xf32>
    %617 = vector.broadcast %13 : vector<8x1xf32> to vector<8x16xf32>
    %618 = arith.mulf %617, %616 : vector<8x16xf32>
    %619 = arith.addf %615, %618 : vector<8x16xf32>
    %620 = vector.extract_strided_slice %594 {offsets = [0, 0], sizes = [8, 16], strides = [1, 1]} : vector<8x18xf32> to vector<8x16xf32>
    %621 = vector.broadcast %14 : vector<8x1xf32> to vector<8x16xf32>
    %622 = arith.mulf %621, %620 : vector<8x16xf32>
    %623 = arith.addf %619, %622 : vector<8x16xf32>
    %624 = vector.extract_strided_slice %594 {offsets = [0, 1], sizes = [8, 16], strides = [1, 1]} : vector<8x18xf32> to vector<8x16xf32>
    %625 = vector.broadcast %15 : vector<8x1xf32> to vector<8x16xf32>
    %626 = arith.mulf %625, %624 : vector<8x16xf32>
    %627 = arith.addf %623, %626 : vector<8x16xf32>
    %628 = vector.extract_strided_slice %594 {offsets = [0, 2], sizes = [8, 16], strides = [1, 1]} : vector<8x18xf32> to vector<8x16xf32>
    %629 = vector.broadcast %16 : vector<8x1xf32> to vector<8x16xf32>
    %630 = arith.mulf %629, %628 : vector<8x16xf32>
    %631 = arith.addf %627, %630 : vector<8x16xf32>
    %c0_151 = arith.constant 0 : index
    %c208 = arith.constant 208 : index
    %632 = vector.load %arg8[%c0_151, %c208] : memref<8x256xf32, #tpu.memory_space<vmem>>, vector<8x16xf32>
    tpu.vector_store %arg8[%c0_151, %c208], %631 {strides = array<i32>} : memref<8x256xf32, #tpu.memory_space<vmem>>, vector<8x16xf32>,
    %c0_152 = arith.constant 0 : index
    %c14_153 = arith.constant 14 : index
    %c0_154 = arith.constant 0 : index
    %633 = vector.load %arg7[%c0_152, %c14_153, %c0_154] : memref<8x18x18xf32, #tpu.memory_space<vmem>>, vector<8x1x18xf32>
    %634 = vector.shape_cast %633 : vector<8x1x18xf32> to vector<8x18xf32>
    %c0_155 = arith.constant 0 : index
    %c15_156 = arith.constant 15 : index
    %c0_157 = arith.constant 0 : index
    %635 = vector.load %arg7[%c0_155, %c15_156, %c0_157] : memref<8x18x18xf32, #tpu.memory_space<vmem>>, vector<8x1x18xf32>
    %636 = vector.shape_cast %635 : vector<8x1x18xf32> to vector<8x18xf32>
    %c0_158 = arith.constant 0 : index
    %c16_159 = arith.constant 16 : index
    %c0_160 = arith.constant 0 : index
    %637 = vector.load %arg7[%c0_158, %c16_159, %c0_160] : memref<8x18x18xf32, #tpu.memory_space<vmem>>, vector<8x1x18xf32>
    %638 = vector.shape_cast %637 : vector<8x1x18xf32> to vector<8x18xf32>
    %cst_161 = arith.constant 0.000000e+00 : f32
    %639 = vector.broadcast %cst_161 : f32 to vector<8x16xf32>
    %640 = vector.extract_strided_slice %634 {offsets = [0, 0], sizes = [8, 16], strides = [1, 1]} : vector<8x18xf32> to vector<8x16xf32>
    %641 = vector.broadcast %8 : vector<8x1xf32> to vector<8x16xf32>
    %642 = arith.mulf %641, %640 : vector<8x16xf32>
    %643 = arith.addf %639, %642 : vector<8x16xf32>
    %644 = vector.extract_strided_slice %634 {offsets = [0, 1], sizes = [8, 16], strides = [1, 1]} : vector<8x18xf32> to vector<8x16xf32>
    %645 = vector.broadcast %9 : vector<8x1xf32> to vector<8x16xf32>
    %646 = arith.mulf %645, %644 : vector<8x16xf32>
    %647 = arith.addf %643, %646 : vector<8x16xf32>
    %648 = vector.extract_strided_slice %634 {offsets = [0, 2], sizes = [8, 16], strides = [1, 1]} : vector<8x18xf32> to vector<8x16xf32>
    %649 = vector.broadcast %10 : vector<8x1xf32> to vector<8x16xf32>
    %650 = arith.mulf %649, %648 : vector<8x16xf32>
    %651 = arith.addf %647, %650 : vector<8x16xf32>
    %652 = vector.extract_strided_slice %636 {offsets = [0, 0], sizes = [8, 16], strides = [1, 1]} : vector<8x18xf32> to vector<8x16xf32>
    %653 = vector.broadcast %11 : vector<8x1xf32> to vector<8x16xf32>
    %654 = arith.mulf %653, %652 : vector<8x16xf32>
    %655 = arith.addf %651, %654 : vector<8x16xf32>
    %656 = vector.extract_strided_slice %636 {offsets = [0, 1], sizes = [8, 16], strides = [1, 1]} : vector<8x18xf32> to vector<8x16xf32>
    %657 = vector.broadcast %12 : vector<8x1xf32> to vector<8x16xf32>
    %658 = arith.mulf %657, %656 : vector<8x16xf32>
    %659 = arith.addf %655, %658 : vector<8x16xf32>
    %660 = vector.extract_strided_slice %636 {offsets = [0, 2], sizes = [8, 16], strides = [1, 1]} : vector<8x18xf32> to vector<8x16xf32>
    %661 = vector.broadcast %13 : vector<8x1xf32> to vector<8x16xf32>
    %662 = arith.mulf %661, %660 : vector<8x16xf32>
    %663 = arith.addf %659, %662 : vector<8x16xf32>
    %664 = vector.extract_strided_slice %638 {offsets = [0, 0], sizes = [8, 16], strides = [1, 1]} : vector<8x18xf32> to vector<8x16xf32>
    %665 = vector.broadcast %14 : vector<8x1xf32> to vector<8x16xf32>
    %666 = arith.mulf %665, %664 : vector<8x16xf32>
    %667 = arith.addf %663, %666 : vector<8x16xf32>
    %668 = vector.extract_strided_slice %638 {offsets = [0, 1], sizes = [8, 16], strides = [1, 1]} : vector<8x18xf32> to vector<8x16xf32>
    %669 = vector.broadcast %15 : vector<8x1xf32> to vector<8x16xf32>
    %670 = arith.mulf %669, %668 : vector<8x16xf32>
    %671 = arith.addf %667, %670 : vector<8x16xf32>
    %672 = vector.extract_strided_slice %638 {offsets = [0, 2], sizes = [8, 16], strides = [1, 1]} : vector<8x18xf32> to vector<8x16xf32>
    %673 = vector.broadcast %16 : vector<8x1xf32> to vector<8x16xf32>
    %674 = arith.mulf %673, %672 : vector<8x16xf32>
    %675 = arith.addf %671, %674 : vector<8x16xf32>
    %c0_162 = arith.constant 0 : index
    %c224 = arith.constant 224 : index
    %676 = vector.load %arg8[%c0_162, %c224] : memref<8x256xf32, #tpu.memory_space<vmem>>, vector<8x16xf32>
    tpu.vector_store %arg8[%c0_162, %c224], %675 {strides = array<i32>} : memref<8x256xf32, #tpu.memory_space<vmem>>, vector<8x16xf32>,
    %c0_163 = arith.constant 0 : index
    %c15_164 = arith.constant 15 : index
    %c0_165 = arith.constant 0 : index
    %677 = vector.load %arg7[%c0_163, %c15_164, %c0_165] : memref<8x18x18xf32, #tpu.memory_space<vmem>>, vector<8x1x18xf32>
    %678 = vector.shape_cast %677 : vector<8x1x18xf32> to vector<8x18xf32>
    %c0_166 = arith.constant 0 : index
    %c16_167 = arith.constant 16 : index
    %c0_168 = arith.constant 0 : index
    %679 = vector.load %arg7[%c0_166, %c16_167, %c0_168] : memref<8x18x18xf32, #tpu.memory_space<vmem>>, vector<8x1x18xf32>
    %680 = vector.shape_cast %679 : vector<8x1x18xf32> to vector<8x18xf32>
    %c0_169 = arith.constant 0 : index
    %c17 = arith.constant 17 : index
    %c0_170 = arith.constant 0 : index
    %681 = vector.load %arg7[%c0_169, %c17, %c0_170] : memref<8x18x18xf32, #tpu.memory_space<vmem>>, vector<8x1x18xf32>
    %682 = vector.shape_cast %681 : vector<8x1x18xf32> to vector<8x18xf32>
    %cst_171 = arith.constant 0.000000e+00 : f32
    %683 = vector.broadcast %cst_171 : f32 to vector<8x16xf32>
    %684 = vector.extract_strided_slice %678 {offsets = [0, 0], sizes = [8, 16], strides = [1, 1]} : vector<8x18xf32> to vector<8x16xf32>
    %685 = vector.broadcast %8 : vector<8x1xf32> to vector<8x16xf32>
    %686 = arith.mulf %685, %684 : vector<8x16xf32>
    %687 = arith.addf %683, %686 : vector<8x16xf32>
    %688 = vector.extract_strided_slice %678 {offsets = [0, 1], sizes = [8, 16], strides = [1, 1]} : vector<8x18xf32> to vector<8x16xf32>
    %689 = vector.broadcast %9 : vector<8x1xf32> to vector<8x16xf32>
    %690 = arith.mulf %689, %688 : vector<8x16xf32>
    %691 = arith.addf %687, %690 : vector<8x16xf32>
    %692 = vector.extract_strided_slice %678 {offsets = [0, 2], sizes = [8, 16], strides = [1, 1]} : vector<8x18xf32> to vector<8x16xf32>
    %693 = vector.broadcast %10 : vector<8x1xf32> to vector<8x16xf32>
    %694 = arith.mulf %693, %692 : vector<8x16xf32>
    %695 = arith.addf %691, %694 : vector<8x16xf32>
    %696 = vector.extract_strided_slice %680 {offsets = [0, 0], sizes = [8, 16], strides = [1, 1]} : vector<8x18xf32> to vector<8x16xf32>
    %697 = vector.broadcast %11 : vector<8x1xf32> to vector<8x16xf32>
    %698 = arith.mulf %697, %696 : vector<8x16xf32>
    %699 = arith.addf %695, %698 : vector<8x16xf32>
    %700 = vector.extract_strided_slice %680 {offsets = [0, 1], sizes = [8, 16], strides = [1, 1]} : vector<8x18xf32> to vector<8x16xf32>
    %701 = vector.broadcast %12 : vector<8x1xf32> to vector<8x16xf32>
    %702 = arith.mulf %701, %700 : vector<8x16xf32>
    %703 = arith.addf %699, %702 : vector<8x16xf32>
    %704 = vector.extract_strided_slice %680 {offsets = [0, 2], sizes = [8, 16], strides = [1, 1]} : vector<8x18xf32> to vector<8x16xf32>
    %705 = vector.broadcast %13 : vector<8x1xf32> to vector<8x16xf32>
    %706 = arith.mulf %705, %704 : vector<8x16xf32>
    %707 = arith.addf %703, %706 : vector<8x16xf32>
    %708 = vector.extract_strided_slice %682 {offsets = [0, 0], sizes = [8, 16], strides = [1, 1]} : vector<8x18xf32> to vector<8x16xf32>
    %709 = vector.broadcast %14 : vector<8x1xf32> to vector<8x16xf32>
    %710 = arith.mulf %709, %708 : vector<8x16xf32>
    %711 = arith.addf %707, %710 : vector<8x16xf32>
    %712 = vector.extract_strided_slice %682 {offsets = [0, 1], sizes = [8, 16], strides = [1, 1]} : vector<8x18xf32> to vector<8x16xf32>
    %713 = vector.broadcast %15 : vector<8x1xf32> to vector<8x16xf32>
    %714 = arith.mulf %713, %712 : vector<8x16xf32>
    %715 = arith.addf %711, %714 : vector<8x16xf32>
    %716 = vector.extract_strided_slice %682 {offsets = [0, 2], sizes = [8, 16], strides = [1, 1]} : vector<8x18xf32> to vector<8x16xf32>
    %717 = vector.broadcast %16 : vector<8x1xf32> to vector<8x16xf32>
    %718 = arith.mulf %717, %716 : vector<8x16xf32>
    %719 = arith.addf %715, %718 : vector<8x16xf32>
    %c0_172 = arith.constant 0 : index
    %c240 = arith.constant 240 : index
    %720 = vector.load %arg8[%c0_172, %c240] : memref<8x256xf32, #tpu.memory_space<vmem>>, vector<8x16xf32>
    tpu.vector_store %arg8[%c0_172, %c240], %719 {strides = array<i32>} : memref<8x256xf32, #tpu.memory_space<vmem>>, vector<8x16xf32>,
    %c0_173 = arith.constant 0 : index
    %c0_174 = arith.constant 0 : index
    %721 = vector.load %arg3[%c0_173, %c0_174] : memref<8x8xf32, #tpu.memory_space<vmem>>, vector<8x8xf32>
    %c0_175 = arith.constant 0 : index
    %c0_176 = arith.constant 0 : index
    %722 = vector.load %arg8[%c0_175, %c0_176] : memref<8x256xf32, #tpu.memory_space<vmem>>, vector<8x256xf32>
    %cst_177 = arith.constant dense<0.000000e+00> : vector<8x256xf32>
    %723 = tpu.matmul %721, %722, %cst_177 {dimension_numbers = #tpu.dot_dimension_numbers<[1], [0], [0], [1], [0, 0, 1, 1], [], []>} : vector<8x8xf32>, vector<8x256xf32>, vector<8x256xf32> -> vector<8x256xf32>
    %cst_178 = arith.constant 0.000000e+00 : f32
    %724 = vector.broadcast %cst_178 : f32 to vector<8x256xf32>
    %725 = arith.maximumf %723, %724 : vector<8x256xf32>
    %cst_179 = arith.constant 0.000000e+00 : f32
    %726 = vector.broadcast %cst_179 : f32 to vector<8x18x18xf32>
    %c0_180 = arith.constant 0 : index
    %c0_181 = arith.constant 0 : index
    %c0_182 = arith.constant 0 : index
    %727 = vector.load %arg9[%c0_180, %c0_181, %c0_182] : memref<8x18x18xf32, #tpu.memory_space<vmem>>, vector<8x18x18xf32>
    tpu.vector_store %arg9[%c0_180, %c0_181, %c0_182], %726 {strides = array<i32>} : memref<8x18x18xf32, #tpu.memory_space<vmem>>, vector<8x18x18xf32>,
    %728 = vector.extract_strided_slice %725 {offsets = [0, 0], sizes = [8, 16], strides = [1, 1]} : vector<8x256xf32> to vector<8x16xf32>
    %c0_183 = arith.constant 0 : index
    %c1_184 = arith.constant 1 : index
    %c1_185 = arith.constant 1 : index
    %729 = vector.load %arg9[%c0_183, %c1_184, %c1_185] : memref<8x18x18xf32, #tpu.memory_space<vmem>>, vector<8x1x16xf32>
    %730 = vector.shape_cast %729 : vector<8x1x16xf32> to vector<8x16xf32>
    %731 = vector.shape_cast %728 : vector<8x16xf32> to vector<8x1x16xf32>
    tpu.vector_store %arg9[%c0_183, %c1_184, %c1_185], %731 {strides = array<i32>} : memref<8x18x18xf32, #tpu.memory_space<vmem>>, vector<8x1x16xf32>,
    %732 = vector.extract_strided_slice %725 {offsets = [0, 16], sizes = [8, 16], strides = [1, 1]} : vector<8x256xf32> to vector<8x16xf32>
    %c0_186 = arith.constant 0 : index
    %c2_187 = arith.constant 2 : index
    %c1_188 = arith.constant 1 : index
    %733 = vector.load %arg9[%c0_186, %c2_187, %c1_188] : memref<8x18x18xf32, #tpu.memory_space<vmem>>, vector<8x1x16xf32>
    %734 = vector.shape_cast %733 : vector<8x1x16xf32> to vector<8x16xf32>
    %735 = vector.shape_cast %732 : vector<8x16xf32> to vector<8x1x16xf32>
    tpu.vector_store %arg9[%c0_186, %c2_187, %c1_188], %735 {strides = array<i32>} : memref<8x18x18xf32, #tpu.memory_space<vmem>>, vector<8x1x16xf32>,
    %736 = vector.extract_strided_slice %725 {offsets = [0, 32], sizes = [8, 16], strides = [1, 1]} : vector<8x256xf32> to vector<8x16xf32>
    %c0_189 = arith.constant 0 : index
    %c3_190 = arith.constant 3 : index
    %c1_191 = arith.constant 1 : index
    %737 = vector.load %arg9[%c0_189, %c3_190, %c1_191] : memref<8x18x18xf32, #tpu.memory_space<vmem>>, vector<8x1x16xf32>
    %738 = vector.shape_cast %737 : vector<8x1x16xf32> to vector<8x16xf32>
    %739 = vector.shape_cast %736 : vector<8x16xf32> to vector<8x1x16xf32>
    tpu.vector_store %arg9[%c0_189, %c3_190, %c1_191], %739 {strides = array<i32>} : memref<8x18x18xf32, #tpu.memory_space<vmem>>, vector<8x1x16xf32>,
    %740 = vector.extract_strided_slice %725 {offsets = [0, 48], sizes = [8, 16], strides = [1, 1]} : vector<8x256xf32> to vector<8x16xf32>
    %c0_192 = arith.constant 0 : index
    %c4_193 = arith.constant 4 : index
    %c1_194 = arith.constant 1 : index
    %741 = vector.load %arg9[%c0_192, %c4_193, %c1_194] : memref<8x18x18xf32, #tpu.memory_space<vmem>>, vector<8x1x16xf32>
    %742 = vector.shape_cast %741 : vector<8x1x16xf32> to vector<8x16xf32>
    %743 = vector.shape_cast %740 : vector<8x16xf32> to vector<8x1x16xf32>
    tpu.vector_store %arg9[%c0_192, %c4_193, %c1_194], %743 {strides = array<i32>} : memref<8x18x18xf32, #tpu.memory_space<vmem>>, vector<8x1x16xf32>,
    %744 = vector.extract_strided_slice %725 {offsets = [0, 64], sizes = [8, 16], strides = [1, 1]} : vector<8x256xf32> to vector<8x16xf32>
    %c0_195 = arith.constant 0 : index
    %c5_196 = arith.constant 5 : index
    %c1_197 = arith.constant 1 : index
    %745 = vector.load %arg9[%c0_195, %c5_196, %c1_197] : memref<8x18x18xf32, #tpu.memory_space<vmem>>, vector<8x1x16xf32>
    %746 = vector.shape_cast %745 : vector<8x1x16xf32> to vector<8x16xf32>
    %747 = vector.shape_cast %744 : vector<8x16xf32> to vector<8x1x16xf32>
    tpu.vector_store %arg9[%c0_195, %c5_196, %c1_197], %747 {strides = array<i32>} : memref<8x18x18xf32, #tpu.memory_space<vmem>>, vector<8x1x16xf32>,
    %748 = vector.extract_strided_slice %725 {offsets = [0, 80], sizes = [8, 16], strides = [1, 1]} : vector<8x256xf32> to vector<8x16xf32>
    %c0_198 = arith.constant 0 : index
    %c6_199 = arith.constant 6 : index
    %c1_200 = arith.constant 1 : index
    %749 = vector.load %arg9[%c0_198, %c6_199, %c1_200] : memref<8x18x18xf32, #tpu.memory_space<vmem>>, vector<8x1x16xf32>
    %750 = vector.shape_cast %749 : vector<8x1x16xf32> to vector<8x16xf32>
    %751 = vector.shape_cast %748 : vector<8x16xf32> to vector<8x1x16xf32>
    tpu.vector_store %arg9[%c0_198, %c6_199, %c1_200], %751 {strides = array<i32>} : memref<8x18x18xf32, #tpu.memory_space<vmem>>, vector<8x1x16xf32>,
    %752 = vector.extract_strided_slice %725 {offsets = [0, 96], sizes = [8, 16], strides = [1, 1]} : vector<8x256xf32> to vector<8x16xf32>
    %c0_201 = arith.constant 0 : index
    %c7_202 = arith.constant 7 : index
    %c1_203 = arith.constant 1 : index
    %753 = vector.load %arg9[%c0_201, %c7_202, %c1_203] : memref<8x18x18xf32, #tpu.memory_space<vmem>>, vector<8x1x16xf32>
    %754 = vector.shape_cast %753 : vector<8x1x16xf32> to vector<8x16xf32>
    %755 = vector.shape_cast %752 : vector<8x16xf32> to vector<8x1x16xf32>
    tpu.vector_store %arg9[%c0_201, %c7_202, %c1_203], %755 {strides = array<i32>} : memref<8x18x18xf32, #tpu.memory_space<vmem>>, vector<8x1x16xf32>,
    %756 = vector.extract_strided_slice %725 {offsets = [0, 112], sizes = [8, 16], strides = [1, 1]} : vector<8x256xf32> to vector<8x16xf32>
    %c0_204 = arith.constant 0 : index
    %c8_205 = arith.constant 8 : index
    %c1_206 = arith.constant 1 : index
    %757 = vector.load %arg9[%c0_204, %c8_205, %c1_206] : memref<8x18x18xf32, #tpu.memory_space<vmem>>, vector<8x1x16xf32>
    %758 = vector.shape_cast %757 : vector<8x1x16xf32> to vector<8x16xf32>
    %759 = vector.shape_cast %756 : vector<8x16xf32> to vector<8x1x16xf32>
    tpu.vector_store %arg9[%c0_204, %c8_205, %c1_206], %759 {strides = array<i32>} : memref<8x18x18xf32, #tpu.memory_space<vmem>>, vector<8x1x16xf32>,
    %760 = vector.extract_strided_slice %725 {offsets = [0, 128], sizes = [8, 16], strides = [1, 1]} : vector<8x256xf32> to vector<8x16xf32>
    %c0_207 = arith.constant 0 : index
    %c9_208 = arith.constant 9 : index
    %c1_209 = arith.constant 1 : index
    %761 = vector.load %arg9[%c0_207, %c9_208, %c1_209] : memref<8x18x18xf32, #tpu.memory_space<vmem>>, vector<8x1x16xf32>
    %762 = vector.shape_cast %761 : vector<8x1x16xf32> to vector<8x16xf32>
    %763 = vector.shape_cast %760 : vector<8x16xf32> to vector<8x1x16xf32>
    tpu.vector_store %arg9[%c0_207, %c9_208, %c1_209], %763 {strides = array<i32>} : memref<8x18x18xf32, #tpu.memory_space<vmem>>, vector<8x1x16xf32>,
    %764 = vector.extract_strided_slice %725 {offsets = [0, 144], sizes = [8, 16], strides = [1, 1]} : vector<8x256xf32> to vector<8x16xf32>
    %c0_210 = arith.constant 0 : index
    %c10_211 = arith.constant 10 : index
    %c1_212 = arith.constant 1 : index
    %765 = vector.load %arg9[%c0_210, %c10_211, %c1_212] : memref<8x18x18xf32, #tpu.memory_space<vmem>>, vector<8x1x16xf32>
    %766 = vector.shape_cast %765 : vector<8x1x16xf32> to vector<8x16xf32>
    %767 = vector.shape_cast %764 : vector<8x16xf32> to vector<8x1x16xf32>
    tpu.vector_store %arg9[%c0_210, %c10_211, %c1_212], %767 {strides = array<i32>} : memref<8x18x18xf32, #tpu.memory_space<vmem>>, vector<8x1x16xf32>,
    %768 = vector.extract_strided_slice %725 {offsets = [0, 160], sizes = [8, 16], strides = [1, 1]} : vector<8x256xf32> to vector<8x16xf32>
    %c0_213 = arith.constant 0 : index
    %c11_214 = arith.constant 11 : index
    %c1_215 = arith.constant 1 : index
    %769 = vector.load %arg9[%c0_213, %c11_214, %c1_215] : memref<8x18x18xf32, #tpu.memory_space<vmem>>, vector<8x1x16xf32>
    %770 = vector.shape_cast %769 : vector<8x1x16xf32> to vector<8x16xf32>
    %771 = vector.shape_cast %768 : vector<8x16xf32> to vector<8x1x16xf32>
    tpu.vector_store %arg9[%c0_213, %c11_214, %c1_215], %771 {strides = array<i32>} : memref<8x18x18xf32, #tpu.memory_space<vmem>>, vector<8x1x16xf32>,
    %772 = vector.extract_strided_slice %725 {offsets = [0, 176], sizes = [8, 16], strides = [1, 1]} : vector<8x256xf32> to vector<8x16xf32>
    %c0_216 = arith.constant 0 : index
    %c12_217 = arith.constant 12 : index
    %c1_218 = arith.constant 1 : index
    %773 = vector.load %arg9[%c0_216, %c12_217, %c1_218] : memref<8x18x18xf32, #tpu.memory_space<vmem>>, vector<8x1x16xf32>
    %774 = vector.shape_cast %773 : vector<8x1x16xf32> to vector<8x16xf32>
    %775 = vector.shape_cast %772 : vector<8x16xf32> to vector<8x1x16xf32>
    tpu.vector_store %arg9[%c0_216, %c12_217, %c1_218], %775 {strides = array<i32>} : memref<8x18x18xf32, #tpu.memory_space<vmem>>, vector<8x1x16xf32>,
    %776 = vector.extract_strided_slice %725 {offsets = [0, 192], sizes = [8, 16], strides = [1, 1]} : vector<8x256xf32> to vector<8x16xf32>
    %c0_219 = arith.constant 0 : index
    %c13_220 = arith.constant 13 : index
    %c1_221 = arith.constant 1 : index
    %777 = vector.load %arg9[%c0_219, %c13_220, %c1_221] : memref<8x18x18xf32, #tpu.memory_space<vmem>>, vector<8x1x16xf32>
    %778 = vector.shape_cast %777 : vector<8x1x16xf32> to vector<8x16xf32>
    %779 = vector.shape_cast %776 : vector<8x16xf32> to vector<8x1x16xf32>
    tpu.vector_store %arg9[%c0_219, %c13_220, %c1_221], %779 {strides = array<i32>} : memref<8x18x18xf32, #tpu.memory_space<vmem>>, vector<8x1x16xf32>,
    %780 = vector.extract_strided_slice %725 {offsets = [0, 208], sizes = [8, 16], strides = [1, 1]} : vector<8x256xf32> to vector<8x16xf32>
    %c0_222 = arith.constant 0 : index
    %c14_223 = arith.constant 14 : index
    %c1_224 = arith.constant 1 : index
    %781 = vector.load %arg9[%c0_222, %c14_223, %c1_224] : memref<8x18x18xf32, #tpu.memory_space<vmem>>, vector<8x1x16xf32>
    %782 = vector.shape_cast %781 : vector<8x1x16xf32> to vector<8x16xf32>
    %783 = vector.shape_cast %780 : vector<8x16xf32> to vector<8x1x16xf32>
    tpu.vector_store %arg9[%c0_222, %c14_223, %c1_224], %783 {strides = array<i32>} : memref<8x18x18xf32, #tpu.memory_space<vmem>>, vector<8x1x16xf32>,
    %784 = vector.extract_strided_slice %725 {offsets = [0, 224], sizes = [8, 16], strides = [1, 1]} : vector<8x256xf32> to vector<8x16xf32>
    %c0_225 = arith.constant 0 : index
    %c15_226 = arith.constant 15 : index
    %c1_227 = arith.constant 1 : index
    %785 = vector.load %arg9[%c0_225, %c15_226, %c1_227] : memref<8x18x18xf32, #tpu.memory_space<vmem>>, vector<8x1x16xf32>
    %786 = vector.shape_cast %785 : vector<8x1x16xf32> to vector<8x16xf32>
    %787 = vector.shape_cast %784 : vector<8x16xf32> to vector<8x1x16xf32>
    tpu.vector_store %arg9[%c0_225, %c15_226, %c1_227], %787 {strides = array<i32>} : memref<8x18x18xf32, #tpu.memory_space<vmem>>, vector<8x1x16xf32>,
    %788 = vector.extract_strided_slice %725 {offsets = [0, 240], sizes = [8, 16], strides = [1, 1]} : vector<8x256xf32> to vector<8x16xf32>
    %c0_228 = arith.constant 0 : index
    %c16_229 = arith.constant 16 : index
    %c1_230 = arith.constant 1 : index
    %789 = vector.load %arg9[%c0_228, %c16_229, %c1_230] : memref<8x18x18xf32, #tpu.memory_space<vmem>>, vector<8x1x16xf32>
    %790 = vector.shape_cast %789 : vector<8x1x16xf32> to vector<8x16xf32>
    %791 = vector.shape_cast %788 : vector<8x16xf32> to vector<8x1x16xf32>
    tpu.vector_store %arg9[%c0_228, %c16_229, %c1_230], %791 {strides = array<i32>} : memref<8x18x18xf32, #tpu.memory_space<vmem>>, vector<8x1x16xf32>,
    %c0_231 = arith.constant 0 : index
    %c0_232 = arith.constant 0 : index
    %792 = vector.load %arg4[%c0_231, %c0_232] : memref<8x9xf32, #tpu.memory_space<vmem>>, vector<8x9xf32>
    %793 = vector.extract_strided_slice %792 {offsets = [0, 0], sizes = [8, 1], strides = [1, 1]} : vector<8x9xf32> to vector<8x1xf32>
    %794 = vector.extract_strided_slice %792 {offsets = [0, 1], sizes = [8, 1], strides = [1, 1]} : vector<8x9xf32> to vector<8x1xf32>
    %795 = vector.extract_strided_slice %792 {offsets = [0, 2], sizes = [8, 1], strides = [1, 1]} : vector<8x9xf32> to vector<8x1xf32>
    %796 = vector.extract_strided_slice %792 {offsets = [0, 3], sizes = [8, 1], strides = [1, 1]} : vector<8x9xf32> to vector<8x1xf32>
    %797 = vector.extract_strided_slice %792 {offsets = [0, 4], sizes = [8, 1], strides = [1, 1]} : vector<8x9xf32> to vector<8x1xf32>
    %798 = vector.extract_strided_slice %792 {offsets = [0, 5], sizes = [8, 1], strides = [1, 1]} : vector<8x9xf32> to vector<8x1xf32>
    %799 = vector.extract_strided_slice %792 {offsets = [0, 6], sizes = [8, 1], strides = [1, 1]} : vector<8x9xf32> to vector<8x1xf32>
    %800 = vector.extract_strided_slice %792 {offsets = [0, 7], sizes = [8, 1], strides = [1, 1]} : vector<8x9xf32> to vector<8x1xf32>
    %801 = vector.extract_strided_slice %792 {offsets = [0, 8], sizes = [8, 1], strides = [1, 1]} : vector<8x9xf32> to vector<8x1xf32>
    %c0_233 = arith.constant 0 : index
    %c0_234 = arith.constant 0 : index
    %c0_235 = arith.constant 0 : index
    %802 = vector.load %arg9[%c0_233, %c0_234, %c0_235] : memref<8x18x18xf32, #tpu.memory_space<vmem>>, vector<8x1x18xf32>
    %803 = vector.shape_cast %802 : vector<8x1x18xf32> to vector<8x18xf32>
    %c0_236 = arith.constant 0 : index
    %c1_237 = arith.constant 1 : index
    %c0_238 = arith.constant 0 : index
    %804 = vector.load %arg9[%c0_236, %c1_237, %c0_238] : memref<8x18x18xf32, #tpu.memory_space<vmem>>, vector<8x1x18xf32>
    %805 = vector.shape_cast %804 : vector<8x1x18xf32> to vector<8x18xf32>
    %c0_239 = arith.constant 0 : index
    %c2_240 = arith.constant 2 : index
    %c0_241 = arith.constant 0 : index
    %806 = vector.load %arg9[%c0_239, %c2_240, %c0_241] : memref<8x18x18xf32, #tpu.memory_space<vmem>>, vector<8x1x18xf32>
    %807 = vector.shape_cast %806 : vector<8x1x18xf32> to vector<8x18xf32>
    %cst_242 = arith.constant 0.000000e+00 : f32
    %808 = vector.broadcast %cst_242 : f32 to vector<8x16xf32>
    %809 = vector.extract_strided_slice %803 {offsets = [0, 0], sizes = [8, 16], strides = [1, 1]} : vector<8x18xf32> to vector<8x16xf32>
    %810 = vector.broadcast %793 : vector<8x1xf32> to vector<8x16xf32>
    %811 = arith.mulf %810, %809 : vector<8x16xf32>
    %812 = arith.addf %808, %811 : vector<8x16xf32>
    %813 = vector.extract_strided_slice %803 {offsets = [0, 1], sizes = [8, 16], strides = [1, 1]} : vector<8x18xf32> to vector<8x16xf32>
    %814 = vector.broadcast %794 : vector<8x1xf32> to vector<8x16xf32>
    %815 = arith.mulf %814, %813 : vector<8x16xf32>
    %816 = arith.addf %812, %815 : vector<8x16xf32>
    %817 = vector.extract_strided_slice %803 {offsets = [0, 2], sizes = [8, 16], strides = [1, 1]} : vector<8x18xf32> to vector<8x16xf32>
    %818 = vector.broadcast %795 : vector<8x1xf32> to vector<8x16xf32>
    %819 = arith.mulf %818, %817 : vector<8x16xf32>
    %820 = arith.addf %816, %819 : vector<8x16xf32>
    %821 = vector.extract_strided_slice %805 {offsets = [0, 0], sizes = [8, 16], strides = [1, 1]} : vector<8x18xf32> to vector<8x16xf32>
    %822 = vector.broadcast %796 : vector<8x1xf32> to vector<8x16xf32>
    %823 = arith.mulf %822, %821 : vector<8x16xf32>
    %824 = arith.addf %820, %823 : vector<8x16xf32>
    %825 = vector.extract_strided_slice %805 {offsets = [0, 1], sizes = [8, 16], strides = [1, 1]} : vector<8x18xf32> to vector<8x16xf32>
    %826 = vector.broadcast %797 : vector<8x1xf32> to vector<8x16xf32>
    %827 = arith.mulf %826, %825 : vector<8x16xf32>
    %828 = arith.addf %824, %827 : vector<8x16xf32>
    %829 = vector.extract_strided_slice %805 {offsets = [0, 2], sizes = [8, 16], strides = [1, 1]} : vector<8x18xf32> to vector<8x16xf32>
    %830 = vector.broadcast %798 : vector<8x1xf32> to vector<8x16xf32>
    %831 = arith.mulf %830, %829 : vector<8x16xf32>
    %832 = arith.addf %828, %831 : vector<8x16xf32>
    %833 = vector.extract_strided_slice %807 {offsets = [0, 0], sizes = [8, 16], strides = [1, 1]} : vector<8x18xf32> to vector<8x16xf32>
    %834 = vector.broadcast %799 : vector<8x1xf32> to vector<8x16xf32>
    %835 = arith.mulf %834, %833 : vector<8x16xf32>
    %836 = arith.addf %832, %835 : vector<8x16xf32>
    %837 = vector.extract_strided_slice %807 {offsets = [0, 1], sizes = [8, 16], strides = [1, 1]} : vector<8x18xf32> to vector<8x16xf32>
    %838 = vector.broadcast %800 : vector<8x1xf32> to vector<8x16xf32>
    %839 = arith.mulf %838, %837 : vector<8x16xf32>
    %840 = arith.addf %836, %839 : vector<8x16xf32>
    %841 = vector.extract_strided_slice %807 {offsets = [0, 2], sizes = [8, 16], strides = [1, 1]} : vector<8x18xf32> to vector<8x16xf32>
    %842 = vector.broadcast %801 : vector<8x1xf32> to vector<8x16xf32>
    %843 = arith.mulf %842, %841 : vector<8x16xf32>
    %844 = arith.addf %840, %843 : vector<8x16xf32>
    %c0_243 = arith.constant 0 : index
    %c0_244 = arith.constant 0 : index
    %845 = vector.load %arg10[%c0_243, %c0_244] : memref<8x256xf32, #tpu.memory_space<vmem>>, vector<8x16xf32>
    tpu.vector_store %arg10[%c0_243, %c0_244], %844 {strides = array<i32>} : memref<8x256xf32, #tpu.memory_space<vmem>>, vector<8x16xf32>,
    %c0_245 = arith.constant 0 : index
    %c1_246 = arith.constant 1 : index
    %c0_247 = arith.constant 0 : index
    %846 = vector.load %arg9[%c0_245, %c1_246, %c0_247] : memref<8x18x18xf32, #tpu.memory_space<vmem>>, vector<8x1x18xf32>
    %847 = vector.shape_cast %846 : vector<8x1x18xf32> to vector<8x18xf32>
    %c0_248 = arith.constant 0 : index
    %c2_249 = arith.constant 2 : index
    %c0_250 = arith.constant 0 : index
    %848 = vector.load %arg9[%c0_248, %c2_249, %c0_250] : memref<8x18x18xf32, #tpu.memory_space<vmem>>, vector<8x1x18xf32>
    %849 = vector.shape_cast %848 : vector<8x1x18xf32> to vector<8x18xf32>
    %c0_251 = arith.constant 0 : index
    %c3_252 = arith.constant 3 : index
    %c0_253 = arith.constant 0 : index
    %850 = vector.load %arg9[%c0_251, %c3_252, %c0_253] : memref<8x18x18xf32, #tpu.memory_space<vmem>>, vector<8x1x18xf32>
    %851 = vector.shape_cast %850 : vector<8x1x18xf32> to vector<8x18xf32>
    %cst_254 = arith.constant 0.000000e+00 : f32
    %852 = vector.broadcast %cst_254 : f32 to vector<8x16xf32>
    %853 = vector.extract_strided_slice %847 {offsets = [0, 0], sizes = [8, 16], strides = [1, 1]} : vector<8x18xf32> to vector<8x16xf32>
    %854 = vector.broadcast %793 : vector<8x1xf32> to vector<8x16xf32>
    %855 = arith.mulf %854, %853 : vector<8x16xf32>
    %856 = arith.addf %852, %855 : vector<8x16xf32>
    %857 = vector.extract_strided_slice %847 {offsets = [0, 1], sizes = [8, 16], strides = [1, 1]} : vector<8x18xf32> to vector<8x16xf32>
    %858 = vector.broadcast %794 : vector<8x1xf32> to vector<8x16xf32>
    %859 = arith.mulf %858, %857 : vector<8x16xf32>
    %860 = arith.addf %856, %859 : vector<8x16xf32>
    %861 = vector.extract_strided_slice %847 {offsets = [0, 2], sizes = [8, 16], strides = [1, 1]} : vector<8x18xf32> to vector<8x16xf32>
    %862 = vector.broadcast %795 : vector<8x1xf32> to vector<8x16xf32>
    %863 = arith.mulf %862, %861 : vector<8x16xf32>
    %864 = arith.addf %860, %863 : vector<8x16xf32>
    %865 = vector.extract_strided_slice %849 {offsets = [0, 0], sizes = [8, 16], strides = [1, 1]} : vector<8x18xf32> to vector<8x16xf32>
    %866 = vector.broadcast %796 : vector<8x1xf32> to vector<8x16xf32>
    %867 = arith.mulf %866, %865 : vector<8x16xf32>
    %868 = arith.addf %864, %867 : vector<8x16xf32>
    %869 = vector.extract_strided_slice %849 {offsets = [0, 1], sizes = [8, 16], strides = [1, 1]} : vector<8x18xf32> to vector<8x16xf32>
    %870 = vector.broadcast %797 : vector<8x1xf32> to vector<8x16xf32>
    %871 = arith.mulf %870, %869 : vector<8x16xf32>
    %872 = arith.addf %868, %871 : vector<8x16xf32>
    %873 = vector.extract_strided_slice %849 {offsets = [0, 2], sizes = [8, 16], strides = [1, 1]} : vector<8x18xf32> to vector<8x16xf32>
    %874 = vector.broadcast %798 : vector<8x1xf32> to vector<8x16xf32>
    %875 = arith.mulf %874, %873 : vector<8x16xf32>
    %876 = arith.addf %872, %875 : vector<8x16xf32>
    %877 = vector.extract_strided_slice %851 {offsets = [0, 0], sizes = [8, 16], strides = [1, 1]} : vector<8x18xf32> to vector<8x16xf32>
    %878 = vector.broadcast %799 : vector<8x1xf32> to vector<8x16xf32>
    %879 = arith.mulf %878, %877 : vector<8x16xf32>
    %880 = arith.addf %876, %879 : vector<8x16xf32>
    %881 = vector.extract_strided_slice %851 {offsets = [0, 1], sizes = [8, 16], strides = [1, 1]} : vector<8x18xf32> to vector<8x16xf32>
    %882 = vector.broadcast %800 : vector<8x1xf32> to vector<8x16xf32>
    %883 = arith.mulf %882, %881 : vector<8x16xf32>
    %884 = arith.addf %880, %883 : vector<8x16xf32>
    %885 = vector.extract_strided_slice %851 {offsets = [0, 2], sizes = [8, 16], strides = [1, 1]} : vector<8x18xf32> to vector<8x16xf32>
    %886 = vector.broadcast %801 : vector<8x1xf32> to vector<8x16xf32>
    %887 = arith.mulf %886, %885 : vector<8x16xf32>
    %888 = arith.addf %884, %887 : vector<8x16xf32>
    %c0_255 = arith.constant 0 : index
    %c16_256 = arith.constant 16 : index
    %889 = vector.load %arg10[%c0_255, %c16_256] : memref<8x256xf32, #tpu.memory_space<vmem>>, vector<8x16xf32>
    tpu.vector_store %arg10[%c0_255, %c16_256], %888 {strides = array<i32>} : memref<8x256xf32, #tpu.memory_space<vmem>>, vector<8x16xf32>,
    %c0_257 = arith.constant 0 : index
    %c2_258 = arith.constant 2 : index
    %c0_259 = arith.constant 0 : index
    %890 = vector.load %arg9[%c0_257, %c2_258, %c0_259] : memref<8x18x18xf32, #tpu.memory_space<vmem>>, vector<8x1x18xf32>
    %891 = vector.shape_cast %890 : vector<8x1x18xf32> to vector<8x18xf32>
    %c0_260 = arith.constant 0 : index
    %c3_261 = arith.constant 3 : index
    %c0_262 = arith.constant 0 : index
    %892 = vector.load %arg9[%c0_260, %c3_261, %c0_262] : memref<8x18x18xf32, #tpu.memory_space<vmem>>, vector<8x1x18xf32>
    %893 = vector.shape_cast %892 : vector<8x1x18xf32> to vector<8x18xf32>
    %c0_263 = arith.constant 0 : index
    %c4_264 = arith.constant 4 : index
    %c0_265 = arith.constant 0 : index
    %894 = vector.load %arg9[%c0_263, %c4_264, %c0_265] : memref<8x18x18xf32, #tpu.memory_space<vmem>>, vector<8x1x18xf32>
    %895 = vector.shape_cast %894 : vector<8x1x18xf32> to vector<8x18xf32>
    %cst_266 = arith.constant 0.000000e+00 : f32
    %896 = vector.broadcast %cst_266 : f32 to vector<8x16xf32>
    %897 = vector.extract_strided_slice %891 {offsets = [0, 0], sizes = [8, 16], strides = [1, 1]} : vector<8x18xf32> to vector<8x16xf32>
    %898 = vector.broadcast %793 : vector<8x1xf32> to vector<8x16xf32>
    %899 = arith.mulf %898, %897 : vector<8x16xf32>
    %900 = arith.addf %896, %899 : vector<8x16xf32>
    %901 = vector.extract_strided_slice %891 {offsets = [0, 1], sizes = [8, 16], strides = [1, 1]} : vector<8x18xf32> to vector<8x16xf32>
    %902 = vector.broadcast %794 : vector<8x1xf32> to vector<8x16xf32>
    %903 = arith.mulf %902, %901 : vector<8x16xf32>
    %904 = arith.addf %900, %903 : vector<8x16xf32>
    %905 = vector.extract_strided_slice %891 {offsets = [0, 2], sizes = [8, 16], strides = [1, 1]} : vector<8x18xf32> to vector<8x16xf32>
    %906 = vector.broadcast %795 : vector<8x1xf32> to vector<8x16xf32>
    %907 = arith.mulf %906, %905 : vector<8x16xf32>
    %908 = arith.addf %904, %907 : vector<8x16xf32>
    %909 = vector.extract_strided_slice %893 {offsets = [0, 0], sizes = [8, 16], strides = [1, 1]} : vector<8x18xf32> to vector<8x16xf32>
    %910 = vector.broadcast %796 : vector<8x1xf32> to vector<8x16xf32>
    %911 = arith.mulf %910, %909 : vector<8x16xf32>
    %912 = arith.addf %908, %911 : vector<8x16xf32>
    %913 = vector.extract_strided_slice %893 {offsets = [0, 1], sizes = [8, 16], strides = [1, 1]} : vector<8x18xf32> to vector<8x16xf32>
    %914 = vector.broadcast %797 : vector<8x1xf32> to vector<8x16xf32>
    %915 = arith.mulf %914, %913 : vector<8x16xf32>
    %916 = arith.addf %912, %915 : vector<8x16xf32>
    %917 = vector.extract_strided_slice %893 {offsets = [0, 2], sizes = [8, 16], strides = [1, 1]} : vector<8x18xf32> to vector<8x16xf32>
    %918 = vector.broadcast %798 : vector<8x1xf32> to vector<8x16xf32>
    %919 = arith.mulf %918, %917 : vector<8x16xf32>
    %920 = arith.addf %916, %919 : vector<8x16xf32>
    %921 = vector.extract_strided_slice %895 {offsets = [0, 0], sizes = [8, 16], strides = [1, 1]} : vector<8x18xf32> to vector<8x16xf32>
    %922 = vector.broadcast %799 : vector<8x1xf32> to vector<8x16xf32>
    %923 = arith.mulf %922, %921 : vector<8x16xf32>
    %924 = arith.addf %920, %923 : vector<8x16xf32>
    %925 = vector.extract_strided_slice %895 {offsets = [0, 1], sizes = [8, 16], strides = [1, 1]} : vector<8x18xf32> to vector<8x16xf32>
    %926 = vector.broadcast %800 : vector<8x1xf32> to vector<8x16xf32>
    %927 = arith.mulf %926, %925 : vector<8x16xf32>
    %928 = arith.addf %924, %927 : vector<8x16xf32>
    %929 = vector.extract_strided_slice %895 {offsets = [0, 2], sizes = [8, 16], strides = [1, 1]} : vector<8x18xf32> to vector<8x16xf32>
    %930 = vector.broadcast %801 : vector<8x1xf32> to vector<8x16xf32>
    %931 = arith.mulf %930, %929 : vector<8x16xf32>
    %932 = arith.addf %928, %931 : vector<8x16xf32>
    %c0_267 = arith.constant 0 : index
    %c32_268 = arith.constant 32 : index
    %933 = vector.load %arg10[%c0_267, %c32_268] : memref<8x256xf32, #tpu.memory_space<vmem>>, vector<8x16xf32>
    tpu.vector_store %arg10[%c0_267, %c32_268], %932 {strides = array<i32>} : memref<8x256xf32, #tpu.memory_space<vmem>>, vector<8x16xf32>,
    %c0_269 = arith.constant 0 : index
    %c3_270 = arith.constant 3 : index
    %c0_271 = arith.constant 0 : index
    %934 = vector.load %arg9[%c0_269, %c3_270, %c0_271] : memref<8x18x18xf32, #tpu.memory_space<vmem>>, vector<8x1x18xf32>
    %935 = vector.shape_cast %934 : vector<8x1x18xf32> to vector<8x18xf32>
    %c0_272 = arith.constant 0 : index
    %c4_273 = arith.constant 4 : index
    %c0_274 = arith.constant 0 : index
    %936 = vector.load %arg9[%c0_272, %c4_273, %c0_274] : memref<8x18x18xf32, #tpu.memory_space<vmem>>, vector<8x1x18xf32>
    %937 = vector.shape_cast %936 : vector<8x1x18xf32> to vector<8x18xf32>
    %c0_275 = arith.constant 0 : index
    %c5_276 = arith.constant 5 : index
    %c0_277 = arith.constant 0 : index
    %938 = vector.load %arg9[%c0_275, %c5_276, %c0_277] : memref<8x18x18xf32, #tpu.memory_space<vmem>>, vector<8x1x18xf32>
    %939 = vector.shape_cast %938 : vector<8x1x18xf32> to vector<8x18xf32>
    %cst_278 = arith.constant 0.000000e+00 : f32
    %940 = vector.broadcast %cst_278 : f32 to vector<8x16xf32>
    %941 = vector.extract_strided_slice %935 {offsets = [0, 0], sizes = [8, 16], strides = [1, 1]} : vector<8x18xf32> to vector<8x16xf32>
    %942 = vector.broadcast %793 : vector<8x1xf32> to vector<8x16xf32>
    %943 = arith.mulf %942, %941 : vector<8x16xf32>
    %944 = arith.addf %940, %943 : vector<8x16xf32>
    %945 = vector.extract_strided_slice %935 {offsets = [0, 1], sizes = [8, 16], strides = [1, 1]} : vector<8x18xf32> to vector<8x16xf32>
    %946 = vector.broadcast %794 : vector<8x1xf32> to vector<8x16xf32>
    %947 = arith.mulf %946, %945 : vector<8x16xf32>
    %948 = arith.addf %944, %947 : vector<8x16xf32>
    %949 = vector.extract_strided_slice %935 {offsets = [0, 2], sizes = [8, 16], strides = [1, 1]} : vector<8x18xf32> to vector<8x16xf32>
    %950 = vector.broadcast %795 : vector<8x1xf32> to vector<8x16xf32>
    %951 = arith.mulf %950, %949 : vector<8x16xf32>
    %952 = arith.addf %948, %951 : vector<8x16xf32>
    %953 = vector.extract_strided_slice %937 {offsets = [0, 0], sizes = [8, 16], strides = [1, 1]} : vector<8x18xf32> to vector<8x16xf32>
    %954 = vector.broadcast %796 : vector<8x1xf32> to vector<8x16xf32>
    %955 = arith.mulf %954, %953 : vector<8x16xf32>
    %956 = arith.addf %952, %955 : vector<8x16xf32>
    %957 = vector.extract_strided_slice %937 {offsets = [0, 1], sizes = [8, 16], strides = [1, 1]} : vector<8x18xf32> to vector<8x16xf32>
    %958 = vector.broadcast %797 : vector<8x1xf32> to vector<8x16xf32>
    %959 = arith.mulf %958, %957 : vector<8x16xf32>
    %960 = arith.addf %956, %959 : vector<8x16xf32>
    %961 = vector.extract_strided_slice %937 {offsets = [0, 2], sizes = [8, 16], strides = [1, 1]} : vector<8x18xf32> to vector<8x16xf32>
    %962 = vector.broadcast %798 : vector<8x1xf32> to vector<8x16xf32>
    %963 = arith.mulf %962, %961 : vector<8x16xf32>
    %964 = arith.addf %960, %963 : vector<8x16xf32>
    %965 = vector.extract_strided_slice %939 {offsets = [0, 0], sizes = [8, 16], strides = [1, 1]} : vector<8x18xf32> to vector<8x16xf32>
    %966 = vector.broadcast %799 : vector<8x1xf32> to vector<8x16xf32>
    %967 = arith.mulf %966, %965 : vector<8x16xf32>
    %968 = arith.addf %964, %967 : vector<8x16xf32>
    %969 = vector.extract_strided_slice %939 {offsets = [0, 1], sizes = [8, 16], strides = [1, 1]} : vector<8x18xf32> to vector<8x16xf32>
    %970 = vector.broadcast %800 : vector<8x1xf32> to vector<8x16xf32>
    %971 = arith.mulf %970, %969 : vector<8x16xf32>
    %972 = arith.addf %968, %971 : vector<8x16xf32>
    %973 = vector.extract_strided_slice %939 {offsets = [0, 2], sizes = [8, 16], strides = [1, 1]} : vector<8x18xf32> to vector<8x16xf32>
    %974 = vector.broadcast %801 : vector<8x1xf32> to vector<8x16xf32>
    %975 = arith.mulf %974, %973 : vector<8x16xf32>
    %976 = arith.addf %972, %975 : vector<8x16xf32>
    %c0_279 = arith.constant 0 : index
    %c48_280 = arith.constant 48 : index
    %977 = vector.load %arg10[%c0_279, %c48_280] : memref<8x256xf32, #tpu.memory_space<vmem>>, vector<8x16xf32>
    tpu.vector_store %arg10[%c0_279, %c48_280], %976 {strides = array<i32>} : memref<8x256xf32, #tpu.memory_space<vmem>>, vector<8x16xf32>,
    %c0_281 = arith.constant 0 : index
    %c4_282 = arith.constant 4 : index
    %c0_283 = arith.constant 0 : index
    %978 = vector.load %arg9[%c0_281, %c4_282, %c0_283] : memref<8x18x18xf32, #tpu.memory_space<vmem>>, vector<8x1x18xf32>
    %979 = vector.shape_cast %978 : vector<8x1x18xf32> to vector<8x18xf32>
    %c0_284 = arith.constant 0 : index
    %c5_285 = arith.constant 5 : index
    %c0_286 = arith.constant 0 : index
    %980 = vector.load %arg9[%c0_284, %c5_285, %c0_286] : memref<8x18x18xf32, #tpu.memory_space<vmem>>, vector<8x1x18xf32>
    %981 = vector.shape_cast %980 : vector<8x1x18xf32> to vector<8x18xf32>
    %c0_287 = arith.constant 0 : index
    %c6_288 = arith.constant 6 : index
    %c0_289 = arith.constant 0 : index
    %982 = vector.load %arg9[%c0_287, %c6_288, %c0_289] : memref<8x18x18xf32, #tpu.memory_space<vmem>>, vector<8x1x18xf32>
    %983 = vector.shape_cast %982 : vector<8x1x18xf32> to vector<8x18xf32>
    %cst_290 = arith.constant 0.000000e+00 : f32
    %984 = vector.broadcast %cst_290 : f32 to vector<8x16xf32>
    %985 = vector.extract_strided_slice %979 {offsets = [0, 0], sizes = [8, 16], strides = [1, 1]} : vector<8x18xf32> to vector<8x16xf32>
    %986 = vector.broadcast %793 : vector<8x1xf32> to vector<8x16xf32>
    %987 = arith.mulf %986, %985 : vector<8x16xf32>
    %988 = arith.addf %984, %987 : vector<8x16xf32>
    %989 = vector.extract_strided_slice %979 {offsets = [0, 1], sizes = [8, 16], strides = [1, 1]} : vector<8x18xf32> to vector<8x16xf32>
    %990 = vector.broadcast %794 : vector<8x1xf32> to vector<8x16xf32>
    %991 = arith.mulf %990, %989 : vector<8x16xf32>
    %992 = arith.addf %988, %991 : vector<8x16xf32>
    %993 = vector.extract_strided_slice %979 {offsets = [0, 2], sizes = [8, 16], strides = [1, 1]} : vector<8x18xf32> to vector<8x16xf32>
    %994 = vector.broadcast %795 : vector<8x1xf32> to vector<8x16xf32>
    %995 = arith.mulf %994, %993 : vector<8x16xf32>
    %996 = arith.addf %992, %995 : vector<8x16xf32>
    %997 = vector.extract_strided_slice %981 {offsets = [0, 0], sizes = [8, 16], strides = [1, 1]} : vector<8x18xf32> to vector<8x16xf32>
    %998 = vector.broadcast %796 : vector<8x1xf32> to vector<8x16xf32>
    %999 = arith.mulf %998, %997 : vector<8x16xf32>
    %1000 = arith.addf %996, %999 : vector<8x16xf32>
    %1001 = vector.extract_strided_slice %981 {offsets = [0, 1], sizes = [8, 16], strides = [1, 1]} : vector<8x18xf32> to vector<8x16xf32>
    %1002 = vector.broadcast %797 : vector<8x1xf32> to vector<8x16xf32>
    %1003 = arith.mulf %1002, %1001 : vector<8x16xf32>
    %1004 = arith.addf %1000, %1003 : vector<8x16xf32>
    %1005 = vector.extract_strided_slice %981 {offsets = [0, 2], sizes = [8, 16], strides = [1, 1]} : vector<8x18xf32> to vector<8x16xf32>
    %1006 = vector.broadcast %798 : vector<8x1xf32> to vector<8x16xf32>
    %1007 = arith.mulf %1006, %1005 : vector<8x16xf32>
    %1008 = arith.addf %1004, %1007 : vector<8x16xf32>
    %1009 = vector.extract_strided_slice %983 {offsets = [0, 0], sizes = [8, 16], strides = [1, 1]} : vector<8x18xf32> to vector<8x16xf32>
    %1010 = vector.broadcast %799 : vector<8x1xf32> to vector<8x16xf32>
    %1011 = arith.mulf %1010, %1009 : vector<8x16xf32>
    %1012 = arith.addf %1008, %1011 : vector<8x16xf32>
    %1013 = vector.extract_strided_slice %983 {offsets = [0, 1], sizes = [8, 16], strides = [1, 1]} : vector<8x18xf32> to vector<8x16xf32>
    %1014 = vector.broadcast %800 : vector<8x1xf32> to vector<8x16xf32>
    %1015 = arith.mulf %1014, %1013 : vector<8x16xf32>
    %1016 = arith.addf %1012, %1015 : vector<8x16xf32>
    %1017 = vector.extract_strided_slice %983 {offsets = [0, 2], sizes = [8, 16], strides = [1, 1]} : vector<8x18xf32> to vector<8x16xf32>
    %1018 = vector.broadcast %801 : vector<8x1xf32> to vector<8x16xf32>
    %1019 = arith.mulf %1018, %1017 : vector<8x16xf32>
    %1020 = arith.addf %1016, %1019 : vector<8x16xf32>
    %c0_291 = arith.constant 0 : index
    %c64_292 = arith.constant 64 : index
    %1021 = vector.load %arg10[%c0_291, %c64_292] : memref<8x256xf32, #tpu.memory_space<vmem>>, vector<8x16xf32>
    tpu.vector_store %arg10[%c0_291, %c64_292], %1020 {strides = array<i32>} : memref<8x256xf32, #tpu.memory_space<vmem>>, vector<8x16xf32>,
    %c0_293 = arith.constant 0 : index
    %c5_294 = arith.constant 5 : index
    %c0_295 = arith.constant 0 : index
    %1022 = vector.load %arg9[%c0_293, %c5_294, %c0_295] : memref<8x18x18xf32, #tpu.memory_space<vmem>>, vector<8x1x18xf32>
    %1023 = vector.shape_cast %1022 : vector<8x1x18xf32> to vector<8x18xf32>
    %c0_296 = arith.constant 0 : index
    %c6_297 = arith.constant 6 : index
    %c0_298 = arith.constant 0 : index
    %1024 = vector.load %arg9[%c0_296, %c6_297, %c0_298] : memref<8x18x18xf32, #tpu.memory_space<vmem>>, vector<8x1x18xf32>
    %1025 = vector.shape_cast %1024 : vector<8x1x18xf32> to vector<8x18xf32>
    %c0_299 = arith.constant 0 : index
    %c7_300 = arith.constant 7 : index
    %c0_301 = arith.constant 0 : index
    %1026 = vector.load %arg9[%c0_299, %c7_300, %c0_301] : memref<8x18x18xf32, #tpu.memory_space<vmem>>, vector<8x1x18xf32>
    %1027 = vector.shape_cast %1026 : vector<8x1x18xf32> to vector<8x18xf32>
    %cst_302 = arith.constant 0.000000e+00 : f32
    %1028 = vector.broadcast %cst_302 : f32 to vector<8x16xf32>
    %1029 = vector.extract_strided_slice %1023 {offsets = [0, 0], sizes = [8, 16], strides = [1, 1]} : vector<8x18xf32> to vector<8x16xf32>
    %1030 = vector.broadcast %793 : vector<8x1xf32> to vector<8x16xf32>
    %1031 = arith.mulf %1030, %1029 : vector<8x16xf32>
    %1032 = arith.addf %1028, %1031 : vector<8x16xf32>
    %1033 = vector.extract_strided_slice %1023 {offsets = [0, 1], sizes = [8, 16], strides = [1, 1]} : vector<8x18xf32> to vector<8x16xf32>
    %1034 = vector.broadcast %794 : vector<8x1xf32> to vector<8x16xf32>
    %1035 = arith.mulf %1034, %1033 : vector<8x16xf32>
    %1036 = arith.addf %1032, %1035 : vector<8x16xf32>
    %1037 = vector.extract_strided_slice %1023 {offsets = [0, 2], sizes = [8, 16], strides = [1, 1]} : vector<8x18xf32> to vector<8x16xf32>
    %1038 = vector.broadcast %795 : vector<8x1xf32> to vector<8x16xf32>
    %1039 = arith.mulf %1038, %1037 : vector<8x16xf32>
    %1040 = arith.addf %1036, %1039 : vector<8x16xf32>
    %1041 = vector.extract_strided_slice %1025 {offsets = [0, 0], sizes = [8, 16], strides = [1, 1]} : vector<8x18xf32> to vector<8x16xf32>
    %1042 = vector.broadcast %796 : vector<8x1xf32> to vector<8x16xf32>
    %1043 = arith.mulf %1042, %1041 : vector<8x16xf32>
    %1044 = arith.addf %1040, %1043 : vector<8x16xf32>
    %1045 = vector.extract_strided_slice %1025 {offsets = [0, 1], sizes = [8, 16], strides = [1, 1]} : vector<8x18xf32> to vector<8x16xf32>
    %1046 = vector.broadcast %797 : vector<8x1xf32> to vector<8x16xf32>
    %1047 = arith.mulf %1046, %1045 : vector<8x16xf32>
    %1048 = arith.addf %1044, %1047 : vector<8x16xf32>
    %1049 = vector.extract_strided_slice %1025 {offsets = [0, 2], sizes = [8, 16], strides = [1, 1]} : vector<8x18xf32> to vector<8x16xf32>
    %1050 = vector.broadcast %798 : vector<8x1xf32> to vector<8x16xf32>
    %1051 = arith.mulf %1050, %1049 : vector<8x16xf32>
    %1052 = arith.addf %1048, %1051 : vector<8x16xf32>
    %1053 = vector.extract_strided_slice %1027 {offsets = [0, 0], sizes = [8, 16], strides = [1, 1]} : vector<8x18xf32> to vector<8x16xf32>
    %1054 = vector.broadcast %799 : vector<8x1xf32> to vector<8x16xf32>
    %1055 = arith.mulf %1054, %1053 : vector<8x16xf32>
    %1056 = arith.addf %1052, %1055 : vector<8x16xf32>
    %1057 = vector.extract_strided_slice %1027 {offsets = [0, 1], sizes = [8, 16], strides = [1, 1]} : vector<8x18xf32> to vector<8x16xf32>
    %1058 = vector.broadcast %800 : vector<8x1xf32> to vector<8x16xf32>
    %1059 = arith.mulf %1058, %1057 : vector<8x16xf32>
    %1060 = arith.addf %1056, %1059 : vector<8x16xf32>
    %1061 = vector.extract_strided_slice %1027 {offsets = [0, 2], sizes = [8, 16], strides = [1, 1]} : vector<8x18xf32> to vector<8x16xf32>
    %1062 = vector.broadcast %801 : vector<8x1xf32> to vector<8x16xf32>
    %1063 = arith.mulf %1062, %1061 : vector<8x16xf32>
    %1064 = arith.addf %1060, %1063 : vector<8x16xf32>
    %c0_303 = arith.constant 0 : index
    %c80_304 = arith.constant 80 : index
    %1065 = vector.load %arg10[%c0_303, %c80_304] : memref<8x256xf32, #tpu.memory_space<vmem>>, vector<8x16xf32>
    tpu.vector_store %arg10[%c0_303, %c80_304], %1064 {strides = array<i32>} : memref<8x256xf32, #tpu.memory_space<vmem>>, vector<8x16xf32>,
    %c0_305 = arith.constant 0 : index
    %c6_306 = arith.constant 6 : index
    %c0_307 = arith.constant 0 : index
    %1066 = vector.load %arg9[%c0_305, %c6_306, %c0_307] : memref<8x18x18xf32, #tpu.memory_space<vmem>>, vector<8x1x18xf32>
    %1067 = vector.shape_cast %1066 : vector<8x1x18xf32> to vector<8x18xf32>
    %c0_308 = arith.constant 0 : index
    %c7_309 = arith.constant 7 : index
    %c0_310 = arith.constant 0 : index
    %1068 = vector.load %arg9[%c0_308, %c7_309, %c0_310] : memref<8x18x18xf32, #tpu.memory_space<vmem>>, vector<8x1x18xf32>
    %1069 = vector.shape_cast %1068 : vector<8x1x18xf32> to vector<8x18xf32>
    %c0_311 = arith.constant 0 : index
    %c8_312 = arith.constant 8 : index
    %c0_313 = arith.constant 0 : index
    %1070 = vector.load %arg9[%c0_311, %c8_312, %c0_313] : memref<8x18x18xf32, #tpu.memory_space<vmem>>, vector<8x1x18xf32>
    %1071 = vector.shape_cast %1070 : vector<8x1x18xf32> to vector<8x18xf32>
    %cst_314 = arith.constant 0.000000e+00 : f32
    %1072 = vector.broadcast %cst_314 : f32 to vector<8x16xf32>
    %1073 = vector.extract_strided_slice %1067 {offsets = [0, 0], sizes = [8, 16], strides = [1, 1]} : vector<8x18xf32> to vector<8x16xf32>
    %1074 = vector.broadcast %793 : vector<8x1xf32> to vector<8x16xf32>
    %1075 = arith.mulf %1074, %1073 : vector<8x16xf32>
    %1076 = arith.addf %1072, %1075 : vector<8x16xf32>
    %1077 = vector.extract_strided_slice %1067 {offsets = [0, 1], sizes = [8, 16], strides = [1, 1]} : vector<8x18xf32> to vector<8x16xf32>
    %1078 = vector.broadcast %794 : vector<8x1xf32> to vector<8x16xf32>
    %1079 = arith.mulf %1078, %1077 : vector<8x16xf32>
    %1080 = arith.addf %1076, %1079 : vector<8x16xf32>
    %1081 = vector.extract_strided_slice %1067 {offsets = [0, 2], sizes = [8, 16], strides = [1, 1]} : vector<8x18xf32> to vector<8x16xf32>
    %1082 = vector.broadcast %795 : vector<8x1xf32> to vector<8x16xf32>
    %1083 = arith.mulf %1082, %1081 : vector<8x16xf32>
    %1084 = arith.addf %1080, %1083 : vector<8x16xf32>
    %1085 = vector.extract_strided_slice %1069 {offsets = [0, 0], sizes = [8, 16], strides = [1, 1]} : vector<8x18xf32> to vector<8x16xf32>
    %1086 = vector.broadcast %796 : vector<8x1xf32> to vector<8x16xf32>
    %1087 = arith.mulf %1086, %1085 : vector<8x16xf32>
    %1088 = arith.addf %1084, %1087 : vector<8x16xf32>
    %1089 = vector.extract_strided_slice %1069 {offsets = [0, 1], sizes = [8, 16], strides = [1, 1]} : vector<8x18xf32> to vector<8x16xf32>
    %1090 = vector.broadcast %797 : vector<8x1xf32> to vector<8x16xf32>
    %1091 = arith.mulf %1090, %1089 : vector<8x16xf32>
    %1092 = arith.addf %1088, %1091 : vector<8x16xf32>
    %1093 = vector.extract_strided_slice %1069 {offsets = [0, 2], sizes = [8, 16], strides = [1, 1]} : vector<8x18xf32> to vector<8x16xf32>
    %1094 = vector.broadcast %798 : vector<8x1xf32> to vector<8x16xf32>
    %1095 = arith.mulf %1094, %1093 : vector<8x16xf32>
    %1096 = arith.addf %1092, %1095 : vector<8x16xf32>
    %1097 = vector.extract_strided_slice %1071 {offsets = [0, 0], sizes = [8, 16], strides = [1, 1]} : vector<8x18xf32> to vector<8x16xf32>
    %1098 = vector.broadcast %799 : vector<8x1xf32> to vector<8x16xf32>
    %1099 = arith.mulf %1098, %1097 : vector<8x16xf32>
    %1100 = arith.addf %1096, %1099 : vector<8x16xf32>
    %1101 = vector.extract_strided_slice %1071 {offsets = [0, 1], sizes = [8, 16], strides = [1, 1]} : vector<8x18xf32> to vector<8x16xf32>
    %1102 = vector.broadcast %800 : vector<8x1xf32> to vector<8x16xf32>
    %1103 = arith.mulf %1102, %1101 : vector<8x16xf32>
    %1104 = arith.addf %1100, %1103 : vector<8x16xf32>
    %1105 = vector.extract_strided_slice %1071 {offsets = [0, 2], sizes = [8, 16], strides = [1, 1]} : vector<8x18xf32> to vector<8x16xf32>
    %1106 = vector.broadcast %801 : vector<8x1xf32> to vector<8x16xf32>
    %1107 = arith.mulf %1106, %1105 : vector<8x16xf32>
    %1108 = arith.addf %1104, %1107 : vector<8x16xf32>
    %c0_315 = arith.constant 0 : index
    %c96_316 = arith.constant 96 : index
    %1109 = vector.load %arg10[%c0_315, %c96_316] : memref<8x256xf32, #tpu.memory_space<vmem>>, vector<8x16xf32>
    tpu.vector_store %arg10[%c0_315, %c96_316], %1108 {strides = array<i32>} : memref<8x256xf32, #tpu.memory_space<vmem>>, vector<8x16xf32>,
    %c0_317 = arith.constant 0 : index
    %c7_318 = arith.constant 7 : index
    %c0_319 = arith.constant 0 : index
    %1110 = vector.load %arg9[%c0_317, %c7_318, %c0_319] : memref<8x18x18xf32, #tpu.memory_space<vmem>>, vector<8x1x18xf32>
    %1111 = vector.shape_cast %1110 : vector<8x1x18xf32> to vector<8x18xf32>
    %c0_320 = arith.constant 0 : index
    %c8_321 = arith.constant 8 : index
    %c0_322 = arith.constant 0 : index
    %1112 = vector.load %arg9[%c0_320, %c8_321, %c0_322] : memref<8x18x18xf32, #tpu.memory_space<vmem>>, vector<8x1x18xf32>
    %1113 = vector.shape_cast %1112 : vector<8x1x18xf32> to vector<8x18xf32>
    %c0_323 = arith.constant 0 : index
    %c9_324 = arith.constant 9 : index
    %c0_325 = arith.constant 0 : index
    %1114 = vector.load %arg9[%c0_323, %c9_324, %c0_325] : memref<8x18x18xf32, #tpu.memory_space<vmem>>, vector<8x1x18xf32>
    %1115 = vector.shape_cast %1114 : vector<8x1x18xf32> to vector<8x18xf32>
    %cst_326 = arith.constant 0.000000e+00 : f32
    %1116 = vector.broadcast %cst_326 : f32 to vector<8x16xf32>
    %1117 = vector.extract_strided_slice %1111 {offsets = [0, 0], sizes = [8, 16], strides = [1, 1]} : vector<8x18xf32> to vector<8x16xf32>
    %1118 = vector.broadcast %793 : vector<8x1xf32> to vector<8x16xf32>
    %1119 = arith.mulf %1118, %1117 : vector<8x16xf32>
    %1120 = arith.addf %1116, %1119 : vector<8x16xf32>
    %1121 = vector.extract_strided_slice %1111 {offsets = [0, 1], sizes = [8, 16], strides = [1, 1]} : vector<8x18xf32> to vector<8x16xf32>
    %1122 = vector.broadcast %794 : vector<8x1xf32> to vector<8x16xf32>
    %1123 = arith.mulf %1122, %1121 : vector<8x16xf32>
    %1124 = arith.addf %1120, %1123 : vector<8x16xf32>
    %1125 = vector.extract_strided_slice %1111 {offsets = [0, 2], sizes = [8, 16], strides = [1, 1]} : vector<8x18xf32> to vector<8x16xf32>
    %1126 = vector.broadcast %795 : vector<8x1xf32> to vector<8x16xf32>
    %1127 = arith.mulf %1126, %1125 : vector<8x16xf32>
    %1128 = arith.addf %1124, %1127 : vector<8x16xf32>
    %1129 = vector.extract_strided_slice %1113 {offsets = [0, 0], sizes = [8, 16], strides = [1, 1]} : vector<8x18xf32> to vector<8x16xf32>
    %1130 = vector.broadcast %796 : vector<8x1xf32> to vector<8x16xf32>
    %1131 = arith.mulf %1130, %1129 : vector<8x16xf32>
    %1132 = arith.addf %1128, %1131 : vector<8x16xf32>
    %1133 = vector.extract_strided_slice %1113 {offsets = [0, 1], sizes = [8, 16], strides = [1, 1]} : vector<8x18xf32> to vector<8x16xf32>
    %1134 = vector.broadcast %797 : vector<8x1xf32> to vector<8x16xf32>
    %1135 = arith.mulf %1134, %1133 : vector<8x16xf32>
    %1136 = arith.addf %1132, %1135 : vector<8x16xf32>
    %1137 = vector.extract_strided_slice %1113 {offsets = [0, 2], sizes = [8, 16], strides = [1, 1]} : vector<8x18xf32> to vector<8x16xf32>
    %1138 = vector.broadcast %798 : vector<8x1xf32> to vector<8x16xf32>
    %1139 = arith.mulf %1138, %1137 : vector<8x16xf32>
    %1140 = arith.addf %1136, %1139 : vector<8x16xf32>
    %1141 = vector.extract_strided_slice %1115 {offsets = [0, 0], sizes = [8, 16], strides = [1, 1]} : vector<8x18xf32> to vector<8x16xf32>
    %1142 = vector.broadcast %799 : vector<8x1xf32> to vector<8x16xf32>
    %1143 = arith.mulf %1142, %1141 : vector<8x16xf32>
    %1144 = arith.addf %1140, %1143 : vector<8x16xf32>
    %1145 = vector.extract_strided_slice %1115 {offsets = [0, 1], sizes = [8, 16], strides = [1, 1]} : vector<8x18xf32> to vector<8x16xf32>
    %1146 = vector.broadcast %800 : vector<8x1xf32> to vector<8x16xf32>
    %1147 = arith.mulf %1146, %1145 : vector<8x16xf32>
    %1148 = arith.addf %1144, %1147 : vector<8x16xf32>
    %1149 = vector.extract_strided_slice %1115 {offsets = [0, 2], sizes = [8, 16], strides = [1, 1]} : vector<8x18xf32> to vector<8x16xf32>
    %1150 = vector.broadcast %801 : vector<8x1xf32> to vector<8x16xf32>
    %1151 = arith.mulf %1150, %1149 : vector<8x16xf32>
    %1152 = arith.addf %1148, %1151 : vector<8x16xf32>
    %c0_327 = arith.constant 0 : index
    %c112_328 = arith.constant 112 : index
    %1153 = vector.load %arg10[%c0_327, %c112_328] : memref<8x256xf32, #tpu.memory_space<vmem>>, vector<8x16xf32>
    tpu.vector_store %arg10[%c0_327, %c112_328], %1152 {strides = array<i32>} : memref<8x256xf32, #tpu.memory_space<vmem>>, vector<8x16xf32>,
    %c0_329 = arith.constant 0 : index
    %c8_330 = arith.constant 8 : index
    %c0_331 = arith.constant 0 : index
    %1154 = vector.load %arg9[%c0_329, %c8_330, %c0_331] : memref<8x18x18xf32, #tpu.memory_space<vmem>>, vector<8x1x18xf32>
    %1155 = vector.shape_cast %1154 : vector<8x1x18xf32> to vector<8x18xf32>
    %c0_332 = arith.constant 0 : index
    %c9_333 = arith.constant 9 : index
    %c0_334 = arith.constant 0 : index
    %1156 = vector.load %arg9[%c0_332, %c9_333, %c0_334] : memref<8x18x18xf32, #tpu.memory_space<vmem>>, vector<8x1x18xf32>
    %1157 = vector.shape_cast %1156 : vector<8x1x18xf32> to vector<8x18xf32>
    %c0_335 = arith.constant 0 : index
    %c10_336 = arith.constant 10 : index
    %c0_337 = arith.constant 0 : index
    %1158 = vector.load %arg9[%c0_335, %c10_336, %c0_337] : memref<8x18x18xf32, #tpu.memory_space<vmem>>, vector<8x1x18xf32>
    %1159 = vector.shape_cast %1158 : vector<8x1x18xf32> to vector<8x18xf32>
    %cst_338 = arith.constant 0.000000e+00 : f32
    %1160 = vector.broadcast %cst_338 : f32 to vector<8x16xf32>
    %1161 = vector.extract_strided_slice %1155 {offsets = [0, 0], sizes = [8, 16], strides = [1, 1]} : vector<8x18xf32> to vector<8x16xf32>
    %1162 = vector.broadcast %793 : vector<8x1xf32> to vector<8x16xf32>
    %1163 = arith.mulf %1162, %1161 : vector<8x16xf32>
    %1164 = arith.addf %1160, %1163 : vector<8x16xf32>
    %1165 = vector.extract_strided_slice %1155 {offsets = [0, 1], sizes = [8, 16], strides = [1, 1]} : vector<8x18xf32> to vector<8x16xf32>
    %1166 = vector.broadcast %794 : vector<8x1xf32> to vector<8x16xf32>
    %1167 = arith.mulf %1166, %1165 : vector<8x16xf32>
    %1168 = arith.addf %1164, %1167 : vector<8x16xf32>
    %1169 = vector.extract_strided_slice %1155 {offsets = [0, 2], sizes = [8, 16], strides = [1, 1]} : vector<8x18xf32> to vector<8x16xf32>
    %1170 = vector.broadcast %795 : vector<8x1xf32> to vector<8x16xf32>
    %1171 = arith.mulf %1170, %1169 : vector<8x16xf32>
    %1172 = arith.addf %1168, %1171 : vector<8x16xf32>
    %1173 = vector.extract_strided_slice %1157 {offsets = [0, 0], sizes = [8, 16], strides = [1, 1]} : vector<8x18xf32> to vector<8x16xf32>
    %1174 = vector.broadcast %796 : vector<8x1xf32> to vector<8x16xf32>
    %1175 = arith.mulf %1174, %1173 : vector<8x16xf32>
    %1176 = arith.addf %1172, %1175 : vector<8x16xf32>
    %1177 = vector.extract_strided_slice %1157 {offsets = [0, 1], sizes = [8, 16], strides = [1, 1]} : vector<8x18xf32> to vector<8x16xf32>
    %1178 = vector.broadcast %797 : vector<8x1xf32> to vector<8x16xf32>
    %1179 = arith.mulf %1178, %1177 : vector<8x16xf32>
    %1180 = arith.addf %1176, %1179 : vector<8x16xf32>
    %1181 = vector.extract_strided_slice %1157 {offsets = [0, 2], sizes = [8, 16], strides = [1, 1]} : vector<8x18xf32> to vector<8x16xf32>
    %1182 = vector.broadcast %798 : vector<8x1xf32> to vector<8x16xf32>
    %1183 = arith.mulf %1182, %1181 : vector<8x16xf32>
    %1184 = arith.addf %1180, %1183 : vector<8x16xf32>
    %1185 = vector.extract_strided_slice %1159 {offsets = [0, 0], sizes = [8, 16], strides = [1, 1]} : vector<8x18xf32> to vector<8x16xf32>
    %1186 = vector.broadcast %799 : vector<8x1xf32> to vector<8x16xf32>
    %1187 = arith.mulf %1186, %1185 : vector<8x16xf32>
    %1188 = arith.addf %1184, %1187 : vector<8x16xf32>
    %1189 = vector.extract_strided_slice %1159 {offsets = [0, 1], sizes = [8, 16], strides = [1, 1]} : vector<8x18xf32> to vector<8x16xf32>
    %1190 = vector.broadcast %800 : vector<8x1xf32> to vector<8x16xf32>
    %1191 = arith.mulf %1190, %1189 : vector<8x16xf32>
    %1192 = arith.addf %1188, %1191 : vector<8x16xf32>
    %1193 = vector.extract_strided_slice %1159 {offsets = [0, 2], sizes = [8, 16], strides = [1, 1]} : vector<8x18xf32> to vector<8x16xf32>
    %1194 = vector.broadcast %801 : vector<8x1xf32> to vector<8x16xf32>
    %1195 = arith.mulf %1194, %1193 : vector<8x16xf32>
    %1196 = arith.addf %1192, %1195 : vector<8x16xf32>
    %c0_339 = arith.constant 0 : index
    %c128_340 = arith.constant 128 : index
    %1197 = vector.load %arg10[%c0_339, %c128_340] : memref<8x256xf32, #tpu.memory_space<vmem>>, vector<8x16xf32>
    tpu.vector_store %arg10[%c0_339, %c128_340], %1196 {strides = array<i32>} : memref<8x256xf32, #tpu.memory_space<vmem>>, vector<8x16xf32>,
    %c0_341 = arith.constant 0 : index
    %c9_342 = arith.constant 9 : index
    %c0_343 = arith.constant 0 : index
    %1198 = vector.load %arg9[%c0_341, %c9_342, %c0_343] : memref<8x18x18xf32, #tpu.memory_space<vmem>>, vector<8x1x18xf32>
    %1199 = vector.shape_cast %1198 : vector<8x1x18xf32> to vector<8x18xf32>
    %c0_344 = arith.constant 0 : index
    %c10_345 = arith.constant 10 : index
    %c0_346 = arith.constant 0 : index
    %1200 = vector.load %arg9[%c0_344, %c10_345, %c0_346] : memref<8x18x18xf32, #tpu.memory_space<vmem>>, vector<8x1x18xf32>
    %1201 = vector.shape_cast %1200 : vector<8x1x18xf32> to vector<8x18xf32>
    %c0_347 = arith.constant 0 : index
    %c11_348 = arith.constant 11 : index
    %c0_349 = arith.constant 0 : index
    %1202 = vector.load %arg9[%c0_347, %c11_348, %c0_349] : memref<8x18x18xf32, #tpu.memory_space<vmem>>, vector<8x1x18xf32>
    %1203 = vector.shape_cast %1202 : vector<8x1x18xf32> to vector<8x18xf32>
    %cst_350 = arith.constant 0.000000e+00 : f32
    %1204 = vector.broadcast %cst_350 : f32 to vector<8x16xf32>
    %1205 = vector.extract_strided_slice %1199 {offsets = [0, 0], sizes = [8, 16], strides = [1, 1]} : vector<8x18xf32> to vector<8x16xf32>
    %1206 = vector.broadcast %793 : vector<8x1xf32> to vector<8x16xf32>
    %1207 = arith.mulf %1206, %1205 : vector<8x16xf32>
    %1208 = arith.addf %1204, %1207 : vector<8x16xf32>
    %1209 = vector.extract_strided_slice %1199 {offsets = [0, 1], sizes = [8, 16], strides = [1, 1]} : vector<8x18xf32> to vector<8x16xf32>
    %1210 = vector.broadcast %794 : vector<8x1xf32> to vector<8x16xf32>
    %1211 = arith.mulf %1210, %1209 : vector<8x16xf32>
    %1212 = arith.addf %1208, %1211 : vector<8x16xf32>
    %1213 = vector.extract_strided_slice %1199 {offsets = [0, 2], sizes = [8, 16], strides = [1, 1]} : vector<8x18xf32> to vector<8x16xf32>
    %1214 = vector.broadcast %795 : vector<8x1xf32> to vector<8x16xf32>
    %1215 = arith.mulf %1214, %1213 : vector<8x16xf32>
    %1216 = arith.addf %1212, %1215 : vector<8x16xf32>
    %1217 = vector.extract_strided_slice %1201 {offsets = [0, 0], sizes = [8, 16], strides = [1, 1]} : vector<8x18xf32> to vector<8x16xf32>
    %1218 = vector.broadcast %796 : vector<8x1xf32> to vector<8x16xf32>
    %1219 = arith.mulf %1218, %1217 : vector<8x16xf32>
    %1220 = arith.addf %1216, %1219 : vector<8x16xf32>
    %1221 = vector.extract_strided_slice %1201 {offsets = [0, 1], sizes = [8, 16], strides = [1, 1]} : vector<8x18xf32> to vector<8x16xf32>
    %1222 = vector.broadcast %797 : vector<8x1xf32> to vector<8x16xf32>
    %1223 = arith.mulf %1222, %1221 : vector<8x16xf32>
    %1224 = arith.addf %1220, %1223 : vector<8x16xf32>
    %1225 = vector.extract_strided_slice %1201 {offsets = [0, 2], sizes = [8, 16], strides = [1, 1]} : vector<8x18xf32> to vector<8x16xf32>
    %1226 = vector.broadcast %798 : vector<8x1xf32> to vector<8x16xf32>
    %1227 = arith.mulf %1226, %1225 : vector<8x16xf32>
    %1228 = arith.addf %1224, %1227 : vector<8x16xf32>
    %1229 = vector.extract_strided_slice %1203 {offsets = [0, 0], sizes = [8, 16], strides = [1, 1]} : vector<8x18xf32> to vector<8x16xf32>
    %1230 = vector.broadcast %799 : vector<8x1xf32> to vector<8x16xf32>
    %1231 = arith.mulf %1230, %1229 : vector<8x16xf32>
    %1232 = arith.addf %1228, %1231 : vector<8x16xf32>
    %1233 = vector.extract_strided_slice %1203 {offsets = [0, 1], sizes = [8, 16], strides = [1, 1]} : vector<8x18xf32> to vector<8x16xf32>
    %1234 = vector.broadcast %800 : vector<8x1xf32> to vector<8x16xf32>
    %1235 = arith.mulf %1234, %1233 : vector<8x16xf32>
    %1236 = arith.addf %1232, %1235 : vector<8x16xf32>
    %1237 = vector.extract_strided_slice %1203 {offsets = [0, 2], sizes = [8, 16], strides = [1, 1]} : vector<8x18xf32> to vector<8x16xf32>
    %1238 = vector.broadcast %801 : vector<8x1xf32> to vector<8x16xf32>
    %1239 = arith.mulf %1238, %1237 : vector<8x16xf32>
    %1240 = arith.addf %1236, %1239 : vector<8x16xf32>
    %c0_351 = arith.constant 0 : index
    %c144_352 = arith.constant 144 : index
    %1241 = vector.load %arg10[%c0_351, %c144_352] : memref<8x256xf32, #tpu.memory_space<vmem>>, vector<8x16xf32>
    tpu.vector_store %arg10[%c0_351, %c144_352], %1240 {strides = array<i32>} : memref<8x256xf32, #tpu.memory_space<vmem>>, vector<8x16xf32>,
    %c0_353 = arith.constant 0 : index
    %c10_354 = arith.constant 10 : index
    %c0_355 = arith.constant 0 : index
    %1242 = vector.load %arg9[%c0_353, %c10_354, %c0_355] : memref<8x18x18xf32, #tpu.memory_space<vmem>>, vector<8x1x18xf32>
    %1243 = vector.shape_cast %1242 : vector<8x1x18xf32> to vector<8x18xf32>
    %c0_356 = arith.constant 0 : index
    %c11_357 = arith.constant 11 : index
    %c0_358 = arith.constant 0 : index
    %1244 = vector.load %arg9[%c0_356, %c11_357, %c0_358] : memref<8x18x18xf32, #tpu.memory_space<vmem>>, vector<8x1x18xf32>
    %1245 = vector.shape_cast %1244 : vector<8x1x18xf32> to vector<8x18xf32>
    %c0_359 = arith.constant 0 : index
    %c12_360 = arith.constant 12 : index
    %c0_361 = arith.constant 0 : index
    %1246 = vector.load %arg9[%c0_359, %c12_360, %c0_361] : memref<8x18x18xf32, #tpu.memory_space<vmem>>, vector<8x1x18xf32>
    %1247 = vector.shape_cast %1246 : vector<8x1x18xf32> to vector<8x18xf32>
    %cst_362 = arith.constant 0.000000e+00 : f32
    %1248 = vector.broadcast %cst_362 : f32 to vector<8x16xf32>
    %1249 = vector.extract_strided_slice %1243 {offsets = [0, 0], sizes = [8, 16], strides = [1, 1]} : vector<8x18xf32> to vector<8x16xf32>
    %1250 = vector.broadcast %793 : vector<8x1xf32> to vector<8x16xf32>
    %1251 = arith.mulf %1250, %1249 : vector<8x16xf32>
    %1252 = arith.addf %1248, %1251 : vector<8x16xf32>
    %1253 = vector.extract_strided_slice %1243 {offsets = [0, 1], sizes = [8, 16], strides = [1, 1]} : vector<8x18xf32> to vector<8x16xf32>
    %1254 = vector.broadcast %794 : vector<8x1xf32> to vector<8x16xf32>
    %1255 = arith.mulf %1254, %1253 : vector<8x16xf32>
    %1256 = arith.addf %1252, %1255 : vector<8x16xf32>
    %1257 = vector.extract_strided_slice %1243 {offsets = [0, 2], sizes = [8, 16], strides = [1, 1]} : vector<8x18xf32> to vector<8x16xf32>
    %1258 = vector.broadcast %795 : vector<8x1xf32> to vector<8x16xf32>
    %1259 = arith.mulf %1258, %1257 : vector<8x16xf32>
    %1260 = arith.addf %1256, %1259 : vector<8x16xf32>
    %1261 = vector.extract_strided_slice %1245 {offsets = [0, 0], sizes = [8, 16], strides = [1, 1]} : vector<8x18xf32> to vector<8x16xf32>
    %1262 = vector.broadcast %796 : vector<8x1xf32> to vector<8x16xf32>
    %1263 = arith.mulf %1262, %1261 : vector<8x16xf32>
    %1264 = arith.addf %1260, %1263 : vector<8x16xf32>
    %1265 = vector.extract_strided_slice %1245 {offsets = [0, 1], sizes = [8, 16], strides = [1, 1]} : vector<8x18xf32> to vector<8x16xf32>
    %1266 = vector.broadcast %797 : vector<8x1xf32> to vector<8x16xf32>
    %1267 = arith.mulf %1266, %1265 : vector<8x16xf32>
    %1268 = arith.addf %1264, %1267 : vector<8x16xf32>
    %1269 = vector.extract_strided_slice %1245 {offsets = [0, 2], sizes = [8, 16], strides = [1, 1]} : vector<8x18xf32> to vector<8x16xf32>
    %1270 = vector.broadcast %798 : vector<8x1xf32> to vector<8x16xf32>
    %1271 = arith.mulf %1270, %1269 : vector<8x16xf32>
    %1272 = arith.addf %1268, %1271 : vector<8x16xf32>
    %1273 = vector.extract_strided_slice %1247 {offsets = [0, 0], sizes = [8, 16], strides = [1, 1]} : vector<8x18xf32> to vector<8x16xf32>
    %1274 = vector.broadcast %799 : vector<8x1xf32> to vector<8x16xf32>
    %1275 = arith.mulf %1274, %1273 : vector<8x16xf32>
    %1276 = arith.addf %1272, %1275 : vector<8x16xf32>
    %1277 = vector.extract_strided_slice %1247 {offsets = [0, 1], sizes = [8, 16], strides = [1, 1]} : vector<8x18xf32> to vector<8x16xf32>
    %1278 = vector.broadcast %800 : vector<8x1xf32> to vector<8x16xf32>
    %1279 = arith.mulf %1278, %1277 : vector<8x16xf32>
    %1280 = arith.addf %1276, %1279 : vector<8x16xf32>
    %1281 = vector.extract_strided_slice %1247 {offsets = [0, 2], sizes = [8, 16], strides = [1, 1]} : vector<8x18xf32> to vector<8x16xf32>
    %1282 = vector.broadcast %801 : vector<8x1xf32> to vector<8x16xf32>
    %1283 = arith.mulf %1282, %1281 : vector<8x16xf32>
    %1284 = arith.addf %1280, %1283 : vector<8x16xf32>
    %c0_363 = arith.constant 0 : index
    %c160_364 = arith.constant 160 : index
    %1285 = vector.load %arg10[%c0_363, %c160_364] : memref<8x256xf32, #tpu.memory_space<vmem>>, vector<8x16xf32>
    tpu.vector_store %arg10[%c0_363, %c160_364], %1284 {strides = array<i32>} : memref<8x256xf32, #tpu.memory_space<vmem>>, vector<8x16xf32>,
    %c0_365 = arith.constant 0 : index
    %c11_366 = arith.constant 11 : index
    %c0_367 = arith.constant 0 : index
    %1286 = vector.load %arg9[%c0_365, %c11_366, %c0_367] : memref<8x18x18xf32, #tpu.memory_space<vmem>>, vector<8x1x18xf32>
    %1287 = vector.shape_cast %1286 : vector<8x1x18xf32> to vector<8x18xf32>
    %c0_368 = arith.constant 0 : index
    %c12_369 = arith.constant 12 : index
    %c0_370 = arith.constant 0 : index
    %1288 = vector.load %arg9[%c0_368, %c12_369, %c0_370] : memref<8x18x18xf32, #tpu.memory_space<vmem>>, vector<8x1x18xf32>
    %1289 = vector.shape_cast %1288 : vector<8x1x18xf32> to vector<8x18xf32>
    %c0_371 = arith.constant 0 : index
    %c13_372 = arith.constant 13 : index
    %c0_373 = arith.constant 0 : index
    %1290 = vector.load %arg9[%c0_371, %c13_372, %c0_373] : memref<8x18x18xf32, #tpu.memory_space<vmem>>, vector<8x1x18xf32>
    %1291 = vector.shape_cast %1290 : vector<8x1x18xf32> to vector<8x18xf32>
    %cst_374 = arith.constant 0.000000e+00 : f32
    %1292 = vector.broadcast %cst_374 : f32 to vector<8x16xf32>
    %1293 = vector.extract_strided_slice %1287 {offsets = [0, 0], sizes = [8, 16], strides = [1, 1]} : vector<8x18xf32> to vector<8x16xf32>
    %1294 = vector.broadcast %793 : vector<8x1xf32> to vector<8x16xf32>
    %1295 = arith.mulf %1294, %1293 : vector<8x16xf32>
    %1296 = arith.addf %1292, %1295 : vector<8x16xf32>
    %1297 = vector.extract_strided_slice %1287 {offsets = [0, 1], sizes = [8, 16], strides = [1, 1]} : vector<8x18xf32> to vector<8x16xf32>
    %1298 = vector.broadcast %794 : vector<8x1xf32> to vector<8x16xf32>
    %1299 = arith.mulf %1298, %1297 : vector<8x16xf32>
    %1300 = arith.addf %1296, %1299 : vector<8x16xf32>
    %1301 = vector.extract_strided_slice %1287 {offsets = [0, 2], sizes = [8, 16], strides = [1, 1]} : vector<8x18xf32> to vector<8x16xf32>
    %1302 = vector.broadcast %795 : vector<8x1xf32> to vector<8x16xf32>
    %1303 = arith.mulf %1302, %1301 : vector<8x16xf32>
    %1304 = arith.addf %1300, %1303 : vector<8x16xf32>
    %1305 = vector.extract_strided_slice %1289 {offsets = [0, 0], sizes = [8, 16], strides = [1, 1]} : vector<8x18xf32> to vector<8x16xf32>
    %1306 = vector.broadcast %796 : vector<8x1xf32> to vector<8x16xf32>
    %1307 = arith.mulf %1306, %1305 : vector<8x16xf32>
    %1308 = arith.addf %1304, %1307 : vector<8x16xf32>
    %1309 = vector.extract_strided_slice %1289 {offsets = [0, 1], sizes = [8, 16], strides = [1, 1]} : vector<8x18xf32> to vector<8x16xf32>
    %1310 = vector.broadcast %797 : vector<8x1xf32> to vector<8x16xf32>
    %1311 = arith.mulf %1310, %1309 : vector<8x16xf32>
    %1312 = arith.addf %1308, %1311 : vector<8x16xf32>
    %1313 = vector.extract_strided_slice %1289 {offsets = [0, 2], sizes = [8, 16], strides = [1, 1]} : vector<8x18xf32> to vector<8x16xf32>
    %1314 = vector.broadcast %798 : vector<8x1xf32> to vector<8x16xf32>
    %1315 = arith.mulf %1314, %1313 : vector<8x16xf32>
    %1316 = arith.addf %1312, %1315 : vector<8x16xf32>
    %1317 = vector.extract_strided_slice %1291 {offsets = [0, 0], sizes = [8, 16], strides = [1, 1]} : vector<8x18xf32> to vector<8x16xf32>
    %1318 = vector.broadcast %799 : vector<8x1xf32> to vector<8x16xf32>
    %1319 = arith.mulf %1318, %1317 : vector<8x16xf32>
    %1320 = arith.addf %1316, %1319 : vector<8x16xf32>
    %1321 = vector.extract_strided_slice %1291 {offsets = [0, 1], sizes = [8, 16], strides = [1, 1]} : vector<8x18xf32> to vector<8x16xf32>
    %1322 = vector.broadcast %800 : vector<8x1xf32> to vector<8x16xf32>
    %1323 = arith.mulf %1322, %1321 : vector<8x16xf32>
    %1324 = arith.addf %1320, %1323 : vector<8x16xf32>
    %1325 = vector.extract_strided_slice %1291 {offsets = [0, 2], sizes = [8, 16], strides = [1, 1]} : vector<8x18xf32> to vector<8x16xf32>
    %1326 = vector.broadcast %801 : vector<8x1xf32> to vector<8x16xf32>
    %1327 = arith.mulf %1326, %1325 : vector<8x16xf32>
    %1328 = arith.addf %1324, %1327 : vector<8x16xf32>
    %c0_375 = arith.constant 0 : index
    %c176_376 = arith.constant 176 : index
    %1329 = vector.load %arg10[%c0_375, %c176_376] : memref<8x256xf32, #tpu.memory_space<vmem>>, vector<8x16xf32>
    tpu.vector_store %arg10[%c0_375, %c176_376], %1328 {strides = array<i32>} : memref<8x256xf32, #tpu.memory_space<vmem>>, vector<8x16xf32>,
    %c0_377 = arith.constant 0 : index
    %c12_378 = arith.constant 12 : index
    %c0_379 = arith.constant 0 : index
    %1330 = vector.load %arg9[%c0_377, %c12_378, %c0_379] : memref<8x18x18xf32, #tpu.memory_space<vmem>>, vector<8x1x18xf32>
    %1331 = vector.shape_cast %1330 : vector<8x1x18xf32> to vector<8x18xf32>
    %c0_380 = arith.constant 0 : index
    %c13_381 = arith.constant 13 : index
    %c0_382 = arith.constant 0 : index
    %1332 = vector.load %arg9[%c0_380, %c13_381, %c0_382] : memref<8x18x18xf32, #tpu.memory_space<vmem>>, vector<8x1x18xf32>
    %1333 = vector.shape_cast %1332 : vector<8x1x18xf32> to vector<8x18xf32>
    %c0_383 = arith.constant 0 : index
    %c14_384 = arith.constant 14 : index
    %c0_385 = arith.constant 0 : index
    %1334 = vector.load %arg9[%c0_383, %c14_384, %c0_385] : memref<8x18x18xf32, #tpu.memory_space<vmem>>, vector<8x1x18xf32>
    %1335 = vector.shape_cast %1334 : vector<8x1x18xf32> to vector<8x18xf32>
    %cst_386 = arith.constant 0.000000e+00 : f32
    %1336 = vector.broadcast %cst_386 : f32 to vector<8x16xf32>
    %1337 = vector.extract_strided_slice %1331 {offsets = [0, 0], sizes = [8, 16], strides = [1, 1]} : vector<8x18xf32> to vector<8x16xf32>
    %1338 = vector.broadcast %793 : vector<8x1xf32> to vector<8x16xf32>
    %1339 = arith.mulf %1338, %1337 : vector<8x16xf32>
    %1340 = arith.addf %1336, %1339 : vector<8x16xf32>
    %1341 = vector.extract_strided_slice %1331 {offsets = [0, 1], sizes = [8, 16], strides = [1, 1]} : vector<8x18xf32> to vector<8x16xf32>
    %1342 = vector.broadcast %794 : vector<8x1xf32> to vector<8x16xf32>
    %1343 = arith.mulf %1342, %1341 : vector<8x16xf32>
    %1344 = arith.addf %1340, %1343 : vector<8x16xf32>
    %1345 = vector.extract_strided_slice %1331 {offsets = [0, 2], sizes = [8, 16], strides = [1, 1]} : vector<8x18xf32> to vector<8x16xf32>
    %1346 = vector.broadcast %795 : vector<8x1xf32> to vector<8x16xf32>
    %1347 = arith.mulf %1346, %1345 : vector<8x16xf32>
    %1348 = arith.addf %1344, %1347 : vector<8x16xf32>
    %1349 = vector.extract_strided_slice %1333 {offsets = [0, 0], sizes = [8, 16], strides = [1, 1]} : vector<8x18xf32> to vector<8x16xf32>
    %1350 = vector.broadcast %796 : vector<8x1xf32> to vector<8x16xf32>
    %1351 = arith.mulf %1350, %1349 : vector<8x16xf32>
    %1352 = arith.addf %1348, %1351 : vector<8x16xf32>
    %1353 = vector.extract_strided_slice %1333 {offsets = [0, 1], sizes = [8, 16], strides = [1, 1]} : vector<8x18xf32> to vector<8x16xf32>
    %1354 = vector.broadcast %797 : vector<8x1xf32> to vector<8x16xf32>
    %1355 = arith.mulf %1354, %1353 : vector<8x16xf32>
    %1356 = arith.addf %1352, %1355 : vector<8x16xf32>
    %1357 = vector.extract_strided_slice %1333 {offsets = [0, 2], sizes = [8, 16], strides = [1, 1]} : vector<8x18xf32> to vector<8x16xf32>
    %1358 = vector.broadcast %798 : vector<8x1xf32> to vector<8x16xf32>
    %1359 = arith.mulf %1358, %1357 : vector<8x16xf32>
    %1360 = arith.addf %1356, %1359 : vector<8x16xf32>
    %1361 = vector.extract_strided_slice %1335 {offsets = [0, 0], sizes = [8, 16], strides = [1, 1]} : vector<8x18xf32> to vector<8x16xf32>
    %1362 = vector.broadcast %799 : vector<8x1xf32> to vector<8x16xf32>
    %1363 = arith.mulf %1362, %1361 : vector<8x16xf32>
    %1364 = arith.addf %1360, %1363 : vector<8x16xf32>
    %1365 = vector.extract_strided_slice %1335 {offsets = [0, 1], sizes = [8, 16], strides = [1, 1]} : vector<8x18xf32> to vector<8x16xf32>
    %1366 = vector.broadcast %800 : vector<8x1xf32> to vector<8x16xf32>
    %1367 = arith.mulf %1366, %1365 : vector<8x16xf32>
    %1368 = arith.addf %1364, %1367 : vector<8x16xf32>
    %1369 = vector.extract_strided_slice %1335 {offsets = [0, 2], sizes = [8, 16], strides = [1, 1]} : vector<8x18xf32> to vector<8x16xf32>
    %1370 = vector.broadcast %801 : vector<8x1xf32> to vector<8x16xf32>
    %1371 = arith.mulf %1370, %1369 : vector<8x16xf32>
    %1372 = arith.addf %1368, %1371 : vector<8x16xf32>
    %c0_387 = arith.constant 0 : index
    %c192_388 = arith.constant 192 : index
    %1373 = vector.load %arg10[%c0_387, %c192_388] : memref<8x256xf32, #tpu.memory_space<vmem>>, vector<8x16xf32>
    tpu.vector_store %arg10[%c0_387, %c192_388], %1372 {strides = array<i32>} : memref<8x256xf32, #tpu.memory_space<vmem>>, vector<8x16xf32>,
    %c0_389 = arith.constant 0 : index
    %c13_390 = arith.constant 13 : index
    %c0_391 = arith.constant 0 : index
    %1374 = vector.load %arg9[%c0_389, %c13_390, %c0_391] : memref<8x18x18xf32, #tpu.memory_space<vmem>>, vector<8x1x18xf32>
    %1375 = vector.shape_cast %1374 : vector<8x1x18xf32> to vector<8x18xf32>
    %c0_392 = arith.constant 0 : index
    %c14_393 = arith.constant 14 : index
    %c0_394 = arith.constant 0 : index
    %1376 = vector.load %arg9[%c0_392, %c14_393, %c0_394] : memref<8x18x18xf32, #tpu.memory_space<vmem>>, vector<8x1x18xf32>
    %1377 = vector.shape_cast %1376 : vector<8x1x18xf32> to vector<8x18xf32>
    %c0_395 = arith.constant 0 : index
    %c15_396 = arith.constant 15 : index
    %c0_397 = arith.constant 0 : index
    %1378 = vector.load %arg9[%c0_395, %c15_396, %c0_397] : memref<8x18x18xf32, #tpu.memory_space<vmem>>, vector<8x1x18xf32>
    %1379 = vector.shape_cast %1378 : vector<8x1x18xf32> to vector<8x18xf32>
    %cst_398 = arith.constant 0.000000e+00 : f32
    %1380 = vector.broadcast %cst_398 : f32 to vector<8x16xf32>
    %1381 = vector.extract_strided_slice %1375 {offsets = [0, 0], sizes = [8, 16], strides = [1, 1]} : vector<8x18xf32> to vector<8x16xf32>
    %1382 = vector.broadcast %793 : vector<8x1xf32> to vector<8x16xf32>
    %1383 = arith.mulf %1382, %1381 : vector<8x16xf32>
    %1384 = arith.addf %1380, %1383 : vector<8x16xf32>
    %1385 = vector.extract_strided_slice %1375 {offsets = [0, 1], sizes = [8, 16], strides = [1, 1]} : vector<8x18xf32> to vector<8x16xf32>
    %1386 = vector.broadcast %794 : vector<8x1xf32> to vector<8x16xf32>
    %1387 = arith.mulf %1386, %1385 : vector<8x16xf32>
    %1388 = arith.addf %1384, %1387 : vector<8x16xf32>
    %1389 = vector.extract_strided_slice %1375 {offsets = [0, 2], sizes = [8, 16], strides = [1, 1]} : vector<8x18xf32> to vector<8x16xf32>
    %1390 = vector.broadcast %795 : vector<8x1xf32> to vector<8x16xf32>
    %1391 = arith.mulf %1390, %1389 : vector<8x16xf32>
    %1392 = arith.addf %1388, %1391 : vector<8x16xf32>
    %1393 = vector.extract_strided_slice %1377 {offsets = [0, 0], sizes = [8, 16], strides = [1, 1]} : vector<8x18xf32> to vector<8x16xf32>
    %1394 = vector.broadcast %796 : vector<8x1xf32> to vector<8x16xf32>
    %1395 = arith.mulf %1394, %1393 : vector<8x16xf32>
    %1396 = arith.addf %1392, %1395 : vector<8x16xf32>
    %1397 = vector.extract_strided_slice %1377 {offsets = [0, 1], sizes = [8, 16], strides = [1, 1]} : vector<8x18xf32> to vector<8x16xf32>
    %1398 = vector.broadcast %797 : vector<8x1xf32> to vector<8x16xf32>
    %1399 = arith.mulf %1398, %1397 : vector<8x16xf32>
    %1400 = arith.addf %1396, %1399 : vector<8x16xf32>
    %1401 = vector.extract_strided_slice %1377 {offsets = [0, 2], sizes = [8, 16], strides = [1, 1]} : vector<8x18xf32> to vector<8x16xf32>
    %1402 = vector.broadcast %798 : vector<8x1xf32> to vector<8x16xf32>
    %1403 = arith.mulf %1402, %1401 : vector<8x16xf32>
    %1404 = arith.addf %1400, %1403 : vector<8x16xf32>
    %1405 = vector.extract_strided_slice %1379 {offsets = [0, 0], sizes = [8, 16], strides = [1, 1]} : vector<8x18xf32> to vector<8x16xf32>
    %1406 = vector.broadcast %799 : vector<8x1xf32> to vector<8x16xf32>
    %1407 = arith.mulf %1406, %1405 : vector<8x16xf32>
    %1408 = arith.addf %1404, %1407 : vector<8x16xf32>
    %1409 = vector.extract_strided_slice %1379 {offsets = [0, 1], sizes = [8, 16], strides = [1, 1]} : vector<8x18xf32> to vector<8x16xf32>
    %1410 = vector.broadcast %800 : vector<8x1xf32> to vector<8x16xf32>
    %1411 = arith.mulf %1410, %1409 : vector<8x16xf32>
    %1412 = arith.addf %1408, %1411 : vector<8x16xf32>
    %1413 = vector.extract_strided_slice %1379 {offsets = [0, 2], sizes = [8, 16], strides = [1, 1]} : vector<8x18xf32> to vector<8x16xf32>
    %1414 = vector.broadcast %801 : vector<8x1xf32> to vector<8x16xf32>
    %1415 = arith.mulf %1414, %1413 : vector<8x16xf32>
    %1416 = arith.addf %1412, %1415 : vector<8x16xf32>
    %c0_399 = arith.constant 0 : index
    %c208_400 = arith.constant 208 : index
    %1417 = vector.load %arg10[%c0_399, %c208_400] : memref<8x256xf32, #tpu.memory_space<vmem>>, vector<8x16xf32>
    tpu.vector_store %arg10[%c0_399, %c208_400], %1416 {strides = array<i32>} : memref<8x256xf32, #tpu.memory_space<vmem>>, vector<8x16xf32>,
    %c0_401 = arith.constant 0 : index
    %c14_402 = arith.constant 14 : index
    %c0_403 = arith.constant 0 : index
    %1418 = vector.load %arg9[%c0_401, %c14_402, %c0_403] : memref<8x18x18xf32, #tpu.memory_space<vmem>>, vector<8x1x18xf32>
    %1419 = vector.shape_cast %1418 : vector<8x1x18xf32> to vector<8x18xf32>
    %c0_404 = arith.constant 0 : index
    %c15_405 = arith.constant 15 : index
    %c0_406 = arith.constant 0 : index
    %1420 = vector.load %arg9[%c0_404, %c15_405, %c0_406] : memref<8x18x18xf32, #tpu.memory_space<vmem>>, vector<8x1x18xf32>
    %1421 = vector.shape_cast %1420 : vector<8x1x18xf32> to vector<8x18xf32>
    %c0_407 = arith.constant 0 : index
    %c16_408 = arith.constant 16 : index
    %c0_409 = arith.constant 0 : index
    %1422 = vector.load %arg9[%c0_407, %c16_408, %c0_409] : memref<8x18x18xf32, #tpu.memory_space<vmem>>, vector<8x1x18xf32>
    %1423 = vector.shape_cast %1422 : vector<8x1x18xf32> to vector<8x18xf32>
    %cst_410 = arith.constant 0.000000e+00 : f32
    %1424 = vector.broadcast %cst_410 : f32 to vector<8x16xf32>
    %1425 = vector.extract_strided_slice %1419 {offsets = [0, 0], sizes = [8, 16], strides = [1, 1]} : vector<8x18xf32> to vector<8x16xf32>
    %1426 = vector.broadcast %793 : vector<8x1xf32> to vector<8x16xf32>
    %1427 = arith.mulf %1426, %1425 : vector<8x16xf32>
    %1428 = arith.addf %1424, %1427 : vector<8x16xf32>
    %1429 = vector.extract_strided_slice %1419 {offsets = [0, 1], sizes = [8, 16], strides = [1, 1]} : vector<8x18xf32> to vector<8x16xf32>
    %1430 = vector.broadcast %794 : vector<8x1xf32> to vector<8x16xf32>
    %1431 = arith.mulf %1430, %1429 : vector<8x16xf32>
    %1432 = arith.addf %1428, %1431 : vector<8x16xf32>
    %1433 = vector.extract_strided_slice %1419 {offsets = [0, 2], sizes = [8, 16], strides = [1, 1]} : vector<8x18xf32> to vector<8x16xf32>
    %1434 = vector.broadcast %795 : vector<8x1xf32> to vector<8x16xf32>
    %1435 = arith.mulf %1434, %1433 : vector<8x16xf32>
    %1436 = arith.addf %1432, %1435 : vector<8x16xf32>
    %1437 = vector.extract_strided_slice %1421 {offsets = [0, 0], sizes = [8, 16], strides = [1, 1]} : vector<8x18xf32> to vector<8x16xf32>
    %1438 = vector.broadcast %796 : vector<8x1xf32> to vector<8x16xf32>
    %1439 = arith.mulf %1438, %1437 : vector<8x16xf32>
    %1440 = arith.addf %1436, %1439 : vector<8x16xf32>
    %1441 = vector.extract_strided_slice %1421 {offsets = [0, 1], sizes = [8, 16], strides = [1, 1]} : vector<8x18xf32> to vector<8x16xf32>
    %1442 = vector.broadcast %797 : vector<8x1xf32> to vector<8x16xf32>
    %1443 = arith.mulf %1442, %1441 : vector<8x16xf32>
    %1444 = arith.addf %1440, %1443 : vector<8x16xf32>
    %1445 = vector.extract_strided_slice %1421 {offsets = [0, 2], sizes = [8, 16], strides = [1, 1]} : vector<8x18xf32> to vector<8x16xf32>
    %1446 = vector.broadcast %798 : vector<8x1xf32> to vector<8x16xf32>
    %1447 = arith.mulf %1446, %1445 : vector<8x16xf32>
    %1448 = arith.addf %1444, %1447 : vector<8x16xf32>
    %1449 = vector.extract_strided_slice %1423 {offsets = [0, 0], sizes = [8, 16], strides = [1, 1]} : vector<8x18xf32> to vector<8x16xf32>
    %1450 = vector.broadcast %799 : vector<8x1xf32> to vector<8x16xf32>
    %1451 = arith.mulf %1450, %1449 : vector<8x16xf32>
    %1452 = arith.addf %1448, %1451 : vector<8x16xf32>
    %1453 = vector.extract_strided_slice %1423 {offsets = [0, 1], sizes = [8, 16], strides = [1, 1]} : vector<8x18xf32> to vector<8x16xf32>
    %1454 = vector.broadcast %800 : vector<8x1xf32> to vector<8x16xf32>
    %1455 = arith.mulf %1454, %1453 : vector<8x16xf32>
    %1456 = arith.addf %1452, %1455 : vector<8x16xf32>
    %1457 = vector.extract_strided_slice %1423 {offsets = [0, 2], sizes = [8, 16], strides = [1, 1]} : vector<8x18xf32> to vector<8x16xf32>
    %1458 = vector.broadcast %801 : vector<8x1xf32> to vector<8x16xf32>
    %1459 = arith.mulf %1458, %1457 : vector<8x16xf32>
    %1460 = arith.addf %1456, %1459 : vector<8x16xf32>
    %c0_411 = arith.constant 0 : index
    %c224_412 = arith.constant 224 : index
    %1461 = vector.load %arg10[%c0_411, %c224_412] : memref<8x256xf32, #tpu.memory_space<vmem>>, vector<8x16xf32>
    tpu.vector_store %arg10[%c0_411, %c224_412], %1460 {strides = array<i32>} : memref<8x256xf32, #tpu.memory_space<vmem>>, vector<8x16xf32>,
    %c0_413 = arith.constant 0 : index
    %c15_414 = arith.constant 15 : index
    %c0_415 = arith.constant 0 : index
    %1462 = vector.load %arg9[%c0_413, %c15_414, %c0_415] : memref<8x18x18xf32, #tpu.memory_space<vmem>>, vector<8x1x18xf32>
    %1463 = vector.shape_cast %1462 : vector<8x1x18xf32> to vector<8x18xf32>
    %c0_416 = arith.constant 0 : index
    %c16_417 = arith.constant 16 : index
    %c0_418 = arith.constant 0 : index
    %1464 = vector.load %arg9[%c0_416, %c16_417, %c0_418] : memref<8x18x18xf32, #tpu.memory_space<vmem>>, vector<8x1x18xf32>
    %1465 = vector.shape_cast %1464 : vector<8x1x18xf32> to vector<8x18xf32>
    %c0_419 = arith.constant 0 : index
    %c17_420 = arith.constant 17 : index
    %c0_421 = arith.constant 0 : index
    %1466 = vector.load %arg9[%c0_419, %c17_420, %c0_421] : memref<8x18x18xf32, #tpu.memory_space<vmem>>, vector<8x1x18xf32>
    %1467 = vector.shape_cast %1466 : vector<8x1x18xf32> to vector<8x18xf32>
    %cst_422 = arith.constant 0.000000e+00 : f32
    %1468 = vector.broadcast %cst_422 : f32 to vector<8x16xf32>
    %1469 = vector.extract_strided_slice %1463 {offsets = [0, 0], sizes = [8, 16], strides = [1, 1]} : vector<8x18xf32> to vector<8x16xf32>
    %1470 = vector.broadcast %793 : vector<8x1xf32> to vector<8x16xf32>
    %1471 = arith.mulf %1470, %1469 : vector<8x16xf32>
    %1472 = arith.addf %1468, %1471 : vector<8x16xf32>
    %1473 = vector.extract_strided_slice %1463 {offsets = [0, 1], sizes = [8, 16], strides = [1, 1]} : vector<8x18xf32> to vector<8x16xf32>
    %1474 = vector.broadcast %794 : vector<8x1xf32> to vector<8x16xf32>
    %1475 = arith.mulf %1474, %1473 : vector<8x16xf32>
    %1476 = arith.addf %1472, %1475 : vector<8x16xf32>
    %1477 = vector.extract_strided_slice %1463 {offsets = [0, 2], sizes = [8, 16], strides = [1, 1]} : vector<8x18xf32> to vector<8x16xf32>
    %1478 = vector.broadcast %795 : vector<8x1xf32> to vector<8x16xf32>
    %1479 = arith.mulf %1478, %1477 : vector<8x16xf32>
    %1480 = arith.addf %1476, %1479 : vector<8x16xf32>
    %1481 = vector.extract_strided_slice %1465 {offsets = [0, 0], sizes = [8, 16], strides = [1, 1]} : vector<8x18xf32> to vector<8x16xf32>
    %1482 = vector.broadcast %796 : vector<8x1xf32> to vector<8x16xf32>
    %1483 = arith.mulf %1482, %1481 : vector<8x16xf32>
    %1484 = arith.addf %1480, %1483 : vector<8x16xf32>
    %1485 = vector.extract_strided_slice %1465 {offsets = [0, 1], sizes = [8, 16], strides = [1, 1]} : vector<8x18xf32> to vector<8x16xf32>
    %1486 = vector.broadcast %797 : vector<8x1xf32> to vector<8x16xf32>
    %1487 = arith.mulf %1486, %1485 : vector<8x16xf32>
    %1488 = arith.addf %1484, %1487 : vector<8x16xf32>
    %1489 = vector.extract_strided_slice %1465 {offsets = [0, 2], sizes = [8, 16], strides = [1, 1]} : vector<8x18xf32> to vector<8x16xf32>
    %1490 = vector.broadcast %798 : vector<8x1xf32> to vector<8x16xf32>
    %1491 = arith.mulf %1490, %1489 : vector<8x16xf32>
    %1492 = arith.addf %1488, %1491 : vector<8x16xf32>
    %1493 = vector.extract_strided_slice %1467 {offsets = [0, 0], sizes = [8, 16], strides = [1, 1]} : vector<8x18xf32> to vector<8x16xf32>
    %1494 = vector.broadcast %799 : vector<8x1xf32> to vector<8x16xf32>
    %1495 = arith.mulf %1494, %1493 : vector<8x16xf32>
    %1496 = arith.addf %1492, %1495 : vector<8x16xf32>
    %1497 = vector.extract_strided_slice %1467 {offsets = [0, 1], sizes = [8, 16], strides = [1, 1]} : vector<8x18xf32> to vector<8x16xf32>
    %1498 = vector.broadcast %800 : vector<8x1xf32> to vector<8x16xf32>
    %1499 = arith.mulf %1498, %1497 : vector<8x16xf32>
    %1500 = arith.addf %1496, %1499 : vector<8x16xf32>
    %1501 = vector.extract_strided_slice %1467 {offsets = [0, 2], sizes = [8, 16], strides = [1, 1]} : vector<8x18xf32> to vector<8x16xf32>
    %1502 = vector.broadcast %801 : vector<8x1xf32> to vector<8x16xf32>
    %1503 = arith.mulf %1502, %1501 : vector<8x16xf32>
    %1504 = arith.addf %1500, %1503 : vector<8x16xf32>
    %c0_423 = arith.constant 0 : index
    %c240_424 = arith.constant 240 : index
    %1505 = vector.load %arg10[%c0_423, %c240_424] : memref<8x256xf32, #tpu.memory_space<vmem>>, vector<8x16xf32>
    tpu.vector_store %arg10[%c0_423, %c240_424], %1504 {strides = array<i32>} : memref<8x256xf32, #tpu.memory_space<vmem>>, vector<8x16xf32>,
    %c0_425 = arith.constant 0 : index
    %c0_426 = arith.constant 0 : index
    %1506 = vector.load %arg5[%c0_425, %c0_426] : memref<8x8xf32, #tpu.memory_space<vmem>>, vector<8x8xf32>
    %c0_427 = arith.constant 0 : index
    %c0_428 = arith.constant 0 : index
    %1507 = vector.load %arg10[%c0_427, %c0_428] : memref<8x256xf32, #tpu.memory_space<vmem>>, vector<8x256xf32>
    %cst_429 = arith.constant dense<0.000000e+00> : vector<8x256xf32>
    %1508 = tpu.matmul %1506, %1507, %cst_429 {dimension_numbers = #tpu.dot_dimension_numbers<[1], [0], [0], [1], [0, 0, 1, 1], [], []>} : vector<8x8xf32>, vector<8x256xf32>, vector<8x256xf32> -> vector<8x256xf32>
    %c0_430 = arith.constant 0 : index
    %c0_431 = arith.constant 0 : index
    %c0_432 = arith.constant 0 : index
    %1509 = vector.load %arg6[%c0_430, %c0_431, %c0_432] : memref<1x8x256xf32, #tpu.memory_space<vmem>>, vector<1x8x256xf32>
    %1510 = vector.shape_cast %1509 : vector<1x8x256xf32> to vector<8x256xf32>
    %1511 = vector.shape_cast %1508 : vector<8x256xf32> to vector<1x8x256xf32>
    tpu.vector_store %arg6[%c0_430, %c0_431, %c0_432], %1511 {strides = array<i32>} : memref<1x8x256xf32, #tpu.memory_space<vmem>>, vector<1x8x256xf32>,
    return
  }
  func.func @transform_0(%arg0: i32) -> (i32, i32, i32, i32) {
    %c0_i32 = arith.constant 0 : i32
    %c0_i32_0 = arith.constant 0 : i32
    %c0_i32_1 = arith.constant 0 : i32
    %c0_i32_2 = arith.constant 0 : i32
    return %arg0, %c0_i32, %c0_i32_0, %c0_i32_1 : i32, i32, i32, i32
  }
  func.func @transform_1(%arg0: i32) -> (i32, i32) {
    %c0_i32 = arith.constant 0 : i32
    %c0_i32_0 = arith.constant 0 : i32
    %c0_i32_1 = arith.constant 0 : i32
    return %c0_i32, %c0_i32_0 : i32, i32
  }
  func.func @transform_2(%arg0: i32) -> (i32, i32) {
    %c0_i32 = arith.constant 0 : i32
    %c0_i32_0 = arith.constant 0 : i32
    %c0_i32_1 = arith.constant 0 : i32
    return %c0_i32, %c0_i32_0 : i32, i32
  }
  func.func @transform_3(%arg0: i32) -> (i32, i32) {
    %c0_i32 = arith.constant 0 : i32
    %c0_i32_0 = arith.constant 0 : i32
    %c0_i32_1 = arith.constant 0 : i32
    return %c0_i32, %c0_i32_0 : i32, i32
  }
  func.func @transform_4(%arg0: i32) -> (i32, i32) {
    %c0_i32 = arith.constant 0 : i32
    %c0_i32_0 = arith.constant 0 : i32
    %c0_i32_1 = arith.constant 0 : i32
    return %c0_i32, %c0_i32_0 : i32, i32
  }
  func.func @transform_5(%arg0: i32) -> (i32, i32, i32) {
    %c0_i32 = arith.constant 0 : i32
    %c0_i32_0 = arith.constant 0 : i32
    %c0_i32_1 = arith.constant 0 : i32
    return %arg0, %c0_i32, %c0_i32_0 : i32, i32, i32
  }
}

</mosaic_0001>

<llo_original>
// kernel: tpu_custom_call.1
$region0: #{tpu_custom_call.1}
  #allocation0 [shape = 'u32[]', space=smem, size = 0x4, offset = 0x4, fixed_abs, tag = 'smem constant byte address 0x4 - core index']
  #allocation1 [shape = 'u32[72,128]{1,0:T(1,128)}', space=vmem, size = 0x9000, scoped, tag = 'internal scratch']
  #allocation2 [shape = 'f32[8,18,18]{2,1,0:T(8,128)}', space=vmem, size = 0x18000, scoped, tag = 'scratch operand']
  #allocation3 [shape = 'f32[8,256]{1,0:T(8,128)}', space=vmem, size = 0x2000, scoped, tag = 'scratch operand']
  #allocation4 [shape = 'f32[8,18,18]{2,1,0:T(8,128)}', space=vmem, size = 0x18000, scoped, tag = 'scratch operand']
  #allocation5 [shape = 'f32[8,256]{1,0:T(8,128)}', space=vmem, size = 0x2000, scoped, tag = 'scratch operand']
  %s0 = inlined_call_operand.hbm [shape: f32[2,8,16,16], index: 0, kind: input, shape index: {}]
  %s1 = inlined_call_operand.hbm [shape: f32[8,9], index: 1, kind: input, shape index: {}]
  %s2 = inlined_call_operand.hbm [shape: f32[8,8], index: 2, kind: input, shape index: {}]
  %s3 = inlined_call_operand.hbm [shape: f32[8,9], index: 3, kind: input, shape index: {}]
  %s4 = inlined_call_operand.hbm [shape: f32[8,8], index: 4, kind: input, shape index: {}]
  %s5 = inlined_call_operand.hbm [shape: f32[2,8,256], index: 5, kind: output, shape index: {}]
  %s6 = sld [smem:[#allocation0]]
  $region73: #{tpu_custom_call.1} parent=0
    _
  %s8 = ssub.s32 1, %s6
  %s9 = scalar_select 0, %s8, %s6
  $region1: #{tpu_custom_call.1} parent=0
    #allocation6 [shape = 'u8[131072]{0}', space=vmem, size = 0x20000, scoped, tag = 'input window, operand 0']
    #allocation7 [shape = 's32[2]{0}', space=sflag, size = 0x8, scoped, tag = 'scoped memory for tpu_custom_call.1']
    #allocation8 [shape = 's32[2]{0}', space=sflag, size = 0x8, scoped, tag = 'scoped memory for tpu_custom_call.1']
    #allocation9 [shape = 'u8[4096]{0}', space=vmem, size = 0x1000, scoped, tag = 'input window, operand 1, single buffered']
    #allocation10 [shape = 's32[1]{0}', space=sflag, size = 0x4, scoped, tag = 'scoped memory for tpu_custom_call.1']
    #allocation11 [shape = 'u8[4096]{0}', space=vmem, size = 0x1000, scoped, tag = 'input window, operand 2, single buffered']
    #allocation12 [shape = 'u8[4096]{0}', space=vmem, size = 0x1000, scoped, tag = 'input window, operand 3, single buffered']
    #allocation13 [shape = 's32[1]{0}', space=sflag, size = 0x4, scoped, tag = 'scoped memory for tpu_custom_call.1']
    #allocation14 [shape = 'u8[4096]{0}', space=vmem, size = 0x1000, scoped, tag = 'input window, operand 4, single buffered']
    #allocation15 [shape = 'u8[16384]{0}', space=vmem, size = 0x4000, scoped, tag = 'output window, operand 0']
    %10 = vsyncpa [#allocation7], 0
    %s11 = scalar_lea.sflag [#allocation7], 1
    %12 = vsyncpa %s11, 0
    %13 = vsyncpa [#allocation10], 0
    %14 = vsyncpa [#allocation13], 0
    %15 = vsyncpa [#allocation8], 0
    %s16 = scalar_lea.sflag [#allocation8], 1
    %17 = vsyncpa %s16, 0
    loop: start=0, step=1, limit=4
    $region2: #{tpu_custom_call.1} parent=1 // loop_pre_header
      _
    $region3: #{tpu_custom_call.1} parent=1 // loop_header
      %s19 = sphi 0, %s23
      %p20 = scmp.ge.s32.totalorder %s19, 4
      %s29 = sphi 0, %s31
      %s32 = sphi 0, %s29
      %s33 = sphi 0, %s32
      %s49 = sphi 0, %s33
      %s53 = sphi 0, %s53
      %s55 = sphi 0, %s53
      %s56 = sphi 0, %s55
      %s70 = sphi 0, %s56
      %s74 = sphi 0, %s74
      %s76 = sphi 0, %s74
      %s77 = sphi 0, %s76
      %s91 = sphi 0, %s77
      %s95 = sphi 0, %s95
      %s97 = sphi 0, %s95
      %s98 = sphi 0, %s97
      %s112 = sphi 0, %s98
      %s116 = sphi 0, %s116
      %s118 = sphi 0, %s116
      %s119 = sphi 0, %s118
      %s133 = sphi 0, %s119
      %s139 = sphi 0, %s141
      %s142 = sphi 0, %s139
      %s143 = sphi 0, %s142
      %s159 = sphi 0, %s143
    $region4: #{tpu_custom_call.1} parent=1 // loop_header_branch
      %22 = sbr.rel (%p20) target = $region8
    $region5: #{tpu_custom_call.1} parent=1 // loop_body
      %s24 = ssub.s32 %s19, 1
      %s25 = ssub.s32 %s19, 2
      %s26 = sadd.s32 %s19, 1
      %s27 = ssub.s32 %s19, %s26
      %p28 = scmp.eq.s32.totalorder %s27, 0
      %s30 = sadd.s32 %s29, 1
      %s31 = scalar_select %p28, %s29, %s30
      %p34 = pneg %p28
      %p35 = scmp.eq.s32.totalorder %s19, 1
      %p36 = por %p34, %p35
      %p37 = scmp.ne.s32.totalorder %s29, %s32
      %p38 = scmp.eq.s32.totalorder %s19, 0
      %p39 = por %p37, %p38
      %p40 = scmp.ne.s32.totalorder %s29, %s32
      %p41 = scmp.eq.s32.totalorder %s24, 1
      %p42 = por %p40, %p41
      %p43 = scmp.ne.s32.totalorder %s32, %s33
      %p44 = scmp.eq.s32.totalorder %s24, 0
      %p45 = por %p43, %p44
      %p46 = scmp.ne.s32.totalorder %s32, %s33
      %p47 = scmp.eq.s32.totalorder %s25, 1
      %p48 = por %p46, %p47
      %p50 = scmp.ne.s32.totalorder %s33, %s49
      %p51 = scmp.eq.s32.totalorder %s25, 0
      %p52 = por %p50, %p51
      %s54 = sadd.s32 %s53, 1
      %p57 = scmp.eq.s32.totalorder %s19, 1
      %p58 = scmp.ne.s32.totalorder %s53, %s55
      %p59 = scmp.eq.s32.totalorder %s19, 0
      %p60 = por %p58, %p59
      %p61 = scmp.ne.s32.totalorder %s53, %s55
      %p62 = scmp.eq.s32.totalorder %s24, 1
      %p63 = por %p61, %p62
      %p64 = scmp.ne.s32.totalorder %s55, %s56
      %p65 = scmp.eq.s32.totalorder %s24, 0
      %p66 = por %p64, %p65
      %p67 = scmp.ne.s32.totalorder %s55, %s56
      %p68 = scmp.eq.s32.totalorder %s25, 1
      %p69 = por %p67, %p68
      %p71 = scmp.ne.s32.totalorder %s56, %s70
      %p72 = scmp.eq.s32.totalorder %s25, 0
      %p73 = por %p71, %p72
      %s75 = sadd.s32 %s74, 1
      %p78 = scmp.eq.s32.totalorder %s19, 1
      %p79 = scmp.ne.s32.totalorder %s74, %s76
      %p80 = scmp.eq.s32.totalorder %s19, 0
      %p81 = por %p79, %p80
      %p82 = scmp.ne.s32.totalorder %s74, %s76
      %p83 = scmp.eq.s32.totalorder %s24, 1
      %p84 = por %p82, %p83
      %p85 = scmp.ne.s32.totalorder %s76, %s77
      %p86 = scmp.eq.s32.totalorder %s24, 0
      %p87 = por %p85, %p86
      %p88 = scmp.ne.s32.totalorder %s76, %s77
      %p89 = scmp.eq.s32.totalorder %s25, 1
      %p90 = por %p88, %p89
      %p92 = scmp.ne.s32.totalorder %s77, %s91
      %p93 = scmp.eq.s32.totalorder %s25, 0
      %p94 = por %p92, %p93
      %s96 = sadd.s32 %s95, 1
      %p99 = scmp.eq.s32.totalorder %s19, 1
      %p100 = scmp.ne.s32.totalorder %s95, %s97
      %p101 = scmp.eq.s32.totalorder %s19, 0
      %p102 = por %p100, %p101
      %p103 = scmp.ne.s32.totalorder %s95, %s97
      %p104 = scmp.eq.s32.totalorder %s24, 1
      %p105 = por %p103, %p104
      %p106 = scmp.ne.s32.totalorder %s97, %s98
      %p107 = scmp.eq.s32.totalorder %s24, 0
      %p108 = por %p106, %p107
      %p109 = scmp.ne.s32.totalorder %s97, %s98
      %p110 = scmp.eq.s32.totalorder %s25, 1
      %p111 = por %p109, %p110
      %p113 = scmp.ne.s32.totalorder %s98, %s112
      %p114 = scmp.eq.s32.totalorder %s25, 0
      %p115 = por %p113, %p114
      %s117 = sadd.s32 %s116, 1
      %p120 = scmp.eq.s32.totalorder %s19, 1
      %p121 = scmp.ne.s32.totalorder %s116, %s118
      %p122 = scmp.eq.s32.totalorder %s19, 0
      %p123 = por %p121, %p122
      %p124 = scmp.ne.s32.totalorder %s116, %s118
      %p125 = scmp.eq.s32.totalorder %s24, 1
      %p126 = por %p124, %p125
      %p127 = scmp.ne.s32.totalorder %s118, %s119
      %p128 = scmp.eq.s32.totalorder %s24, 0
      %p129 = por %p127, %p128
      %p130 = scmp.ne.s32.totalorder %s118, %s119
      %p131 = scmp.eq.s32.totalorder %s25, 1
      %p132 = por %p130, %p131
      %p134 = scmp.ne.s32.totalorder %s119, %s133
      %p135 = scmp.eq.s32.totalorder %s25, 0
      %p136 = por %p134, %p135
      %s137 = ssub.s32 %s19, %s26
      %p138 = scmp.eq.s32.totalorder %s137, 0
      %s140 = sadd.s32 %s139, 1
      %s141 = scalar_select %p138, %s139, %s140
      %p144 = pneg %p138
      %p145 = scmp.eq.s32.totalorder %s19, 1
      %p146 = por %p144, %p145
      %p147 = scmp.ne.s32.totalorder %s139, %s142
      %p148 = scmp.eq.s32.totalorder %s19, 0
      %p149 = por %p147, %p148
      %p150 = scmp.ne.s32.totalorder %s139, %s142
      %p151 = scmp.eq.s32.totalorder %s24, 1
      %p152 = por %p150, %p151
      %p153 = scmp.ne.s32.totalorder %s142, %s143
      %p154 = scmp.eq.s32.totalorder %s24, 0
      %p155 = por %p153, %p154
      %p156 = scmp.ne.s32.totalorder %s142, %s143
      %p157 = scmp.eq.s32.totalorder %s25, 1
      %p158 = por %p156, %p157
      %p160 = scmp.ne.s32.totalorder %s143, %s159
      %p161 = scmp.eq.s32.totalorder %s25, 0
      %p162 = por %p160, %p161
      %p163 = scmp.le.s32.totalorder 1, %s19
      %p164 = scmp.lt.s32.totalorder %s19, 3
      %p165 = pnand %p163, %p164
      %p166 = pneg %p165
      // Predicated region
      $region9: #{tpu_custom_call.1} parent=5 // pred_check
        _
      $region10: #{tpu_custom_call.1} parent=5 // pred_check_branch
        %168 = sbr.rel (%p165) target = $region12
      $region11: #{tpu_custom_call.1} parent=5 // pred_region
        %s169 = ssub.s32 %s19, 1
        // Predicated region
        $region13: #{tpu_custom_call.1} parent=11 // pred_check
          %p170 = pneg %p66
        $region14: #{tpu_custom_call.1} parent=11 // pred_check_branch
          %172 = sbr.rel (%p170) target = $region16
        $region15: #{tpu_custom_call.1} parent=11 // pred_region
          %174 = vsyncadd [#allocation10], 0
          %s176 = sshll.u32 %s1, 4
          %s177 = int_to_ptr.hbm [resolvable:$true] %s176
          %s178 = sshll.u32 [#allocation9], 4
          %s179 = int_to_ptr.vmem [resolvable:$true] %s178
          %181 = dma.hbm_to_vmem [thread:$0]  %s177, 128, %s179, [#allocation10]
        $region16: #{tpu_custom_call.1} parent=11 // pred_fallthru
          _
        // Predicated region
        $region17: #{tpu_custom_call.1} parent=11 // pred_check
          %p182 = pneg %p87
        $region18: #{tpu_custom_call.1} parent=11 // pred_check_branch
          %184 = sbr.rel (%p182) target = $region20
        $region19: #{tpu_custom_call.1} parent=11 // pred_region
          %186 = vsyncadd [#allocation10], 0
          %s188 = sshll.u32 %s2, 4
          %s189 = int_to_ptr.hbm [resolvable:$true] %s188
          %s190 = sshll.u32 [#allocation11], 4
          %s191 = int_to_ptr.vmem [resolvable:$true] %s190
          %193 = dma.hbm_to_vmem [thread:$0]  %s189, 128, %s191, [#allocation10]
        $region20: #{tpu_custom_call.1} parent=11 // pred_fallthru
          _
        // Predicated region
        $region21: #{tpu_custom_call.1} parent=11 // pred_check
          %p194 = pneg %p108
        $region22: #{tpu_custom_call.1} parent=11 // pred_check_branch
          %196 = sbr.rel (%p194) target = $region24
        $region23: #{tpu_custom_call.1} parent=11 // pred_region
          %198 = vsyncadd [#allocation13], 0
          %s200 = sshll.u32 %s3, 4
          %s201 = int_to_ptr.hbm [resolvable:$true] %s200
          %s202 = sshll.u32 [#allocation12], 4
          %s203 = int_to_ptr.vmem [resolvable:$true] %s202
          %205 = dma.hbm_to_vmem [thread:$0]  %s201, 128, %s203, [#allocation13]
        $region24: #{tpu_custom_call.1} parent=11 // pred_fallthru
          _
        // Predicated region
        $region25: #{tpu_custom_call.1} parent=11 // pred_check
          %p206 = pneg %p129
        $region26: #{tpu_custom_call.1} parent=11 // pred_check_branch
          %208 = sbr.rel (%p206) target = $region28
        $region27: #{tpu_custom_call.1} parent=11 // pred_region
          %210 = vsyncadd [#allocation13], 0
          %s212 = sshll.u32 %s4, 4
          %s213 = int_to_ptr.hbm [resolvable:$true] %s212
          %s214 = sshll.u32 [#allocation14], 4
          %s215 = int_to_ptr.vmem [resolvable:$true] %s214
          %217 = dma.hbm_to_vmem [thread:$0]  %s213, 128, %s215, [#allocation13]
        $region28: #{tpu_custom_call.1} parent=11 // pred_fallthru
          _
      $region12: #{tpu_custom_call.1} parent=5 // pred_fallthru
        _
      %p218 = scmp.lt.s32.totalorder %s19, 2
      // Predicated region
      $region29: #{tpu_custom_call.1} parent=5 // pred_check
        %p219 = pneg %p218
      $region30: #{tpu_custom_call.1} parent=5 // pred_check_branch
        %221 = sbr.rel (%p219) target = $region32
      $region31: #{tpu_custom_call.1} parent=5 // pred_region
        // Predicated region
        $region33: #{tpu_custom_call.1} parent=31 // pred_check
          %p222 = pneg %p39
        $region34: #{tpu_custom_call.1} parent=31 // pred_check_branch
          %224 = sbr.rel (%p222) target = $region36
        $region35: #{tpu_custom_call.1} parent=31 // pred_region
          %s225 = sand.u32 %s29, 1
          %s226 = scalar_lea.sflag [#allocation7], %s225
          %s227 = sand.u32 %s29, 1
          %s228 = smul.addr %s227, 128
          %s229 = scalar_lea.vmem [#allocation6], %s228
          %231 = vsyncadd %s226, 0
          %s232 = smul.addr %s19, 16
          %s233 = smul.addr %s232, 8
          %s234 = scalar_lea.hbm %s0, %s233
          %s235 = sshll.u32 %s234, 4
          %s236 = int_to_ptr.hbm [resolvable:$true] %s235
          %s237 = sshll.u32 %s229, 4
          %s238 = int_to_ptr.vmem [resolvable:$true] %s237
          %243 = dma.hbm_to_vmem [thread:$0]  %s236, 2048, %s238, %s226, 128, 128, 8
        $region36: #{tpu_custom_call.1} parent=31 // pred_fallthru
          _
      $region32: #{tpu_custom_call.1} parent=5 // pred_fallthru
        _
      %p244 = scmp.le.s32.totalorder 1, %s19
      %p245 = scmp.lt.s32.totalorder %s19, 3
      %p246 = pnand %p244, %p245
      %p247 = pneg %p246
      // Predicated region
      $region37: #{tpu_custom_call.1} parent=5 // pred_check
        _
      $region38: #{tpu_custom_call.1} parent=5 // pred_check_branch
        %249 = sbr.rel (%p246) target = $region40
      $region39: #{tpu_custom_call.1} parent=5 // pred_region
        %s250 = ssub.s32 %s19, 1
        %s251 = sand.u32 %s32, 1
        %s252 = scalar_lea.sflag [#allocation7], %s251
        %s253 = sand.u32 %s32, 1
        %s254 = smul.addr %s253, 128
        %s255 = scalar_lea.vmem [#allocation6], %s254
        // Predicated region
        $region41: #{tpu_custom_call.1} parent=39 // pred_check
          %p256 = pneg %p45
        $region42: #{tpu_custom_call.1} parent=39 // pred_check_branch
          %258 = sbr.rel (%p256) target = $region44
        $region43: #{tpu_custom_call.1} parent=39 // pred_region
          %260 = dma.done %s252, 2048
        $region44: #{tpu_custom_call.1} parent=39 // pred_fallthru
          _
        // Predicated region
        $region45: #{tpu_custom_call.1} parent=39 // pred_check
          %p261 = pneg %p66
        $region46: #{tpu_custom_call.1} parent=39 // pred_check_branch
          %263 = sbr.rel (%p261) target = $region48
        $region47: #{tpu_custom_call.1} parent=39 // pred_region
          %265 = dma.done [#allocation10], 128
        $region48: #{tpu_custom_call.1} parent=39 // pred_fallthru
          _
        // Predicated region
        $region49: #{tpu_custom_call.1} parent=39 // pred_check
          %p266 = pneg %p87
        $region50: #{tpu_custom_call.1} parent=39 // pred_check_branch
          %268 = sbr.rel (%p266) target = $region52
        $region51: #{tpu_custom_call.1} parent=39 // pred_region
          %270 = dma.done [#allocation10], 128
        $region52: #{tpu_custom_call.1} parent=39 // pred_fallthru
          _
        // Predicated region
        $region53: #{tpu_custom_call.1} parent=39 // pred_check
          %p271 = pneg %p108
        $region54: #{tpu_custom_call.1} parent=39 // pred_check_branch
          %273 = sbr.rel (%p271) target = $region56
        $region55: #{tpu_custom_call.1} parent=39 // pred_region
          %275 = dma.done [#allocation13], 128
        $region56: #{tpu_custom_call.1} parent=39 // pred_fallthru
          _
        // Predicated region
        $region57: #{tpu_custom_call.1} parent=39 // pred_check
          %p276 = pneg %p129
        $region58: #{tpu_custom_call.1} parent=39 // pred_check_branch
          %278 = sbr.rel (%p276) target = $region60
        $region59: #{tpu_custom_call.1} parent=39 // pred_region
          %280 = dma.done [#allocation13], 128
        $region60: #{tpu_custom_call.1} parent=39 // pred_fallthru
          _
        %s281 = sand.u32 %s32, 1
        %s282 = scalar_lea.sflag [#allocation7], %s281
        %s283 = sand.u32 %s32, 1
        %s284 = smul.addr %s283, 128
        %s285 = scalar_lea.vmem [#allocation6], %s284
        %p286 = pneg %p45
        %p287 = pneg %p42
        %p288 = pneg %p66
        %p289 = pneg %p63
        %p290 = pneg %p87
        %p291 = pneg %p84
        %p292 = pneg %p108
        %p293 = pneg %p105
        %p294 = pneg %p129
        %p295 = pneg %p126
        %p296 = pneg %p155
        %p297 = pneg %p152
        %s298 = sand.u32 %s142, 1
        %s299 = scalar_lea.sflag [#allocation8], %s298
        %s300 = sand.u32 %s142, 1
        %s301 = smul.addr %s300, 16
        %s302 = scalar_lea.vmem [#allocation15], %s301
        %vm303 = vcmask 146432
        %304 = vst.msk [vmem:[#allocation2] sm:$0xff] %vm303, 0.0
        %305 = vst.msk [vmem:[#allocation2 + $0x8] sm:$0xff] %vm303, 0.0
        %vm306 = vcmask 140288
        %307 = vst.msk [vmem:[#allocation2 + $0x10] sm:$0x3] %vm306, 0.0
        %308 = vst.msk [vmem:[#allocation2 + $0x18] sm:$0xff] %vm303, 0.0
        %309 = vst.msk [vmem:[#allocation2 + $0x20] sm:$0xff] %vm303, 0.0
        %310 = vst.msk [vmem:[#allocation2 + $0x28] sm:$0x3] %vm306, 0.0
        %311 = vst.msk [vmem:[#allocation2 + $0x30] sm:$0xff] %vm303, 0.0
        %312 = vst.msk [vmem:[#allocation2 + $0x38] sm:$0xff] %vm303, 0.0
        %313 = vst.msk [vmem:[#allocation2 + $0x40] sm:$0x3] %vm306, 0.0
        %314 = vst.msk [vmem:[#allocation2 + $0x48] sm:$0xff] %vm303, 0.0
        %315 = vst.msk [vmem:[#allocation2 + $0x50] sm:$0xff] %vm303, 0.0
        %316 = vst.msk [vmem:[#allocation2 + $0x58] sm:$0x3] %vm306, 0.0
        %317 = vst.msk [vmem:[#allocation2 + $0x60] sm:$0xff] %vm303, 0.0
        %318 = vst.msk [vmem:[#allocation2 + $0x68] sm:$0xff] %vm303, 0.0
        %319 = vst.msk [vmem:[#allocation2 + $0x70] sm:$0x3] %vm306, 0.0
        %320 = vst.msk [vmem:[#allocation2 + $0x78] sm:$0xff] %vm303, 0.0
        %321 = vst.msk [vmem:[#allocation2 + $0x80] sm:$0xff] %vm303, 0.0
        %322 = vst.msk [vmem:[#allocation2 + $0x88] sm:$0x3] %vm306, 0.0
        %323 = vst.msk [vmem:[#allocation2 + $0x90] sm:$0xff] %vm303, 0.0
        %324 = vst.msk [vmem:[#allocation2 + $0x98] sm:$0xff] %vm303, 0.0
        %325 = vst.msk [vmem:[#allocation2 + $0xa0] sm:$0x3] %vm306, 0.0
        %326 = vst.msk [vmem:[#allocation2 + $0xa8] sm:$0xff] %vm303, 0.0
        %327 = vst.msk [vmem:[#allocation2 + $0xb0] sm:$0xff] %vm303, 0.0
        %328 = vst.msk [vmem:[#allocation2 + $0xb8] sm:$0x3] %vm306, 0.0
        %v329 = vld [vmem:[%s255] sm:$0xff]
        %v330 = vld [vmem:[%s255 + $0x8] sm:$0xff]
        %v331 = vld [vmem:[%s255 + $0x10] sm:$0xff]
        %v332 = vld [vmem:[%s255 + $0x18] sm:$0xff]
        %v333 = vld [vmem:[%s255 + $0x20] sm:$0xff]
        %v334 = vld [vmem:[%s255 + $0x28] sm:$0xff]
        %v335 = vld [vmem:[%s255 + $0x30] sm:$0xff]
        %v336 = vld [vmem:[%s255 + $0x38] sm:$0xff]
        %v337 = vld [vmem:[%s255 + $0x40] sm:$0xff]
        %v338 = vld [vmem:[%s255 + $0x48] sm:$0xff]
        %v339 = vld [vmem:[%s255 + $0x50] sm:$0xff]
        %v340 = vld [vmem:[%s255 + $0x58] sm:$0xff]
        %v341 = vld [vmem:[%s255 + $0x60] sm:$0xff]
        %v342 = vld [vmem:[%s255 + $0x68] sm:$0xff]
        %v343 = vld [vmem:[%s255 + $0x70] sm:$0xff]
        %v344 = vld [vmem:[%s255 + $0x78] sm:$0xff]
        %v345 = vmax.f32 %v329, 0.0
        %v346 = vmax.f32 %v330, 0.0
        %v347 = vmax.f32 %v331, 0.0
        %v348 = vmax.f32 %v332, 0.0
        %v349 = vmax.f32 %v333, 0.0
        %v350 = vmax.f32 %v334, 0.0
        %v351 = vmax.f32 %v335, 0.0
        %v352 = vmax.f32 %v336, 0.0
        %v353 = vmax.f32 %v337, 0.0
        %v354 = vmax.f32 %v338, 0.0
        %v355 = vmax.f32 %v339, 0.0
        %v356 = vmax.f32 %v340, 0.0
        %v357 = vmax.f32 %v341, 0.0
        %v358 = vmax.f32 %v342, 0.0
        %v359 = vmax.f32 %v343, 0.0
        %v360 = vmax.f32 %v344, 0.0
        %377 = vrot.lane.b32.xlu0 %v345, 1
        %v378 = vpop.permute.xlu0 %377
        %379 = vrot.lane.b32.xlu0 %v346, 1
        %v380 = vpop.permute.xlu0 %379
        %381 = vrot.lane.b32.xlu0 %v347, 1
        %v382 = vpop.permute.xlu0 %381
        %383 = vrot.lane.b32.xlu0 %v348, 1
        %v384 = vpop.permute.xlu0 %383
        %385 = vrot.lane.b32.xlu0 %v349, 1
        %v386 = vpop.permute.xlu0 %385
        %387 = vrot.lane.b32.xlu0 %v350, 1
        %v388 = vpop.permute.xlu0 %387
        %389 = vrot.lane.b32.xlu0 %v351, 1
        %v390 = vpop.permute.xlu0 %389
        %391 = vrot.lane.b32.xlu0 %v352, 1
        %v392 = vpop.permute.xlu0 %391
        %393 = vrot.lane.b32.xlu0 %v353, 1
        %v394 = vpop.permute.xlu0 %393
        %395 = vrot.lane.b32.xlu0 %v354, 1
        %v396 = vpop.permute.xlu0 %395
        %397 = vrot.lane.b32.xlu0 %v355, 1
        %v398 = vpop.permute.xlu0 %397
        %399 = vrot.lane.b32.xlu0 %v356, 1
        %v400 = vpop.permute.xlu0 %399
        %401 = vrot.lane.b32.xlu0 %v357, 1
        %v402 = vpop.permute.xlu0 %401
        %403 = vrot.lane.b32.xlu0 %v358, 1
        %v404 = vpop.permute.xlu0 %403
        %405 = vrot.lane.b32.xlu0 %v359, 1
        %v406 = vpop.permute.xlu0 %405
        %407 = vrot.lane.b32.xlu0 %v360, 1
        %v408 = vpop.permute.xlu0 %407
        %vm425 = vcmask 138248
        %426 = vst.msk [vmem:[#allocation2 + $0x1] sm:$0xff] %vm425, %v378
        %427 = vst.msk [vmem:[#allocation2 + $0x9] sm:$0xff] %vm425, %v380
        %428 = vst.msk [vmem:[#allocation2 + $0x19] sm:$0xff] %vm425, %v382
        %429 = vst.msk [vmem:[#allocation2 + $0x21] sm:$0xff] %vm425, %v384
        %430 = vst.msk [vmem:[#allocation2 + $0x31] sm:$0xff] %vm425, %v386
        %431 = vst.msk [vmem:[#allocation2 + $0x39] sm:$0xff] %vm425, %v388
        %432 = vst.msk [vmem:[#allocation2 + $0x49] sm:$0xff] %vm425, %v390
        %433 = vst.msk [vmem:[#allocation2 + $0x51] sm:$0xff] %vm425, %v392
        %434 = vst.msk [vmem:[#allocation2 + $0x61] sm:$0xff] %vm425, %v394
        %435 = vst.msk [vmem:[#allocation2 + $0x69] sm:$0xff] %vm425, %v396
        %436 = vst.msk [vmem:[#allocation2 + $0x79] sm:$0xff] %vm425, %v398
        %437 = vst.msk [vmem:[#allocation2 + $0x81] sm:$0xff] %vm425, %v400
        %438 = vst.msk [vmem:[#allocation2 + $0x91] sm:$0xff] %vm425, %v402
        %439 = vst.msk [vmem:[#allocation2 + $0x99] sm:$0xff] %vm425, %v404
        %440 = vst.msk [vmem:[#allocation2 + $0xa9] sm:$0xff] %vm425, %v406
        %441 = vst.msk [vmem:[#allocation2 + $0xb1] sm:$0xff] %vm425, %v408
        %v442 = vld [vmem:[#allocation9] sm:$0xff]
        %v443 = vld [vmem:[#allocation2] sm:$0x1]
        %v444 = vld [vmem:[#allocation2 + $0x18] sm:$0x1]
        %v445 = vld [vmem:[#allocation2 + $0x30] sm:$0x1]
        %v446 = vld [vmem:[#allocation2 + $0x48] sm:$0x1]
        %v447 = vld [vmem:[#allocation2 + $0x60] sm:$0x1]
        %v448 = vld [vmem:[#allocation2 + $0x78] sm:$0x1]
        %v449 = vld [vmem:[#allocation2 + $0x90] sm:$0x1]
        %v450 = vld [vmem:[#allocation2 + $0xa8] sm:$0x1]
        %v451 = vld [vmem:[#allocation2 + $0x1] sm:$0x1]
        %v452 = vld [vmem:[#allocation2 + $0x19] sm:$0x1]
        %v453 = vld [vmem:[#allocation2 + $0x31] sm:$0x1]
        %v454 = vld [vmem:[#allocation2 + $0x49] sm:$0x1]
        %v455 = vld [vmem:[#allocation2 + $0x61] sm:$0x1]
        %v456 = vld [vmem:[#allocation2 + $0x79] sm:$0x1]
        %v457 = vld [vmem:[#allocation2 + $0x91] sm:$0x1]
        %v458 = vld [vmem:[#allocation2 + $0xa9] sm:$0x1]
        %v459 = vld [vmem:[#allocation2 + $0x2] sm:$0x1]
        %v460 = vld [vmem:[#allocation2 + $0x1a] sm:$0x1]
        %v461 = vld [vmem:[#allocation2 + $0x32] sm:$0x1]
        %v462 = vld [vmem:[#allocation2 + $0x4a] sm:$0x1]
        %v463 = vld [vmem:[#allocation2 + $0x62] sm:$0x1]
        %v464 = vld [vmem:[#allocation2 + $0x7a] sm:$0x1]
        %v465 = vld [vmem:[#allocation2 + $0x92] sm:$0x1]
        %v466 = vld [vmem:[#allocation2 + $0xaa] sm:$0x1]
        %468 = vset.pattern.permute.xlu0 0
        %469 = vperm.xlu0 %468, %v442
        %v470 = vpop.permute.xlu0 %469
        %v480 = vrot.slane %v444, 7
        %vm481 = vcmask 1041409
        %v482 = vsel %vm481, %v480, %v443
        %v483 = vrot.slane %v445, 6
        %vm484 = vcmask 1042434
        %v485 = vsel %vm484, %v483, %v482
        %v486 = vrot.slane %v446, 5
        %vm487 = vcmask 1043459
        %v488 = vsel %vm487, %v486, %v485
        %v489 = vrot.slane %v447, 4
        %vm490 = vcmask 1044484
        %v491 = vsel %vm490, %v489, %v488
        %v492 = vrot.slane %v448, 3
        %vm493 = vcmask 1045509
        %v494 = vsel %vm493, %v492, %v491
        %v495 = vrot.slane %v449, 2
        %vm496 = vcmask 1046534
        %v497 = vsel %vm496, %v495, %v494
        %v498 = vrot.slane %v450, 1
        %vm499 = vcmask 1047559
        %v500 = vsel %vm499, %v498, %v497
        %v502 = vmul.f32 %v470, %v500
        %v503 = vadd.f32 %v502, 0.0
        %504 = vset.pattern.permute.xlu0 1
        %505 = vperm.xlu0 %504, %v442
        %v506 = vpop.permute.xlu0 %505
        %508 = vrot.lane.b32.xlu0 %v500, 127
        %v509 = vpop.permute.xlu0 %508
        %v511 = vmul.f32 %v506, %v509
        %v512 = vadd.f32 %v503, %v511
        %513 = vset.pattern.permute.xlu0 2
        %514 = vperm.xlu0 %513, %v442
        %v515 = vpop.permute.xlu0 %514
        %517 = vrot.lane.b32.xlu0 %v500, 126
        %v518 = vpop.permute.xlu0 %517
        %v520 = vmul.f32 %v515, %v518
        %v521 = vadd.f32 %v512, %v520
        %522 = vset.pattern.permute.xlu0 3
        %523 = vperm.xlu0 %522, %v442
        %v524 = vpop.permute.xlu0 %523
        %v534 = vrot.slane %v452, 7
        %v535 = vsel %vm481, %v534, %v451
        %v536 = vrot.slane %v453, 6
        %v537 = vsel %vm484, %v536, %v535
        %v538 = vrot.slane %v454, 5
        %v539 = vsel %vm487, %v538, %v537
        %v540 = vrot.slane %v455, 4
        %v541 = vsel %vm490, %v540, %v539
        %v542 = vrot.slane %v456, 3
        %v543 = vsel %vm493, %v542, %v541
        %v544 = vrot.slane %v457, 2
        %v545 = vsel %vm496, %v544, %v543
        %v546 = vrot.slane %v458, 1
        %v547 = vsel %vm499, %v546, %v545
        %v549 = vmul.f32 %v524, %v547
        %v550 = vadd.f32 %v521, %v549
        %551 = vset.pattern.permute.xlu0 4
        %552 = vperm.xlu0 %551, %v442
        %v553 = vpop.permute.xlu0 %552
        %555 = vrot.lane.b32.xlu0 %v547, 127
        %v556 = vpop.permute.xlu0 %555
        %v558 = vmul.f32 %v553, %v556
        %v559 = vadd.f32 %v550, %v558
        %560 = vset.pattern.permute.xlu0 5
        %561 = vperm.xlu0 %560, %v442
        %v562 = vpop.permute.xlu0 %561
        %564 = vrot.lane.b32.xlu0 %v547, 126
        %v565 = vpop.permute.xlu0 %564
        %v567 = vmul.f32 %v562, %v565
        %v568 = vadd.f32 %v559, %v567
        %569 = vset.pattern.permute.xlu0 6
        %570 = vperm.xlu0 %569, %v442
        %v571 = vpop.permute.xlu0 %570
        %v581 = vrot.slane %v460, 7
        %v582 = vsel %vm481, %v581, %v459
        %v583 = vrot.slane %v461, 6
        %v584 = vsel %vm484, %v583, %v582
        %v585 = vrot.slane %v462, 5
        %v586 = vsel %vm487, %v585, %v584
        %v587 = vrot.slane %v463, 4
        %v588 = vsel %vm490, %v587, %v586
        %v589 = vrot.slane %v464, 3
        %v590 = vsel %vm493, %v589, %v588
        %v591 = vrot.slane %v465, 2
        %v592 = vsel %vm496, %v591, %v590
        %v593 = vrot.slane %v466, 1
        %v594 = vsel %vm499, %v593, %v592
        %v596 = vmul.f32 %v571, %v594
        %v597 = vadd.f32 %v568, %v596
        %598 = vset.pattern.permute.xlu0 7
        %599 = vperm.xlu0 %598, %v442
        %v600 = vpop.permute.xlu0 %599
        %602 = vrot.lane.b32.xlu0 %v594, 127
        %v603 = vpop.permute.xlu0 %602
        %v605 = vmul.f32 %v600, %v603
        %v606 = vadd.f32 %v597, %v605
        %607 = vset.pattern.permute.xlu0 8
        %608 = vperm.xlu0 %607, %v442
        %v609 = vpop.permute.xlu0 %608
        %611 = vrot.lane.b32.xlu0 %v594, 126
        %v612 = vpop.permute.xlu0 %611
        %v614 = vmul.f32 %v609, %v612
        %v615 = vadd.f32 %v606, %v614
        %vm616 = vcmask 130048
        %617 = vst.msk [vmem:[#allocation3] sm:$0xff] %vm616, %v615
        %v618 = vld [vmem:[#allocation2 + $0x1] sm:$0x1]
        %v619 = vld [vmem:[#allocation2 + $0x19] sm:$0x1]
        %v620 = vld [vmem:[#allocation2 + $0x31] sm:$0x1]
        %v621 = vld [vmem:[#allocation2 + $0x49] sm:$0x1]
        %v622 = vld [vmem:[#allocation2 + $0x61] sm:$0x1]
        %v623 = vld [vmem:[#allocation2 + $0x79] sm:$0x1]
        %v624 = vld [vmem:[#allocation2 + $0x91] sm:$0x1]
        %v625 = vld [vmem:[#allocation2 + $0xa9] sm:$0x1]
        %v626 = vld [vmem:[#allocation2 + $0x2] sm:$0x1]
        %v627 = vld [vmem:[#allocation2 + $0x1a] sm:$0x1]
        %v628 = vld [vmem:[#allocation2 + $0x32] sm:$0x1]
        %v629 = vld [vmem:[#allocation2 + $0x4a] sm:$0x1]
        %v630 = vld [vmem:[#allocation2 + $0x62] sm:$0x1]
        %v631 = vld [vmem:[#allocation2 + $0x7a] sm:$0x1]
        %v632 = vld [vmem:[#allocation2 + $0x92] sm:$0x1]
        %v633 = vld [vmem:[#allocation2 + $0xaa] sm:$0x1]
        %v634 = vld [vmem:[#allocation2 + $0x3] sm:$0x1]
        %v635 = vld [vmem:[#allocation2 + $0x1b] sm:$0x1]
        %v636 = vld [vmem:[#allocation2 + $0x33] sm:$0x1]
        %v637 = vld [vmem:[#allocation2 + $0x4b] sm:$0x1]
        %v638 = vld [vmem:[#allocation2 + $0x63] sm:$0x1]
        %v639 = vld [vmem:[#allocation2 + $0x7b] sm:$0x1]
        %v640 = vld [vmem:[#allocation2 + $0x93] sm:$0x1]
        %v641 = vld [vmem:[#allocation2 + $0xab] sm:$0x1]
        %v650 = vrot.slane %v619, 7
        %v651 = vsel %vm481, %v650, %v618
        %v652 = vrot.slane %v620, 6
        %v653 = vsel %vm484, %v652, %v651
        %v654 = vrot.slane %v621, 5
        %v655 = vsel %vm487, %v654, %v653
        %v656 = vrot.slane %v622, 4
        %v657 = vsel %vm490, %v656, %v655
        %v658 = vrot.slane %v623, 3
        %v659 = vsel %vm493, %v658, %v657
        %v660 = vrot.slane %v624, 2
        %v661 = vsel %vm496, %v660, %v659
        %v662 = vrot.slane %v625, 1
        %v663 = vsel %vm499, %v662, %v661
        %v665 = vmul.f32 %v470, %v663
        %v666 = vadd.f32 %v665, 0.0
        %667 = vrot.lane.b32.xlu0 %v663, 127
        %v668 = vpop.permute.xlu0 %667
        %v670 = vmul.f32 %v506, %v668
        %v671 = vadd.f32 %v666, %v670
        %672 = vrot.lane.b32.xlu0 %v663, 126
        %v673 = vpop.permute.xlu0 %672
        %v675 = vmul.f32 %v515, %v673
        %v676 = vadd.f32 %v671, %v675
        %v685 = vrot.slane %v627, 7
        %v686 = vsel %vm481, %v685, %v626
        %v687 = vrot.slane %v628, 6
        %v688 = vsel %vm484, %v687, %v686
        %v689 = vrot.slane %v629, 5
        %v690 = vsel %vm487, %v689, %v688
        %v691 = vrot.slane %v630, 4
        %v692 = vsel %vm490, %v691, %v690
        %v693 = vrot.slane %v631, 3
        %v694 = vsel %vm493, %v693, %v692
        %v695 = vrot.slane %v632, 2
        %v696 = vsel %vm496, %v695, %v694
        %v697 = vrot.slane %v633, 1
        %v698 = vsel %vm499, %v697, %v696
        %v700 = vmul.f32 %v524, %v698
        %v701 = vadd.f32 %v676, %v700
        %702 = vrot.lane.b32.xlu0 %v698, 127
        %v703 = vpop.permute.xlu0 %702
        %v705 = vmul.f32 %v553, %v703
        %v706 = vadd.f32 %v701, %v705
        %707 = vrot.lane.b32.xlu0 %v698, 126
        %v708 = vpop.permute.xlu0 %707
        %v710 = vmul.f32 %v562, %v708
        %v711 = vadd.f32 %v706, %v710
        %v720 = vrot.slane %v635, 7
        %v721 = vsel %vm481, %v720, %v634
        %v722 = vrot.slane %v636, 6
        %v723 = vsel %vm484, %v722, %v721
        %v724 = vrot.slane %v637, 5
        %v725 = vsel %vm487, %v724, %v723
        %v726 = vrot.slane %v638, 4
        %v727 = vsel %vm490, %v726, %v725
        %v728 = vrot.slane %v639, 3
        %v729 = vsel %vm493, %v728, %v727
        %v730 = vrot.slane %v640, 2
        %v731 = vsel %vm496, %v730, %v729
        %v732 = vrot.slane %v641, 1
        %v733 = vsel %vm499, %v732, %v731
        %v735 = vmul.f32 %v571, %v733
        %v736 = vadd.f32 %v711, %v735
        %737 = vrot.lane.b32.xlu0 %v733, 127
        %v738 = vpop.permute.xlu0 %737
        %v740 = vmul.f32 %v600, %v738
        %v741 = vadd.f32 %v736, %v740
        %742 = vrot.lane.b32.xlu0 %v733, 126
        %v743 = vpop.permute.xlu0 %742
        %v745 = vmul.f32 %v609, %v743
        %v746 = vadd.f32 %v741, %v745
        %748 = vrot.lane.b32.xlu0 %v746, 16
        %v749 = vpop.permute.xlu0 %748
        %vm751 = vcmask 261248
        %752 = vst.msk [vmem:[#allocation3] sm:$0xff] %vm751, %v749
        %v753 = vld [vmem:[#allocation2 + $0x2] sm:$0x1]
        %v754 = vld [vmem:[#allocation2 + $0x1a] sm:$0x1]
        %v755 = vld [vmem:[#allocation2 + $0x32] sm:$0x1]
        %v756 = vld [vmem:[#allocation2 + $0x4a] sm:$0x1]
        %v757 = vld [vmem:[#allocation2 + $0x62] sm:$0x1]
        %v758 = vld [vmem:[#allocation2 + $0x7a] sm:$0x1]
        %v759 = vld [vmem:[#allocation2 + $0x92] sm:$0x1]
        %v760 = vld [vmem:[#allocation2 + $0xaa] sm:$0x1]
        %v761 = vld [vmem:[#allocation2 + $0x3] sm:$0x1]
        %v762 = vld [vmem:[#allocation2 + $0x1b] sm:$0x1]
        %v763 = vld [vmem:[#allocation2 + $0x33] sm:$0x1]
        %v764 = vld [vmem:[#allocation2 + $0x4b] sm:$0x1]
        %v765 = vld [vmem:[#allocation2 + $0x63] sm:$0x1]
        %v766 = vld [vmem:[#allocation2 + $0x7b] sm:$0x1]
        %v767 = vld [vmem:[#allocation2 + $0x93] sm:$0x1]
        %v768 = vld [vmem:[#allocation2 + $0xab] sm:$0x1]
        %v769 = vld [vmem:[#allocation2 + $0x4] sm:$0x1]
        %v770 = vld [vmem:[#allocation2 + $0x1c] sm:$0x1]
        %v771 = vld [vmem:[#allocation2 + $0x34] sm:$0x1]
        %v772 = vld [vmem:[#allocation2 + $0x4c] sm:$0x1]
        %v773 = vld [vmem:[#allocation2 + $0x64] sm:$0x1]
        %v774 = vld [vmem:[#allocation2 + $0x7c] sm:$0x1]
        %v775 = vld [vmem:[#allocation2 + $0x94] sm:$0x1]
        %v776 = vld [vmem:[#allocation2 + $0xac] sm:$0x1]
        %v785 = vrot.slane %v754, 7
        %v786 = vsel %vm481, %v785, %v753
        %v787 = vrot.slane %v755, 6
        %v788 = vsel %vm484, %v787, %v786
        %v789 = vrot.slane %v756, 5
        %v790 = vsel %vm487, %v789, %v788
        %v791 = vrot.slane %v757, 4
        %v792 = vsel %vm490, %v791, %v790
        %v793 = vrot.slane %v758, 3
        %v794 = vsel %vm493, %v793, %v792
        %v795 = vrot.slane %v759, 2
        %v796 = vsel %vm496, %v795, %v794
        %v797 = vrot.slane %v760, 1
        %v798 = vsel %vm499, %v797, %v796
        %v800 = vmul.f32 %v470, %v798
        %v801 = vadd.f32 %v800, 0.0
        %802 = vrot.lane.b32.xlu0 %v798, 127
        %v803 = vpop.permute.xlu0 %802
        %v805 = vmul.f32 %v506, %v803
        %v806 = vadd.f32 %v801, %v805
        %807 = vrot.lane.b32.xlu0 %v798, 126
        %v808 = vpop.permute.xlu0 %807
        %v810 = vmul.f32 %v515, %v808
        %v811 = vadd.f32 %v806, %v810
        %v820 = vrot.slane %v762, 7
        %v821 = vsel %vm481, %v820, %v761
        %v822 = vrot.slane %v763, 6
        %v823 = vsel %vm484, %v822, %v821
        %v824 = vrot.slane %v764, 5
        %v825 = vsel %vm487, %v824, %v823
        %v826 = vrot.slane %v765, 4
        %v827 = vsel %vm490, %v826, %v825
        %v828 = vrot.slane %v766, 3
        %v829 = vsel %vm493, %v828, %v827
        %v830 = vrot.slane %v767, 2
        %v831 = vsel %vm496, %v830, %v829
        %v832 = vrot.slane %v768, 1
        %v833 = vsel %vm499, %v832, %v831
        %v835 = vmul.f32 %v524, %v833
        %v836 = vadd.f32 %v811, %v835
        %837 = vrot.lane.b32.xlu0 %v833, 127
        %v838 = vpop.permute.xlu0 %837
        %v840 = vmul.f32 %v553, %v838
        %v841 = vadd.f32 %v836, %v840
        %842 = vrot.lane.b32.xlu0 %v833, 126
        %v843 = vpop.permute.xlu0 %842
        %v845 = vmul.f32 %v562, %v843
        %v846 = vadd.f32 %v841, %v845
        %v855 = vrot.slane %v770, 7
        %v856 = vsel %vm481, %v855, %v769
        %v857 = vrot.slane %v771, 6
        %v858 = vsel %vm484, %v857, %v856
        %v859 = vrot.slane %v772, 5
        %v860 = vsel %vm487, %v859, %v858
        %v861 = vrot.slane %v773, 4
        %v862 = vsel %vm490, %v861, %v860
        %v863 = vrot.slane %v774, 3
        %v864 = vsel %vm493, %v863, %v862
        %v865 = vrot.slane %v775, 2
        %v866 = vsel %vm496, %v865, %v864
        %v867 = vrot.slane %v776, 1
        %v868 = vsel %vm499, %v867, %v866
        %v870 = vmul.f32 %v571, %v868
        %v871 = vadd.f32 %v846, %v870
        %872 = vrot.lane.b32.xlu0 %v868, 127
        %v873 = vpop.permute.xlu0 %872
        %v875 = vmul.f32 %v600, %v873
        %v876 = vadd.f32 %v871, %v875
        %877 = vrot.lane.b32.xlu0 %v868, 126
        %v878 = vpop.permute.xlu0 %877
        %v880 = vmul.f32 %v609, %v878
        %v881 = vadd.f32 %v876, %v880
        %883 = vrot.lane.b32.xlu0 %v881, 32
        %v884 = vpop.permute.xlu0 %883
        %vm886 = vcmask 392448
        %887 = vst.msk [vmem:[#allocation3] sm:$0xff] %vm886, %v884
        %v888 = vld [vmem:[#allocation2 + $0x3] sm:$0x1]
        %v889 = vld [vmem:[#allocation2 + $0x1b] sm:$0x1]
        %v890 = vld [vmem:[#allocation2 + $0x33] sm:$0x1]
        %v891 = vld [vmem:[#allocation2 + $0x4b] sm:$0x1]
        %v892 = vld [vmem:[#allocation2 + $0x63] sm:$0x1]
        %v893 = vld [vmem:[#allocation2 + $0x7b] sm:$0x1]
        %v894 = vld [vmem:[#allocation2 + $0x93] sm:$0x1]
        %v895 = vld [vmem:[#allocation2 + $0xab] sm:$0x1]
        %v896 = vld [vmem:[#allocation2 + $0x4] sm:$0x1]
        %v897 = vld [vmem:[#allocation2 + $0x1c] sm:$0x1]
        %v898 = vld [vmem:[#allocation2 + $0x34] sm:$0x1]
        %v899 = vld [vmem:[#allocation2 + $0x4c] sm:$0x1]
        %v900 = vld [vmem:[#allocation2 + $0x64] sm:$0x1]
        %v901 = vld [vmem:[#allocation2 + $0x7c] sm:$0x1]
        %v902 = vld [vmem:[#allocation2 + $0x94] sm:$0x1]
        %v903 = vld [vmem:[#allocation2 + $0xac] sm:$0x1]
        %v904 = vld [vmem:[#allocation2 + $0x5] sm:$0x1]
        %v905 = vld [vmem:[#allocation2 + $0x1d] sm:$0x1]
        %v906 = vld [vmem:[#allocation2 + $0x35] sm:$0x1]
        %v907 = vld [vmem:[#allocation2 + $0x4d] sm:$0x1]
        %v908 = vld [vmem:[#allocation2 + $0x65] sm:$0x1]
        %v909 = vld [vmem:[#allocation2 + $0x7d] sm:$0x1]
        %v910 = vld [vmem:[#allocation2 + $0x95] sm:$0x1]
        %v911 = vld [vmem:[#allocation2 + $0xad] sm:$0x1]
        %v920 = vrot.slane %v889, 7
        %v921 = vsel %vm481, %v920, %v888
        %v922 = vrot.slane %v890, 6
        %v923 = vsel %vm484, %v922, %v921
        %v924 = vrot.slane %v891, 5
        %v925 = vsel %vm487, %v924, %v923
        %v926 = vrot.slane %v892, 4
        %v927 = vsel %vm490, %v926, %v925
        %v928 = vrot.slane %v893, 3
        %v929 = vsel %vm493, %v928, %v927
        %v930 = vrot.slane %v894, 2
        %v931 = vsel %vm496, %v930, %v929
        %v932 = vrot.slane %v895, 1
        %v933 = vsel %vm499, %v932, %v931
        %v935 = vmul.f32 %v470, %v933
        %v936 = vadd.f32 %v935, 0.0
        %937 = vrot.lane.b32.xlu0 %v933, 127
        %v938 = vpop.permute.xlu0 %937
        %v940 = vmul.f32 %v506, %v938
        %v941 = vadd.f32 %v936, %v940
        %942 = vrot.lane.b32.xlu0 %v933, 126
        %v943 = vpop.permute.xlu0 %942
        %v945 = vmul.f32 %v515, %v943
        %v946 = vadd.f32 %v941, %v945
        %v955 = vrot.slane %v897, 7
        %v956 = vsel %vm481, %v955, %v896
        %v957 = vrot.slane %v898, 6
        %v958 = vsel %vm484, %v957, %v956
        %v959 = vrot.slane %v899, 5
        %v960 = vsel %vm487, %v959, %v958
        %v961 = vrot.slane %v900, 4
        %v962 = vsel %vm490, %v961, %v960
        %v963 = vrot.slane %v901, 3
        %v964 = vsel %vm493, %v963, %v962
        %v965 = vrot.slane %v902, 2
        %v966 = vsel %vm496, %v965, %v964
        %v967 = vrot.slane %v903, 1
        %v968 = vsel %vm499, %v967, %v966
        %v970 = vmul.f32 %v524, %v968
        %v971 = vadd.f32 %v946, %v970
        %972 = vrot.lane.b32.xlu0 %v968, 127
        %v973 = vpop.permute.xlu0 %972
        %v975 = vmul.f32 %v553, %v973
        %v976 = vadd.f32 %v971, %v975
        %977 = vrot.lane.b32.xlu0 %v968, 126
        %v978 = vpop.permute.xlu0 %977
        %v980 = vmul.f32 %v562, %v978
        %v981 = vadd.f32 %v976, %v980
        %v990 = vrot.slane %v905, 7
        %v991 = vsel %vm481, %v990, %v904
        %v992 = vrot.slane %v906, 6
        %v993 = vsel %vm484, %v992, %v991
        %v994 = vrot.slane %v907, 5
        %v995 = vsel %vm487, %v994, %v993
        %v996 = vrot.slane %v908, 4
        %v997 = vsel %vm490, %v996, %v995
        %v998 = vrot.slane %v909, 3
        %v999 = vsel %vm493, %v998, %v997
        %v1000 = vrot.slane %v910, 2
        %v1001 = vsel %vm496, %v1000, %v999
        %v1002 = vrot.slane %v911, 1
        %v1003 = vsel %vm499, %v1002, %v1001
        %v1005 = vmul.f32 %v571, %v1003
        %v1006 = vadd.f32 %v981, %v1005
        %1007 = vrot.lane.b32.xlu0 %v1003, 127
        %v1008 = vpop.permute.xlu0 %1007
        %v1010 = vmul.f32 %v600, %v1008
        %v1011 = vadd.f32 %v1006, %v1010
        %1012 = vrot.lane.b32.xlu0 %v1003, 126
        %v1013 = vpop.permute.xlu0 %1012
        %v1015 = vmul.f32 %v609, %v1013
        %v1016 = vadd.f32 %v1011, %v1015
        %1018 = vrot.lane.b32.xlu0 %v1016, 48
        %v1019 = vpop.permute.xlu0 %1018
        %vm1021 = vcmask 523648
        %1022 = vst.msk [vmem:[#allocation3] sm:$0xff] %vm1021, %v1019
        %v1023 = vld [vmem:[#allocation2 + $0x4] sm:$0x1]
        %v1024 = vld [vmem:[#allocation2 + $0x1c] sm:$0x1]
        %v1025 = vld [vmem:[#allocation2 + $0x34] sm:$0x1]
        %v1026 = vld [vmem:[#allocation2 + $0x4c] sm:$0x1]
        %v1027 = vld [vmem:[#allocation2 + $0x64] sm:$0x1]
        %v1028 = vld [vmem:[#allocation2 + $0x7c] sm:$0x1]
        %v1029 = vld [vmem:[#allocation2 + $0x94] sm:$0x1]
        %v1030 = vld [vmem:[#allocation2 + $0xac] sm:$0x1]
        %v1031 = vld [vmem:[#allocation2 + $0x5] sm:$0x1]
        %v1032 = vld [vmem:[#allocation2 + $0x1d] sm:$0x1]
        %v1033 = vld [vmem:[#allocation2 + $0x35] sm:$0x1]
        %v1034 = vld [vmem:[#allocation2 + $0x4d] sm:$0x1]
        %v1035 = vld [vmem:[#allocation2 + $0x65] sm:$0x1]
        %v1036 = vld [vmem:[#allocation2 + $0x7d] sm:$0x1]
        %v1037 = vld [vmem:[#allocation2 + $0x95] sm:$0x1]
        %v1038 = vld [vmem:[#allocation2 + $0xad] sm:$0x1]
        %v1039 = vld [vmem:[#allocation2 + $0x6] sm:$0x1]
        %v1040 = vld [vmem:[#allocation2 + $0x1e] sm:$0x1]
        %v1041 = vld [vmem:[#allocation2 + $0x36] sm:$0x1]
        %v1042 = vld [vmem:[#allocation2 + $0x4e] sm:$0x1]
        %v1043 = vld [vmem:[#allocation2 + $0x66] sm:$0x1]
        %v1044 = vld [vmem:[#allocation2 + $0x7e] sm:$0x1]
        %v1045 = vld [vmem:[#allocation2 + $0x96] sm:$0x1]
        %v1046 = vld [vmem:[#allocation2 + $0xae] sm:$0x1]
        %v1055 = vrot.slane %v1024, 7
        %v1056 = vsel %vm481, %v1055, %v1023
        %v1057 = vrot.slane %v1025, 6
        %v1058 = vsel %vm484, %v1057, %v1056
        %v1059 = vrot.slane %v1026, 5
        %v1060 = vsel %vm487, %v1059, %v1058
        %v1061 = vrot.slane %v1027, 4
        %v1062 = vsel %vm490, %v1061, %v1060
        %v1063 = vrot.slane %v1028, 3
        %v1064 = vsel %vm493, %v1063, %v1062
        %v1065 = vrot.slane %v1029, 2
        %v1066 = vsel %vm496, %v1065, %v1064
        %v1067 = vrot.slane %v1030, 1
        %v1068 = vsel %vm499, %v1067, %v1066
        %v1070 = vmul.f32 %v470, %v1068
        %v1071 = vadd.f32 %v1070, 0.0
        %1072 = vrot.lane.b32.xlu0 %v1068, 127
        %v1073 = vpop.permute.xlu0 %1072
        %v1075 = vmul.f32 %v506, %v1073
        %v1076 = vadd.f32 %v1071, %v1075
        %1077 = vrot.lane.b32.xlu0 %v1068, 126
        %v1078 = vpop.permute.xlu0 %1077
        %v1080 = vmul.f32 %v515, %v1078
        %v1081 = vadd.f32 %v1076, %v1080
        %v1090 = vrot.slane %v1032, 7
        %v1091 = vsel %vm481, %v1090, %v1031
        %v1092 = vrot.slane %v1033, 6
        %v1093 = vsel %vm484, %v1092, %v1091
        %v1094 = vrot.slane %v1034, 5
        %v1095 = vsel %vm487, %v1094, %v1093
        %v1096 = vrot.slane %v1035, 4
        %v1097 = vsel %vm490, %v1096, %v1095
        %v1098 = vrot.slane %v1036, 3
        %v1099 = vsel %vm493, %v1098, %v1097
        %v1100 = vrot.slane %v1037, 2
        %v1101 = vsel %vm496, %v1100, %v1099
        %v1102 = vrot.slane %v1038, 1
        %v1103 = vsel %vm499, %v1102, %v1101
        %v1105 = vmul.f32 %v524, %v1103
        %v1106 = vadd.f32 %v1081, %v1105
        %1107 = vrot.lane.b32.xlu0 %v1103, 127
        %v1108 = vpop.permute.xlu0 %1107
        %v1110 = vmul.f32 %v553, %v1108
        %v1111 = vadd.f32 %v1106, %v1110
        %1112 = vrot.lane.b32.xlu0 %v1103, 126
        %v1113 = vpop.permute.xlu0 %1112
        %v1115 = vmul.f32 %v562, %v1113
        %v1116 = vadd.f32 %v1111, %v1115
        %v1125 = vrot.slane %v1040, 7
        %v1126 = vsel %vm481, %v1125, %v1039
        %v1127 = vrot.slane %v1041, 6
        %v1128 = vsel %vm484, %v1127, %v1126
        %v1129 = vrot.slane %v1042, 5
        %v1130 = vsel %vm487, %v1129, %v1128
        %v1131 = vrot.slane %v1043, 4
        %v1132 = vsel %vm490, %v1131, %v1130
        %v1133 = vrot.slane %v1044, 3
        %v1134 = vsel %vm493, %v1133, %v1132
        %v1135 = vrot.slane %v1045, 2
        %v1136 = vsel %vm496, %v1135, %v1134
        %v1137 = vrot.slane %v1046, 1
        %v1138 = vsel %vm499, %v1137, %v1136
        %v1140 = vmul.f32 %v571, %v1138
        %v1141 = vadd.f32 %v1116, %v1140
        %1142 = vrot.lane.b32.xlu0 %v1138, 127
        %v1143 = vpop.permute.xlu0 %1142
        %v1145 = vmul.f32 %v600, %v1143
        %v1146 = vadd.f32 %v1141, %v1145
        %1147 = vrot.lane.b32.xlu0 %v1138, 126
        %v1148 = vpop.permute.xlu0 %1147
        %v1150 = vmul.f32 %v609, %v1148
        %v1151 = vadd.f32 %v1146, %v1150
        %1153 = vrot.lane.b32.xlu0 %v1151, 64
        %v1154 = vpop.permute.xlu0 %1153
        %vm1156 = vcmask 654848
        %1157 = vst.msk [vmem:[#allocation3] sm:$0xff] %vm1156, %v1154
        %v1158 = vld [vmem:[#allocation2 + $0x5] sm:$0x1]
        %v1159 = vld [vmem:[#allocation2 + $0x1d] sm:$0x1]
        %v1160 = vld [vmem:[#allocation2 + $0x35] sm:$0x1]
        %v1161 = vld [vmem:[#allocation2 + $0x4d] sm:$0x1]
        %v1162 = vld [vmem:[#allocation2 + $0x65] sm:$0x1]
        %v1163 = vld [vmem:[#allocation2 + $0x7d] sm:$0x1]
        %v1164 = vld [vmem:[#allocation2 + $0x95] sm:$0x1]
        %v1165 = vld [vmem:[#allocation2 + $0xad] sm:$0x1]
        %v1166 = vld [vmem:[#allocation2 + $0x6] sm:$0x1]
        %v1167 = vld [vmem:[#allocation2 + $0x1e] sm:$0x1]
        %v1168 = vld [vmem:[#allocation2 + $0x36] sm:$0x1]
        %v1169 = vld [vmem:[#allocation2 + $0x4e] sm:$0x1]
        %v1170 = vld [vmem:[#allocation2 + $0x66] sm:$0x1]
        %v1171 = vld [vmem:[#allocation2 + $0x7e] sm:$0x1]
        %v1172 = vld [vmem:[#allocation2 + $0x96] sm:$0x1]
        %v1173 = vld [vmem:[#allocation2 + $0xae] sm:$0x1]
        %v1174 = vld [vmem:[#allocation2 + $0x7] sm:$0x1]
        %v1175 = vld [vmem:[#allocation2 + $0x1f] sm:$0x1]
        %v1176 = vld [vmem:[#allocation2 + $0x37] sm:$0x1]
        %v1177 = vld [vmem:[#allocation2 + $0x4f] sm:$0x1]
        %v1178 = vld [vmem:[#allocation2 + $0x67] sm:$0x1]
        %v1179 = vld [vmem:[#allocation2 + $0x7f] sm:$0x1]
        %v1180 = vld [vmem:[#allocation2 + $0x97] sm:$0x1]
        %v1181 = vld [vmem:[#allocation2 + $0xaf] sm:$0x1]
        %v1190 = vrot.slane %v1159, 7
        %v1191 = vsel %vm481, %v1190, %v1158
        %v1192 = vrot.slane %v1160, 6
        %v1193 = vsel %vm484, %v1192, %v1191
        %v1194 = vrot.slane %v1161, 5
        %v1195 = vsel %vm487, %v1194, %v1193
        %v1196 = vrot.slane %v1162, 4
        %v1197 = vsel %vm490, %v1196, %v1195
        %v1198 = vrot.slane %v1163, 3
        %v1199 = vsel %vm493, %v1198, %v1197
        %v1200 = vrot.slane %v1164, 2
        %v1201 = vsel %vm496, %v1200, %v1199
        %v1202 = vrot.slane %v1165, 1
        %v1203 = vsel %vm499, %v1202, %v1201
        %v1205 = vmul.f32 %v470, %v1203
        %v1206 = vadd.f32 %v1205, 0.0
        %1207 = vrot.lane.b32.xlu0 %v1203, 127
        %v1208 = vpop.permute.xlu0 %1207
        %v1210 = vmul.f32 %v506, %v1208
        %v1211 = vadd.f32 %v1206, %v1210
        %1212 = vrot.lane.b32.xlu0 %v1203, 126
        %v1213 = vpop.permute.xlu0 %1212
        %v1215 = vmul.f32 %v515, %v1213
        %v1216 = vadd.f32 %v1211, %v1215
        %v1225 = vrot.slane %v1167, 7
        %v1226 = vsel %vm481, %v1225, %v1166
        %v1227 = vrot.slane %v1168, 6
        %v1228 = vsel %vm484, %v1227, %v1226
        %v1229 = vrot.slane %v1169, 5
        %v1230 = vsel %vm487, %v1229, %v1228
        %v1231 = vrot.slane %v1170, 4
        %v1232 = vsel %vm490, %v1231, %v1230
        %v1233 = vrot.slane %v1171, 3
        %v1234 = vsel %vm493, %v1233, %v1232
        %v1235 = vrot.slane %v1172, 2
        %v1236 = vsel %vm496, %v1235, %v1234
        %v1237 = vrot.slane %v1173, 1
        %v1238 = vsel %vm499, %v1237, %v1236
        %v1240 = vmul.f32 %v524, %v1238
        %v1241 = vadd.f32 %v1216, %v1240
        %1242 = vrot.lane.b32.xlu0 %v1238, 127
        %v1243 = vpop.permute.xlu0 %1242
        %v1245 = vmul.f32 %v553, %v1243
        %v1246 = vadd.f32 %v1241, %v1245
        %1247 = vrot.lane.b32.xlu0 %v1238, 126
        %v1248 = vpop.permute.xlu0 %1247
        %v1250 = vmul.f32 %v562, %v1248
        %v1251 = vadd.f32 %v1246, %v1250
        %v1260 = vrot.slane %v1175, 7
        %v1261 = vsel %vm481, %v1260, %v1174
        %v1262 = vrot.slane %v1176, 6
        %v1263 = vsel %vm484, %v1262, %v1261
        %v1264 = vrot.slane %v1177, 5
        %v1265 = vsel %vm487, %v1264, %v1263
        %v1266 = vrot.slane %v1178, 4
        %v1267 = vsel %vm490, %v1266, %v1265
        %v1268 = vrot.slane %v1179, 3
        %v1269 = vsel %vm493, %v1268, %v1267
        %v1270 = vrot.slane %v1180, 2
        %v1271 = vsel %vm496, %v1270, %v1269
        %v1272 = vrot.slane %v1181, 1
        %v1273 = vsel %vm499, %v1272, %v1271
        %v1275 = vmul.f32 %v571, %v1273
        %v1276 = vadd.f32 %v1251, %v1275
        %1277 = vrot.lane.b32.xlu0 %v1273, 127
        %v1278 = vpop.permute.xlu0 %1277
        %v1280 = vmul.f32 %v600, %v1278
        %v1281 = vadd.f32 %v1276, %v1280
        %1282 = vrot.lane.b32.xlu0 %v1273, 126
        %v1283 = vpop.permute.xlu0 %1282
        %v1285 = vmul.f32 %v609, %v1283
        %v1286 = vadd.f32 %v1281, %v1285
        %1288 = vrot.lane.b32.xlu0 %v1286, 80
        %v1289 = vpop.permute.xlu0 %1288
        %vm1291 = vcmask 786048
        %1292 = vst.msk [vmem:[#allocation3] sm:$0xff] %vm1291, %v1289
        %v1293 = vld [vmem:[#allocation2 + $0x6] sm:$0x1]
        %v1294 = vld [vmem:[#allocation2 + $0x1e] sm:$0x1]
        %v1295 = vld [vmem:[#allocation2 + $0x36] sm:$0x1]
        %v1296 = vld [vmem:[#allocation2 + $0x4e] sm:$0x1]
        %v1297 = vld [vmem:[#allocation2 + $0x66] sm:$0x1]
        %v1298 = vld [vmem:[#allocation2 + $0x7e] sm:$0x1]
        %v1299 = vld [vmem:[#allocation2 + $0x96] sm:$0x1]
        %v1300 = vld [vmem:[#allocation2 + $0xae] sm:$0x1]
        %v1301 = vld [vmem:[#allocation2 + $0x7] sm:$0x1]
        %v1302 = vld [vmem:[#allocation2 + $0x1f] sm:$0x1]
        %v1303 = vld [vmem:[#allocation2 + $0x37] sm:$0x1]
        %v1304 = vld [vmem:[#allocation2 + $0x4f] sm:$0x1]
        %v1305 = vld [vmem:[#allocation2 + $0x67] sm:$0x1]
        %v1306 = vld [vmem:[#allocation2 + $0x7f] sm:$0x1]
        %v1307 = vld [vmem:[#allocation2 + $0x97] sm:$0x1]
        %v1308 = vld [vmem:[#allocation2 + $0xaf] sm:$0x1]
        %v1309 = vld [vmem:[#allocation2 + $0x8] sm:$0x1]
        %v1310 = vld [vmem:[#allocation2 + $0x20] sm:$0x1]
        %v1311 = vld [vmem:[#allocation2 + $0x38] sm:$0x1]
        %v1312 = vld [vmem:[#allocation2 + $0x50] sm:$0x1]
        %v1313 = vld [vmem:[#allocation2 + $0x68] sm:$0x1]
        %v1314 = vld [vmem:[#allocation2 + $0x80] sm:$0x1]
        %v1315 = vld [vmem:[#allocation2 + $0x98] sm:$0x1]
        %v1316 = vld [vmem:[#allocation2 + $0xb0] sm:$0x1]
        %v1325 = vrot.slane %v1294, 7
        %v1326 = vsel %vm481, %v1325, %v1293
        %v1327 = vrot.slane %v1295, 6
        %v1328 = vsel %vm484, %v1327, %v1326
        %v1329 = vrot.slane %v1296, 5
        %v1330 = vsel %vm487, %v1329, %v1328
        %v1331 = vrot.slane %v1297, 4
        %v1332 = vsel %vm490, %v1331, %v1330
        %v1333 = vrot.slane %v1298, 3
        %v1334 = vsel %vm493, %v1333, %v1332
        %v1335 = vrot.slane %v1299, 2
        %v1336 = vsel %vm496, %v1335, %v1334
        %v1337 = vrot.slane %v1300, 1
        %v1338 = vsel %vm499, %v1337, %v1336
        %v1340 = vmul.f32 %v470, %v1338
        %v1341 = vadd.f32 %v1340, 0.0
        %1342 = vrot.lane.b32.xlu0 %v1338, 127
        %v1343 = vpop.permute.xlu0 %1342
        %v1345 = vmul.f32 %v506, %v1343
        %v1346 = vadd.f32 %v1341, %v1345
        %1347 = vrot.lane.b32.xlu0 %v1338, 126
        %v1348 = vpop.permute.xlu0 %1347
        %v1350 = vmul.f32 %v515, %v1348
        %v1351 = vadd.f32 %v1346, %v1350
        %v1360 = vrot.slane %v1302, 7
        %v1361 = vsel %vm481, %v1360, %v1301
        %v1362 = vrot.slane %v1303, 6
        %v1363 = vsel %vm484, %v1362, %v1361
        %v1364 = vrot.slane %v1304, 5
        %v1365 = vsel %vm487, %v1364, %v1363
        %v1366 = vrot.slane %v1305, 4
        %v1367 = vsel %vm490, %v1366, %v1365
        %v1368 = vrot.slane %v1306, 3
        %v1369 = vsel %vm493, %v1368, %v1367
        %v1370 = vrot.slane %v1307, 2
        %v1371 = vsel %vm496, %v1370, %v1369
        %v1372 = vrot.slane %v1308, 1
        %v1373 = vsel %vm499, %v1372, %v1371
        %v1375 = vmul.f32 %v524, %v1373
        %v1376 = vadd.f32 %v1351, %v1375
        %1377 = vrot.lane.b32.xlu0 %v1373, 127
        %v1378 = vpop.permute.xlu0 %1377
        %v1380 = vmul.f32 %v553, %v1378
        %v1381 = vadd.f32 %v1376, %v1380
        %1382 = vrot.lane.b32.xlu0 %v1373, 126
        %v1383 = vpop.permute.xlu0 %1382
        %v1385 = vmul.f32 %v562, %v1383
        %v1386 = vadd.f32 %v1381, %v1385
        %v1395 = vrot.slane %v1310, 7
        %v1396 = vsel %vm481, %v1395, %v1309
        %v1397 = vrot.slane %v1311, 6
        %v1398 = vsel %vm484, %v1397, %v1396
        %v1399 = vrot.slane %v1312, 5
        %v1400 = vsel %vm487, %v1399, %v1398
        %v1401 = vrot.slane %v1313, 4
        %v1402 = vsel %vm490, %v1401, %v1400
        %v1403 = vrot.slane %v1314, 3
        %v1404 = vsel %vm493, %v1403, %v1402
        %v1405 = vrot.slane %v1315, 2
        %v1406 = vsel %vm496, %v1405, %v1404
        %v1407 = vrot.slane %v1316, 1
        %v1408 = vsel %vm499, %v1407, %v1406
        %v1410 = vmul.f32 %v571, %v1408
        %v1411 = vadd.f32 %v1386, %v1410
        %1412 = vrot.lane.b32.xlu0 %v1408, 127
        %v1413 = vpop.permute.xlu0 %1412
        %v1415 = vmul.f32 %v600, %v1413
        %v1416 = vadd.f32 %v1411, %v1415
        %1417 = vrot.lane.b32.xlu0 %v1408, 126
        %v1418 = vpop.permute.xlu0 %1417
        %v1420 = vmul.f32 %v609, %v1418
        %v1421 = vadd.f32 %v1416, %v1420
        %1423 = vrot.lane.b32.xlu0 %v1421, 96
        %v1424 = vpop.permute.xlu0 %1423
        %vm1426 = vcmask 917248
        %1427 = vst.msk [vmem:[#allocation3] sm:$0xff] %vm1426, %v1424
        %v1428 = vld [vmem:[#allocation2 + $0x7] sm:$0x1]
        %v1429 = vld [vmem:[#allocation2 + $0x1f] sm:$0x1]
        %v1430 = vld [vmem:[#allocation2 + $0x37] sm:$0x1]
        %v1431 = vld [vmem:[#allocation2 + $0x4f] sm:$0x1]
        %v1432 = vld [vmem:[#allocation2 + $0x67] sm:$0x1]
        %v1433 = vld [vmem:[#allocation2 + $0x7f] sm:$0x1]
        %v1434 = vld [vmem:[#allocation2 + $0x97] sm:$0x1]
        %v1435 = vld [vmem:[#allocation2 + $0xaf] sm:$0x1]
        %v1436 = vld [vmem:[#allocation2 + $0x8] sm:$0x1]
        %v1437 = vld [vmem:[#allocation2 + $0x20] sm:$0x1]
        %v1438 = vld [vmem:[#allocation2 + $0x38] sm:$0x1]
        %v1439 = vld [vmem:[#allocation2 + $0x50] sm:$0x1]
        %v1440 = vld [vmem:[#allocation2 + $0x68] sm:$0x1]
        %v1441 = vld [vmem:[#allocation2 + $0x80] sm:$0x1]
        %v1442 = vld [vmem:[#allocation2 + $0x98] sm:$0x1]
        %v1443 = vld [vmem:[#allocation2 + $0xb0] sm:$0x1]
        %v1444 = vld [vmem:[#allocation2 + $0x9] sm:$0x1]
        %v1445 = vld [vmem:[#allocation2 + $0x21] sm:$0x1]
        %v1446 = vld [vmem:[#allocation2 + $0x39] sm:$0x1]
        %v1447 = vld [vmem:[#allocation2 + $0x51] sm:$0x1]
        %v1448 = vld [vmem:[#allocation2 + $0x69] sm:$0x1]
        %v1449 = vld [vmem:[#allocation2 + $0x81] sm:$0x1]
        %v1450 = vld [vmem:[#allocation2 + $0x99] sm:$0x1]
        %v1451 = vld [vmem:[#allocation2 + $0xb1] sm:$0x1]
        %v1460 = vrot.slane %v1429, 7
        %v1461 = vsel %vm481, %v1460, %v1428
        %v1462 = vrot.slane %v1430, 6
        %v1463 = vsel %vm484, %v1462, %v1461
        %v1464 = vrot.slane %v1431, 5
        %v1465 = vsel %vm487, %v1464, %v1463
        %v1466 = vrot.slane %v1432, 4
        %v1467 = vsel %vm490, %v1466, %v1465
        %v1468 = vrot.slane %v1433, 3
        %v1469 = vsel %vm493, %v1468, %v1467
        %v1470 = vrot.slane %v1434, 2
        %v1471 = vsel %vm496, %v1470, %v1469
        %v1472 = vrot.slane %v1435, 1
        %v1473 = vsel %vm499, %v1472, %v1471
        %v1475 = vmul.f32 %v470, %v1473
        %v1476 = vadd.f32 %v1475, 0.0
        %1477 = vrot.lane.b32.xlu0 %v1473, 127
        %v1478 = vpop.permute.xlu0 %1477
        %v1480 = vmul.f32 %v506, %v1478
        %v1481 = vadd.f32 %v1476, %v1480
        %1482 = vrot.lane.b32.xlu0 %v1473, 126
        %v1483 = vpop.permute.xlu0 %1482
        %v1485 = vmul.f32 %v515, %v1483
        %v1486 = vadd.f32 %v1481, %v1485
        %v1495 = vrot.slane %v1437, 7
        %v1496 = vsel %vm481, %v1495, %v1436
        %v1497 = vrot.slane %v1438, 6
        %v1498 = vsel %vm484, %v1497, %v1496
        %v1499 = vrot.slane %v1439, 5
        %v1500 = vsel %vm487, %v1499, %v1498
        %v1501 = vrot.slane %v1440, 4
        %v1502 = vsel %vm490, %v1501, %v1500
        %v1503 = vrot.slane %v1441, 3
        %v1504 = vsel %vm493, %v1503, %v1502
        %v1505 = vrot.slane %v1442, 2
        %v1506 = vsel %vm496, %v1505, %v1504
        %v1507 = vrot.slane %v1443, 1
        %v1508 = vsel %vm499, %v1507, %v1506
        %v1510 = vmul.f32 %v524, %v1508
        %v1511 = vadd.f32 %v1486, %v1510
        %1512 = vrot.lane.b32.xlu0 %v1508, 127
        %v1513 = vpop.permute.xlu0 %1512
        %v1515 = vmul.f32 %v553, %v1513
        %v1516 = vadd.f32 %v1511, %v1515
        %1517 = vrot.lane.b32.xlu0 %v1508, 126
        %v1518 = vpop.permute.xlu0 %1517
        %v1520 = vmul.f32 %v562, %v1518
        %v1521 = vadd.f32 %v1516, %v1520
        %v1530 = vrot.slane %v1445, 7
        %v1531 = vsel %vm481, %v1530, %v1444
        %v1532 = vrot.slane %v1446, 6
        %v1533 = vsel %vm484, %v1532, %v1531
        %v1534 = vrot.slane %v1447, 5
        %v1535 = vsel %vm487, %v1534, %v1533
        %v1536 = vrot.slane %v1448, 4
        %v1537 = vsel %vm490, %v1536, %v1535
        %v1538 = vrot.slane %v1449, 3
        %v1539 = vsel %vm493, %v1538, %v1537
        %v1540 = vrot.slane %v1450, 2
        %v1541 = vsel %vm496, %v1540, %v1539
        %v1542 = vrot.slane %v1451, 1
        %v1543 = vsel %vm499, %v1542, %v1541
        %v1545 = vmul.f32 %v571, %v1543
        %v1546 = vadd.f32 %v1521, %v1545
        %1547 = vrot.lane.b32.xlu0 %v1543, 127
        %v1548 = vpop.permute.xlu0 %1547
        %v1550 = vmul.f32 %v600, %v1548
        %v1551 = vadd.f32 %v1546, %v1550
        %1552 = vrot.lane.b32.xlu0 %v1543, 126
        %v1553 = vpop.permute.xlu0 %1552
        %v1555 = vmul.f32 %v609, %v1553
        %v1556 = vadd.f32 %v1551, %v1555
        %1558 = vrot.lane.b32.xlu0 %v1556, 112
        %v1559 = vpop.permute.xlu0 %1558
        %vm1561 = vcmask 1048448
        %1562 = vst.msk [vmem:[#allocation3] sm:$0xff] %vm1561, %v1559
        %v1563 = vld [vmem:[#allocation2 + $0x8] sm:$0x1]
        %v1564 = vld [vmem:[#allocation2 + $0x20] sm:$0x1]
        %v1565 = vld [vmem:[#allocation2 + $0x38] sm:$0x1]
        %v1566 = vld [vmem:[#allocation2 + $0x50] sm:$0x1]
        %v1567 = vld [vmem:[#allocation2 + $0x68] sm:$0x1]
        %v1568 = vld [vmem:[#allocation2 + $0x80] sm:$0x1]
        %v1569 = vld [vmem:[#allocation2 + $0x98] sm:$0x1]
        %v1570 = vld [vmem:[#allocation2 + $0xb0] sm:$0x1]
        %v1571 = vld [vmem:[#allocation2 + $0x9] sm:$0x1]
        %v1572 = vld [vmem:[#allocation2 + $0x21] sm:$0x1]
        %v1573 = vld [vmem:[#allocation2 + $0x39] sm:$0x1]
        %v1574 = vld [vmem:[#allocation2 + $0x51] sm:$0x1]
        %v1575 = vld [vmem:[#allocation2 + $0x69] sm:$0x1]
        %v1576 = vld [vmem:[#allocation2 + $0x81] sm:$0x1]
        %v1577 = vld [vmem:[#allocation2 + $0x99] sm:$0x1]
        %v1578 = vld [vmem:[#allocation2 + $0xb1] sm:$0x1]
        %v1579 = vld [vmem:[#allocation2 + $0xa] sm:$0x1]
        %v1580 = vld [vmem:[#allocation2 + $0x22] sm:$0x1]
        %v1581 = vld [vmem:[#allocation2 + $0x3a] sm:$0x1]
        %v1582 = vld [vmem:[#allocation2 + $0x52] sm:$0x1]
        %v1583 = vld [vmem:[#allocation2 + $0x6a] sm:$0x1]
        %v1584 = vld [vmem:[#allocation2 + $0x82] sm:$0x1]
        %v1585 = vld [vmem:[#allocation2 + $0x9a] sm:$0x1]
        %v1586 = vld [vmem:[#allocation2 + $0xb2] sm:$0x1]
        %v1595 = vrot.slane %v1564, 7
        %v1596 = vsel %vm481, %v1595, %v1563
        %v1597 = vrot.slane %v1565, 6
        %v1598 = vsel %vm484, %v1597, %v1596
        %v1599 = vrot.slane %v1566, 5
        %v1600 = vsel %vm487, %v1599, %v1598
        %v1601 = vrot.slane %v1567, 4
        %v1602 = vsel %vm490, %v1601, %v1600
        %v1603 = vrot.slane %v1568, 3
        %v1604 = vsel %vm493, %v1603, %v1602
        %v1605 = vrot.slane %v1569, 2
        %v1606 = vsel %vm496, %v1605, %v1604
        %v1607 = vrot.slane %v1570, 1
        %v1608 = vsel %vm499, %v1607, %v1606
        %v1610 = vmul.f32 %v470, %v1608
        %v1611 = vadd.f32 %v1610, 0.0
        %1612 = vrot.lane.b32.xlu0 %v1608, 127
        %v1613 = vpop.permute.xlu0 %1612
        %v1615 = vmul.f32 %v506, %v1613
        %v1616 = vadd.f32 %v1611, %v1615
        %1617 = vrot.lane.b32.xlu0 %v1608, 126
        %v1618 = vpop.permute.xlu0 %1617
        %v1620 = vmul.f32 %v515, %v1618
        %v1621 = vadd.f32 %v1616, %v1620
        %v1630 = vrot.slane %v1572, 7
        %v1631 = vsel %vm481, %v1630, %v1571
        %v1632 = vrot.slane %v1573, 6
        %v1633 = vsel %vm484, %v1632, %v1631
        %v1634 = vrot.slane %v1574, 5
        %v1635 = vsel %vm487, %v1634, %v1633
        %v1636 = vrot.slane %v1575, 4
        %v1637 = vsel %vm490, %v1636, %v1635
        %v1638 = vrot.slane %v1576, 3
        %v1639 = vsel %vm493, %v1638, %v1637
        %v1640 = vrot.slane %v1577, 2
        %v1641 = vsel %vm496, %v1640, %v1639
        %v1642 = vrot.slane %v1578, 1
        %v1643 = vsel %vm499, %v1642, %v1641
        %v1645 = vmul.f32 %v524, %v1643
        %v1646 = vadd.f32 %v1621, %v1645
        %1647 = vrot.lane.b32.xlu0 %v1643, 127
        %v1648 = vpop.permute.xlu0 %1647
        %v1650 = vmul.f32 %v553, %v1648
        %v1651 = vadd.f32 %v1646, %v1650
        %1652 = vrot.lane.b32.xlu0 %v1643, 126
        %v1653 = vpop.permute.xlu0 %1652
        %v1655 = vmul.f32 %v562, %v1653
        %v1656 = vadd.f32 %v1651, %v1655
        %v1665 = vrot.slane %v1580, 7
        %v1666 = vsel %vm481, %v1665, %v1579
        %v1667 = vrot.slane %v1581, 6
        %v1668 = vsel %vm484, %v1667, %v1666
        %v1669 = vrot.slane %v1582, 5
        %v1670 = vsel %vm487, %v1669, %v1668
        %v1671 = vrot.slane %v1583, 4
        %v1672 = vsel %vm490, %v1671, %v1670
        %v1673 = vrot.slane %v1584, 3
        %v1674 = vsel %vm493, %v1673, %v1672
        %v1675 = vrot.slane %v1585, 2
        %v1676 = vsel %vm496, %v1675, %v1674
        %v1677 = vrot.slane %v1586, 1
        %v1678 = vsel %vm499, %v1677, %v1676
        %v1680 = vmul.f32 %v571, %v1678
        %v1681 = vadd.f32 %v1656, %v1680
        %1682 = vrot.lane.b32.xlu0 %v1678, 127
        %v1683 = vpop.permute.xlu0 %1682
        %v1685 = vmul.f32 %v600, %v1683
        %v1686 = vadd.f32 %v1681, %v1685
        %1687 = vrot.lane.b32.xlu0 %v1678, 126
        %v1688 = vpop.permute.xlu0 %1687
        %v1690 = vmul.f32 %v609, %v1688
        %v1691 = vadd.f32 %v1686, %v1690
        %1692 = vst.msk [vmem:[#allocation3 + $0x8] sm:$0xff] %vm616, %v1691
        %v1693 = vld [vmem:[#allocation2 + $0x9] sm:$0x1]
        %v1694 = vld [vmem:[#allocation2 + $0x21] sm:$0x1]
        %v1695 = vld [vmem:[#allocation2 + $0x39] sm:$0x1]
        %v1696 = vld [vmem:[#allocation2 + $0x51] sm:$0x1]
        %v1697 = vld [vmem:[#allocation2 + $0x69] sm:$0x1]
        %v1698 = vld [vmem:[#allocation2 + $0x81] sm:$0x1]
        %v1699 = vld [vmem:[#allocation2 + $0x99] sm:$0x1]
        %v1700 = vld [vmem:[#allocation2 + $0xb1] sm:$0x1]
        %v1701 = vld [vmem:[#allocation2 + $0xa] sm:$0x1]
        %v1702 = vld [vmem:[#allocation2 + $0x22] sm:$0x1]
        %v1703 = vld [vmem:[#allocation2 + $0x3a] sm:$0x1]
        %v1704 = vld [vmem:[#allocation2 + $0x52] sm:$0x1]
        %v1705 = vld [vmem:[#allocation2 + $0x6a] sm:$0x1]
        %v1706 = vld [vmem:[#allocation2 + $0x82] sm:$0x1]
        %v1707 = vld [vmem:[#allocation2 + $0x9a] sm:$0x1]
        %v1708 = vld [vmem:[#allocation2 + $0xb2] sm:$0x1]
        %v1709 = vld [vmem:[#allocation2 + $0xb] sm:$0x1]
        %v1710 = vld [vmem:[#allocation2 + $0x23] sm:$0x1]
        %v1711 = vld [vmem:[#allocation2 + $0x3b] sm:$0x1]
        %v1712 = vld [vmem:[#allocation2 + $0x53] sm:$0x1]
        %v1713 = vld [vmem:[#allocation2 + $0x6b] sm:$0x1]
        %v1714 = vld [vmem:[#allocation2 + $0x83] sm:$0x1]
        %v1715 = vld [vmem:[#allocation2 + $0x9b] sm:$0x1]
        %v1716 = vld [vmem:[#allocation2 + $0xb3] sm:$0x1]
        %v1725 = vrot.slane %v1694, 7
        %v1726 = vsel %vm481, %v1725, %v1693
        %v1727 = vrot.slane %v1695, 6
        %v1728 = vsel %vm484, %v1727, %v1726
        %v1729 = vrot.slane %v1696, 5
        %v1730 = vsel %vm487, %v1729, %v1728
        %v1731 = vrot.slane %v1697, 4
        %v1732 = vsel %vm490, %v1731, %v1730
        %v1733 = vrot.slane %v1698, 3
        %v1734 = vsel %vm493, %v1733, %v1732
        %v1735 = vrot.slane %v1699, 2
        %v1736 = vsel %vm496, %v1735, %v1734
        %v1737 = vrot.slane %v1700, 1
        %v1738 = vsel %vm499, %v1737, %v1736
        %v1740 = vmul.f32 %v470, %v1738
        %v1741 = vadd.f32 %v1740, 0.0
        %1742 = vrot.lane.b32.xlu0 %v1738, 127
        %v1743 = vpop.permute.xlu0 %1742
        %v1745 = vmul.f32 %v506, %v1743
        %v1746 = vadd.f32 %v1741, %v1745
        %1747 = vrot.lane.b32.xlu0 %v1738, 126
        %v1748 = vpop.permute.xlu0 %1747
        %v1750 = vmul.f32 %v515, %v1748
        %v1751 = vadd.f32 %v1746, %v1750
        %v1760 = vrot.slane %v1702, 7
        %v1761 = vsel %vm481, %v1760, %v1701
        %v1762 = vrot.slane %v1703, 6
        %v1763 = vsel %vm484, %v1762, %v1761
        %v1764 = vrot.slane %v1704, 5
        %v1765 = vsel %vm487, %v1764, %v1763
        %v1766 = vrot.slane %v1705, 4
        %v1767 = vsel %vm490, %v1766, %v1765
        %v1768 = vrot.slane %v1706, 3
        %v1769 = vsel %vm493, %v1768, %v1767
        %v1770 = vrot.slane %v1707, 2
        %v1771 = vsel %vm496, %v1770, %v1769
        %v1772 = vrot.slane %v1708, 1
        %v1773 = vsel %vm499, %v1772, %v1771
        %v1775 = vmul.f32 %v524, %v1773
        %v1776 = vadd.f32 %v1751, %v1775
        %1777 = vrot.lane.b32.xlu0 %v1773, 127
        %v1778 = vpop.permute.xlu0 %1777
        %v1780 = vmul.f32 %v553, %v1778
        %v1781 = vadd.f32 %v1776, %v1780
        %1782 = vrot.lane.b32.xlu0 %v1773, 126
        %v1783 = vpop.permute.xlu0 %1782
        %v1785 = vmul.f32 %v562, %v1783
        %v1786 = vadd.f32 %v1781, %v1785
        %v1795 = vrot.slane %v1710, 7
        %v1796 = vsel %vm481, %v1795, %v1709
        %v1797 = vrot.slane %v1711, 6
        %v1798 = vsel %vm484, %v1797, %v1796
        %v1799 = vrot.slane %v1712, 5
        %v1800 = vsel %vm487, %v1799, %v1798
        %v1801 = vrot.slane %v1713, 4
        %v1802 = vsel %vm490, %v1801, %v1800
        %v1803 = vrot.slane %v1714, 3
        %v1804 = vsel %vm493, %v1803, %v1802
        %v1805 = vrot.slane %v1715, 2
        %v1806 = vsel %vm496, %v1805, %v1804
        %v1807 = vrot.slane %v1716, 1
        %v1808 = vsel %vm499, %v1807, %v1806
        %v1810 = vmul.f32 %v571, %v1808
        %v1811 = vadd.f32 %v1786, %v1810
        %1812 = vrot.lane.b32.xlu0 %v1808, 127
        %v1813 = vpop.permute.xlu0 %1812
        %v1815 = vmul.f32 %v600, %v1813
        %v1816 = vadd.f32 %v1811, %v1815
        %1817 = vrot.lane.b32.xlu0 %v1808, 126
        %v1818 = vpop.permute.xlu0 %1817
        %v1820 = vmul.f32 %v609, %v1818
        %v1821 = vadd.f32 %v1816, %v1820
        %1823 = vrot.lane.b32.xlu0 %v1821, 16
        %v1824 = vpop.permute.xlu0 %1823
        %1826 = vst.msk [vmem:[#allocation3 + $0x8] sm:$0xff] %vm751, %v1824
        %v1827 = vld [vmem:[#allocation2 + $0xa] sm:$0x1]
        %v1828 = vld [vmem:[#allocation2 + $0x22] sm:$0x1]
        %v1829 = vld [vmem:[#allocation2 + $0x3a] sm:$0x1]
        %v1830 = vld [vmem:[#allocation2 + $0x52] sm:$0x1]
        %v1831 = vld [vmem:[#allocation2 + $0x6a] sm:$0x1]
        %v1832 = vld [vmem:[#allocation2 + $0x82] sm:$0x1]
        %v1833 = vld [vmem:[#allocation2 + $0x9a] sm:$0x1]
        %v1834 = vld [vmem:[#allocation2 + $0xb2] sm:$0x1]
        %v1835 = vld [vmem:[#allocation2 + $0xb] sm:$0x1]
        %v1836 = vld [vmem:[#allocation2 + $0x23] sm:$0x1]
        %v1837 = vld [vmem:[#allocation2 + $0x3b] sm:$0x1]
        %v1838 = vld [vmem:[#allocation2 + $0x53] sm:$0x1]
        %v1839 = vld [vmem:[#allocation2 + $0x6b] sm:$0x1]
        %v1840 = vld [vmem:[#allocation2 + $0x83] sm:$0x1]
        %v1841 = vld [vmem:[#allocation2 + $0x9b] sm:$0x1]
        %v1842 = vld [vmem:[#allocation2 + $0xb3] sm:$0x1]
        %v1843 = vld [vmem:[#allocation2 + $0xc] sm:$0x1]
        %v1844 = vld [vmem:[#allocation2 + $0x24] sm:$0x1]
        %v1845 = vld [vmem:[#allocation2 + $0x3c] sm:$0x1]
        %v1846 = vld [vmem:[#allocation2 + $0x54] sm:$0x1]
        %v1847 = vld [vmem:[#allocation2 + $0x6c] sm:$0x1]
        %v1848 = vld [vmem:[#allocation2 + $0x84] sm:$0x1]
        %v1849 = vld [vmem:[#allocation2 + $0x9c] sm:$0x1]
        %v1850 = vld [vmem:[#allocation2 + $0xb4] sm:$0x1]
        %v1859 = vrot.slane %v1828, 7
        %v1860 = vsel %vm481, %v1859, %v1827
        %v1861 = vrot.slane %v1829, 6
        %v1862 = vsel %vm484, %v1861, %v1860
        %v1863 = vrot.slane %v1830, 5
        %v1864 = vsel %vm487, %v1863, %v1862
        %v1865 = vrot.slane %v1831, 4
        %v1866 = vsel %vm490, %v1865, %v1864
        %v1867 = vrot.slane %v1832, 3
        %v1868 = vsel %vm493, %v1867, %v1866
        %v1869 = vrot.slane %v1833, 2
        %v1870 = vsel %vm496, %v1869, %v1868
        %v1871 = vrot.slane %v1834, 1
        %v1872 = vsel %vm499, %v1871, %v1870
        %v1874 = vmul.f32 %v470, %v1872
        %v1875 = vadd.f32 %v1874, 0.0
        %1876 = vrot.lane.b32.xlu0 %v1872, 127
        %v1877 = vpop.permute.xlu0 %1876
        %v1879 = vmul.f32 %v506, %v1877
        %v1880 = vadd.f32 %v1875, %v1879
        %1881 = vrot.lane.b32.xlu0 %v1872, 126
        %v1882 = vpop.permute.xlu0 %1881
        %v1884 = vmul.f32 %v515, %v1882
        %v1885 = vadd.f32 %v1880, %v1884
        %v1894 = vrot.slane %v1836, 7
        %v1895 = vsel %vm481, %v1894, %v1835
        %v1896 = vrot.slane %v1837, 6
        %v1897 = vsel %vm484, %v1896, %v1895
        %v1898 = vrot.slane %v1838, 5
        %v1899 = vsel %vm487, %v1898, %v1897
        %v1900 = vrot.slane %v1839, 4
        %v1901 = vsel %vm490, %v1900, %v1899
        %v1902 = vrot.slane %v1840, 3
        %v1903 = vsel %vm493, %v1902, %v1901
        %v1904 = vrot.slane %v1841, 2
        %v1905 = vsel %vm496, %v1904, %v1903
        %v1906 = vrot.slane %v1842, 1
        %v1907 = vsel %vm499, %v1906, %v1905
        %v1909 = vmul.f32 %v524, %v1907
        %v1910 = vadd.f32 %v1885, %v1909
        %1911 = vrot.lane.b32.xlu0 %v1907, 127
        %v1912 = vpop.permute.xlu0 %1911
        %v1914 = vmul.f32 %v553, %v1912
        %v1915 = vadd.f32 %v1910, %v1914
        %1916 = vrot.lane.b32.xlu0 %v1907, 126
        %v1917 = vpop.permute.xlu0 %1916
        %v1919 = vmul.f32 %v562, %v1917
        %v1920 = vadd.f32 %v1915, %v1919
        %v1929 = vrot.slane %v1844, 7
        %v1930 = vsel %vm481, %v1929, %v1843
        %v1931 = vrot.slane %v1845, 6
        %v1932 = vsel %vm484, %v1931, %v1930
        %v1933 = vrot.slane %v1846, 5
        %v1934 = vsel %vm487, %v1933, %v1932
        %v1935 = vrot.slane %v1847, 4
        %v1936 = vsel %vm490, %v1935, %v1934
        %v1937 = vrot.slane %v1848, 3
        %v1938 = vsel %vm493, %v1937, %v1936
        %v1939 = vrot.slane %v1849, 2
        %v1940 = vsel %vm496, %v1939, %v1938
        %v1941 = vrot.slane %v1850, 1
        %v1942 = vsel %vm499, %v1941, %v1940
        %v1944 = vmul.f32 %v571, %v1942
        %v1945 = vadd.f32 %v1920, %v1944
        %1946 = vrot.lane.b32.xlu0 %v1942, 127
        %v1947 = vpop.permute.xlu0 %1946
        %v1949 = vmul.f32 %v600, %v1947
        %v1950 = vadd.f32 %v1945, %v1949
        %1951 = vrot.lane.b32.xlu0 %v1942, 126
        %v1952 = vpop.permute.xlu0 %1951
        %v1954 = vmul.f32 %v609, %v1952
        %v1955 = vadd.f32 %v1950, %v1954
        %1957 = vrot.lane.b32.xlu0 %v1955, 32
        %v1958 = vpop.permute.xlu0 %1957
        %1960 = vst.msk [vmem:[#allocation3 + $0x8] sm:$0xff] %vm886, %v1958
        %v1961 = vld [vmem:[#allocation2 + $0xb] sm:$0x1]
        %v1962 = vld [vmem:[#allocation2 + $0x23] sm:$0x1]
        %v1963 = vld [vmem:[#allocation2 + $0x3b] sm:$0x1]
        %v1964 = vld [vmem:[#allocation2 + $0x53] sm:$0x1]
        %v1965 = vld [vmem:[#allocation2 + $0x6b] sm:$0x1]
        %v1966 = vld [vmem:[#allocation2 + $0x83] sm:$0x1]
        %v1967 = vld [vmem:[#allocation2 + $0x9b] sm:$0x1]
        %v1968 = vld [vmem:[#allocation2 + $0xb3] sm:$0x1]
        %v1969 = vld [vmem:[#allocation2 + $0xc] sm:$0x1]
        %v1970 = vld [vmem:[#allocation2 + $0x24] sm:$0x1]
        %v1971 = vld [vmem:[#allocation2 + $0x3c] sm:$0x1]
        %v1972 = vld [vmem:[#allocation2 + $0x54] sm:$0x1]
        %v1973 = vld [vmem:[#allocation2 + $0x6c] sm:$0x1]
        %v1974 = vld [vmem:[#allocation2 + $0x84] sm:$0x1]
        %v1975 = vld [vmem:[#allocation2 + $0x9c] sm:$0x1]
        %v1976 = vld [vmem:[#allocation2 + $0xb4] sm:$0x1]
        %v1977 = vld [vmem:[#allocation2 + $0xd] sm:$0x1]
        %v1978 = vld [vmem:[#allocation2 + $0x25] sm:$0x1]
        %v1979 = vld [vmem:[#allocation2 + $0x3d] sm:$0x1]
        %v1980 = vld [vmem:[#allocation2 + $0x55] sm:$0x1]
        %v1981 = vld [vmem:[#allocation2 + $0x6d] sm:$0x1]
        %v1982 = vld [vmem:[#allocation2 + $0x85] sm:$0x1]
        %v1983 = vld [vmem:[#allocation2 + $0x9d] sm:$0x1]
        %v1984 = vld [vmem:[#allocation2 + $0xb5] sm:$0x1]
        %v1993 = vrot.slane %v1962, 7
        %v1994 = vsel %vm481, %v1993, %v1961
        %v1995 = vrot.slane %v1963, 6
        %v1996 = vsel %vm484, %v1995, %v1994
        %v1997 = vrot.slane %v1964, 5
        %v1998 = vsel %vm487, %v1997, %v1996
        %v1999 = vrot.slane %v1965, 4
        %v2000 = vsel %vm490, %v1999, %v1998
        %v2001 = vrot.slane %v1966, 3
        %v2002 = vsel %vm493, %v2001, %v2000
        %v2003 = vrot.slane %v1967, 2
        %v2004 = vsel %vm496, %v2003, %v2002
        %v2005 = vrot.slane %v1968, 1
        %v2006 = vsel %vm499, %v2005, %v2004
        %v2008 = vmul.f32 %v470, %v2006
        %v2009 = vadd.f32 %v2008, 0.0
        %2010 = vrot.lane.b32.xlu0 %v2006, 127
        %v2011 = vpop.permute.xlu0 %2010
        %v2013 = vmul.f32 %v506, %v2011
        %v2014 = vadd.f32 %v2009, %v2013
        %2015 = vrot.lane.b32.xlu0 %v2006, 126
        %v2016 = vpop.permute.xlu0 %2015
        %v2018 = vmul.f32 %v515, %v2016
        %v2019 = vadd.f32 %v2014, %v2018
        %v2028 = vrot.slane %v1970, 7
        %v2029 = vsel %vm481, %v2028, %v1969
        %v2030 = vrot.slane %v1971, 6
        %v2031 = vsel %vm484, %v2030, %v2029
        %v2032 = vrot.slane %v1972, 5
        %v2033 = vsel %vm487, %v2032, %v2031
        %v2034 = vrot.slane %v1973, 4
        %v2035 = vsel %vm490, %v2034, %v2033
        %v2036 = vrot.slane %v1974, 3
        %v2037 = vsel %vm493, %v2036, %v2035
        %v2038 = vrot.slane %v1975, 2
        %v2039 = vsel %vm496, %v2038, %v2037
        %v2040 = vrot.slane %v1976, 1
        %v2041 = vsel %vm499, %v2040, %v2039
        %v2043 = vmul.f32 %v524, %v2041
        %v2044 = vadd.f32 %v2019, %v2043
        %2045 = vrot.lane.b32.xlu0 %v2041, 127
        %v2046 = vpop.permute.xlu0 %2045
        %v2048 = vmul.f32 %v553, %v2046
        %v2049 = vadd.f32 %v2044, %v2048
        %2050 = vrot.lane.b32.xlu0 %v2041, 126
        %v2051 = vpop.permute.xlu0 %2050
        %v2053 = vmul.f32 %v562, %v2051
        %v2054 = vadd.f32 %v2049, %v2053
        %v2063 = vrot.slane %v1978, 7
        %v2064 = vsel %vm481, %v2063, %v1977
        %v2065 = vrot.slane %v1979, 6
        %v2066 = vsel %vm484, %v2065, %v2064
        %v2067 = vrot.slane %v1980, 5
        %v2068 = vsel %vm487, %v2067, %v2066
        %v2069 = vrot.slane %v1981, 4
        %v2070 = vsel %vm490, %v2069, %v2068
        %v2071 = vrot.slane %v1982, 3
        %v2072 = vsel %vm493, %v2071, %v2070
        %v2073 = vrot.slane %v1983, 2
        %v2074 = vsel %vm496, %v2073, %v2072
        %v2075 = vrot.slane %v1984, 1
        %v2076 = vsel %vm499, %v2075, %v2074
        %v2078 = vmul.f32 %v571, %v2076
        %v2079 = vadd.f32 %v2054, %v2078
        %2080 = vrot.lane.b32.xlu0 %v2076, 127
        %v2081 = vpop.permute.xlu0 %2080
        %v2083 = vmul.f32 %v600, %v2081
        %v2084 = vadd.f32 %v2079, %v2083
        %2085 = vrot.lane.b32.xlu0 %v2076, 126
        %v2086 = vpop.permute.xlu0 %2085
        %v2088 = vmul.f32 %v609, %v2086
        %v2089 = vadd.f32 %v2084, %v2088
        %2091 = vrot.lane.b32.xlu0 %v2089, 48
        %v2092 = vpop.permute.xlu0 %2091
        %2094 = vst.msk [vmem:[#allocation3 + $0x8] sm:$0xff] %vm1021, %v2092
        %v2095 = vld [vmem:[#allocation2 + $0xc] sm:$0x1]
        %v2096 = vld [vmem:[#allocation2 + $0x24] sm:$0x1]
        %v2097 = vld [vmem:[#allocation2 + $0x3c] sm:$0x1]
        %v2098 = vld [vmem:[#allocation2 + $0x54] sm:$0x1]
        %v2099 = vld [vmem:[#allocation2 + $0x6c] sm:$0x1]
        %v2100 = vld [vmem:[#allocation2 + $0x84] sm:$0x1]
        %v2101 = vld [vmem:[#allocation2 + $0x9c] sm:$0x1]
        %v2102 = vld [vmem:[#allocation2 + $0xb4] sm:$0x1]
        %v2103 = vld [vmem:[#allocation2 + $0xd] sm:$0x1]
        %v2104 = vld [vmem:[#allocation2 + $0x25] sm:$0x1]
        %v2105 = vld [vmem:[#allocation2 + $0x3d] sm:$0x1]
        %v2106 = vld [vmem:[#allocation2 + $0x55] sm:$0x1]
        %v2107 = vld [vmem:[#allocation2 + $0x6d] sm:$0x1]
        %v2108 = vld [vmem:[#allocation2 + $0x85] sm:$0x1]
        %v2109 = vld [vmem:[#allocation2 + $0x9d] sm:$0x1]
        %v2110 = vld [vmem:[#allocation2 + $0xb5] sm:$0x1]
        %v2111 = vld [vmem:[#allocation2 + $0xe] sm:$0x1]
        %v2112 = vld [vmem:[#allocation2 + $0x26] sm:$0x1]
        %v2113 = vld [vmem:[#allocation2 + $0x3e] sm:$0x1]
        %v2114 = vld [vmem:[#allocation2 + $0x56] sm:$0x1]
        %v2115 = vld [vmem:[#allocation2 + $0x6e] sm:$0x1]
        %v2116 = vld [vmem:[#allocation2 + $0x86] sm:$0x1]
        %v2117 = vld [vmem:[#allocation2 + $0x9e] sm:$0x1]
        %v2118 = vld [vmem:[#allocation2 + $0xb6] sm:$0x1]
        %v2127 = vrot.slane %v2096, 7
        %v2128 = vsel %vm481, %v2127, %v2095
        %v2129 = vrot.slane %v2097, 6
        %v2130 = vsel %vm484, %v2129, %v2128
        %v2131 = vrot.slane %v2098, 5
        %v2132 = vsel %vm487, %v2131, %v2130
        %v2133 = vrot.slane %v2099, 4
        %v2134 = vsel %vm490, %v2133, %v2132
        %v2135 = vrot.slane %v2100, 3
        %v2136 = vsel %vm493, %v2135, %v2134
        %v2137 = vrot.slane %v2101, 2
        %v2138 = vsel %vm496, %v2137, %v2136
        %v2139 = vrot.slane %v2102, 1
        %v2140 = vsel %vm499, %v2139, %v2138
        %v2142 = vmul.f32 %v470, %v2140
        %v2143 = vadd.f32 %v2142, 0.0
        %2144 = vrot.lane.b32.xlu0 %v2140, 127
        %v2145 = vpop.permute.xlu0 %2144
        %v2147 = vmul.f32 %v506, %v2145
        %v2148 = vadd.f32 %v2143, %v2147
        %2149 = vrot.lane.b32.xlu0 %v2140, 126
        %v2150 = vpop.permute.xlu0 %2149
        %v2152 = vmul.f32 %v515, %v2150
        %v2153 = vadd.f32 %v2148, %v2152
        %v2162 = vrot.slane %v2104, 7
        %v2163 = vsel %vm481, %v2162, %v2103
        %v2164 = vrot.slane %v2105, 6
        %v2165 = vsel %vm484, %v2164, %v2163
        %v2166 = vrot.slane %v2106, 5
        %v2167 = vsel %vm487, %v2166, %v2165
        %v2168 = vrot.slane %v2107, 4
        %v2169 = vsel %vm490, %v2168, %v2167
        %v2170 = vrot.slane %v2108, 3
        %v2171 = vsel %vm493, %v2170, %v2169
        %v2172 = vrot.slane %v2109, 2
        %v2173 = vsel %vm496, %v2172, %v2171
        %v2174 = vrot.slane %v2110, 1
        %v2175 = vsel %vm499, %v2174, %v2173
        %v2177 = vmul.f32 %v524, %v2175
        %v2178 = vadd.f32 %v2153, %v2177
        %2179 = vrot.lane.b32.xlu0 %v2175, 127
        %v2180 = vpop.permute.xlu0 %2179
        %v2182 = vmul.f32 %v553, %v2180
        %v2183 = vadd.f32 %v2178, %v2182
        %2184 = vrot.lane.b32.xlu0 %v2175, 126
        %v2185 = vpop.permute.xlu0 %2184
        %v2187 = vmul.f32 %v562, %v2185
        %v2188 = vadd.f32 %v2183, %v2187
        %v2197 = vrot.slane %v2112, 7
        %v2198 = vsel %vm481, %v2197, %v2111
        %v2199 = vrot.slane %v2113, 6
        %v2200 = vsel %vm484, %v2199, %v2198
        %v2201 = vrot.slane %v2114, 5
        %v2202 = vsel %vm487, %v2201, %v2200
        %v2203 = vrot.slane %v2115, 4
        %v2204 = vsel %vm490, %v2203, %v2202
        %v2205 = vrot.slane %v2116, 3
        %v2206 = vsel %vm493, %v2205, %v2204
        %v2207 = vrot.slane %v2117, 2
        %v2208 = vsel %vm496, %v2207, %v2206
        %v2209 = vrot.slane %v2118, 1
        %v2210 = vsel %vm499, %v2209, %v2208
        %v2212 = vmul.f32 %v571, %v2210
        %v2213 = vadd.f32 %v2188, %v2212
        %2214 = vrot.lane.b32.xlu0 %v2210, 127
        %v2215 = vpop.permute.xlu0 %2214
        %v2217 = vmul.f32 %v600, %v2215
        %v2218 = vadd.f32 %v2213, %v2217
        %2219 = vrot.lane.b32.xlu0 %v2210, 126
        %v2220 = vpop.permute.xlu0 %2219
        %v2222 = vmul.f32 %v609, %v2220
        %v2223 = vadd.f32 %v2218, %v2222
        %2225 = vrot.lane.b32.xlu0 %v2223, 64
        %v2226 = vpop.permute.xlu0 %2225
        %2228 = vst.msk [vmem:[#allocation3 + $0x8] sm:$0xff] %vm1156, %v2226
        %v2229 = vld [vmem:[#allocation2 + $0xd] sm:$0x1]
        %v2230 = vld [vmem:[#allocation2 + $0x25] sm:$0x1]
        %v2231 = vld [vmem:[#allocation2 + $0x3d] sm:$0x1]
        %v2232 = vld [vmem:[#allocation2 + $0x55] sm:$0x1]
        %v2233 = vld [vmem:[#allocation2 + $0x6d] sm:$0x1]
        %v2234 = vld [vmem:[#allocation2 + $0x85] sm:$0x1]
        %v2235 = vld [vmem:[#allocation2 + $0x9d] sm:$0x1]
        %v2236 = vld [vmem:[#allocation2 + $0xb5] sm:$0x1]
        %v2237 = vld [vmem:[#allocation2 + $0xe] sm:$0x1]
        %v2238 = vld [vmem:[#allocation2 + $0x26] sm:$0x1]
        %v2239 = vld [vmem:[#allocation2 + $0x3e] sm:$0x1]
        %v2240 = vld [vmem:[#allocation2 + $0x56] sm:$0x1]
        %v2241 = vld [vmem:[#allocation2 + $0x6e] sm:$0x1]
        %v2242 = vld [vmem:[#allocation2 + $0x86] sm:$0x1]
        %v2243 = vld [vmem:[#allocation2 + $0x9e] sm:$0x1]
        %v2244 = vld [vmem:[#allocation2 + $0xb6] sm:$0x1]
        %v2245 = vld [vmem:[#allocation2 + $0xf] sm:$0x1]
        %v2246 = vld [vmem:[#allocation2 + $0x27] sm:$0x1]
        %v2247 = vld [vmem:[#allocation2 + $0x3f] sm:$0x1]
        %v2248 = vld [vmem:[#allocation2 + $0x57] sm:$0x1]
        %v2249 = vld [vmem:[#allocation2 + $0x6f] sm:$0x1]
        %v2250 = vld [vmem:[#allocation2 + $0x87] sm:$0x1]
        %v2251 = vld [vmem:[#allocation2 + $0x9f] sm:$0x1]
        %v2252 = vld [vmem:[#allocation2 + $0xb7] sm:$0x1]
        %v2261 = vrot.slane %v2230, 7
        %v2262 = vsel %vm481, %v2261, %v2229
        %v2263 = vrot.slane %v2231, 6
        %v2264 = vsel %vm484, %v2263, %v2262
        %v2265 = vrot.slane %v2232, 5
        %v2266 = vsel %vm487, %v2265, %v2264
        %v2267 = vrot.slane %v2233, 4
        %v2268 = vsel %vm490, %v2267, %v2266
        %v2269 = vrot.slane %v2234, 3
        %v2270 = vsel %vm493, %v2269, %v2268
        %v2271 = vrot.slane %v2235, 2
        %v2272 = vsel %vm496, %v2271, %v2270
        %v2273 = vrot.slane %v2236, 1
        %v2274 = vsel %vm499, %v2273, %v2272
        %v2276 = vmul.f32 %v470, %v2274
        %v2277 = vadd.f32 %v2276, 0.0
        %2278 = vrot.lane.b32.xlu0 %v2274, 127
        %v2279 = vpop.permute.xlu0 %2278
        %v2281 = vmul.f32 %v506, %v2279
        %v2282 = vadd.f32 %v2277, %v2281
        %2283 = vrot.lane.b32.xlu0 %v2274, 126
        %v2284 = vpop.permute.xlu0 %2283
        %v2286 = vmul.f32 %v515, %v2284
        %v2287 = vadd.f32 %v2282, %v2286
        %v2296 = vrot.slane %v2238, 7
        %v2297 = vsel %vm481, %v2296, %v2237
        %v2298 = vrot.slane %v2239, 6
        %v2299 = vsel %vm484, %v2298, %v2297
        %v2300 = vrot.slane %v2240, 5
        %v2301 = vsel %vm487, %v2300, %v2299
        %v2302 = vrot.slane %v2241, 4
        %v2303 = vsel %vm490, %v2302, %v2301
        %v2304 = vrot.slane %v2242, 3
        %v2305 = vsel %vm493, %v2304, %v2303
        %v2306 = vrot.slane %v2243, 2
        %v2307 = vsel %vm496, %v2306, %v2305
        %v2308 = vrot.slane %v2244, 1
        %v2309 = vsel %vm499, %v2308, %v2307
        %v2311 = vmul.f32 %v524, %v2309
        %v2312 = vadd.f32 %v2287, %v2311
        %2313 = vrot.lane.b32.xlu0 %v2309, 127
        %v2314 = vpop.permute.xlu0 %2313
        %v2316 = vmul.f32 %v553, %v2314
        %v2317 = vadd.f32 %v2312, %v2316
        %2318 = vrot.lane.b32.xlu0 %v2309, 126
        %v2319 = vpop.permute.xlu0 %2318
        %v2321 = vmul.f32 %v562, %v2319
        %v2322 = vadd.f32 %v2317, %v2321
        %v2331 = vrot.slane %v2246, 7
        %v2332 = vsel %vm481, %v2331, %v2245
        %v2333 = vrot.slane %v2247, 6
        %v2334 = vsel %vm484, %v2333, %v2332
        %v2335 = vrot.slane %v2248, 5
        %v2336 = vsel %vm487, %v2335, %v2334
        %v2337 = vrot.slane %v2249, 4
        %v2338 = vsel %vm490, %v2337, %v2336
        %v2339 = vrot.slane %v2250, 3
        %v2340 = vsel %vm493, %v2339, %v2338
        %v2341 = vrot.slane %v2251, 2
        %v2342 = vsel %vm496, %v2341, %v2340
        %v2343 = vrot.slane %v2252, 1
        %v2344 = vsel %vm499, %v2343, %v2342
        %v2346 = vmul.f32 %v571, %v2344
        %v2347 = vadd.f32 %v2322, %v2346
        %2348 = vrot.lane.b32.xlu0 %v2344, 127
        %v2349 = vpop.permute.xlu0 %2348
        %v2351 = vmul.f32 %v600, %v2349
        %v2352 = vadd.f32 %v2347, %v2351
        %2353 = vrot.lane.b32.xlu0 %v2344, 126
        %v2354 = vpop.permute.xlu0 %2353
        %v2356 = vmul.f32 %v609, %v2354
        %v2357 = vadd.f32 %v2352, %v2356
        %2359 = vrot.lane.b32.xlu0 %v2357, 80
        %v2360 = vpop.permute.xlu0 %2359
        %2362 = vst.msk [vmem:[#allocation3 + $0x8] sm:$0xff] %vm1291, %v2360
        %v2363 = vld [vmem:[#allocation2 + $0xe] sm:$0x1]
        %v2364 = vld [vmem:[#allocation2 + $0x26] sm:$0x1]
        %v2365 = vld [vmem:[#allocation2 + $0x3e] sm:$0x1]
        %v2366 = vld [vmem:[#allocation2 + $0x56] sm:$0x1]
        %v2367 = vld [vmem:[#allocation2 + $0x6e] sm:$0x1]
        %v2368 = vld [vmem:[#allocation2 + $0x86] sm:$0x1]
        %v2369 = vld [vmem:[#allocation2 + $0x9e] sm:$0x1]
        %v2370 = vld [vmem:[#allocation2 + $0xb6] sm:$0x1]
        %v2371 = vld [vmem:[#allocation2 + $0xf] sm:$0x1]
        %v2372 = vld [vmem:[#allocation2 + $0x27] sm:$0x1]
        %v2373 = vld [vmem:[#allocation2 + $0x3f] sm:$0x1]
        %v2374 = vld [vmem:[#allocation2 + $0x57] sm:$0x1]
        %v2375 = vld [vmem:[#allocation2 + $0x6f] sm:$0x1]
        %v2376 = vld [vmem:[#allocation2 + $0x87] sm:$0x1]
        %v2377 = vld [vmem:[#allocation2 + $0x9f] sm:$0x1]
        %v2378 = vld [vmem:[#allocation2 + $0xb7] sm:$0x1]
        %v2379 = vld [vmem:[#allocation2 + $0x10] sm:$0x1]
        %v2380 = vld [vmem:[#allocation2 + $0x28] sm:$0x1]
        %v2381 = vld [vmem:[#allocation2 + $0x40] sm:$0x1]
        %v2382 = vld [vmem:[#allocation2 + $0x58] sm:$0x1]
        %v2383 = vld [vmem:[#allocation2 + $0x70] sm:$0x1]
        %v2384 = vld [vmem:[#allocation2 + $0x88] sm:$0x1]
        %v2385 = vld [vmem:[#allocation2 + $0xa0] sm:$0x1]
        %v2386 = vld [vmem:[#allocation2 + $0xb8] sm:$0x1]
        %v2395 = vrot.slane %v2364, 7
        %v2396 = vsel %vm481, %v2395, %v2363
        %v2397 = vrot.slane %v2365, 6
        %v2398 = vsel %vm484, %v2397, %v2396
        %v2399 = vrot.slane %v2366, 5
        %v2400 = vsel %vm487, %v2399, %v2398
        %v2401 = vrot.slane %v2367, 4
        %v2402 = vsel %vm490, %v2401, %v2400
        %v2403 = vrot.slane %v2368, 3
        %v2404 = vsel %vm493, %v2403, %v2402
        %v2405 = vrot.slane %v2369, 2
        %v2406 = vsel %vm496, %v2405, %v2404
        %v2407 = vrot.slane %v2370, 1
        %v2408 = vsel %vm499, %v2407, %v2406
        %v2410 = vmul.f32 %v470, %v2408
        %v2411 = vadd.f32 %v2410, 0.0
        %2412 = vrot.lane.b32.xlu0 %v2408, 127
        %v2413 = vpop.permute.xlu0 %2412
        %v2415 = vmul.f32 %v506, %v2413
        %v2416 = vadd.f32 %v2411, %v2415
        %2417 = vrot.lane.b32.xlu0 %v2408, 126
        %v2418 = vpop.permute.xlu0 %2417
        %v2420 = vmul.f32 %v515, %v2418
        %v2421 = vadd.f32 %v2416, %v2420
        %v2430 = vrot.slane %v2372, 7
        %v2431 = vsel %vm481, %v2430, %v2371
        %v2432 = vrot.slane %v2373, 6
        %v2433 = vsel %vm484, %v2432, %v2431
        %v2434 = vrot.slane %v2374, 5
        %v2435 = vsel %vm487, %v2434, %v2433
        %v2436 = vrot.slane %v2375, 4
        %v2437 = vsel %vm490, %v2436, %v2435
        %v2438 = vrot.slane %v2376, 3
        %v2439 = vsel %vm493, %v2438, %v2437
        %v2440 = vrot.slane %v2377, 2
        %v2441 = vsel %vm496, %v2440, %v2439
        %v2442 = vrot.slane %v2378, 1
        %v2443 = vsel %vm499, %v2442, %v2441
        %v2445 = vmul.f32 %v524, %v2443
        %v2446 = vadd.f32 %v2421, %v2445
        %2447 = vrot.lane.b32.xlu0 %v2443, 127
        %v2448 = vpop.permute.xlu0 %2447
        %v2450 = vmul.f32 %v553, %v2448
        %v2451 = vadd.f32 %v2446, %v2450
        %2452 = vrot.lane.b32.xlu0 %v2443, 126
        %v2453 = vpop.permute.xlu0 %2452
        %v2455 = vmul.f32 %v562, %v2453
        %v2456 = vadd.f32 %v2451, %v2455
        %v2465 = vrot.slane %v2380, 7
        %v2466 = vsel %vm481, %v2465, %v2379
        %v2467 = vrot.slane %v2381, 6
        %v2468 = vsel %vm484, %v2467, %v2466
        %v2469 = vrot.slane %v2382, 5
        %v2470 = vsel %vm487, %v2469, %v2468
        %v2471 = vrot.slane %v2383, 4
        %v2472 = vsel %vm490, %v2471, %v2470
        %v2473 = vrot.slane %v2384, 3
        %v2474 = vsel %vm493, %v2473, %v2472
        %v2475 = vrot.slane %v2385, 2
        %v2476 = vsel %vm496, %v2475, %v2474
        %v2477 = vrot.slane %v2386, 1
        %v2478 = vsel %vm499, %v2477, %v2476
        %v2480 = vmul.f32 %v571, %v2478
        %v2481 = vadd.f32 %v2456, %v2480
        %2482 = vrot.lane.b32.xlu0 %v2478, 127
        %v2483 = vpop.permute.xlu0 %2482
        %v2485 = vmul.f32 %v600, %v2483
        %v2486 = vadd.f32 %v2481, %v2485
        %2487 = vrot.lane.b32.xlu0 %v2478, 126
        %v2488 = vpop.permute.xlu0 %2487
        %v2490 = vmul.f32 %v609, %v2488
        %v2491 = vadd.f32 %v2486, %v2490
        %2493 = vrot.lane.b32.xlu0 %v2491, 96
        %v2494 = vpop.permute.xlu0 %2493
        %2496 = vst.msk [vmem:[#allocation3 + $0x8] sm:$0xff] %vm1426, %v2494
        %v2497 = vld [vmem:[#allocation2 + $0xf] sm:$0x1]
        %v2498 = vld [vmem:[#allocation2 + $0x27] sm:$0x1]
        %v2499 = vld [vmem:[#allocation2 + $0x3f] sm:$0x1]
        %v2500 = vld [vmem:[#allocation2 + $0x57] sm:$0x1]
        %v2501 = vld [vmem:[#allocation2 + $0x6f] sm:$0x1]
        %v2502 = vld [vmem:[#allocation2 + $0x87] sm:$0x1]
        %v2503 = vld [vmem:[#allocation2 + $0x9f] sm:$0x1]
        %v2504 = vld [vmem:[#allocation2 + $0xb7] sm:$0x1]
        %v2505 = vld [vmem:[#allocation2 + $0x10] sm:$0x1]
        %v2506 = vld [vmem:[#allocation2 + $0x28] sm:$0x1]
        %v2507 = vld [vmem:[#allocation2 + $0x40] sm:$0x1]
        %v2508 = vld [vmem:[#allocation2 + $0x58] sm:$0x1]
        %v2509 = vld [vmem:[#allocation2 + $0x70] sm:$0x1]
        %v2510 = vld [vmem:[#allocation2 + $0x88] sm:$0x1]
        %v2511 = vld [vmem:[#allocation2 + $0xa0] sm:$0x1]
        %v2512 = vld [vmem:[#allocation2 + $0xb8] sm:$0x1]
        %v2513 = vld [vmem:[#allocation2 + $0x11] sm:$0x1]
        %v2514 = vld [vmem:[#allocation2 + $0x29] sm:$0x1]
        %v2515 = vld [vmem:[#allocation2 + $0x41] sm:$0x1]
        %v2516 = vld [vmem:[#allocation2 + $0x59] sm:$0x1]
        %v2517 = vld [vmem:[#allocation2 + $0x71] sm:$0x1]
        %v2518 = vld [vmem:[#allocation2 + $0x89] sm:$0x1]
        %v2519 = vld [vmem:[#allocation2 + $0xa1] sm:$0x1]
        %v2520 = vld [vmem:[#allocation2 + $0xb9] sm:$0x1]
        %v2529 = vrot.slane %v2498, 7
        %v2530 = vsel %vm481, %v2529, %v2497
        %v2531 = vrot.slane %v2499, 6
        %v2532 = vsel %vm484, %v2531, %v2530
        %v2533 = vrot.slane %v2500, 5
        %v2534 = vsel %vm487, %v2533, %v2532
        %v2535 = vrot.slane %v2501, 4
        %v2536 = vsel %vm490, %v2535, %v2534
        %v2537 = vrot.slane %v2502, 3
        %v2538 = vsel %vm493, %v2537, %v2536
        %v2539 = vrot.slane %v2503, 2
        %v2540 = vsel %vm496, %v2539, %v2538
        %v2541 = vrot.slane %v2504, 1
        %v2542 = vsel %vm499, %v2541, %v2540
        %v2544 = vmul.f32 %v470, %v2542
        %v2545 = vadd.f32 %v2544, 0.0
        %2546 = vrot.lane.b32.xlu0 %v2542, 127
        %v2547 = vpop.permute.xlu0 %2546
        %v2549 = vmul.f32 %v506, %v2547
        %v2550 = vadd.f32 %v2545, %v2549
        %2551 = vrot.lane.b32.xlu0 %v2542, 126
        %v2552 = vpop.permute.xlu0 %2551
        %v2554 = vmul.f32 %v515, %v2552
        %v2555 = vadd.f32 %v2550, %v2554
        %v2564 = vrot.slane %v2506, 7
        %v2565 = vsel %vm481, %v2564, %v2505
        %v2566 = vrot.slane %v2507, 6
        %v2567 = vsel %vm484, %v2566, %v2565
        %v2568 = vrot.slane %v2508, 5
        %v2569 = vsel %vm487, %v2568, %v2567
        %v2570 = vrot.slane %v2509, 4
        %v2571 = vsel %vm490, %v2570, %v2569
        %v2572 = vrot.slane %v2510, 3
        %v2573 = vsel %vm493, %v2572, %v2571
        %v2574 = vrot.slane %v2511, 2
        %v2575 = vsel %vm496, %v2574, %v2573
        %v2576 = vrot.slane %v2512, 1
        %v2577 = vsel %vm499, %v2576, %v2575
        %v2579 = vmul.f32 %v524, %v2577
        %v2580 = vadd.f32 %v2555, %v2579
        %2581 = vrot.lane.b32.xlu0 %v2577, 127
        %v2582 = vpop.permute.xlu0 %2581
        %v2584 = vmul.f32 %v553, %v2582
        %v2585 = vadd.f32 %v2580, %v2584
        %2586 = vrot.lane.b32.xlu0 %v2577, 126
        %v2587 = vpop.permute.xlu0 %2586
        %v2589 = vmul.f32 %v562, %v2587
        %v2590 = vadd.f32 %v2585, %v2589
        %v2599 = vrot.slane %v2514, 7
        %v2600 = vsel %vm481, %v2599, %v2513
        %v2601 = vrot.slane %v2515, 6
        %v2602 = vsel %vm484, %v2601, %v2600
        %v2603 = vrot.slane %v2516, 5
        %v2604 = vsel %vm487, %v2603, %v2602
        %v2605 = vrot.slane %v2517, 4
        %v2606 = vsel %vm490, %v2605, %v2604
        %v2607 = vrot.slane %v2518, 3
        %v2608 = vsel %vm493, %v2607, %v2606
        %v2609 = vrot.slane %v2519, 2
        %v2610 = vsel %vm496, %v2609, %v2608
        %v2611 = vrot.slane %v2520, 1
        %v2612 = vsel %vm499, %v2611, %v2610
        %v2614 = vmul.f32 %v571, %v2612
        %v2615 = vadd.f32 %v2590, %v2614
        %2616 = vrot.lane.b32.xlu0 %v2612, 127
        %v2617 = vpop.permute.xlu0 %2616
        %v2619 = vmul.f32 %v600, %v2617
        %v2620 = vadd.f32 %v2615, %v2619
        %2621 = vrot.lane.b32.xlu0 %v2612, 126
        %v2622 = vpop.permute.xlu0 %2621
        %v2624 = vmul.f32 %v609, %v2622
        %v2625 = vadd.f32 %v2620, %v2624
        %2627 = vrot.lane.b32.xlu0 %v2625, 112
        %v2628 = vpop.permute.xlu0 %2627
        %2630 = vst.msk [vmem:[#allocation3 + $0x8] sm:$0xff] %vm1561, %v2628
        %v2631 = vld [vmem:[#allocation11] sm:$0xff]
        %v2632 = vld [vmem:[#allocation3] sm:$0xff]
        %v2633 = vld [vmem:[#allocation3 + $0x8] sm:$0xff]
        %vm2634 = vcmask 64512
        %v2636 = vsel %vm2634, %v2631, 0
        %2638 = vmatpush.msra.mxu0 0.0
        %2639 = vmatpush.msra.mxu0 0.0
        %2640 = vmatpush.msra.mxu0 0.0
        %2641 = vmatpush.msra.mxu0 0.0
        %2642 = vmatpush.msra.mxu0 0.0
        %2643 = vmatpush.msra.mxu0 0.0
        %2644 = vmatpush.msra.mxu0 0.0
        %2645 = vmatpush.msra.mxu0 0.0
        %2646 = vmatpush.msra.mxu0 0.0
        %2647 = vmatpush.msra.mxu0 0.0
        %2648 = vmatpush.msra.mxu0 0.0
        %2649 = vmatpush.msra.mxu0 0.0
        %2650 = vmatpush.msra.mxu0 0.0
        %2651 = vmatpush.msra.mxu0 0.0
        %2652 = vmatpush.msra.mxu0 0.0
        %2653 = vmatpush.msra.mxu0 %v2632
        %2654 = vmatmul.f32.gmra.mxu0 %v2636
        %v2655 = vpop.f32.mrf.mxu0
        %v2656 = vadd.f32 0.0, %v2655
        %2657 = vdwg.mxu0
        %2658 = vmatpush.msra.mxu0 0.0
        %2659 = vmatpush.msra.mxu0 0.0
        %2660 = vmatpush.msra.mxu0 0.0
        %2661 = vmatpush.msra.mxu0 0.0
        %2662 = vmatpush.msra.mxu0 0.0
        %2663 = vmatpush.msra.mxu0 0.0
        %2664 = vmatpush.msra.mxu0 0.0
        %2665 = vmatpush.msra.mxu0 0.0
        %2666 = vmatpush.msra.mxu0 0.0
        %2667 = vmatpush.msra.mxu0 0.0
        %2668 = vmatpush.msra.mxu0 0.0
        %2669 = vmatpush.msra.mxu0 0.0
        %2670 = vmatpush.msra.mxu0 0.0
        %2671 = vmatpush.msra.mxu0 0.0
        %2672 = vmatpush.msra.mxu0 0.0
        %2673 = vmatpush.msra.mxu0 %v2633
        %2674 = vmatmul.f32.gmra.mxu0 %v2636
        %v2675 = vpop.f32.mrf.mxu0
        %v2676 = vadd.f32 0.0, %v2675
        %2677 = vdwg.mxu0
        %v2678 = vmax.f32 %v2656, 0.0
        %v2679 = vmax.f32 %v2676, 0.0
        %2680 = vst.msk [vmem:[#allocation4] sm:$0xff] %vm303, 0.0
        %2681 = vst.msk [vmem:[#allocation4 + $0x8] sm:$0xff] %vm303, 0.0
        %2682 = vst.msk [vmem:[#allocation4 + $0x10] sm:$0x3] %vm306, 0.0
        %2683 = vst.msk [vmem:[#allocation4 + $0x18] sm:$0xff] %vm303, 0.0
        %2684 = vst.msk [vmem:[#allocation4 + $0x20] sm:$0xff] %vm303, 0.0
        %2685 = vst.msk [vmem:[#allocation4 + $0x28] sm:$0x3] %vm306, 0.0
        %2686 = vst.msk [vmem:[#allocation4 + $0x30] sm:$0xff] %vm303, 0.0
        %2687 = vst.msk [vmem:[#allocation4 + $0x38] sm:$0xff] %vm303, 0.0
        %2688 = vst.msk [vmem:[#allocation4 + $0x40] sm:$0x3] %vm306, 0.0
        %2689 = vst.msk [vmem:[#allocation4 + $0x48] sm:$0xff] %vm303, 0.0
        %2690 = vst.msk [vmem:[#allocation4 + $0x50] sm:$0xff] %vm303, 0.0
        %2691 = vst.msk [vmem:[#allocation4 + $0x58] sm:$0x3] %vm306, 0.0
        %2692 = vst.msk [vmem:[#allocation4 + $0x60] sm:$0xff] %vm303, 0.0
        %2693 = vst.msk [vmem:[#allocation4 + $0x68] sm:$0xff] %vm303, 0.0
        %2694 = vst.msk [vmem:[#allocation4 + $0x70] sm:$0x3] %vm306, 0.0
        %2695 = vst.msk [vmem:[#allocation4 + $0x78] sm:$0xff] %vm303, 0.0
        %2696 = vst.msk [vmem:[#allocation4 + $0x80] sm:$0xff] %vm303, 0.0
        %2697 = vst.msk [vmem:[#allocation4 + $0x88] sm:$0x3] %vm306, 0.0
        %2698 = vst.msk [vmem:[#allocation4 + $0x90] sm:$0xff] %vm303, 0.0
        %2699 = vst.msk [vmem:[#allocation4 + $0x98] sm:$0xff] %vm303, 0.0
        %2700 = vst.msk [vmem:[#allocation4 + $0xa0] sm:$0x3] %vm306, 0.0
        %2701 = vst.msk [vmem:[#allocation4 + $0xa8] sm:$0xff] %vm303, 0.0
        %2702 = vst.msk [vmem:[#allocation4 + $0xb0] sm:$0xff] %vm303, 0.0
        %2703 = vst.msk [vmem:[#allocation4 + $0xb8] sm:$0x3] %vm306, 0.0
        %v2705 = vrot.slane %v2678, 1
        %v2706 = vrot.slane %v2678, 2
        %v2707 = vrot.slane %v2678, 3
        %v2708 = vrot.slane %v2678, 4
        %v2709 = vrot.slane %v2678, 5
        %v2710 = vrot.slane %v2678, 6
        %v2711 = vrot.slane %v2678, 7
        %v2712 = vperm.slane %v2678, 0
        %v2713 = vperm.slane %v2705, 0
        %v2714 = vperm.slane %v2706, 0
        %v2715 = vperm.slane %v2707, 0
        %v2716 = vperm.slane %v2708, 0
        %v2717 = vperm.slane %v2709, 0
        %v2718 = vperm.slane %v2710, 0
        %v2719 = vperm.slane %v2711, 0
        %2720 = vrot.lane.b32.xlu0 %v2712, 1
        %v2721 = vpop.permute.xlu0 %2720
        %2722 = vrot.lane.b32.xlu0 %v2713, 1
        %v2723 = vpop.permute.xlu0 %2722
        %2724 = vrot.lane.b32.xlu0 %v2714, 1
        %v2725 = vpop.permute.xlu0 %2724
        %2726 = vrot.lane.b32.xlu0 %v2715, 1
        %v2727 = vpop.permute.xlu0 %2726
        %2728 = vrot.lane.b32.xlu0 %v2716, 1
        %v2729 = vpop.permute.xlu0 %2728
        %2730 = vrot.lane.b32.xlu0 %v2717, 1
        %v2731 = vpop.permute.xlu0 %2730
        %2732 = vrot.lane.b32.xlu0 %v2718, 1
        %v2733 = vpop.permute.xlu0 %2732
        %2734 = vrot.lane.b32.xlu0 %v2719, 1
        %v2735 = vpop.permute.xlu0 %2734
        %vm2744 = vcmask 131080
        %2745 = vst.msk [vmem:[#allocation4 + $0x1] sm:$0x1] %vm2744, %v2721
        %2746 = vst.msk [vmem:[#allocation4 + $0x19] sm:$0x1] %vm2744, %v2723
        %2747 = vst.msk [vmem:[#allocation4 + $0x31] sm:$0x1] %vm2744, %v2725
        %2748 = vst.msk [vmem:[#allocation4 + $0x49] sm:$0x1] %vm2744, %v2727
        %2749 = vst.msk [vmem:[#allocation4 + $0x61] sm:$0x1] %vm2744, %v2729
        %2750 = vst.msk [vmem:[#allocation4 + $0x79] sm:$0x1] %vm2744, %v2731
        %2751 = vst.msk [vmem:[#allocation4 + $0x91] sm:$0x1] %vm2744, %v2733
        %2752 = vst.msk [vmem:[#allocation4 + $0xa9] sm:$0x1] %vm2744, %v2735
        %2753 = vrot.lane.b32.xlu0 %v2712, 113
        %v2754 = vpop.permute.xlu0 %2753
        %2755 = vrot.lane.b32.xlu0 %v2713, 113
        %v2756 = vpop.permute.xlu0 %2755
        %2757 = vrot.lane.b32.xlu0 %v2714, 113
        %v2758 = vpop.permute.xlu0 %2757
        %2759 = vrot.lane.b32.xlu0 %v2715, 113
        %v2760 = vpop.permute.xlu0 %2759
        %2761 = vrot.lane.b32.xlu0 %v2716, 113
        %v2762 = vpop.permute.xlu0 %2761
        %2763 = vrot.lane.b32.xlu0 %v2717, 113
        %v2764 = vpop.permute.xlu0 %2763
        %2765 = vrot.lane.b32.xlu0 %v2718, 113
        %v2766 = vpop.permute.xlu0 %2765
        %2767 = vrot.lane.b32.xlu0 %v2719, 113
        %v2768 = vpop.permute.xlu0 %2767
        %2777 = vst.msk [vmem:[#allocation4 + $0x2] sm:$0x1] %vm2744, %v2754
        %2778 = vst.msk [vmem:[#allocation4 + $0x1a] sm:$0x1] %vm2744, %v2756
        %2779 = vst.msk [vmem:[#allocation4 + $0x32] sm:$0x1] %vm2744, %v2758
        %2780 = vst.msk [vmem:[#allocation4 + $0x4a] sm:$0x1] %vm2744, %v2760
        %2781 = vst.msk [vmem:[#allocation4 + $0x62] sm:$0x1] %vm2744, %v2762
        %2782 = vst.msk [vmem:[#allocation4 + $0x7a] sm:$0x1] %vm2744, %v2764
        %2783 = vst.msk [vmem:[#allocation4 + $0x92] sm:$0x1] %vm2744, %v2766
        %2784 = vst.msk [vmem:[#allocation4 + $0xaa] sm:$0x1] %vm2744, %v2768
        %2785 = vrot.lane.b32.xlu0 %v2712, 97
        %v2786 = vpop.permute.xlu0 %2785
        %2787 = vrot.lane.b32.xlu0 %v2713, 97
        %v2788 = vpop.permute.xlu0 %2787
        %2789 = vrot.lane.b32.xlu0 %v2714, 97
        %v2790 = vpop.permute.xlu0 %2789
        %2791 = vrot.lane.b32.xlu0 %v2715, 97
        %v2792 = vpop.permute.xlu0 %2791
        %2793 = vrot.lane.b32.xlu0 %v2716, 97
        %v2794 = vpop.permute.xlu0 %2793
        %2795 = vrot.lane.b32.xlu0 %v2717, 97
        %v2796 = vpop.permute.xlu0 %2795
        %2797 = vrot.lane.b32.xlu0 %v2718, 97
        %v2798 = vpop.permute.xlu0 %2797
        %2799 = vrot.lane.b32.xlu0 %v2719, 97
        %v2800 = vpop.permute.xlu0 %2799
        %2809 = vst.msk [vmem:[#allocation4 + $0x3] sm:$0x1] %vm2744, %v2786
        %2810 = vst.msk [vmem:[#allocation4 + $0x1b] sm:$0x1] %vm2744, %v2788
        %2811 = vst.msk [vmem:[#allocation4 + $0x33] sm:$0x1] %vm2744, %v2790
        %2812 = vst.msk [vmem:[#allocation4 + $0x4b] sm:$0x1] %vm2744, %v2792
        %2813 = vst.msk [vmem:[#allocation4 + $0x63] sm:$0x1] %vm2744, %v2794
        %2814 = vst.msk [vmem:[#allocation4 + $0x7b] sm:$0x1] %vm2744, %v2796
        %2815 = vst.msk [vmem:[#allocation4 + $0x93] sm:$0x1] %vm2744, %v2798
        %2816 = vst.msk [vmem:[#allocation4 + $0xab] sm:$0x1] %vm2744, %v2800
        %2817 = vrot.lane.b32.xlu0 %v2712, 81
        %v2818 = vpop.permute.xlu0 %2817
        %2819 = vrot.lane.b32.xlu0 %v2713, 81
        %v2820 = vpop.permute.xlu0 %2819
        %2821 = vrot.lane.b32.xlu0 %v2714, 81
        %v2822 = vpop.permute.xlu0 %2821
        %2823 = vrot.lane.b32.xlu0 %v2715, 81
        %v2824 = vpop.permute.xlu0 %2823
        %2825 = vrot.lane.b32.xlu0 %v2716, 81
        %v2826 = vpop.permute.xlu0 %2825
        %2827 = vrot.lane.b32.xlu0 %v2717, 81
        %v2828 = vpop.permute.xlu0 %2827
        %2829 = vrot.lane.b32.xlu0 %v2718, 81
        %v2830 = vpop.permute.xlu0 %2829
        %2831 = vrot.lane.b32.xlu0 %v2719, 81
        %v2832 = vpop.permute.xlu0 %2831
        %2841 = vst.msk [vmem:[#allocation4 + $0x4] sm:$0x1] %vm2744, %v2818
        %2842 = vst.msk [vmem:[#allocation4 + $0x1c] sm:$0x1] %vm2744, %v2820
        %2843 = vst.msk [vmem:[#allocation4 + $0x34] sm:$0x1] %vm2744, %v2822
        %2844 = vst.msk [vmem:[#allocation4 + $0x4c] sm:$0x1] %vm2744, %v2824
        %2845 = vst.msk [vmem:[#allocation4 + $0x64] sm:$0x1] %vm2744, %v2826
        %2846 = vst.msk [vmem:[#allocation4 + $0x7c] sm:$0x1] %vm2744, %v2828
        %2847 = vst.msk [vmem:[#allocation4 + $0x94] sm:$0x1] %vm2744, %v2830
        %2848 = vst.msk [vmem:[#allocation4 + $0xac] sm:$0x1] %vm2744, %v2832
        %2849 = vrot.lane.b32.xlu0 %v2712, 65
        %v2850 = vpop.permute.xlu0 %2849
        %2851 = vrot.lane.b32.xlu0 %v2713, 65
        %v2852 = vpop.permute.xlu0 %2851
        %2853 = vrot.lane.b32.xlu0 %v2714, 65
        %v2854 = vpop.permute.xlu0 %2853
        %2855 = vrot.lane.b32.xlu0 %v2715, 65
        %v2856 = vpop.permute.xlu0 %2855
        %2857 = vrot.lane.b32.xlu0 %v2716, 65
        %v2858 = vpop.permute.xlu0 %2857
        %2859 = vrot.lane.b32.xlu0 %v2717, 65
        %v2860 = vpop.permute.xlu0 %2859
        %2861 = vrot.lane.b32.xlu0 %v2718, 65
        %v2862 = vpop.permute.xlu0 %2861
        %2863 = vrot.lane.b32.xlu0 %v2719, 65
        %v2864 = vpop.permute.xlu0 %2863
        %2873 = vst.msk [vmem:[#allocation4 + $0x5] sm:$0x1] %vm2744, %v2850
        %2874 = vst.msk [vmem:[#allocation4 + $0x1d] sm:$0x1] %vm2744, %v2852
        %2875 = vst.msk [vmem:[#allocation4 + $0x35] sm:$0x1] %vm2744, %v2854
        %2876 = vst.msk [vmem:[#allocation4 + $0x4d] sm:$0x1] %vm2744, %v2856
        %2877 = vst.msk [vmem:[#allocation4 + $0x65] sm:$0x1] %vm2744, %v2858
        %2878 = vst.msk [vmem:[#allocation4 + $0x7d] sm:$0x1] %vm2744, %v2860
        %2879 = vst.msk [vmem:[#allocation4 + $0x95] sm:$0x1] %vm2744, %v2862
        %2880 = vst.msk [vmem:[#allocation4 + $0xad] sm:$0x1] %vm2744, %v2864
        %2881 = vrot.lane.b32.xlu0 %v2712, 49
        %v2882 = vpop.permute.xlu0 %2881
        %2883 = vrot.lane.b32.xlu0 %v2713, 49
        %v2884 = vpop.permute.xlu0 %2883
        %2885 = vrot.lane.b32.xlu0 %v2714, 49
        %v2886 = vpop.permute.xlu0 %2885
        %2887 = vrot.lane.b32.xlu0 %v2715, 49
        %v2888 = vpop.permute.xlu0 %2887
        %2889 = vrot.lane.b32.xlu0 %v2716, 49
        %v2890 = vpop.permute.xlu0 %2889
        %2891 = vrot.lane.b32.xlu0 %v2717, 49
        %v2892 = vpop.permute.xlu0 %2891
        %2893 = vrot.lane.b32.xlu0 %v2718, 49
        %v2894 = vpop.permute.xlu0 %2893
        %2895 = vrot.lane.b32.xlu0 %v2719, 49
        %v2896 = vpop.permute.xlu0 %2895
        %2905 = vst.msk [vmem:[#allocation4 + $0x6] sm:$0x1] %vm2744, %v2882
        %2906 = vst.msk [vmem:[#allocation4 + $0x1e] sm:$0x1] %vm2744, %v2884
        %2907 = vst.msk [vmem:[#allocation4 + $0x36] sm:$0x1] %vm2744, %v2886
        %2908 = vst.msk [vmem:[#allocation4 + $0x4e] sm:$0x1] %vm2744, %v2888
        %2909 = vst.msk [vmem:[#allocation4 + $0x66] sm:$0x1] %vm2744, %v2890
        %2910 = vst.msk [vmem:[#allocation4 + $0x7e] sm:$0x1] %vm2744, %v2892
        %2911 = vst.msk [vmem:[#allocation4 + $0x96] sm:$0x1] %vm2744, %v2894
        %2912 = vst.msk [vmem:[#allocation4 + $0xae] sm:$0x1] %vm2744, %v2896
        %2913 = vrot.lane.b32.xlu0 %v2712, 33
        %v2914 = vpop.permute.xlu0 %2913
        %2915 = vrot.lane.b32.xlu0 %v2713, 33
        %v2916 = vpop.permute.xlu0 %2915
        %2917 = vrot.lane.b32.xlu0 %v2714, 33
        %v2918 = vpop.permute.xlu0 %2917
        %2919 = vrot.lane.b32.xlu0 %v2715, 33
        %v2920 = vpop.permute.xlu0 %2919
        %2921 = vrot.lane.b32.xlu0 %v2716, 33
        %v2922 = vpop.permute.xlu0 %2921
        %2923 = vrot.lane.b32.xlu0 %v2717, 33
        %v2924 = vpop.permute.xlu0 %2923
        %2925 = vrot.lane.b32.xlu0 %v2718, 33
        %v2926 = vpop.permute.xlu0 %2925
        %2927 = vrot.lane.b32.xlu0 %v2719, 33
        %v2928 = vpop.permute.xlu0 %2927
        %2937 = vst.msk [vmem:[#allocation4 + $0x7] sm:$0x1] %vm2744, %v2914
        %2938 = vst.msk [vmem:[#allocation4 + $0x1f] sm:$0x1] %vm2744, %v2916
        %2939 = vst.msk [vmem:[#allocation4 + $0x37] sm:$0x1] %vm2744, %v2918
        %2940 = vst.msk [vmem:[#allocation4 + $0x4f] sm:$0x1] %vm2744, %v2920
        %2941 = vst.msk [vmem:[#allocation4 + $0x67] sm:$0x1] %vm2744, %v2922
        %2942 = vst.msk [vmem:[#allocation4 + $0x7f] sm:$0x1] %vm2744, %v2924
        %2943 = vst.msk [vmem:[#allocation4 + $0x97] sm:$0x1] %vm2744, %v2926
        %2944 = vst.msk [vmem:[#allocation4 + $0xaf] sm:$0x1] %vm2744, %v2928
        %2945 = vrot.lane.b32.xlu0 %v2712, 17
        %v2946 = vpop.permute.xlu0 %2945
        %2947 = vrot.lane.b32.xlu0 %v2713, 17
        %v2948 = vpop.permute.xlu0 %2947
        %2949 = vrot.lane.b32.xlu0 %v2714, 17
        %v2950 = vpop.permute.xlu0 %2949
        %2951 = vrot.lane.b32.xlu0 %v2715, 17
        %v2952 = vpop.permute.xlu0 %2951
        %2953 = vrot.lane.b32.xlu0 %v2716, 17
        %v2954 = vpop.permute.xlu0 %2953
        %2955 = vrot.lane.b32.xlu0 %v2717, 17
        %v2956 = vpop.permute.xlu0 %2955
        %2957 = vrot.lane.b32.xlu0 %v2718, 17
        %v2958 = vpop.permute.xlu0 %2957
        %2959 = vrot.lane.b32.xlu0 %v2719, 17
        %v2960 = vpop.permute.xlu0 %2959
        %2969 = vst.msk [vmem:[#allocation4 + $0x8] sm:$0x1] %vm2744, %v2946
        %2970 = vst.msk [vmem:[#allocation4 + $0x20] sm:$0x1] %vm2744, %v2948
        %2971 = vst.msk [vmem:[#allocation4 + $0x38] sm:$0x1] %vm2744, %v2950
        %2972 = vst.msk [vmem:[#allocation4 + $0x50] sm:$0x1] %vm2744, %v2952
        %2973 = vst.msk [vmem:[#allocation4 + $0x68] sm:$0x1] %vm2744, %v2954
        %2974 = vst.msk [vmem:[#allocation4 + $0x80] sm:$0x1] %vm2744, %v2956
        %2975 = vst.msk [vmem:[#allocation4 + $0x98] sm:$0x1] %vm2744, %v2958
        %2976 = vst.msk [vmem:[#allocation4 + $0xb0] sm:$0x1] %vm2744, %v2960
        %v2978 = vrot.slane %v2679, 1
        %v2979 = vrot.slane %v2679, 2
        %v2980 = vrot.slane %v2679, 3
        %v2981 = vrot.slane %v2679, 4
        %v2982 = vrot.slane %v2679, 5
        %v2983 = vrot.slane %v2679, 6
        %v2984 = vrot.slane %v2679, 7
        %v2985 = vperm.slane %v2679, 0
        %v2986 = vperm.slane %v2978, 0
        %v2987 = vperm.slane %v2979, 0
        %v2988 = vperm.slane %v2980, 0
        %v2989 = vperm.slane %v2981, 0
        %v2990 = vperm.slane %v2982, 0
        %v2991 = vperm.slane %v2983, 0
        %v2992 = vperm.slane %v2984, 0
        %2993 = vrot.lane.b32.xlu0 %v2985, 1
        %v2994 = vpop.permute.xlu0 %2993
        %2995 = vrot.lane.b32.xlu0 %v2986, 1
        %v2996 = vpop.permute.xlu0 %2995
        %2997 = vrot.lane.b32.xlu0 %v2987, 1
        %v2998 = vpop.permute.xlu0 %2997
        %2999 = vrot.lane.b32.xlu0 %v2988, 1
        %v3000 = vpop.permute.xlu0 %2999
        %3001 = vrot.lane.b32.xlu0 %v2989, 1
        %v3002 = vpop.permute.xlu0 %3001
        %3003 = vrot.lane.b32.xlu0 %v2990, 1
        %v3004 = vpop.permute.xlu0 %3003
        %3005 = vrot.lane.b32.xlu0 %v2991, 1
        %v3006 = vpop.permute.xlu0 %3005
        %3007 = vrot.lane.b32.xlu0 %v2992, 1
        %v3008 = vpop.permute.xlu0 %3007
        %3017 = vst.msk [vmem:[#allocation4 + $0x9] sm:$0x1] %vm2744, %v2994
        %3018 = vst.msk [vmem:[#allocation4 + $0x21] sm:$0x1] %vm2744, %v2996
        %3019 = vst.msk [vmem:[#allocation4 + $0x39] sm:$0x1] %vm2744, %v2998
        %3020 = vst.msk [vmem:[#allocation4 + $0x51] sm:$0x1] %vm2744, %v3000
        %3021 = vst.msk [vmem:[#allocation4 + $0x69] sm:$0x1] %vm2744, %v3002
        %3022 = vst.msk [vmem:[#allocation4 + $0x81] sm:$0x1] %vm2744, %v3004
        %3023 = vst.msk [vmem:[#allocation4 + $0x99] sm:$0x1] %vm2744, %v3006
        %3024 = vst.msk [vmem:[#allocation4 + $0xb1] sm:$0x1] %vm2744, %v3008
        %3025 = vrot.lane.b32.xlu0 %v2985, 113
        %v3026 = vpop.permute.xlu0 %3025
        %3027 = vrot.lane.b32.xlu0 %v2986, 113
        %v3028 = vpop.permute.xlu0 %3027
        %3029 = vrot.lane.b32.xlu0 %v2987, 113
        %v3030 = vpop.permute.xlu0 %3029
        %3031 = vrot.lane.b32.xlu0 %v2988, 113
        %v3032 = vpop.permute.xlu0 %3031
        %3033 = vrot.lane.b32.xlu0 %v2989, 113
        %v3034 = vpop.permute.xlu0 %3033
        %3035 = vrot.lane.b32.xlu0 %v2990, 113
        %v3036 = vpop.permute.xlu0 %3035
        %3037 = vrot.lane.b32.xlu0 %v2991, 113
        %v3038 = vpop.permute.xlu0 %3037
        %3039 = vrot.lane.b32.xlu0 %v2992, 113
        %v3040 = vpop.permute.xlu0 %3039
        %3049 = vst.msk [vmem:[#allocation4 + $0xa] sm:$0x1] %vm2744, %v3026
        %3050 = vst.msk [vmem:[#allocation4 + $0x22] sm:$0x1] %vm2744, %v3028
        %3051 = vst.msk [vmem:[#allocation4 + $0x3a] sm:$0x1] %vm2744, %v3030
        %3052 = vst.msk [vmem:[#allocation4 + $0x52] sm:$0x1] %vm2744, %v3032
        %3053 = vst.msk [vmem:[#allocation4 + $0x6a] sm:$0x1] %vm2744, %v3034
        %3054 = vst.msk [vmem:[#allocation4 + $0x82] sm:$0x1] %vm2744, %v3036
        %3055 = vst.msk [vmem:[#allocation4 + $0x9a] sm:$0x1] %vm2744, %v3038
        %3056 = vst.msk [vmem:[#allocation4 + $0xb2] sm:$0x1] %vm2744, %v3040
        %3057 = vrot.lane.b32.xlu0 %v2985, 97
        %v3058 = vpop.permute.xlu0 %3057
        %3059 = vrot.lane.b32.xlu0 %v2986, 97
        %v3060 = vpop.permute.xlu0 %3059
        %3061 = vrot.lane.b32.xlu0 %v2987, 97
        %v3062 = vpop.permute.xlu0 %3061
        %3063 = vrot.lane.b32.xlu0 %v2988, 97
        %v3064 = vpop.permute.xlu0 %3063
        %3065 = vrot.lane.b32.xlu0 %v2989, 97
        %v3066 = vpop.permute.xlu0 %3065
        %3067 = vrot.lane.b32.xlu0 %v2990, 97
        %v3068 = vpop.permute.xlu0 %3067
        %3069 = vrot.lane.b32.xlu0 %v2991, 97
        %v3070 = vpop.permute.xlu0 %3069
        %3071 = vrot.lane.b32.xlu0 %v2992, 97
        %v3072 = vpop.permute.xlu0 %3071
        %3081 = vst.msk [vmem:[#allocation4 + $0xb] sm:$0x1] %vm2744, %v3058
        %3082 = vst.msk [vmem:[#allocation4 + $0x23] sm:$0x1] %vm2744, %v3060
        %3083 = vst.msk [vmem:[#allocation4 + $0x3b] sm:$0x1] %vm2744, %v3062
        %3084 = vst.msk [vmem:[#allocation4 + $0x53] sm:$0x1] %vm2744, %v3064
        %3085 = vst.msk [vmem:[#allocation4 + $0x6b] sm:$0x1] %vm2744, %v3066
        %3086 = vst.msk [vmem:[#allocation4 + $0x83] sm:$0x1] %vm2744, %v3068
        %3087 = vst.msk [vmem:[#allocation4 + $0x9b] sm:$0x1] %vm2744, %v3070
        %3088 = vst.msk [vmem:[#allocation4 + $0xb3] sm:$0x1] %vm2744, %v3072
        %3089 = vrot.lane.b32.xlu0 %v2985, 81
        %v3090 = vpop.permute.xlu0 %3089
        %3091 = vrot.lane.b32.xlu0 %v2986, 81
        %v3092 = vpop.permute.xlu0 %3091
        %3093 = vrot.lane.b32.xlu0 %v2987, 81
        %v3094 = vpop.permute.xlu0 %3093
        %3095 = vrot.lane.b32.xlu0 %v2988, 81
        %v3096 = vpop.permute.xlu0 %3095
        %3097 = vrot.lane.b32.xlu0 %v2989, 81
        %v3098 = vpop.permute.xlu0 %3097
        %3099 = vrot.lane.b32.xlu0 %v2990, 81
        %v3100 = vpop.permute.xlu0 %3099
        %3101 = vrot.lane.b32.xlu0 %v2991, 81
        %v3102 = vpop.permute.xlu0 %3101
        %3103 = vrot.lane.b32.xlu0 %v2992, 81
        %v3104 = vpop.permute.xlu0 %3103
        %3113 = vst.msk [vmem:[#allocation4 + $0xc] sm:$0x1] %vm2744, %v3090
        %3114 = vst.msk [vmem:[#allocation4 + $0x24] sm:$0x1] %vm2744, %v3092
        %3115 = vst.msk [vmem:[#allocation4 + $0x3c] sm:$0x1] %vm2744, %v3094
        %3116 = vst.msk [vmem:[#allocation4 + $0x54] sm:$0x1] %vm2744, %v3096
        %3117 = vst.msk [vmem:[#allocation4 + $0x6c] sm:$0x1] %vm2744, %v3098
        %3118 = vst.msk [vmem:[#allocation4 + $0x84] sm:$0x1] %vm2744, %v3100
        %3119 = vst.msk [vmem:[#allocation4 + $0x9c] sm:$0x1] %vm2744, %v3102
        %3120 = vst.msk [vmem:[#allocation4 + $0xb4] sm:$0x1] %vm2744, %v3104
        %3121 = vrot.lane.b32.xlu0 %v2985, 65
        %v3122 = vpop.permute.xlu0 %3121
        %3123 = vrot.lane.b32.xlu0 %v2986, 65
        %v3124 = vpop.permute.xlu0 %3123
        %3125 = vrot.lane.b32.xlu0 %v2987, 65
        %v3126 = vpop.permute.xlu0 %3125
        %3127 = vrot.lane.b32.xlu0 %v2988, 65
        %v3128 = vpop.permute.xlu0 %3127
        %3129 = vrot.lane.b32.xlu0 %v2989, 65
        %v3130 = vpop.permute.xlu0 %3129
        %3131 = vrot.lane.b32.xlu0 %v2990, 65
        %v3132 = vpop.permute.xlu0 %3131
        %3133 = vrot.lane.b32.xlu0 %v2991, 65
        %v3134 = vpop.permute.xlu0 %3133
        %3135 = vrot.lane.b32.xlu0 %v2992, 65
        %v3136 = vpop.permute.xlu0 %3135
        %3145 = vst.msk [vmem:[#allocation4 + $0xd] sm:$0x1] %vm2744, %v3122
        %3146 = vst.msk [vmem:[#allocation4 + $0x25] sm:$0x1] %vm2744, %v3124
        %3147 = vst.msk [vmem:[#allocation4 + $0x3d] sm:$0x1] %vm2744, %v3126
        %3148 = vst.msk [vmem:[#allocation4 + $0x55] sm:$0x1] %vm2744, %v3128
        %3149 = vst.msk [vmem:[#allocation4 + $0x6d] sm:$0x1] %vm2744, %v3130
        %3150 = vst.msk [vmem:[#allocation4 + $0x85] sm:$0x1] %vm2744, %v3132
        %3151 = vst.msk [vmem:[#allocation4 + $0x9d] sm:$0x1] %vm2744, %v3134
        %3152 = vst.msk [vmem:[#allocation4 + $0xb5] sm:$0x1] %vm2744, %v3136
        %3153 = vrot.lane.b32.xlu0 %v2985, 49
        %v3154 = vpop.permute.xlu0 %3153
        %3155 = vrot.lane.b32.xlu0 %v2986, 49
        %v3156 = vpop.permute.xlu0 %3155
        %3157 = vrot.lane.b32.xlu0 %v2987, 49
        %v3158 = vpop.permute.xlu0 %3157
        %3159 = vrot.lane.b32.xlu0 %v2988, 49
        %v3160 = vpop.permute.xlu0 %3159
        %3161 = vrot.lane.b32.xlu0 %v2989, 49
        %v3162 = vpop.permute.xlu0 %3161
        %3163 = vrot.lane.b32.xlu0 %v2990, 49
        %v3164 = vpop.permute.xlu0 %3163
        %3165 = vrot.lane.b32.xlu0 %v2991, 49
        %v3166 = vpop.permute.xlu0 %3165
        %3167 = vrot.lane.b32.xlu0 %v2992, 49
        %v3168 = vpop.permute.xlu0 %3167
        %3177 = vst.msk [vmem:[#allocation4 + $0xe] sm:$0x1] %vm2744, %v3154
        %3178 = vst.msk [vmem:[#allocation4 + $0x26] sm:$0x1] %vm2744, %v3156
        %3179 = vst.msk [vmem:[#allocation4 + $0x3e] sm:$0x1] %vm2744, %v3158
        %3180 = vst.msk [vmem:[#allocation4 + $0x56] sm:$0x1] %vm2744, %v3160
        %3181 = vst.msk [vmem:[#allocation4 + $0x6e] sm:$0x1] %vm2744, %v3162
        %3182 = vst.msk [vmem:[#allocation4 + $0x86] sm:$0x1] %vm2744, %v3164
        %3183 = vst.msk [vmem:[#allocation4 + $0x9e] sm:$0x1] %vm2744, %v3166
        %3184 = vst.msk [vmem:[#allocation4 + $0xb6] sm:$0x1] %vm2744, %v3168
        %3185 = vrot.lane.b32.xlu0 %v2985, 33
        %v3186 = vpop.permute.xlu0 %3185
        %3187 = vrot.lane.b32.xlu0 %v2986, 33
        %v3188 = vpop.permute.xlu0 %3187
        %3189 = vrot.lane.b32.xlu0 %v2987, 33
        %v3190 = vpop.permute.xlu0 %3189
        %3191 = vrot.lane.b32.xlu0 %v2988, 33
        %v3192 = vpop.permute.xlu0 %3191
        %3193 = vrot.lane.b32.xlu0 %v2989, 33
        %v3194 = vpop.permute.xlu0 %3193
        %3195 = vrot.lane.b32.xlu0 %v2990, 33
        %v3196 = vpop.permute.xlu0 %3195
        %3197 = vrot.lane.b32.xlu0 %v2991, 33
        %v3198 = vpop.permute.xlu0 %3197
        %3199 = vrot.lane.b32.xlu0 %v2992, 33
        %v3200 = vpop.permute.xlu0 %3199
        %3209 = vst.msk [vmem:[#allocation4 + $0xf] sm:$0x1] %vm2744, %v3186
        %3210 = vst.msk [vmem:[#allocation4 + $0x27] sm:$0x1] %vm2744, %v3188
        %3211 = vst.msk [vmem:[#allocation4 + $0x3f] sm:$0x1] %vm2744, %v3190
        %3212 = vst.msk [vmem:[#allocation4 + $0x57] sm:$0x1] %vm2744, %v3192
        %3213 = vst.msk [vmem:[#allocation4 + $0x6f] sm:$0x1] %vm2744, %v3194
        %3214 = vst.msk [vmem:[#allocation4 + $0x87] sm:$0x1] %vm2744, %v3196
        %3215 = vst.msk [vmem:[#allocation4 + $0x9f] sm:$0x1] %vm2744, %v3198
        %3216 = vst.msk [vmem:[#allocation4 + $0xb7] sm:$0x1] %vm2744, %v3200
        %3217 = vrot.lane.b32.xlu0 %v2985, 17
        %v3218 = vpop.permute.xlu0 %3217
        %3219 = vrot.lane.b32.xlu0 %v2986, 17
        %v3220 = vpop.permute.xlu0 %3219
        %3221 = vrot.lane.b32.xlu0 %v2987, 17
        %v3222 = vpop.permute.xlu0 %3221
        %3223 = vrot.lane.b32.xlu0 %v2988, 17
        %v3224 = vpop.permute.xlu0 %3223
        %3225 = vrot.lane.b32.xlu0 %v2989, 17
        %v3226 = vpop.permute.xlu0 %3225
        %3227 = vrot.lane.b32.xlu0 %v2990, 17
        %v3228 = vpop.permute.xlu0 %3227
        %3229 = vrot.lane.b32.xlu0 %v2991, 17
        %v3230 = vpop.permute.xlu0 %3229
        %3231 = vrot.lane.b32.xlu0 %v2992, 17
        %v3232 = vpop.permute.xlu0 %3231
        %3241 = vst.msk [vmem:[#allocation4 + $0x10] sm:$0x1] %vm2744, %v3218
        %3242 = vst.msk [vmem:[#allocation4 + $0x28] sm:$0x1] %vm2744, %v3220
        %3243 = vst.msk [vmem:[#allocation4 + $0x40] sm:$0x1] %vm2744, %v3222
        %3244 = vst.msk [vmem:[#allocation4 + $0x58] sm:$0x1] %vm2744, %v3224
        %3245 = vst.msk [vmem:[#allocation4 + $0x70] sm:$0x1] %vm2744, %v3226
        %3246 = vst.msk [vmem:[#allocation4 + $0x88] sm:$0x1] %vm2744, %v3228
        %3247 = vst.msk [vmem:[#allocation4 + $0xa0] sm:$0x1] %vm2744, %v3230
        %3248 = vst.msk [vmem:[#allocation4 + $0xb8] sm:$0x1] %vm2744, %v3232
        %v3249 = vld [vmem:[#allocation12] sm:$0xff]
        %v3250 = vld [vmem:[#allocation4] sm:$0x1]
        %v3251 = vld [vmem:[#allocation4 + $0x18] sm:$0x1]
        %v3252 = vld [vmem:[#allocation4 + $0x30] sm:$0x1]
        %v3253 = vld [vmem:[#allocation4 + $0x48] sm:$0x1]
        %v3254 = vld [vmem:[#allocation4 + $0x60] sm:$0x1]
        %v3255 = vld [vmem:[#allocation4 + $0x78] sm:$0x1]
        %v3256 = vld [vmem:[#allocation4 + $0x90] sm:$0x1]
        %v3257 = vld [vmem:[#allocation4 + $0xa8] sm:$0x1]
        %v3258 = vld [vmem:[#allocation4 + $0x1] sm:$0x1]
        %v3259 = vld [vmem:[#allocation4 + $0x19] sm:$0x1]
        %v3260 = vld [vmem:[#allocation4 + $0x31] sm:$0x1]
        %v3261 = vld [vmem:[#allocation4 + $0x49] sm:$0x1]
        %v3262 = vld [vmem:[#allocation4 + $0x61] sm:$0x1]
        %v3263 = vld [vmem:[#allocation4 + $0x79] sm:$0x1]
        %v3264 = vld [vmem:[#allocation4 + $0x91] sm:$0x1]
        %v3265 = vld [vmem:[#allocation4 + $0xa9] sm:$0x1]
        %v3266 = vld [vmem:[#allocation4 + $0x2] sm:$0x1]
        %v3267 = vld [vmem:[#allocation4 + $0x1a] sm:$0x1]
        %v3268 = vld [vmem:[#allocation4 + $0x32] sm:$0x1]
        %v3269 = vld [vmem:[#allocation4 + $0x4a] sm:$0x1]
        %v3270 = vld [vmem:[#allocation4 + $0x62] sm:$0x1]
        %v3271 = vld [vmem:[#allocation4 + $0x7a] sm:$0x1]
        %v3272 = vld [vmem:[#allocation4 + $0x92] sm:$0x1]
        %v3273 = vld [vmem:[#allocation4 + $0xaa] sm:$0x1]
        %3275 = vset.pattern.permute.xlu0 0
        %3276 = vperm.xlu0 %3275, %v3249
        %v3277 = vpop.permute.xlu0 %3276
        %v3287 = vrot.slane %v3251, 7
        %v3288 = vsel %vm481, %v3287, %v3250
        %v3289 = vrot.slane %v3252, 6
        %v3290 = vsel %vm484, %v3289, %v3288
        %v3291 = vrot.slane %v3253, 5
        %v3292 = vsel %vm487, %v3291, %v3290
        %v3293 = vrot.slane %v3254, 4
        %v3294 = vsel %vm490, %v3293, %v3292
        %v3295 = vrot.slane %v3255, 3
        %v3296 = vsel %vm493, %v3295, %v3294
        %v3297 = vrot.slane %v3256, 2
        %v3298 = vsel %vm496, %v3297, %v3296
        %v3299 = vrot.slane %v3257, 1
        %v3300 = vsel %vm499, %v3299, %v3298
        %v3302 = vmul.f32 %v3277, %v3300
        %v3303 = vadd.f32 %v3302, 0.0
        %3304 = vset.pattern.permute.xlu0 1
        %3305 = vperm.xlu0 %3304, %v3249
        %v3306 = vpop.permute.xlu0 %3305
        %3308 = vrot.lane.b32.xlu0 %v3300, 127
        %v3309 = vpop.permute.xlu0 %3308
        %v3311 = vmul.f32 %v3306, %v3309
        %v3312 = vadd.f32 %v3303, %v3311
        %3313 = vset.pattern.permute.xlu0 2
        %3314 = vperm.xlu0 %3313, %v3249
        %v3315 = vpop.permute.xlu0 %3314
        %3317 = vrot.lane.b32.xlu0 %v3300, 126
        %v3318 = vpop.permute.xlu0 %3317
        %v3320 = vmul.f32 %v3315, %v3318
        %v3321 = vadd.f32 %v3312, %v3320
        %3322 = vset.pattern.permute.xlu0 3
        %3323 = vperm.xlu0 %3322, %v3249
        %v3324 = vpop.permute.xlu0 %3323
        %v3334 = vrot.slane %v3259, 7
        %v3335 = vsel %vm481, %v3334, %v3258
        %v3336 = vrot.slane %v3260, 6
        %v3337 = vsel %vm484, %v3336, %v3335
        %v3338 = vrot.slane %v3261, 5
        %v3339 = vsel %vm487, %v3338, %v3337
        %v3340 = vrot.slane %v3262, 4
        %v3341 = vsel %vm490, %v3340, %v3339
        %v3342 = vrot.slane %v3263, 3
        %v3343 = vsel %vm493, %v3342, %v3341
        %v3344 = vrot.slane %v3264, 2
        %v3345 = vsel %vm496, %v3344, %v3343
        %v3346 = vrot.slane %v3265, 1
        %v3347 = vsel %vm499, %v3346, %v3345
        %v3349 = vmul.f32 %v3324, %v3347
        %v3350 = vadd.f32 %v3321, %v3349
        %3351 = vset.pattern.permute.xlu0 4
        %3352 = vperm.xlu0 %3351, %v3249
        %v3353 = vpop.permute.xlu0 %3352
        %3355 = vrot.lane.b32.xlu0 %v3347, 127
        %v3356 = vpop.permute.xlu0 %3355
        %v3358 = vmul.f32 %v3353, %v3356
        %v3359 = vadd.f32 %v3350, %v3358
        %3360 = vset.pattern.permute.xlu0 5
        %3361 = vperm.xlu0 %3360, %v3249
        %v3362 = vpop.permute.xlu0 %3361
        %3364 = vrot.lane.b32.xlu0 %v3347, 126
        %v3365 = vpop.permute.xlu0 %3364
        %v3367 = vmul.f32 %v3362, %v3365
        %v3368 = vadd.f32 %v3359, %v3367
        %3369 = vset.pattern.permute.xlu0 6
        %3370 = vperm.xlu0 %3369, %v3249
        %v3371 = vpop.permute.xlu0 %3370
        %v3381 = vrot.slane %v3267, 7
        %v3382 = vsel %vm481, %v3381, %v3266
        %v3383 = vrot.slane %v3268, 6
        %v3384 = vsel %vm484, %v3383, %v3382
        %v3385 = vrot.slane %v3269, 5
        %v3386 = vsel %vm487, %v3385, %v3384
        %v3387 = vrot.slane %v3270, 4
        %v3388 = vsel %vm490, %v3387, %v3386
        %v3389 = vrot.slane %v3271, 3
        %v3390 = vsel %vm493, %v3389, %v3388
        %v3391 = vrot.slane %v3272, 2
        %v3392 = vsel %vm496, %v3391, %v3390
        %v3393 = vrot.slane %v3273, 1
        %v3394 = vsel %vm499, %v3393, %v3392
        %v3396 = vmul.f32 %v3371, %v3394
        %v3397 = vadd.f32 %v3368, %v3396
        %3398 = vset.pattern.permute.xlu0 7
        %3399 = vperm.xlu0 %3398, %v3249
        %v3400 = vpop.permute.xlu0 %3399
        %3402 = vrot.lane.b32.xlu0 %v3394, 127
        %v3403 = vpop.permute.xlu0 %3402
        %v3405 = vmul.f32 %v3400, %v3403
        %v3406 = vadd.f32 %v3397, %v3405
        %3407 = vset.pattern.permute.xlu0 8
        %3408 = vperm.xlu0 %3407, %v3249
        %v3409 = vpop.permute.xlu0 %3408
        %3411 = vrot.lane.b32.xlu0 %v3394, 126
        %v3412 = vpop.permute.xlu0 %3411
        %v3414 = vmul.f32 %v3409, %v3412
        %v3415 = vadd.f32 %v3406, %v3414
        %3416 = vst.msk [vmem:[#allocation5] sm:$0xff] %vm616, %v3415
        %v3417 = vld [vmem:[#allocation4 + $0x1] sm:$0x1]
        %v3418 = vld [vmem:[#allocation4 + $0x19] sm:$0x1]
        %v3419 = vld [vmem:[#allocation4 + $0x31] sm:$0x1]
        %v3420 = vld [vmem:[#allocation4 + $0x49] sm:$0x1]
        %v3421 = vld [vmem:[#allocation4 + $0x61] sm:$0x1]
        %v3422 = vld [vmem:[#allocation4 + $0x79] sm:$0x1]
        %v3423 = vld [vmem:[#allocation4 + $0x91] sm:$0x1]
        %v3424 = vld [vmem:[#allocation4 + $0xa9] sm:$0x1]
        %v3425 = vld [vmem:[#allocation4 + $0x2] sm:$0x1]
        %v3426 = vld [vmem:[#allocation4 + $0x1a] sm:$0x1]
        %v3427 = vld [vmem:[#allocation4 + $0x32] sm:$0x1]
        %v3428 = vld [vmem:[#allocation4 + $0x4a] sm:$0x1]
        %v3429 = vld [vmem:[#allocation4 + $0x62] sm:$0x1]
        %v3430 = vld [vmem:[#allocation4 + $0x7a] sm:$0x1]
        %v3431 = vld [vmem:[#allocation4 + $0x92] sm:$0x1]
        %v3432 = vld [vmem:[#allocation4 + $0xaa] sm:$0x1]
        %v3433 = vld [vmem:[#allocation4 + $0x3] sm:$0x1]
        %v3434 = vld [vmem:[#allocation4 + $0x1b] sm:$0x1]
        %v3435 = vld [vmem:[#allocation4 + $0x33] sm:$0x1]
        %v3436 = vld [vmem:[#allocation4 + $0x4b] sm:$0x1]
        %v3437 = vld [vmem:[#allocation4 + $0x63] sm:$0x1]
        %v3438 = vld [vmem:[#allocation4 + $0x7b] sm:$0x1]
        %v3439 = vld [vmem:[#allocation4 + $0x93] sm:$0x1]
        %v3440 = vld [vmem:[#allocation4 + $0xab] sm:$0x1]
        %v3449 = vrot.slane %v3418, 7
        %v3450 = vsel %vm481, %v3449, %v3417
        %v3451 = vrot.slane %v3419, 6
        %v3452 = vsel %vm484, %v3451, %v3450
        %v3453 = vrot.slane %v3420, 5
        %v3454 = vsel %vm487, %v3453, %v3452
        %v3455 = vrot.slane %v3421, 4
        %v3456 = vsel %vm490, %v3455, %v3454
        %v3457 = vrot.slane %v3422, 3
        %v3458 = vsel %vm493, %v3457, %v3456
        %v3459 = vrot.slane %v3423, 2
        %v3460 = vsel %vm496, %v3459, %v3458
        %v3461 = vrot.slane %v3424, 1
        %v3462 = vsel %vm499, %v3461, %v3460
        %v3464 = vmul.f32 %v3277, %v3462
        %v3465 = vadd.f32 %v3464, 0.0
        %3466 = vrot.lane.b32.xlu0 %v3462, 127
        %v3467 = vpop.permute.xlu0 %3466
        %v3469 = vmul.f32 %v3306, %v3467
        %v3470 = vadd.f32 %v3465, %v3469
        %3471 = vrot.lane.b32.xlu0 %v3462, 126
        %v3472 = vpop.permute.xlu0 %3471
        %v3474 = vmul.f32 %v3315, %v3472
        %v3475 = vadd.f32 %v3470, %v3474
        %v3484 = vrot.slane %v3426, 7
        %v3485 = vsel %vm481, %v3484, %v3425
        %v3486 = vrot.slane %v3427, 6
        %v3487 = vsel %vm484, %v3486, %v3485
        %v3488 = vrot.slane %v3428, 5
        %v3489 = vsel %vm487, %v3488, %v3487
        %v3490 = vrot.slane %v3429, 4
        %v3491 = vsel %vm490, %v3490, %v3489
        %v3492 = vrot.slane %v3430, 3
        %v3493 = vsel %vm493, %v3492, %v3491
        %v3494 = vrot.slane %v3431, 2
        %v3495 = vsel %vm496, %v3494, %v3493
        %v3496 = vrot.slane %v3432, 1
        %v3497 = vsel %vm499, %v3496, %v3495
        %v3499 = vmul.f32 %v3324, %v3497
        %v3500 = vadd.f32 %v3475, %v3499
        %3501 = vrot.lane.b32.xlu0 %v3497, 127
        %v3502 = vpop.permute.xlu0 %3501
        %v3504 = vmul.f32 %v3353, %v3502
        %v3505 = vadd.f32 %v3500, %v3504
        %3506 = vrot.lane.b32.xlu0 %v3497, 126
        %v3507 = vpop.permute.xlu0 %3506
        %v3509 = vmul.f32 %v3362, %v3507
        %v3510 = vadd.f32 %v3505, %v3509
        %v3519 = vrot.slane %v3434, 7
        %v3520 = vsel %vm481, %v3519, %v3433
        %v3521 = vrot.slane %v3435, 6
        %v3522 = vsel %vm484, %v3521, %v3520
        %v3523 = vrot.slane %v3436, 5
        %v3524 = vsel %vm487, %v3523, %v3522
        %v3525 = vrot.slane %v3437, 4
        %v3526 = vsel %vm490, %v3525, %v3524
        %v3527 = vrot.slane %v3438, 3
        %v3528 = vsel %vm493, %v3527, %v3526
        %v3529 = vrot.slane %v3439, 2
        %v3530 = vsel %vm496, %v3529, %v3528
        %v3531 = vrot.slane %v3440, 1
        %v3532 = vsel %vm499, %v3531, %v3530
        %v3534 = vmul.f32 %v3371, %v3532
        %v3535 = vadd.f32 %v3510, %v3534
        %3536 = vrot.lane.b32.xlu0 %v3532, 127
        %v3537 = vpop.permute.xlu0 %3536
        %v3539 = vmul.f32 %v3400, %v3537
        %v3540 = vadd.f32 %v3535, %v3539
        %3541 = vrot.lane.b32.xlu0 %v3532, 126
        %v3542 = vpop.permute.xlu0 %3541
        %v3544 = vmul.f32 %v3409, %v3542
        %v3545 = vadd.f32 %v3540, %v3544
        %3547 = vrot.lane.b32.xlu0 %v3545, 16
        %v3548 = vpop.permute.xlu0 %3547
        %3550 = vst.msk [vmem:[#allocation5] sm:$0xff] %vm751, %v3548
        %v3551 = vld [vmem:[#allocation4 + $0x2] sm:$0x1]
        %v3552 = vld [vmem:[#allocation4 + $0x1a] sm:$0x1]
        %v3553 = vld [vmem:[#allocation4 + $0x32] sm:$0x1]
        %v3554 = vld [vmem:[#allocation4 + $0x4a] sm:$0x1]
        %v3555 = vld [vmem:[#allocation4 + $0x62] sm:$0x1]
        %v3556 = vld [vmem:[#allocation4 + $0x7a] sm:$0x1]
        %v3557 = vld [vmem:[#allocation4 + $0x92] sm:$0x1]
        %v3558 = vld [vmem:[#allocation4 + $0xaa] sm:$0x1]
        %v3559 = vld [vmem:[#allocation4 + $0x3] sm:$0x1]
        %v3560 = vld [vmem:[#allocation4 + $0x1b] sm:$0x1]
        %v3561 = vld [vmem:[#allocation4 + $0x33] sm:$0x1]
        %v3562 = vld [vmem:[#allocation4 + $0x4b] sm:$0x1]
        %v3563 = vld [vmem:[#allocation4 + $0x63] sm:$0x1]
        %v3564 = vld [vmem:[#allocation4 + $0x7b] sm:$0x1]
        %v3565 = vld [vmem:[#allocation4 + $0x93] sm:$0x1]
        %v3566 = vld [vmem:[#allocation4 + $0xab] sm:$0x1]
        %v3567 = vld [vmem:[#allocation4 + $0x4] sm:$0x1]
        %v3568 = vld [vmem:[#allocation4 + $0x1c] sm:$0x1]
        %v3569 = vld [vmem:[#allocation4 + $0x34] sm:$0x1]
        %v3570 = vld [vmem:[#allocation4 + $0x4c] sm:$0x1]
        %v3571 = vld [vmem:[#allocation4 + $0x64] sm:$0x1]
        %v3572 = vld [vmem:[#allocation4 + $0x7c] sm:$0x1]
        %v3573 = vld [vmem:[#allocation4 + $0x94] sm:$0x1]
        %v3574 = vld [vmem:[#allocation4 + $0xac] sm:$0x1]
        %v3583 = vrot.slane %v3552, 7
        %v3584 = vsel %vm481, %v3583, %v3551
        %v3585 = vrot.slane %v3553, 6
        %v3586 = vsel %vm484, %v3585, %v3584
        %v3587 = vrot.slane %v3554, 5
        %v3588 = vsel %vm487, %v3587, %v3586
        %v3589 = vrot.slane %v3555, 4
        %v3590 = vsel %vm490, %v3589, %v3588
        %v3591 = vrot.slane %v3556, 3
        %v3592 = vsel %vm493, %v3591, %v3590
        %v3593 = vrot.slane %v3557, 2
        %v3594 = vsel %vm496, %v3593, %v3592
        %v3595 = vrot.slane %v3558, 1
        %v3596 = vsel %vm499, %v3595, %v3594
        %v3598 = vmul.f32 %v3277, %v3596
        %v3599 = vadd.f32 %v3598, 0.0
        %3600 = vrot.lane.b32.xlu0 %v3596, 127
        %v3601 = vpop.permute.xlu0 %3600
        %v3603 = vmul.f32 %v3306, %v3601
        %v3604 = vadd.f32 %v3599, %v3603
        %3605 = vrot.lane.b32.xlu0 %v3596, 126
        %v3606 = vpop.permute.xlu0 %3605
        %v3608 = vmul.f32 %v3315, %v3606
        %v3609 = vadd.f32 %v3604, %v3608
        %v3618 = vrot.slane %v3560, 7
        %v3619 = vsel %vm481, %v3618, %v3559
        %v3620 = vrot.slane %v3561, 6
        %v3621 = vsel %vm484, %v3620, %v3619
        %v3622 = vrot.slane %v3562, 5
        %v3623 = vsel %vm487, %v3622, %v3621
        %v3624 = vrot.slane %v3563, 4
        %v3625 = vsel %vm490, %v3624, %v3623
        %v3626 = vrot.slane %v3564, 3
        %v3627 = vsel %vm493, %v3626, %v3625
        %v3628 = vrot.slane %v3565, 2
        %v3629 = vsel %vm496, %v3628, %v3627
        %v3630 = vrot.slane %v3566, 1
        %v3631 = vsel %vm499, %v3630, %v3629
        %v3633 = vmul.f32 %v3324, %v3631
        %v3634 = vadd.f32 %v3609, %v3633
        %3635 = vrot.lane.b32.xlu0 %v3631, 127
        %v3636 = vpop.permute.xlu0 %3635
        %v3638 = vmul.f32 %v3353, %v3636
        %v3639 = vadd.f32 %v3634, %v3638
        %3640 = vrot.lane.b32.xlu0 %v3631, 126
        %v3641 = vpop.permute.xlu0 %3640
        %v3643 = vmul.f32 %v3362, %v3641
        %v3644 = vadd.f32 %v3639, %v3643
        %v3653 = vrot.slane %v3568, 7
        %v3654 = vsel %vm481, %v3653, %v3567
        %v3655 = vrot.slane %v3569, 6
        %v3656 = vsel %vm484, %v3655, %v3654
        %v3657 = vrot.slane %v3570, 5
        %v3658 = vsel %vm487, %v3657, %v3656
        %v3659 = vrot.slane %v3571, 4
        %v3660 = vsel %vm490, %v3659, %v3658
        %v3661 = vrot.slane %v3572, 3
        %v3662 = vsel %vm493, %v3661, %v3660
        %v3663 = vrot.slane %v3573, 2
        %v3664 = vsel %vm496, %v3663, %v3662
        %v3665 = vrot.slane %v3574, 1
        %v3666 = vsel %vm499, %v3665, %v3664
        %v3668 = vmul.f32 %v3371, %v3666
        %v3669 = vadd.f32 %v3644, %v3668
        %3670 = vrot.lane.b32.xlu0 %v3666, 127
        %v3671 = vpop.permute.xlu0 %3670
        %v3673 = vmul.f32 %v3400, %v3671
        %v3674 = vadd.f32 %v3669, %v3673
        %3675 = vrot.lane.b32.xlu0 %v3666, 126
        %v3676 = vpop.permute.xlu0 %3675
        %v3678 = vmul.f32 %v3409, %v3676
        %v3679 = vadd.f32 %v3674, %v3678
        %3681 = vrot.lane.b32.xlu0 %v3679, 32
        %v3682 = vpop.permute.xlu0 %3681
        %3684 = vst.msk [vmem:[#allocation5] sm:$0xff] %vm886, %v3682
        %v3685 = vld [vmem:[#allocation4 + $0x3] sm:$0x1]
        %v3686 = vld [vmem:[#allocation4 + $0x1b] sm:$0x1]
        %v3687 = vld [vmem:[#allocation4 + $0x33] sm:$0x1]
        %v3688 = vld [vmem:[#allocation4 + $0x4b] sm:$0x1]
        %v3689 = vld [vmem:[#allocation4 + $0x63] sm:$0x1]
        %v3690 = vld [vmem:[#allocation4 + $0x7b] sm:$0x1]
        %v3691 = vld [vmem:[#allocation4 + $0x93] sm:$0x1]
        %v3692 = vld [vmem:[#allocation4 + $0xab] sm:$0x1]
        %v3693 = vld [vmem:[#allocation4 + $0x4] sm:$0x1]
        %v3694 = vld [vmem:[#allocation4 + $0x1c] sm:$0x1]
        %v3695 = vld [vmem:[#allocation4 + $0x34] sm:$0x1]
        %v3696 = vld [vmem:[#allocation4 + $0x4c] sm:$0x1]
        %v3697 = vld [vmem:[#allocation4 + $0x64] sm:$0x1]
        %v3698 = vld [vmem:[#allocation4 + $0x7c] sm:$0x1]
        %v3699 = vld [vmem:[#allocation4 + $0x94] sm:$0x1]
        %v3700 = vld [vmem:[#allocation4 + $0xac] sm:$0x1]
        %v3701 = vld [vmem:[#allocation4 + $0x5] sm:$0x1]
        %v3702 = vld [vmem:[#allocation4 + $0x1d] sm:$0x1]
        %v3703 = vld [vmem:[#allocation4 + $0x35] sm:$0x1]
        %v3704 = vld [vmem:[#allocation4 + $0x4d] sm:$0x1]
        %v3705 = vld [vmem:[#allocation4 + $0x65] sm:$0x1]
        %v3706 = vld [vmem:[#allocation4 + $0x7d] sm:$0x1]
        %v3707 = vld [vmem:[#allocation4 + $0x95] sm:$0x1]
        %v3708 = vld [vmem:[#allocation4 + $0xad] sm:$0x1]
        %v3717 = vrot.slane %v3686, 7
        %v3718 = vsel %vm481, %v3717, %v3685
        %v3719 = vrot.slane %v3687, 6
        %v3720 = vsel %vm484, %v3719, %v3718
        %v3721 = vrot.slane %v3688, 5
        %v3722 = vsel %vm487, %v3721, %v3720
        %v3723 = vrot.slane %v3689, 4
        %v3724 = vsel %vm490, %v3723, %v3722
        %v3725 = vrot.slane %v3690, 3
        %v3726 = vsel %vm493, %v3725, %v3724
        %v3727 = vrot.slane %v3691, 2
        %v3728 = vsel %vm496, %v3727, %v3726
        %v3729 = vrot.slane %v3692, 1
        %v3730 = vsel %vm499, %v3729, %v3728
        %v3732 = vmul.f32 %v3277, %v3730
        %v3733 = vadd.f32 %v3732, 0.0
        %3734 = vrot.lane.b32.xlu0 %v3730, 127
        %v3735 = vpop.permute.xlu0 %3734
        %v3737 = vmul.f32 %v3306, %v3735
        %v3738 = vadd.f32 %v3733, %v3737
        %3739 = vrot.lane.b32.xlu0 %v3730, 126
        %v3740 = vpop.permute.xlu0 %3739
        %v3742 = vmul.f32 %v3315, %v3740
        %v3743 = vadd.f32 %v3738, %v3742
        %v3752 = vrot.slane %v3694, 7
        %v3753 = vsel %vm481, %v3752, %v3693
        %v3754 = vrot.slane %v3695, 6
        %v3755 = vsel %vm484, %v3754, %v3753
        %v3756 = vrot.slane %v3696, 5
        %v3757 = vsel %vm487, %v3756, %v3755
        %v3758 = vrot.slane %v3697, 4
        %v3759 = vsel %vm490, %v3758, %v3757
        %v3760 = vrot.slane %v3698, 3
        %v3761 = vsel %vm493, %v3760, %v3759
        %v3762 = vrot.slane %v3699, 2
        %v3763 = vsel %vm496, %v3762, %v3761
        %v3764 = vrot.slane %v3700, 1
        %v3765 = vsel %vm499, %v3764, %v3763
        %v3767 = vmul.f32 %v3324, %v3765
        %v3768 = vadd.f32 %v3743, %v3767
        %3769 = vrot.lane.b32.xlu0 %v3765, 127
        %v3770 = vpop.permute.xlu0 %3769
        %v3772 = vmul.f32 %v3353, %v3770
        %v3773 = vadd.f32 %v3768, %v3772
        %3774 = vrot.lane.b32.xlu0 %v3765, 126
        %v3775 = vpop.permute.xlu0 %3774
        %v3777 = vmul.f32 %v3362, %v3775
        %v3778 = vadd.f32 %v3773, %v3777
        %v3787 = vrot.slane %v3702, 7
        %v3788 = vsel %vm481, %v3787, %v3701
        %v3789 = vrot.slane %v3703, 6
        %v3790 = vsel %vm484, %v3789, %v3788
        %v3791 = vrot.slane %v3704, 5
        %v3792 = vsel %vm487, %v3791, %v3790
        %v3793 = vrot.slane %v3705, 4
        %v3794 = vsel %vm490, %v3793, %v3792
        %v3795 = vrot.slane %v3706, 3
        %v3796 = vsel %vm493, %v3795, %v3794
        %v3797 = vrot.slane %v3707, 2
        %v3798 = vsel %vm496, %v3797, %v3796
        %v3799 = vrot.slane %v3708, 1
        %v3800 = vsel %vm499, %v3799, %v3798
        %v3802 = vmul.f32 %v3371, %v3800
        %v3803 = vadd.f32 %v3778, %v3802
        %3804 = vrot.lane.b32.xlu0 %v3800, 127
        %v3805 = vpop.permute.xlu0 %3804
        %v3807 = vmul.f32 %v3400, %v3805
        %v3808 = vadd.f32 %v3803, %v3807
        %3809 = vrot.lane.b32.xlu0 %v3800, 126
        %v3810 = vpop.permute.xlu0 %3809
        %v3812 = vmul.f32 %v3409, %v3810
        %v3813 = vadd.f32 %v3808, %v3812
        %3815 = vrot.lane.b32.xlu0 %v3813, 48
        %v3816 = vpop.permute.xlu0 %3815
        %3818 = vst.msk [vmem:[#allocation5] sm:$0xff] %vm1021, %v3816
        %v3819 = vld [vmem:[#allocation4 + $0x4] sm:$0x1]
        %v3820 = vld [vmem:[#allocation4 + $0x1c] sm:$0x1]
        %v3821 = vld [vmem:[#allocation4 + $0x34] sm:$0x1]
        %v3822 = vld [vmem:[#allocation4 + $0x4c] sm:$0x1]
        %v3823 = vld [vmem:[#allocation4 + $0x64] sm:$0x1]
        %v3824 = vld [vmem:[#allocation4 + $0x7c] sm:$0x1]
        %v3825 = vld [vmem:[#allocation4 + $0x94] sm:$0x1]
        %v3826 = vld [vmem:[#allocation4 + $0xac] sm:$0x1]
        %v3827 = vld [vmem:[#allocation4 + $0x5] sm:$0x1]
        %v3828 = vld [vmem:[#allocation4 + $0x1d] sm:$0x1]
        %v3829 = vld [vmem:[#allocation4 + $0x35] sm:$0x1]
        %v3830 = vld [vmem:[#allocation4 + $0x4d] sm:$0x1]
        %v3831 = vld [vmem:[#allocation4 + $0x65] sm:$0x1]
        %v3832 = vld [vmem:[#allocation4 + $0x7d] sm:$0x1]
        %v3833 = vld [vmem:[#allocation4 + $0x95] sm:$0x1]
        %v3834 = vld [vmem:[#allocation4 + $0xad] sm:$0x1]
        %v3835 = vld [vmem:[#allocation4 + $0x6] sm:$0x1]
        %v3836 = vld [vmem:[#allocation4 + $0x1e] sm:$0x1]
        %v3837 = vld [vmem:[#allocation4 + $0x36] sm:$0x1]
        %v3838 = vld [vmem:[#allocation4 + $0x4e] sm:$0x1]
        %v3839 = vld [vmem:[#allocation4 + $0x66] sm:$0x1]
        %v3840 = vld [vmem:[#allocation4 + $0x7e] sm:$0x1]
        %v3841 = vld [vmem:[#allocation4 + $0x96] sm:$0x1]
        %v3842 = vld [vmem:[#allocation4 + $0xae] sm:$0x1]
        %v3851 = vrot.slane %v3820, 7
        %v3852 = vsel %vm481, %v3851, %v3819
        %v3853 = vrot.slane %v3821, 6
        %v3854 = vsel %vm484, %v3853, %v3852
        %v3855 = vrot.slane %v3822, 5
        %v3856 = vsel %vm487, %v3855, %v3854
        %v3857 = vrot.slane %v3823, 4
        %v3858 = vsel %vm490, %v3857, %v3856
        %v3859 = vrot.slane %v3824, 3
        %v3860 = vsel %vm493, %v3859, %v3858
        %v3861 = vrot.slane %v3825, 2
        %v3862 = vsel %vm496, %v3861, %v3860
        %v3863 = vrot.slane %v3826, 1
        %v3864 = vsel %vm499, %v3863, %v3862
        %v3866 = vmul.f32 %v3277, %v3864
        %v3867 = vadd.f32 %v3866, 0.0
        %3868 = vrot.lane.b32.xlu0 %v3864, 127
        %v3869 = vpop.permute.xlu0 %3868
        %v3871 = vmul.f32 %v3306, %v3869
        %v3872 = vadd.f32 %v3867, %v3871
        %3873 = vrot.lane.b32.xlu0 %v3864, 126
        %v3874 = vpop.permute.xlu0 %3873
        %v3876 = vmul.f32 %v3315, %v3874
        %v3877 = vadd.f32 %v3872, %v3876
        %v3886 = vrot.slane %v3828, 7
        %v3887 = vsel %vm481, %v3886, %v3827
        %v3888 = vrot.slane %v3829, 6
        %v3889 = vsel %vm484, %v3888, %v3887
        %v3890 = vrot.slane %v3830, 5
        %v3891 = vsel %vm487, %v3890, %v3889
        %v3892 = vrot.slane %v3831, 4
        %v3893 = vsel %vm490, %v3892, %v3891
        %v3894 = vrot.slane %v3832, 3
        %v3895 = vsel %vm493, %v3894, %v3893
        %v3896 = vrot.slane %v3833, 2
        %v3897 = vsel %vm496, %v3896, %v3895
        %v3898 = vrot.slane %v3834, 1
        %v3899 = vsel %vm499, %v3898, %v3897
        %v3901 = vmul.f32 %v3324, %v3899
        %v3902 = vadd.f32 %v3877, %v3901
        %3903 = vrot.lane.b32.xlu0 %v3899, 127
        %v3904 = vpop.permute.xlu0 %3903
        %v3906 = vmul.f32 %v3353, %v3904
        %v3907 = vadd.f32 %v3902, %v3906
        %3908 = vrot.lane.b32.xlu0 %v3899, 126
        %v3909 = vpop.permute.xlu0 %3908
        %v3911 = vmul.f32 %v3362, %v3909
        %v3912 = vadd.f32 %v3907, %v3911
        %v3921 = vrot.slane %v3836, 7
        %v3922 = vsel %vm481, %v3921, %v3835
        %v3923 = vrot.slane %v3837, 6
        %v3924 = vsel %vm484, %v3923, %v3922
        %v3925 = vrot.slane %v3838, 5
        %v3926 = vsel %vm487, %v3925, %v3924
        %v3927 = vrot.slane %v3839, 4
        %v3928 = vsel %vm490, %v3927, %v3926
        %v3929 = vrot.slane %v3840, 3
        %v3930 = vsel %vm493, %v3929, %v3928
        %v3931 = vrot.slane %v3841, 2
        %v3932 = vsel %vm496, %v3931, %v3930
        %v3933 = vrot.slane %v3842, 1
        %v3934 = vsel %vm499, %v3933, %v3932
        %v3936 = vmul.f32 %v3371, %v3934
        %v3937 = vadd.f32 %v3912, %v3936
        %3938 = vrot.lane.b32.xlu0 %v3934, 127
        %v3939 = vpop.permute.xlu0 %3938
        %v3941 = vmul.f32 %v3400, %v3939
        %v3942 = vadd.f32 %v3937, %v3941
        %3943 = vrot.lane.b32.xlu0 %v3934, 126
        %v3944 = vpop.permute.xlu0 %3943
        %v3946 = vmul.f32 %v3409, %v3944
        %v3947 = vadd.f32 %v3942, %v3946
        %3949 = vrot.lane.b32.xlu0 %v3947, 64
        %v3950 = vpop.permute.xlu0 %3949
        %3952 = vst.msk [vmem:[#allocation5] sm:$0xff] %vm1156, %v3950
        %v3953 = vld [vmem:[#allocation4 + $0x5] sm:$0x1]
        %v3954 = vld [vmem:[#allocation4 + $0x1d] sm:$0x1]
        %v3955 = vld [vmem:[#allocation4 + $0x35] sm:$0x1]
        %v3956 = vld [vmem:[#allocation4 + $0x4d] sm:$0x1]
        %v3957 = vld [vmem:[#allocation4 + $0x65] sm:$0x1]
        %v3958 = vld [vmem:[#allocation4 + $0x7d] sm:$0x1]
        %v3959 = vld [vmem:[#allocation4 + $0x95] sm:$0x1]
        %v3960 = vld [vmem:[#allocation4 + $0xad] sm:$0x1]
        %v3961 = vld [vmem:[#allocation4 + $0x6] sm:$0x1]
        %v3962 = vld [vmem:[#allocation4 + $0x1e] sm:$0x1]
        %v3963 = vld [vmem:[#allocation4 + $0x36] sm:$0x1]
        %v3964 = vld [vmem:[#allocation4 + $0x4e] sm:$0x1]
        %v3965 = vld [vmem:[#allocation4 + $0x66] sm:$0x1]
        %v3966 = vld [vmem:[#allocation4 + $0x7e] sm:$0x1]
        %v3967 = vld [vmem:[#allocation4 + $0x96] sm:$0x1]
        %v3968 = vld [vmem:[#allocation4 + $0xae] sm:$0x1]
        %v3969 = vld [vmem:[#allocation4 + $0x7] sm:$0x1]
        %v3970 = vld [vmem:[#allocation4 + $0x1f] sm:$0x1]
        %v3971 = vld [vmem:[#allocation4 + $0x37] sm:$0x1]
        %v3972 = vld [vmem:[#allocation4 + $0x4f] sm:$0x1]
        %v3973 = vld [vmem:[#allocation4 + $0x67] sm:$0x1]
        %v3974 = vld [vmem:[#allocation4 + $0x7f] sm:$0x1]
        %v3975 = vld [vmem:[#allocation4 + $0x97] sm:$0x1]
        %v3976 = vld [vmem:[#allocation4 + $0xaf] sm:$0x1]
        %v3985 = vrot.slane %v3954, 7
        %v3986 = vsel %vm481, %v3985, %v3953
        %v3987 = vrot.slane %v3955, 6
        %v3988 = vsel %vm484, %v3987, %v3986
        %v3989 = vrot.slane %v3956, 5
        %v3990 = vsel %vm487, %v3989, %v3988
        %v3991 = vrot.slane %v3957, 4
        %v3992 = vsel %vm490, %v3991, %v3990
        %v3993 = vrot.slane %v3958, 3
        %v3994 = vsel %vm493, %v3993, %v3992
        %v3995 = vrot.slane %v3959, 2
        %v3996 = vsel %vm496, %v3995, %v3994
        %v3997 = vrot.slane %v3960, 1
        %v3998 = vsel %vm499, %v3997, %v3996
        %v4000 = vmul.f32 %v3277, %v3998
        %v4001 = vadd.f32 %v4000, 0.0
        %4002 = vrot.lane.b32.xlu0 %v3998, 127
        %v4003 = vpop.permute.xlu0 %4002
        %v4005 = vmul.f32 %v3306, %v4003
        %v4006 = vadd.f32 %v4001, %v4005
        %4007 = vrot.lane.b32.xlu0 %v3998, 126
        %v4008 = vpop.permute.xlu0 %4007
        %v4010 = vmul.f32 %v3315, %v4008
        %v4011 = vadd.f32 %v4006, %v4010
        %v4020 = vrot.slane %v3962, 7
        %v4021 = vsel %vm481, %v4020, %v3961
        %v4022 = vrot.slane %v3963, 6
        %v4023 = vsel %vm484, %v4022, %v4021
        %v4024 = vrot.slane %v3964, 5
        %v4025 = vsel %vm487, %v4024, %v4023
        %v4026 = vrot.slane %v3965, 4
        %v4027 = vsel %vm490, %v4026, %v4025
        %v4028 = vrot.slane %v3966, 3
        %v4029 = vsel %vm493, %v4028, %v4027
        %v4030 = vrot.slane %v3967, 2
        %v4031 = vsel %vm496, %v4030, %v4029
        %v4032 = vrot.slane %v3968, 1
        %v4033 = vsel %vm499, %v4032, %v4031
        %v4035 = vmul.f32 %v3324, %v4033
        %v4036 = vadd.f32 %v4011, %v4035
        %4037 = vrot.lane.b32.xlu0 %v4033, 127
        %v4038 = vpop.permute.xlu0 %4037
        %v4040 = vmul.f32 %v3353, %v4038
        %v4041 = vadd.f32 %v4036, %v4040
        %4042 = vrot.lane.b32.xlu0 %v4033, 126
        %v4043 = vpop.permute.xlu0 %4042
        %v4045 = vmul.f32 %v3362, %v4043
        %v4046 = vadd.f32 %v4041, %v4045
        %v4055 = vrot.slane %v3970, 7
        %v4056 = vsel %vm481, %v4055, %v3969
        %v4057 = vrot.slane %v3971, 6
        %v4058 = vsel %vm484, %v4057, %v4056
        %v4059 = vrot.slane %v3972, 5
        %v4060 = vsel %vm487, %v4059, %v4058
        %v4061 = vrot.slane %v3973, 4
        %v4062 = vsel %vm490, %v4061, %v4060
        %v4063 = vrot.slane %v3974, 3
        %v4064 = vsel %vm493, %v4063, %v4062
        %v4065 = vrot.slane %v3975, 2
        %v4066 = vsel %vm496, %v4065, %v4064
        %v4067 = vrot.slane %v3976, 1
        %v4068 = vsel %vm499, %v4067, %v4066
        %v4070 = vmul.f32 %v3371, %v4068
        %v4071 = vadd.f32 %v4046, %v4070
        %4072 = vrot.lane.b32.xlu0 %v4068, 127
        %v4073 = vpop.permute.xlu0 %4072
        %v4075 = vmul.f32 %v3400, %v4073
        %v4076 = vadd.f32 %v4071, %v4075
        %4077 = vrot.lane.b32.xlu0 %v4068, 126
        %v4078 = vpop.permute.xlu0 %4077
        %v4080 = vmul.f32 %v3409, %v4078
        %v4081 = vadd.f32 %v4076, %v4080
        %4083 = vrot.lane.b32.xlu0 %v4081, 80
        %v4084 = vpop.permute.xlu0 %4083
        %4086 = vst.msk [vmem:[#allocation5] sm:$0xff] %vm1291, %v4084
        %v4087 = vld [vmem:[#allocation4 + $0x6] sm:$0x1]
        %v4088 = vld [vmem:[#allocation4 + $0x1e] sm:$0x1]
        %v4089 = vld [vmem:[#allocation4 + $0x36] sm:$0x1]
        %v4090 = vld [vmem:[#allocation4 + $0x4e] sm:$0x1]
        %v4091 = vld [vmem:[#allocation4 + $0x66] sm:$0x1]
        %v4092 = vld [vmem:[#allocation4 + $0x7e] sm:$0x1]
        %v4093 = vld [vmem:[#allocation4 + $0x96] sm:$0x1]
        %v4094 = vld [vmem:[#allocation4 + $0xae] sm:$0x1]
        %v4095 = vld [vmem:[#allocation4 + $0x7] sm:$0x1]
        %v4096 = vld [vmem:[#allocation4 + $0x1f] sm:$0x1]
        %v4097 = vld [vmem:[#allocation4 + $0x37] sm:$0x1]
        %v4098 = vld [vmem:[#allocation4 + $0x4f] sm:$0x1]
        %v4099 = vld [vmem:[#allocation4 + $0x67] sm:$0x1]
        %v4100 = vld [vmem:[#allocation4 + $0x7f] sm:$0x1]
        %v4101 = vld [vmem:[#allocation4 + $0x97] sm:$0x1]
        %v4102 = vld [vmem:[#allocation4 + $0xaf] sm:$0x1]
        %v4103 = vld [vmem:[#allocation4 + $0x8] sm:$0x1]
        %v4104 = vld [vmem:[#allocation4 + $0x20] sm:$0x1]
        %v4105 = vld [vmem:[#allocation4 + $0x38] sm:$0x1]
        %v4106 = vld [vmem:[#allocation4 + $0x50] sm:$0x1]
        %v4107 = vld [vmem:[#allocation4 + $0x68] sm:$0x1]
        %v4108 = vld [vmem:[#allocation4 + $0x80] sm:$0x1]
        %v4109 = vld [vmem:[#allocation4 + $0x98] sm:$0x1]
        %v4110 = vld [vmem:[#allocation4 + $0xb0] sm:$0x1]
        %v4119 = vrot.slane %v4088, 7
        %v4120 = vsel %vm481, %v4119, %v4087
        %v4121 = vrot.slane %v4089, 6
        %v4122 = vsel %vm484, %v4121, %v4120
        %v4123 = vrot.slane %v4090, 5
        %v4124 = vsel %vm487, %v4123, %v4122
        %v4125 = vrot.slane %v4091, 4
        %v4126 = vsel %vm490, %v4125, %v4124
        %v4127 = vrot.slane %v4092, 3
        %v4128 = vsel %vm493, %v4127, %v4126
        %v4129 = vrot.slane %v4093, 2
        %v4130 = vsel %vm496, %v4129, %v4128
        %v4131 = vrot.slane %v4094, 1
        %v4132 = vsel %vm499, %v4131, %v4130
        %v4134 = vmul.f32 %v3277, %v4132
        %v4135 = vadd.f32 %v4134, 0.0
        %4136 = vrot.lane.b32.xlu0 %v4132, 127
        %v4137 = vpop.permute.xlu0 %4136
        %v4139 = vmul.f32 %v3306, %v4137
        %v4140 = vadd.f32 %v4135, %v4139
        %4141 = vrot.lane.b32.xlu0 %v4132, 126
        %v4142 = vpop.permute.xlu0 %4141
        %v4144 = vmul.f32 %v3315, %v4142
        %v4145 = vadd.f32 %v4140, %v4144
        %v4154 = vrot.slane %v4096, 7
        %v4155 = vsel %vm481, %v4154, %v4095
        %v4156 = vrot.slane %v4097, 6
        %v4157 = vsel %vm484, %v4156, %v4155
        %v4158 = vrot.slane %v4098, 5
        %v4159 = vsel %vm487, %v4158, %v4157
        %v4160 = vrot.slane %v4099, 4
        %v4161 = vsel %vm490, %v4160, %v4159
        %v4162 = vrot.slane %v4100, 3
        %v4163 = vsel %vm493, %v4162, %v4161
        %v4164 = vrot.slane %v4101, 2
        %v4165 = vsel %vm496, %v4164, %v4163
        %v4166 = vrot.slane %v4102, 1
        %v4167 = vsel %vm499, %v4166, %v4165
        %v4169 = vmul.f32 %v3324, %v4167
        %v4170 = vadd.f32 %v4145, %v4169
        %4171 = vrot.lane.b32.xlu0 %v4167, 127
        %v4172 = vpop.permute.xlu0 %4171
        %v4174 = vmul.f32 %v3353, %v4172
        %v4175 = vadd.f32 %v4170, %v4174
        %4176 = vrot.lane.b32.xlu0 %v4167, 126
        %v4177 = vpop.permute.xlu0 %4176
        %v4179 = vmul.f32 %v3362, %v4177
        %v4180 = vadd.f32 %v4175, %v4179
        %v4189 = vrot.slane %v4104, 7
        %v4190 = vsel %vm481, %v4189, %v4103
        %v4191 = vrot.slane %v4105, 6
        %v4192 = vsel %vm484, %v4191, %v4190
        %v4193 = vrot.slane %v4106, 5
        %v4194 = vsel %vm487, %v4193, %v4192
        %v4195 = vrot.slane %v4107, 4
        %v4196 = vsel %vm490, %v4195, %v4194
        %v4197 = vrot.slane %v4108, 3
        %v4198 = vsel %vm493, %v4197, %v4196
        %v4199 = vrot.slane %v4109, 2
        %v4200 = vsel %vm496, %v4199, %v4198
        %v4201 = vrot.slane %v4110, 1
        %v4202 = vsel %vm499, %v4201, %v4200
        %v4204 = vmul.f32 %v3371, %v4202
        %v4205 = vadd.f32 %v4180, %v4204
        %4206 = vrot.lane.b32.xlu0 %v4202, 127
        %v4207 = vpop.permute.xlu0 %4206
        %v4209 = vmul.f32 %v3400, %v4207
        %v4210 = vadd.f32 %v4205, %v4209
        %4211 = vrot.lane.b32.xlu0 %v4202, 126
        %v4212 = vpop.permute.xlu0 %4211
        %v4214 = vmul.f32 %v3409, %v4212
        %v4215 = vadd.f32 %v4210, %v4214
        %4217 = vrot.lane.b32.xlu0 %v4215, 96
        %v4218 = vpop.permute.xlu0 %4217
        %4220 = vst.msk [vmem:[#allocation5] sm:$0xff] %vm1426, %v4218
        %v4221 = vld [vmem:[#allocation4 + $0x7] sm:$0x1]
        %v4222 = vld [vmem:[#allocation4 + $0x1f] sm:$0x1]
        %v4223 = vld [vmem:[#allocation4 + $0x37] sm:$0x1]
        %v4224 = vld [vmem:[#allocation4 + $0x4f] sm:$0x1]
        %v4225 = vld [vmem:[#allocation4 + $0x67] sm:$0x1]
        %v4226 = vld [vmem:[#allocation4 + $0x7f] sm:$0x1]
        %v4227 = vld [vmem:[#allocation4 + $0x97] sm:$0x1]
        %v4228 = vld [vmem:[#allocation4 + $0xaf] sm:$0x1]
        %v4229 = vld [vmem:[#allocation4 + $0x8] sm:$0x1]
        %v4230 = vld [vmem:[#allocation4 + $0x20] sm:$0x1]
        %v4231 = vld [vmem:[#allocation4 + $0x38] sm:$0x1]
        %v4232 = vld [vmem:[#allocation4 + $0x50] sm:$0x1]
        %v4233 = vld [vmem:[#allocation4 + $0x68] sm:$0x1]
        %v4234 = vld [vmem:[#allocation4 + $0x80] sm:$0x1]
        %v4235 = vld [vmem:[#allocation4 + $0x98] sm:$0x1]
        %v4236 = vld [vmem:[#allocation4 + $0xb0] sm:$0x1]
        %v4237 = vld [vmem:[#allocation4 + $0x9] sm:$0x1]
        %v4238 = vld [vmem:[#allocation4 + $0x21] sm:$0x1]
        %v4239 = vld [vmem:[#allocation4 + $0x39] sm:$0x1]
        %v4240 = vld [vmem:[#allocation4 + $0x51] sm:$0x1]
        %v4241 = vld [vmem:[#allocation4 + $0x69] sm:$0x1]
        %v4242 = vld [vmem:[#allocation4 + $0x81] sm:$0x1]
        %v4243 = vld [vmem:[#allocation4 + $0x99] sm:$0x1]
        %v4244 = vld [vmem:[#allocation4 + $0xb1] sm:$0x1]
        %v4253 = vrot.slane %v4222, 7
        %v4254 = vsel %vm481, %v4253, %v4221
        %v4255 = vrot.slane %v4223, 6
        %v4256 = vsel %vm484, %v4255, %v4254
        %v4257 = vrot.slane %v4224, 5
        %v4258 = vsel %vm487, %v4257, %v4256
        %v4259 = vrot.slane %v4225, 4
        %v4260 = vsel %vm490, %v4259, %v4258
        %v4261 = vrot.slane %v4226, 3
        %v4262 = vsel %vm493, %v4261, %v4260
        %v4263 = vrot.slane %v4227, 2
        %v4264 = vsel %vm496, %v4263, %v4262
        %v4265 = vrot.slane %v4228, 1
        %v4266 = vsel %vm499, %v4265, %v4264
        %v4268 = vmul.f32 %v3277, %v4266
        %v4269 = vadd.f32 %v4268, 0.0
        %4270 = vrot.lane.b32.xlu0 %v4266, 127
        %v4271 = vpop.permute.xlu0 %4270
        %v4273 = vmul.f32 %v3306, %v4271
        %v4274 = vadd.f32 %v4269, %v4273
        %4275 = vrot.lane.b32.xlu0 %v4266, 126
        %v4276 = vpop.permute.xlu0 %4275
        %v4278 = vmul.f32 %v3315, %v4276
        %v4279 = vadd.f32 %v4274, %v4278
        %v4288 = vrot.slane %v4230, 7
        %v4289 = vsel %vm481, %v4288, %v4229
        %v4290 = vrot.slane %v4231, 6
        %v4291 = vsel %vm484, %v4290, %v4289
        %v4292 = vrot.slane %v4232, 5
        %v4293 = vsel %vm487, %v4292, %v4291
        %v4294 = vrot.slane %v4233, 4
        %v4295 = vsel %vm490, %v4294, %v4293
        %v4296 = vrot.slane %v4234, 3
        %v4297 = vsel %vm493, %v4296, %v4295
        %v4298 = vrot.slane %v4235, 2
        %v4299 = vsel %vm496, %v4298, %v4297
        %v4300 = vrot.slane %v4236, 1
        %v4301 = vsel %vm499, %v4300, %v4299
        %v4303 = vmul.f32 %v3324, %v4301
        %v4304 = vadd.f32 %v4279, %v4303
        %4305 = vrot.lane.b32.xlu0 %v4301, 127
        %v4306 = vpop.permute.xlu0 %4305
        %v4308 = vmul.f32 %v3353, %v4306
        %v4309 = vadd.f32 %v4304, %v4308
        %4310 = vrot.lane.b32.xlu0 %v4301, 126
        %v4311 = vpop.permute.xlu0 %4310
        %v4313 = vmul.f32 %v3362, %v4311
        %v4314 = vadd.f32 %v4309, %v4313
        %v4323 = vrot.slane %v4238, 7
        %v4324 = vsel %vm481, %v4323, %v4237
        %v4325 = vrot.slane %v4239, 6
        %v4326 = vsel %vm484, %v4325, %v4324
        %v4327 = vrot.slane %v4240, 5
        %v4328 = vsel %vm487, %v4327, %v4326
        %v4329 = vrot.slane %v4241, 4
        %v4330 = vsel %vm490, %v4329, %v4328
        %v4331 = vrot.slane %v4242, 3
        %v4332 = vsel %vm493, %v4331, %v4330
        %v4333 = vrot.slane %v4243, 2
        %v4334 = vsel %vm496, %v4333, %v4332
        %v4335 = vrot.slane %v4244, 1
        %v4336 = vsel %vm499, %v4335, %v4334
        %v4338 = vmul.f32 %v3371, %v4336
        %v4339 = vadd.f32 %v4314, %v4338
        %4340 = vrot.lane.b32.xlu0 %v4336, 127
        %v4341 = vpop.permute.xlu0 %4340
        %v4343 = vmul.f32 %v3400, %v4341
        %v4344 = vadd.f32 %v4339, %v4343
        %4345 = vrot.lane.b32.xlu0 %v4336, 126
        %v4346 = vpop.permute.xlu0 %4345
        %v4348 = vmul.f32 %v3409, %v4346
        %v4349 = vadd.f32 %v4344, %v4348
        %4351 = vrot.lane.b32.xlu0 %v4349, 112
        %v4352 = vpop.permute.xlu0 %4351
        %4354 = vst.msk [vmem:[#allocation5] sm:$0xff] %vm1561, %v4352
        %v4355 = vld [vmem:[#allocation4 + $0x8] sm:$0x1]
        %v4356 = vld [vmem:[#allocation4 + $0x20] sm:$0x1]
        %v4357 = vld [vmem:[#allocation4 + $0x38] sm:$0x1]
        %v4358 = vld [vmem:[#allocation4 + $0x50] sm:$0x1]
        %v4359 = vld [vmem:[#allocation4 + $0x68] sm:$0x1]
        %v4360 = vld [vmem:[#allocation4 + $0x80] sm:$0x1]
        %v4361 = vld [vmem:[#allocation4 + $0x98] sm:$0x1]
        %v4362 = vld [vmem:[#allocation4 + $0xb0] sm:$0x1]
        %v4363 = vld [vmem:[#allocation4 + $0x9] sm:$0x1]
        %v4364 = vld [vmem:[#allocation4 + $0x21] sm:$0x1]
        %v4365 = vld [vmem:[#allocation4 + $0x39] sm:$0x1]
        %v4366 = vld [vmem:[#allocation4 + $0x51] sm:$0x1]
        %v4367 = vld [vmem:[#allocation4 + $0x69] sm:$0x1]
        %v4368 = vld [vmem:[#allocation4 + $0x81] sm:$0x1]
        %v4369 = vld [vmem:[#allocation4 + $0x99] sm:$0x1]
        %v4370 = vld [vmem:[#allocation4 + $0xb1] sm:$0x1]
        %v4371 = vld [vmem:[#allocation4 + $0xa] sm:$0x1]
        %v4372 = vld [vmem:[#allocation4 + $0x22] sm:$0x1]
        %v4373 = vld [vmem:[#allocation4 + $0x3a] sm:$0x1]
        %v4374 = vld [vmem:[#allocation4 + $0x52] sm:$0x1]
        %v4375 = vld [vmem:[#allocation4 + $0x6a] sm:$0x1]
        %v4376 = vld [vmem:[#allocation4 + $0x82] sm:$0x1]
        %v4377 = vld [vmem:[#allocation4 + $0x9a] sm:$0x1]
        %v4378 = vld [vmem:[#allocation4 + $0xb2] sm:$0x1]
        %v4387 = vrot.slane %v4356, 7
        %v4388 = vsel %vm481, %v4387, %v4355
        %v4389 = vrot.slane %v4357, 6
        %v4390 = vsel %vm484, %v4389, %v4388
        %v4391 = vrot.slane %v4358, 5
        %v4392 = vsel %vm487, %v4391, %v4390
        %v4393 = vrot.slane %v4359, 4
        %v4394 = vsel %vm490, %v4393, %v4392
        %v4395 = vrot.slane %v4360, 3
        %v4396 = vsel %vm493, %v4395, %v4394
        %v4397 = vrot.slane %v4361, 2
        %v4398 = vsel %vm496, %v4397, %v4396
        %v4399 = vrot.slane %v4362, 1
        %v4400 = vsel %vm499, %v4399, %v4398
        %v4402 = vmul.f32 %v3277, %v4400
        %v4403 = vadd.f32 %v4402, 0.0
        %4404 = vrot.lane.b32.xlu0 %v4400, 127
        %v4405 = vpop.permute.xlu0 %4404
        %v4407 = vmul.f32 %v3306, %v4405
        %v4408 = vadd.f32 %v4403, %v4407
        %4409 = vrot.lane.b32.xlu0 %v4400, 126
        %v4410 = vpop.permute.xlu0 %4409
        %v4412 = vmul.f32 %v3315, %v4410
        %v4413 = vadd.f32 %v4408, %v4412
        %v4422 = vrot.slane %v4364, 7
        %v4423 = vsel %vm481, %v4422, %v4363
        %v4424 = vrot.slane %v4365, 6
        %v4425 = vsel %vm484, %v4424, %v4423
        %v4426 = vrot.slane %v4366, 5
        %v4427 = vsel %vm487, %v4426, %v4425
        %v4428 = vrot.slane %v4367, 4
        %v4429 = vsel %vm490, %v4428, %v4427
        %v4430 = vrot.slane %v4368, 3
        %v4431 = vsel %vm493, %v4430, %v4429
        %v4432 = vrot.slane %v4369, 2
        %v4433 = vsel %vm496, %v4432, %v4431
        %v4434 = vrot.slane %v4370, 1
        %v4435 = vsel %vm499, %v4434, %v4433
        %v4437 = vmul.f32 %v3324, %v4435
        %v4438 = vadd.f32 %v4413, %v4437
        %4439 = vrot.lane.b32.xlu0 %v4435, 127
        %v4440 = vpop.permute.xlu0 %4439
        %v4442 = vmul.f32 %v3353, %v4440
        %v4443 = vadd.f32 %v4438, %v4442
        %4444 = vrot.lane.b32.xlu0 %v4435, 126
        %v4445 = vpop.permute.xlu0 %4444
        %v4447 = vmul.f32 %v3362, %v4445
        %v4448 = vadd.f32 %v4443, %v4447
        %v4457 = vrot.slane %v4372, 7
        %v4458 = vsel %vm481, %v4457, %v4371
        %v4459 = vrot.slane %v4373, 6
        %v4460 = vsel %vm484, %v4459, %v4458
        %v4461 = vrot.slane %v4374, 5
        %v4462 = vsel %vm487, %v4461, %v4460
        %v4463 = vrot.slane %v4375, 4
        %v4464 = vsel %vm490, %v4463, %v4462
        %v4465 = vrot.slane %v4376, 3
        %v4466 = vsel %vm493, %v4465, %v4464
        %v4467 = vrot.slane %v4377, 2
        %v4468 = vsel %vm496, %v4467, %v4466
        %v4469 = vrot.slane %v4378, 1
        %v4470 = vsel %vm499, %v4469, %v4468
        %v4472 = vmul.f32 %v3371, %v4470
        %v4473 = vadd.f32 %v4448, %v4472
        %4474 = vrot.lane.b32.xlu0 %v4470, 127
        %v4475 = vpop.permute.xlu0 %4474
        %v4477 = vmul.f32 %v3400, %v4475
        %v4478 = vadd.f32 %v4473, %v4477
        %4479 = vrot.lane.b32.xlu0 %v4470, 126
        %v4480 = vpop.permute.xlu0 %4479
        %v4482 = vmul.f32 %v3409, %v4480
        %v4483 = vadd.f32 %v4478, %v4482
        %4484 = vst.msk [vmem:[#allocation5 + $0x8] sm:$0xff] %vm616, %v4483
        %v4485 = vld [vmem:[#allocation4 + $0x9] sm:$0x1]
        %v4486 = vld [vmem:[#allocation4 + $0x21] sm:$0x1]
        %v4487 = vld [vmem:[#allocation4 + $0x39] sm:$0x1]
        %v4488 = vld [vmem:[#allocation4 + $0x51] sm:$0x1]
        %v4489 = vld [vmem:[#allocation4 + $0x69] sm:$0x1]
        %v4490 = vld [vmem:[#allocation4 + $0x81] sm:$0x1]
        %v4491 = vld [vmem:[#allocation4 + $0x99] sm:$0x1]
        %v4492 = vld [vmem:[#allocation4 + $0xb1] sm:$0x1]
        %v4493 = vld [vmem:[#allocation4 + $0xa] sm:$0x1]
        %v4494 = vld [vmem:[#allocation4 + $0x22] sm:$0x1]
        %v4495 = vld [vmem:[#allocation4 + $0x3a] sm:$0x1]
        %v4496 = vld [vmem:[#allocation4 + $0x52] sm:$0x1]
        %v4497 = vld [vmem:[#allocation4 + $0x6a] sm:$0x1]
        %v4498 = vld [vmem:[#allocation4 + $0x82] sm:$0x1]
        %v4499 = vld [vmem:[#allocation4 + $0x9a] sm:$0x1]
        %v4500 = vld [vmem:[#allocation4 + $0xb2] sm:$0x1]
        %v4501 = vld [vmem:[#allocation4 + $0xb] sm:$0x1]
        %v4502 = vld [vmem:[#allocation4 + $0x23] sm:$0x1]
        %v4503 = vld [vmem:[#allocation4 + $0x3b] sm:$0x1]
        %v4504 = vld [vmem:[#allocation4 + $0x53] sm:$0x1]
        %v4505 = vld [vmem:[#allocation4 + $0x6b] sm:$0x1]
        %v4506 = vld [vmem:[#allocation4 + $0x83] sm:$0x1]
        %v4507 = vld [vmem:[#allocation4 + $0x9b] sm:$0x1]
        %v4508 = vld [vmem:[#allocation4 + $0xb3] sm:$0x1]
        %v4517 = vrot.slane %v4486, 7
        %v4518 = vsel %vm481, %v4517, %v4485
        %v4519 = vrot.slane %v4487, 6
        %v4520 = vsel %vm484, %v4519, %v4518
        %v4521 = vrot.slane %v4488, 5
        %v4522 = vsel %vm487, %v4521, %v4520
        %v4523 = vrot.slane %v4489, 4
        %v4524 = vsel %vm490, %v4523, %v4522
        %v4525 = vrot.slane %v4490, 3
        %v4526 = vsel %vm493, %v4525, %v4524
        %v4527 = vrot.slane %v4491, 2
        %v4528 = vsel %vm496, %v4527, %v4526
        %v4529 = vrot.slane %v4492, 1
        %v4530 = vsel %vm499, %v4529, %v4528
        %v4532 = vmul.f32 %v3277, %v4530
        %v4533 = vadd.f32 %v4532, 0.0
        %4534 = vrot.lane.b32.xlu0 %v4530, 127
        %v4535 = vpop.permute.xlu0 %4534
        %v4537 = vmul.f32 %v3306, %v4535
        %v4538 = vadd.f32 %v4533, %v4537
        %4539 = vrot.lane.b32.xlu0 %v4530, 126
        %v4540 = vpop.permute.xlu0 %4539
        %v4542 = vmul.f32 %v3315, %v4540
        %v4543 = vadd.f32 %v4538, %v4542
        %v4552 = vrot.slane %v4494, 7
        %v4553 = vsel %vm481, %v4552, %v4493
        %v4554 = vrot.slane %v4495, 6
        %v4555 = vsel %vm484, %v4554, %v4553
        %v4556 = vrot.slane %v4496, 5
        %v4557 = vsel %vm487, %v4556, %v4555
        %v4558 = vrot.slane %v4497, 4
        %v4559 = vsel %vm490, %v4558, %v4557
        %v4560 = vrot.slane %v4498, 3
        %v4561 = vsel %vm493, %v4560, %v4559
        %v4562 = vrot.slane %v4499, 2
        %v4563 = vsel %vm496, %v4562, %v4561
        %v4564 = vrot.slane %v4500, 1
        %v4565 = vsel %vm499, %v4564, %v4563
        %v4567 = vmul.f32 %v3324, %v4565
        %v4568 = vadd.f32 %v4543, %v4567
        %4569 = vrot.lane.b32.xlu0 %v4565, 127
        %v4570 = vpop.permute.xlu0 %4569
        %v4572 = vmul.f32 %v3353, %v4570
        %v4573 = vadd.f32 %v4568, %v4572
        %4574 = vrot.lane.b32.xlu0 %v4565, 126
        %v4575 = vpop.permute.xlu0 %4574
        %v4577 = vmul.f32 %v3362, %v4575
        %v4578 = vadd.f32 %v4573, %v4577
        %v4587 = vrot.slane %v4502, 7
        %v4588 = vsel %vm481, %v4587, %v4501
        %v4589 = vrot.slane %v4503, 6
        %v4590 = vsel %vm484, %v4589, %v4588
        %v4591 = vrot.slane %v4504, 5
        %v4592 = vsel %vm487, %v4591, %v4590
        %v4593 = vrot.slane %v4505, 4
        %v4594 = vsel %vm490, %v4593, %v4592
        %v4595 = vrot.slane %v4506, 3
        %v4596 = vsel %vm493, %v4595, %v4594
        %v4597 = vrot.slane %v4507, 2
        %v4598 = vsel %vm496, %v4597, %v4596
        %v4599 = vrot.slane %v4508, 1
        %v4600 = vsel %vm499, %v4599, %v4598
        %v4602 = vmul.f32 %v3371, %v4600
        %v4603 = vadd.f32 %v4578, %v4602
        %4604 = vrot.lane.b32.xlu0 %v4600, 127
        %v4605 = vpop.permute.xlu0 %4604
        %v4607 = vmul.f32 %v3400, %v4605
        %v4608 = vadd.f32 %v4603, %v4607
        %4609 = vrot.lane.b32.xlu0 %v4600, 126
        %v4610 = vpop.permute.xlu0 %4609
        %v4612 = vmul.f32 %v3409, %v4610
        %v4613 = vadd.f32 %v4608, %v4612
        %4615 = vrot.lane.b32.xlu0 %v4613, 16
        %v4616 = vpop.permute.xlu0 %4615
        %4618 = vst.msk [vmem:[#allocation5 + $0x8] sm:$0xff] %vm751, %v4616
        %v4619 = vld [vmem:[#allocation4 + $0xa] sm:$0x1]
        %v4620 = vld [vmem:[#allocation4 + $0x22] sm:$0x1]
        %v4621 = vld [vmem:[#allocation4 + $0x3a] sm:$0x1]
        %v4622 = vld [vmem:[#allocation4 + $0x52] sm:$0x1]
        %v4623 = vld [vmem:[#allocation4 + $0x6a] sm:$0x1]
        %v4624 = vld [vmem:[#allocation4 + $0x82] sm:$0x1]
        %v4625 = vld [vmem:[#allocation4 + $0x9a] sm:$0x1]
        %v4626 = vld [vmem:[#allocation4 + $0xb2] sm:$0x1]
        %v4627 = vld [vmem:[#allocation4 + $0xb] sm:$0x1]
        %v4628 = vld [vmem:[#allocation4 + $0x23] sm:$0x1]
        %v4629 = vld [vmem:[#allocation4 + $0x3b] sm:$0x1]
        %v4630 = vld [vmem:[#allocation4 + $0x53] sm:$0x1]
        %v4631 = vld [vmem:[#allocation4 + $0x6b] sm:$0x1]
        %v4632 = vld [vmem:[#allocation4 + $0x83] sm:$0x1]
        %v4633 = vld [vmem:[#allocation4 + $0x9b] sm:$0x1]
        %v4634 = vld [vmem:[#allocation4 + $0xb3] sm:$0x1]
        %v4635 = vld [vmem:[#allocation4 + $0xc] sm:$0x1]
        %v4636 = vld [vmem:[#allocation4 + $0x24] sm:$0x1]
        %v4637 = vld [vmem:[#allocation4 + $0x3c] sm:$0x1]
        %v4638 = vld [vmem:[#allocation4 + $0x54] sm:$0x1]
        %v4639 = vld [vmem:[#allocation4 + $0x6c] sm:$0x1]
        %v4640 = vld [vmem:[#allocation4 + $0x84] sm:$0x1]
        %v4641 = vld [vmem:[#allocation4 + $0x9c] sm:$0x1]
        %v4642 = vld [vmem:[#allocation4 + $0xb4] sm:$0x1]
        %v4651 = vrot.slane %v4620, 7
        %v4652 = vsel %vm481, %v4651, %v4619
        %v4653 = vrot.slane %v4621, 6
        %v4654 = vsel %vm484, %v4653, %v4652
        %v4655 = vrot.slane %v4622, 5
        %v4656 = vsel %vm487, %v4655, %v4654
        %v4657 = vrot.slane %v4623, 4
        %v4658 = vsel %vm490, %v4657, %v4656
        %v4659 = vrot.slane %v4624, 3
        %v4660 = vsel %vm493, %v4659, %v4658
        %v4661 = vrot.slane %v4625, 2
        %v4662 = vsel %vm496, %v4661, %v4660
        %v4663 = vrot.slane %v4626, 1
        %v4664 = vsel %vm499, %v4663, %v4662
        %v4666 = vmul.f32 %v3277, %v4664
        %v4667 = vadd.f32 %v4666, 0.0
        %4668 = vrot.lane.b32.xlu0 %v4664, 127
        %v4669 = vpop.permute.xlu0 %4668
        %v4671 = vmul.f32 %v3306, %v4669
        %v4672 = vadd.f32 %v4667, %v4671
        %4673 = vrot.lane.b32.xlu0 %v4664, 126
        %v4674 = vpop.permute.xlu0 %4673
        %v4676 = vmul.f32 %v3315, %v4674
        %v4677 = vadd.f32 %v4672, %v4676
        %v4686 = vrot.slane %v4628, 7
        %v4687 = vsel %vm481, %v4686, %v4627
        %v4688 = vrot.slane %v4629, 6
        %v4689 = vsel %vm484, %v4688, %v4687
        %v4690 = vrot.slane %v4630, 5
        %v4691 = vsel %vm487, %v4690, %v4689
        %v4692 = vrot.slane %v4631, 4
        %v4693 = vsel %vm490, %v4692, %v4691
        %v4694 = vrot.slane %v4632, 3
        %v4695 = vsel %vm493, %v4694, %v4693
        %v4696 = vrot.slane %v4633, 2
        %v4697 = vsel %vm496, %v4696, %v4695
        %v4698 = vrot.slane %v4634, 1
        %v4699 = vsel %vm499, %v4698, %v4697
        %v4701 = vmul.f32 %v3324, %v4699
        %v4702 = vadd.f32 %v4677, %v4701
        %4703 = vrot.lane.b32.xlu0 %v4699, 127
        %v4704 = vpop.permute.xlu0 %4703
        %v4706 = vmul.f32 %v3353, %v4704
        %v4707 = vadd.f32 %v4702, %v4706
        %4708 = vrot.lane.b32.xlu0 %v4699, 126
        %v4709 = vpop.permute.xlu0 %4708
        %v4711 = vmul.f32 %v3362, %v4709
        %v4712 = vadd.f32 %v4707, %v4711
        %v4721 = vrot.slane %v4636, 7
        %v4722 = vsel %vm481, %v4721, %v4635
        %v4723 = vrot.slane %v4637, 6
        %v4724 = vsel %vm484, %v4723, %v4722
        %v4725 = vrot.slane %v4638, 5
        %v4726 = vsel %vm487, %v4725, %v4724
        %v4727 = vrot.slane %v4639, 4
        %v4728 = vsel %vm490, %v4727, %v4726
        %v4729 = vrot.slane %v4640, 3
        %v4730 = vsel %vm493, %v4729, %v4728
        %v4731 = vrot.slane %v4641, 2
        %v4732 = vsel %vm496, %v4731, %v4730
        %v4733 = vrot.slane %v4642, 1
        %v4734 = vsel %vm499, %v4733, %v4732
        %v4736 = vmul.f32 %v3371, %v4734
        %v4737 = vadd.f32 %v4712, %v4736
        %4738 = vrot.lane.b32.xlu0 %v4734, 127
        %v4739 = vpop.permute.xlu0 %4738
        %v4741 = vmul.f32 %v3400, %v4739
        %v4742 = vadd.f32 %v4737, %v4741
        %4743 = vrot.lane.b32.xlu0 %v4734, 126
        %v4744 = vpop.permute.xlu0 %4743
        %v4746 = vmul.f32 %v3409, %v4744
        %v4747 = vadd.f32 %v4742, %v4746
        %4749 = vrot.lane.b32.xlu0 %v4747, 32
        %v4750 = vpop.permute.xlu0 %4749
        %4752 = vst.msk [vmem:[#allocation5 + $0x8] sm:$0xff] %vm886, %v4750
        %v4753 = vld [vmem:[#allocation4 + $0xb] sm:$0x1]
        %v4754 = vld [vmem:[#allocation4 + $0x23] sm:$0x1]
        %v4755 = vld [vmem:[#allocation4 + $0x3b] sm:$0x1]
        %v4756 = vld [vmem:[#allocation4 + $0x53] sm:$0x1]
        %v4757 = vld [vmem:[#allocation4 + $0x6b] sm:$0x1]
        %v4758 = vld [vmem:[#allocation4 + $0x83] sm:$0x1]
        %v4759 = vld [vmem:[#allocation4 + $0x9b] sm:$0x1]
        %v4760 = vld [vmem:[#allocation4 + $0xb3] sm:$0x1]
        %v4761 = vld [vmem:[#allocation4 + $0xc] sm:$0x1]
        %v4762 = vld [vmem:[#allocation4 + $0x24] sm:$0x1]
        %v4763 = vld [vmem:[#allocation4 + $0x3c] sm:$0x1]
        %v4764 = vld [vmem:[#allocation4 + $0x54] sm:$0x1]
        %v4765 = vld [vmem:[#allocation4 + $0x6c] sm:$0x1]
        %v4766 = vld [vmem:[#allocation4 + $0x84] sm:$0x1]
        %v4767 = vld [vmem:[#allocation4 + $0x9c] sm:$0x1]
        %v4768 = vld [vmem:[#allocation4 + $0xb4] sm:$0x1]
        %v4769 = vld [vmem:[#allocation4 + $0xd] sm:$0x1]
        %v4770 = vld [vmem:[#allocation4 + $0x25] sm:$0x1]
        %v4771 = vld [vmem:[#allocation4 + $0x3d] sm:$0x1]
        %v4772 = vld [vmem:[#allocation4 + $0x55] sm:$0x1]
        %v4773 = vld [vmem:[#allocation4 + $0x6d] sm:$0x1]
        %v4774 = vld [vmem:[#allocation4 + $0x85] sm:$0x1]
        %v4775 = vld [vmem:[#allocation4 + $0x9d] sm:$0x1]
        %v4776 = vld [vmem:[#allocation4 + $0xb5] sm:$0x1]
        %v4785 = vrot.slane %v4754, 7
        %v4786 = vsel %vm481, %v4785, %v4753
        %v4787 = vrot.slane %v4755, 6
        %v4788 = vsel %vm484, %v4787, %v4786
        %v4789 = vrot.slane %v4756, 5
        %v4790 = vsel %vm487, %v4789, %v4788
        %v4791 = vrot.slane %v4757, 4
        %v4792 = vsel %vm490, %v4791, %v4790
        %v4793 = vrot.slane %v4758, 3
        %v4794 = vsel %vm493, %v4793, %v4792
        %v4795 = vrot.slane %v4759, 2
        %v4796 = vsel %vm496, %v4795, %v4794
        %v4797 = vrot.slane %v4760, 1
        %v4798 = vsel %vm499, %v4797, %v4796
        %v4800 = vmul.f32 %v3277, %v4798
        %v4801 = vadd.f32 %v4800, 0.0
        %4802 = vrot.lane.b32.xlu0 %v4798, 127
        %v4803 = vpop.permute.xlu0 %4802
        %v4805 = vmul.f32 %v3306, %v4803
        %v4806 = vadd.f32 %v4801, %v4805
        %4807 = vrot.lane.b32.xlu0 %v4798, 126
        %v4808 = vpop.permute.xlu0 %4807
        %v4810 = vmul.f32 %v3315, %v4808
        %v4811 = vadd.f32 %v4806, %v4810
        %v4820 = vrot.slane %v4762, 7
        %v4821 = vsel %vm481, %v4820, %v4761
        %v4822 = vrot.slane %v4763, 6
        %v4823 = vsel %vm484, %v4822, %v4821
        %v4824 = vrot.slane %v4764, 5
        %v4825 = vsel %vm487, %v4824, %v4823
        %v4826 = vrot.slane %v4765, 4
        %v4827 = vsel %vm490, %v4826, %v4825
        %v4828 = vrot.slane %v4766, 3
        %v4829 = vsel %vm493, %v4828, %v4827
        %v4830 = vrot.slane %v4767, 2
        %v4831 = vsel %vm496, %v4830, %v4829
        %v4832 = vrot.slane %v4768, 1
        %v4833 = vsel %vm499, %v4832, %v4831
        %v4835 = vmul.f32 %v3324, %v4833
        %v4836 = vadd.f32 %v4811, %v4835
        %4837 = vrot.lane.b32.xlu0 %v4833, 127
        %v4838 = vpop.permute.xlu0 %4837
        %v4840 = vmul.f32 %v3353, %v4838
        %v4841 = vadd.f32 %v4836, %v4840
        %4842 = vrot.lane.b32.xlu0 %v4833, 126
        %v4843 = vpop.permute.xlu0 %4842
        %v4845 = vmul.f32 %v3362, %v4843
        %v4846 = vadd.f32 %v4841, %v4845
        %v4855 = vrot.slane %v4770, 7
        %v4856 = vsel %vm481, %v4855, %v4769
        %v4857 = vrot.slane %v4771, 6
        %v4858 = vsel %vm484, %v4857, %v4856
        %v4859 = vrot.slane %v4772, 5
        %v4860 = vsel %vm487, %v4859, %v4858
        %v4861 = vrot.slane %v4773, 4
        %v4862 = vsel %vm490, %v4861, %v4860
        %v4863 = vrot.slane %v4774, 3
        %v4864 = vsel %vm493, %v4863, %v4862
        %v4865 = vrot.slane %v4775, 2
        %v4866 = vsel %vm496, %v4865, %v4864
        %v4867 = vrot.slane %v4776, 1
        %v4868 = vsel %vm499, %v4867, %v4866
        %v4870 = vmul.f32 %v3371, %v4868
        %v4871 = vadd.f32 %v4846, %v4870
        %4872 = vrot.lane.b32.xlu0 %v4868, 127
        %v4873 = vpop.permute.xlu0 %4872
        %v4875 = vmul.f32 %v3400, %v4873
        %v4876 = vadd.f32 %v4871, %v4875
        %4877 = vrot.lane.b32.xlu0 %v4868, 126
        %v4878 = vpop.permute.xlu0 %4877
        %v4880 = vmul.f32 %v3409, %v4878
        %v4881 = vadd.f32 %v4876, %v4880
        %4883 = vrot.lane.b32.xlu0 %v4881, 48
        %v4884 = vpop.permute.xlu0 %4883
        %4886 = vst.msk [vmem:[#allocation5 + $0x8] sm:$0xff] %vm1021, %v4884
        %v4887 = vld [vmem:[#allocation4 + $0xc] sm:$0x1]
        %v4888 = vld [vmem:[#allocation4 + $0x24] sm:$0x1]
        %v4889 = vld [vmem:[#allocation4 + $0x3c] sm:$0x1]
        %v4890 = vld [vmem:[#allocation4 + $0x54] sm:$0x1]
        %v4891 = vld [vmem:[#allocation4 + $0x6c] sm:$0x1]
        %v4892 = vld [vmem:[#allocation4 + $0x84] sm:$0x1]
        %v4893 = vld [vmem:[#allocation4 + $0x9c] sm:$0x1]
        %v4894 = vld [vmem:[#allocation4 + $0xb4] sm:$0x1]
        %v4895 = vld [vmem:[#allocation4 + $0xd] sm:$0x1]
        %v4896 = vld [vmem:[#allocation4 + $0x25] sm:$0x1]
        %v4897 = vld [vmem:[#allocation4 + $0x3d] sm:$0x1]
        %v4898 = vld [vmem:[#allocation4 + $0x55] sm:$0x1]
        %v4899 = vld [vmem:[#allocation4 + $0x6d] sm:$0x1]
        %v4900 = vld [vmem:[#allocation4 + $0x85] sm:$0x1]
        %v4901 = vld [vmem:[#allocation4 + $0x9d] sm:$0x1]
        %v4902 = vld [vmem:[#allocation4 + $0xb5] sm:$0x1]
        %v4903 = vld [vmem:[#allocation4 + $0xe] sm:$0x1]
        %v4904 = vld [vmem:[#allocation4 + $0x26] sm:$0x1]
        %v4905 = vld [vmem:[#allocation4 + $0x3e] sm:$0x1]
        %v4906 = vld [vmem:[#allocation4 + $0x56] sm:$0x1]
        %v4907 = vld [vmem:[#allocation4 + $0x6e] sm:$0x1]
        %v4908 = vld [vmem:[#allocation4 + $0x86] sm:$0x1]
        %v4909 = vld [vmem:[#allocation4 + $0x9e] sm:$0x1]
        %v4910 = vld [vmem:[#allocation4 + $0xb6] sm:$0x1]
        %v4919 = vrot.slane %v4888, 7
        %v4920 = vsel %vm481, %v4919, %v4887
        %v4921 = vrot.slane %v4889, 6
        %v4922 = vsel %vm484, %v4921, %v4920
        %v4923 = vrot.slane %v4890, 5
        %v4924 = vsel %vm487, %v4923, %v4922
        %v4925 = vrot.slane %v4891, 4
        %v4926 = vsel %vm490, %v4925, %v4924
        %v4927 = vrot.slane %v4892, 3
        %v4928 = vsel %vm493, %v4927, %v4926
        %v4929 = vrot.slane %v4893, 2
        %v4930 = vsel %vm496, %v4929, %v4928
        %v4931 = vrot.slane %v4894, 1
        %v4932 = vsel %vm499, %v4931, %v4930
        %v4934 = vmul.f32 %v3277, %v4932
        %v4935 = vadd.f32 %v4934, 0.0
        %4936 = vrot.lane.b32.xlu0 %v4932, 127
        %v4937 = vpop.permute.xlu0 %4936
        %v4939 = vmul.f32 %v3306, %v4937
        %v4940 = vadd.f32 %v4935, %v4939
        %4941 = vrot.lane.b32.xlu0 %v4932, 126
        %v4942 = vpop.permute.xlu0 %4941
        %v4944 = vmul.f32 %v3315, %v4942
        %v4945 = vadd.f32 %v4940, %v4944
        %v4954 = vrot.slane %v4896, 7
        %v4955 = vsel %vm481, %v4954, %v4895
        %v4956 = vrot.slane %v4897, 6
        %v4957 = vsel %vm484, %v4956, %v4955
        %v4958 = vrot.slane %v4898, 5
        %v4959 = vsel %vm487, %v4958, %v4957
        %v4960 = vrot.slane %v4899, 4
        %v4961 = vsel %vm490, %v4960, %v4959
        %v4962 = vrot.slane %v4900, 3
        %v4963 = vsel %vm493, %v4962, %v4961
        %v4964 = vrot.slane %v4901, 2
        %v4965 = vsel %vm496, %v4964, %v4963
        %v4966 = vrot.slane %v4902, 1
        %v4967 = vsel %vm499, %v4966, %v4965
        %v4969 = vmul.f32 %v3324, %v4967
        %v4970 = vadd.f32 %v4945, %v4969
        %4971 = vrot.lane.b32.xlu0 %v4967, 127
        %v4972 = vpop.permute.xlu0 %4971
        %v4974 = vmul.f32 %v3353, %v4972
        %v4975 = vadd.f32 %v4970, %v4974
        %4976 = vrot.lane.b32.xlu0 %v4967, 126
        %v4977 = vpop.permute.xlu0 %4976
        %v4979 = vmul.f32 %v3362, %v4977
        %v4980 = vadd.f32 %v4975, %v4979
        %v4989 = vrot.slane %v4904, 7
        %v4990 = vsel %vm481, %v4989, %v4903
        %v4991 = vrot.slane %v4905, 6
        %v4992 = vsel %vm484, %v4991, %v4990
        %v4993 = vrot.slane %v4906, 5
        %v4994 = vsel %vm487, %v4993, %v4992
        %v4995 = vrot.slane %v4907, 4
        %v4996 = vsel %vm490, %v4995, %v4994
        %v4997 = vrot.slane %v4908, 3
        %v4998 = vsel %vm493, %v4997, %v4996
        %v4999 = vrot.slane %v4909, 2
        %v5000 = vsel %vm496, %v4999, %v4998
        %v5001 = vrot.slane %v4910, 1
        %v5002 = vsel %vm499, %v5001, %v5000
        %v5004 = vmul.f32 %v3371, %v5002
        %v5005 = vadd.f32 %v4980, %v5004
        %5006 = vrot.lane.b32.xlu0 %v5002, 127
        %v5007 = vpop.permute.xlu0 %5006
        %v5009 = vmul.f32 %v3400, %v5007
        %v5010 = vadd.f32 %v5005, %v5009
        %5011 = vrot.lane.b32.xlu0 %v5002, 126
        %v5012 = vpop.permute.xlu0 %5011
        %v5014 = vmul.f32 %v3409, %v5012
        %v5015 = vadd.f32 %v5010, %v5014
        %5017 = vrot.lane.b32.xlu0 %v5015, 64
        %v5018 = vpop.permute.xlu0 %5017
        %5020 = vst.msk [vmem:[#allocation5 + $0x8] sm:$0xff] %vm1156, %v5018
        %v5021 = vld [vmem:[#allocation4 + $0xd] sm:$0x1]
        %v5022 = vld [vmem:[#allocation4 + $0x25] sm:$0x1]
        %v5023 = vld [vmem:[#allocation4 + $0x3d] sm:$0x1]
        %v5024 = vld [vmem:[#allocation4 + $0x55] sm:$0x1]
        %v5025 = vld [vmem:[#allocation4 + $0x6d] sm:$0x1]
        %v5026 = vld [vmem:[#allocation4 + $0x85] sm:$0x1]
        %v5027 = vld [vmem:[#allocation4 + $0x9d] sm:$0x1]
        %v5028 = vld [vmem:[#allocation4 + $0xb5] sm:$0x1]
        %v5029 = vld [vmem:[#allocation4 + $0xe] sm:$0x1]
        %v5030 = vld [vmem:[#allocation4 + $0x26] sm:$0x1]
        %v5031 = vld [vmem:[#allocation4 + $0x3e] sm:$0x1]
        %v5032 = vld [vmem:[#allocation4 + $0x56] sm:$0x1]
        %v5033 = vld [vmem:[#allocation4 + $0x6e] sm:$0x1]
        %v5034 = vld [vmem:[#allocation4 + $0x86] sm:$0x1]
        %v5035 = vld [vmem:[#allocation4 + $0x9e] sm:$0x1]
        %v5036 = vld [vmem:[#allocation4 + $0xb6] sm:$0x1]
        %v5037 = vld [vmem:[#allocation4 + $0xf] sm:$0x1]
        %v5038 = vld [vmem:[#allocation4 + $0x27] sm:$0x1]
        %v5039 = vld [vmem:[#allocation4 + $0x3f] sm:$0x1]
        %v5040 = vld [vmem:[#allocation4 + $0x57] sm:$0x1]
        %v5041 = vld [vmem:[#allocation4 + $0x6f] sm:$0x1]
        %v5042 = vld [vmem:[#allocation4 + $0x87] sm:$0x1]
        %v5043 = vld [vmem:[#allocation4 + $0x9f] sm:$0x1]
        %v5044 = vld [vmem:[#allocation4 + $0xb7] sm:$0x1]
        %v5053 = vrot.slane %v5022, 7
        %v5054 = vsel %vm481, %v5053, %v5021
        %v5055 = vrot.slane %v5023, 6
        %v5056 = vsel %vm484, %v5055, %v5054
        %v5057 = vrot.slane %v5024, 5
        %v5058 = vsel %vm487, %v5057, %v5056
        %v5059 = vrot.slane %v5025, 4
        %v5060 = vsel %vm490, %v5059, %v5058
        %v5061 = vrot.slane %v5026, 3
        %v5062 = vsel %vm493, %v5061, %v5060
        %v5063 = vrot.slane %v5027, 2
        %v5064 = vsel %vm496, %v5063, %v5062
        %v5065 = vrot.slane %v5028, 1
        %v5066 = vsel %vm499, %v5065, %v5064
        %v5068 = vmul.f32 %v3277, %v5066
        %v5069 = vadd.f32 %v5068, 0.0
        %5070 = vrot.lane.b32.xlu0 %v5066, 127
        %v5071 = vpop.permute.xlu0 %5070
        %v5073 = vmul.f32 %v3306, %v5071
        %v5074 = vadd.f32 %v5069, %v5073
        %5075 = vrot.lane.b32.xlu0 %v5066, 126
        %v5076 = vpop.permute.xlu0 %5075
        %v5078 = vmul.f32 %v3315, %v5076
        %v5079 = vadd.f32 %v5074, %v5078
        %v5088 = vrot.slane %v5030, 7
        %v5089 = vsel %vm481, %v5088, %v5029
        %v5090 = vrot.slane %v5031, 6
        %v5091 = vsel %vm484, %v5090, %v5089
        %v5092 = vrot.slane %v5032, 5
        %v5093 = vsel %vm487, %v5092, %v5091
        %v5094 = vrot.slane %v5033, 4
        %v5095 = vsel %vm490, %v5094, %v5093
        %v5096 = vrot.slane %v5034, 3
        %v5097 = vsel %vm493, %v5096, %v5095
        %v5098 = vrot.slane %v5035, 2
        %v5099 = vsel %vm496, %v5098, %v5097
        %v5100 = vrot.slane %v5036, 1
        %v5101 = vsel %vm499, %v5100, %v5099
        %v5103 = vmul.f32 %v3324, %v5101
        %v5104 = vadd.f32 %v5079, %v5103
        %5105 = vrot.lane.b32.xlu0 %v5101, 127
        %v5106 = vpop.permute.xlu0 %5105
        %v5108 = vmul.f32 %v3353, %v5106
        %v5109 = vadd.f32 %v5104, %v5108
        %5110 = vrot.lane.b32.xlu0 %v5101, 126
        %v5111 = vpop.permute.xlu0 %5110
        %v5113 = vmul.f32 %v3362, %v5111
        %v5114 = vadd.f32 %v5109, %v5113
        %v5123 = vrot.slane %v5038, 7
        %v5124 = vsel %vm481, %v5123, %v5037
        %v5125 = vrot.slane %v5039, 6
        %v5126 = vsel %vm484, %v5125, %v5124
        %v5127 = vrot.slane %v5040, 5
        %v5128 = vsel %vm487, %v5127, %v5126
        %v5129 = vrot.slane %v5041, 4
        %v5130 = vsel %vm490, %v5129, %v5128
        %v5131 = vrot.slane %v5042, 3
        %v5132 = vsel %vm493, %v5131, %v5130
        %v5133 = vrot.slane %v5043, 2
        %v5134 = vsel %vm496, %v5133, %v5132
        %v5135 = vrot.slane %v5044, 1
        %v5136 = vsel %vm499, %v5135, %v5134
        %v5138 = vmul.f32 %v3371, %v5136
        %v5139 = vadd.f32 %v5114, %v5138
        %5140 = vrot.lane.b32.xlu0 %v5136, 127
        %v5141 = vpop.permute.xlu0 %5140
        %v5143 = vmul.f32 %v3400, %v5141
        %v5144 = vadd.f32 %v5139, %v5143
        %5145 = vrot.lane.b32.xlu0 %v5136, 126
        %v5146 = vpop.permute.xlu0 %5145
        %v5148 = vmul.f32 %v3409, %v5146
        %v5149 = vadd.f32 %v5144, %v5148
        %5151 = vrot.lane.b32.xlu0 %v5149, 80
        %v5152 = vpop.permute.xlu0 %5151
        %5154 = vst.msk [vmem:[#allocation5 + $0x8] sm:$0xff] %vm1291, %v5152
        %v5155 = vld [vmem:[#allocation4 + $0xe] sm:$0x1]
        %v5156 = vld [vmem:[#allocation4 + $0x26] sm:$0x1]
        %v5157 = vld [vmem:[#allocation4 + $0x3e] sm:$0x1]
        %v5158 = vld [vmem:[#allocation4 + $0x56] sm:$0x1]
        %v5159 = vld [vmem:[#allocation4 + $0x6e] sm:$0x1]
        %v5160 = vld [vmem:[#allocation4 + $0x86] sm:$0x1]
        %v5161 = vld [vmem:[#allocation4 + $0x9e] sm:$0x1]
        %v5162 = vld [vmem:[#allocation4 + $0xb6] sm:$0x1]
        %v5163 = vld [vmem:[#allocation4 + $0xf] sm:$0x1]
        %v5164 = vld [vmem:[#allocation4 + $0x27] sm:$0x1]
        %v5165 = vld [vmem:[#allocation4 + $0x3f] sm:$0x1]
        %v5166 = vld [vmem:[#allocation4 + $0x57] sm:$0x1]
        %v5167 = vld [vmem:[#allocation4 + $0x6f] sm:$0x1]
        %v5168 = vld [vmem:[#allocation4 + $0x87] sm:$0x1]
        %v5169 = vld [vmem:[#allocation4 + $0x9f] sm:$0x1]
        %v5170 = vld [vmem:[#allocation4 + $0xb7] sm:$0x1]
        %v5171 = vld [vmem:[#allocation4 + $0x10] sm:$0x1]
        %v5172 = vld [vmem:[#allocation4 + $0x28] sm:$0x1]
        %v5173 = vld [vmem:[#allocation4 + $0x40] sm:$0x1]
        %v5174 = vld [vmem:[#allocation4 + $0x58] sm:$0x1]
        %v5175 = vld [vmem:[#allocation4 + $0x70] sm:$0x1]
        %v5176 = vld [vmem:[#allocation4 + $0x88] sm:$0x1]
        %v5177 = vld [vmem:[#allocation4 + $0xa0] sm:$0x1]
        %v5178 = vld [vmem:[#allocation4 + $0xb8] sm:$0x1]
        %v5187 = vrot.slane %v5156, 7
        %v5188 = vsel %vm481, %v5187, %v5155
        %v5189 = vrot.slane %v5157, 6
        %v5190 = vsel %vm484, %v5189, %v5188
        %v5191 = vrot.slane %v5158, 5
        %v5192 = vsel %vm487, %v5191, %v5190
        %v5193 = vrot.slane %v5159, 4
        %v5194 = vsel %vm490, %v5193, %v5192
        %v5195 = vrot.slane %v5160, 3
        %v5196 = vsel %vm493, %v5195, %v5194
        %v5197 = vrot.slane %v5161, 2
        %v5198 = vsel %vm496, %v5197, %v5196
        %v5199 = vrot.slane %v5162, 1
        %v5200 = vsel %vm499, %v5199, %v5198
        %v5202 = vmul.f32 %v3277, %v5200
        %v5203 = vadd.f32 %v5202, 0.0
        %5204 = vrot.lane.b32.xlu0 %v5200, 127
        %v5205 = vpop.permute.xlu0 %5204
        %v5207 = vmul.f32 %v3306, %v5205
        %v5208 = vadd.f32 %v5203, %v5207
        %5209 = vrot.lane.b32.xlu0 %v5200, 126
        %v5210 = vpop.permute.xlu0 %5209
        %v5212 = vmul.f32 %v3315, %v5210
        %v5213 = vadd.f32 %v5208, %v5212
        %v5222 = vrot.slane %v5164, 7
        %v5223 = vsel %vm481, %v5222, %v5163
        %v5224 = vrot.slane %v5165, 6
        %v5225 = vsel %vm484, %v5224, %v5223
        %v5226 = vrot.slane %v5166, 5
        %v5227 = vsel %vm487, %v5226, %v5225
        %v5228 = vrot.slane %v5167, 4
        %v5229 = vsel %vm490, %v5228, %v5227
        %v5230 = vrot.slane %v5168, 3
        %v5231 = vsel %vm493, %v5230, %v5229
        %v5232 = vrot.slane %v5169, 2
        %v5233 = vsel %vm496, %v5232, %v5231
        %v5234 = vrot.slane %v5170, 1
        %v5235 = vsel %vm499, %v5234, %v5233
        %v5237 = vmul.f32 %v3324, %v5235
        %v5238 = vadd.f32 %v5213, %v5237
        %5239 = vrot.lane.b32.xlu0 %v5235, 127
        %v5240 = vpop.permute.xlu0 %5239
        %v5242 = vmul.f32 %v3353, %v5240
        %v5243 = vadd.f32 %v5238, %v5242
        %5244 = vrot.lane.b32.xlu0 %v5235, 126
        %v5245 = vpop.permute.xlu0 %5244
        %v5247 = vmul.f32 %v3362, %v5245
        %v5248 = vadd.f32 %v5243, %v5247
        %v5257 = vrot.slane %v5172, 7
        %v5258 = vsel %vm481, %v5257, %v5171
        %v5259 = vrot.slane %v5173, 6
        %v5260 = vsel %vm484, %v5259, %v5258
        %v5261 = vrot.slane %v5174, 5
        %v5262 = vsel %vm487, %v5261, %v5260
        %v5263 = vrot.slane %v5175, 4
        %v5264 = vsel %vm490, %v5263, %v5262
        %v5265 = vrot.slane %v5176, 3
        %v5266 = vsel %vm493, %v5265, %v5264
        %v5267 = vrot.slane %v5177, 2
        %v5268 = vsel %vm496, %v5267, %v5266
        %v5269 = vrot.slane %v5178, 1
        %v5270 = vsel %vm499, %v5269, %v5268
        %v5272 = vmul.f32 %v3371, %v5270
        %v5273 = vadd.f32 %v5248, %v5272
        %5274 = vrot.lane.b32.xlu0 %v5270, 127
        %v5275 = vpop.permute.xlu0 %5274
        %v5277 = vmul.f32 %v3400, %v5275
        %v5278 = vadd.f32 %v5273, %v5277
        %5279 = vrot.lane.b32.xlu0 %v5270, 126
        %v5280 = vpop.permute.xlu0 %5279
        %v5282 = vmul.f32 %v3409, %v5280
        %v5283 = vadd.f32 %v5278, %v5282
        %5285 = vrot.lane.b32.xlu0 %v5283, 96
        %v5286 = vpop.permute.xlu0 %5285
        %5288 = vst.msk [vmem:[#allocation5 + $0x8] sm:$0xff] %vm1426, %v5286
        %v5289 = vld [vmem:[#allocation4 + $0xf] sm:$0x1]
        %v5290 = vld [vmem:[#allocation4 + $0x27] sm:$0x1]
        %v5291 = vld [vmem:[#allocation4 + $0x3f] sm:$0x1]
        %v5292 = vld [vmem:[#allocation4 + $0x57] sm:$0x1]
        %v5293 = vld [vmem:[#allocation4 + $0x6f] sm:$0x1]
        %v5294 = vld [vmem:[#allocation4 + $0x87] sm:$0x1]
        %v5295 = vld [vmem:[#allocation4 + $0x9f] sm:$0x1]
        %v5296 = vld [vmem:[#allocation4 + $0xb7] sm:$0x1]
        %v5297 = vld [vmem:[#allocation4 + $0x10] sm:$0x1]
        %v5298 = vld [vmem:[#allocation4 + $0x28] sm:$0x1]
        %v5299 = vld [vmem:[#allocation4 + $0x40] sm:$0x1]
        %v5300 = vld [vmem:[#allocation4 + $0x58] sm:$0x1]
        %v5301 = vld [vmem:[#allocation4 + $0x70] sm:$0x1]
        %v5302 = vld [vmem:[#allocation4 + $0x88] sm:$0x1]
        %v5303 = vld [vmem:[#allocation4 + $0xa0] sm:$0x1]
        %v5304 = vld [vmem:[#allocation4 + $0xb8] sm:$0x1]
        %v5305 = vld [vmem:[#allocation4 + $0x11] sm:$0x1]
        %v5306 = vld [vmem:[#allocation4 + $0x29] sm:$0x1]
        %v5307 = vld [vmem:[#allocation4 + $0x41] sm:$0x1]
        %v5308 = vld [vmem:[#allocation4 + $0x59] sm:$0x1]
        %v5309 = vld [vmem:[#allocation4 + $0x71] sm:$0x1]
        %v5310 = vld [vmem:[#allocation4 + $0x89] sm:$0x1]
        %v5311 = vld [vmem:[#allocation4 + $0xa1] sm:$0x1]
        %v5312 = vld [vmem:[#allocation4 + $0xb9] sm:$0x1]
        %v5321 = vrot.slane %v5290, 7
        %v5322 = vsel %vm481, %v5321, %v5289
        %v5323 = vrot.slane %v5291, 6
        %v5324 = vsel %vm484, %v5323, %v5322
        %v5325 = vrot.slane %v5292, 5
        %v5326 = vsel %vm487, %v5325, %v5324
        %v5327 = vrot.slane %v5293, 4
        %v5328 = vsel %vm490, %v5327, %v5326
        %v5329 = vrot.slane %v5294, 3
        %v5330 = vsel %vm493, %v5329, %v5328
        %v5331 = vrot.slane %v5295, 2
        %v5332 = vsel %vm496, %v5331, %v5330
        %v5333 = vrot.slane %v5296, 1
        %v5334 = vsel %vm499, %v5333, %v5332
        %v5336 = vmul.f32 %v3277, %v5334
        %v5337 = vadd.f32 %v5336, 0.0
        %5338 = vrot.lane.b32.xlu0 %v5334, 127
        %v5339 = vpop.permute.xlu0 %5338
        %v5341 = vmul.f32 %v3306, %v5339
        %v5342 = vadd.f32 %v5337, %v5341
        %5343 = vrot.lane.b32.xlu0 %v5334, 126
        %v5344 = vpop.permute.xlu0 %5343
        %v5346 = vmul.f32 %v3315, %v5344
        %v5347 = vadd.f32 %v5342, %v5346
        %v5356 = vrot.slane %v5298, 7
        %v5357 = vsel %vm481, %v5356, %v5297
        %v5358 = vrot.slane %v5299, 6
        %v5359 = vsel %vm484, %v5358, %v5357
        %v5360 = vrot.slane %v5300, 5
        %v5361 = vsel %vm487, %v5360, %v5359
        %v5362 = vrot.slane %v5301, 4
        %v5363 = vsel %vm490, %v5362, %v5361
        %v5364 = vrot.slane %v5302, 3
        %v5365 = vsel %vm493, %v5364, %v5363
        %v5366 = vrot.slane %v5303, 2
        %v5367 = vsel %vm496, %v5366, %v5365
        %v5368 = vrot.slane %v5304, 1
        %v5369 = vsel %vm499, %v5368, %v5367
        %v5371 = vmul.f32 %v3324, %v5369
        %v5372 = vadd.f32 %v5347, %v5371
        %5373 = vrot.lane.b32.xlu0 %v5369, 127
        %v5374 = vpop.permute.xlu0 %5373
        %v5376 = vmul.f32 %v3353, %v5374
        %v5377 = vadd.f32 %v5372, %v5376
        %5378 = vrot.lane.b32.xlu0 %v5369, 126
        %v5379 = vpop.permute.xlu0 %5378
        %v5381 = vmul.f32 %v3362, %v5379
        %v5382 = vadd.f32 %v5377, %v5381
        %v5391 = vrot.slane %v5306, 7
        %v5392 = vsel %vm481, %v5391, %v5305
        %v5393 = vrot.slane %v5307, 6
        %v5394 = vsel %vm484, %v5393, %v5392
        %v5395 = vrot.slane %v5308, 5
        %v5396 = vsel %vm487, %v5395, %v5394
        %v5397 = vrot.slane %v5309, 4
        %v5398 = vsel %vm490, %v5397, %v5396
        %v5399 = vrot.slane %v5310, 3
        %v5400 = vsel %vm493, %v5399, %v5398
        %v5401 = vrot.slane %v5311, 2
        %v5402 = vsel %vm496, %v5401, %v5400
        %v5403 = vrot.slane %v5312, 1
        %v5404 = vsel %vm499, %v5403, %v5402
        %v5406 = vmul.f32 %v3371, %v5404
        %v5407 = vadd.f32 %v5382, %v5406
        %5408 = vrot.lane.b32.xlu0 %v5404, 127
        %v5409 = vpop.permute.xlu0 %5408
        %v5411 = vmul.f32 %v3400, %v5409
        %v5412 = vadd.f32 %v5407, %v5411
        %5413 = vrot.lane.b32.xlu0 %v5404, 126
        %v5414 = vpop.permute.xlu0 %5413
        %v5416 = vmul.f32 %v3409, %v5414
        %v5417 = vadd.f32 %v5412, %v5416
        %5419 = vrot.lane.b32.xlu0 %v5417, 112
        %v5420 = vpop.permute.xlu0 %5419
        %5422 = vst.msk [vmem:[#allocation5 + $0x8] sm:$0xff] %vm1561, %v5420
        %v5423 = vld [vmem:[#allocation14] sm:$0xff]
        %v5424 = vld [vmem:[#allocation5] sm:$0xff]
        %v5425 = vld [vmem:[#allocation5 + $0x8] sm:$0xff]
        %v5427 = vsel %vm2634, %v5423, 0
        %5429 = vmatpush.msra.mxu0 0.0
        %5430 = vmatpush.msra.mxu0 0.0
        %5431 = vmatpush.msra.mxu0 0.0
        %5432 = vmatpush.msra.mxu0 0.0
        %5433 = vmatpush.msra.mxu0 0.0
        %5434 = vmatpush.msra.mxu0 0.0
        %5435 = vmatpush.msra.mxu0 0.0
        %5436 = vmatpush.msra.mxu0 0.0
        %5437 = vmatpush.msra.mxu0 0.0
        %5438 = vmatpush.msra.mxu0 0.0
        %5439 = vmatpush.msra.mxu0 0.0
        %5440 = vmatpush.msra.mxu0 0.0
        %5441 = vmatpush.msra.mxu0 0.0
        %5442 = vmatpush.msra.mxu0 0.0
        %5443 = vmatpush.msra.mxu0 0.0
        %5444 = vmatpush.msra.mxu0 %v5424
        %5445 = vmatmul.f32.gmra.mxu0 %v5427
        %v5446 = vpop.f32.mrf.mxu0
        %v5447 = vadd.f32 0.0, %v5446
        %5448 = vdwg.mxu0
        %5449 = vmatpush.msra.mxu0 0.0
        %5450 = vmatpush.msra.mxu0 0.0
        %5451 = vmatpush.msra.mxu0 0.0
        %5452 = vmatpush.msra.mxu0 0.0
        %5453 = vmatpush.msra.mxu0 0.0
        %5454 = vmatpush.msra.mxu0 0.0
        %5455 = vmatpush.msra.mxu0 0.0
        %5456 = vmatpush.msra.mxu0 0.0
        %5457 = vmatpush.msra.mxu0 0.0
        %5458 = vmatpush.msra.mxu0 0.0
        %5459 = vmatpush.msra.mxu0 0.0
        %5460 = vmatpush.msra.mxu0 0.0
        %5461 = vmatpush.msra.mxu0 0.0
        %5462 = vmatpush.msra.mxu0 0.0
        %5463 = vmatpush.msra.mxu0 0.0
        %5464 = vmatpush.msra.mxu0 %v5425
        %5465 = vmatmul.f32.gmra.mxu0 %v5427
        %v5466 = vpop.f32.mrf.mxu0
        %v5467 = vadd.f32 0.0, %v5466
        %5468 = vdwg.mxu0
        %5469 = vst [vmem:[%s302] sm:$0xff] %v5447
        %5470 = vst [vmem:[%s302 + $0x8] sm:$0xff] %v5467
        %s5471 = sand.u32 %s142, 1
        %s5472 = scalar_lea.sflag [#allocation8], %s5471
        %s5473 = sand.u32 %s142, 1
        %s5474 = smul.addr %s5473, 16
        %s5475 = scalar_lea.vmem [#allocation15], %s5474
        // Predicated region
        $region61: #{tpu_custom_call.1} parent=39 // pred_check
          %p5476 = pneg %p152
        $region62: #{tpu_custom_call.1} parent=39 // pred_check_branch
          %5478 = sbr.rel (%p5476) target = $region64
        $region63: #{tpu_custom_call.1} parent=39 // pred_region
          %5480 = vsyncadd %s5472, 0
          %s5481 = smul.addr %s24, 2
          %s5482 = smul.addr %s5481, 8
          %s5483 = scalar_lea.hbm %s5, %s5482
          %s5485 = sshll.u32 %s5475, 4
          %s5486 = int_to_ptr.vmem [resolvable:$true] %s5485
          %s5487 = sshll.u32 %s5483, 4
          %s5488 = int_to_ptr.hbm [resolvable:$true] %s5487
          %5490 = dma.vmem_to_hbm [thread:$0]  %s5486, 256, %s5488, %s5472
        $region64: #{tpu_custom_call.1} parent=39 // pred_fallthru
          _
      $region40: #{tpu_custom_call.1} parent=5 // pred_fallthru
        _
      %p5491 = scmp.le.s32.totalorder 2, %s19
      // Predicated region
      $region65: #{tpu_custom_call.1} parent=5 // pred_check
        %p5492 = pneg %p5491
      $region66: #{tpu_custom_call.1} parent=5 // pred_check_branch
        %5494 = sbr.rel (%p5492) target = $region68
      $region67: #{tpu_custom_call.1} parent=5 // pred_region
        %s5495 = ssub.s32 %s19, 2
        // Predicated region
        $region69: #{tpu_custom_call.1} parent=67 // pred_check
          %p5496 = pneg %p158
        $region70: #{tpu_custom_call.1} parent=67 // pred_check_branch
          %5498 = sbr.rel (%p5496) target = $region72
        $region71: #{tpu_custom_call.1} parent=67 // pred_region
          %s5499 = sand.u32 %s143, 1
          %s5500 = scalar_lea.sflag [#allocation8], %s5499
          %s5501 = sand.u32 %s143, 1
          %s5502 = smul.addr %s5501, 16
          %s5503 = scalar_lea.vmem [#allocation15], %s5502
          %5505 = dma.done %s5500, 256
        $region72: #{tpu_custom_call.1} parent=67 // pred_fallthru
          _
      $region68: #{tpu_custom_call.1} parent=5 // pred_fallthru
        _
    $region6: #{tpu_custom_call.1} parent=1 // loop_footer
      %s23 = sadd.s32 1, %s19
    $region7: #{tpu_custom_call.1} parent=1 // loop_footer_branch
      %18 = sbr.rel target = $region3
    $region8: #{tpu_custom_call.1} parent=1 // loop_exit
      _
    %5506 = vsyncpa [#allocation7], 1
    %s5507 = scalar_lea.sflag [#allocation7], 1
    %5508 = vsyncpa %s5507, 1
    %5509 = vsyncpa [#allocation10], 1
    %5510 = vsyncpa [#allocation13], 1
    %5511 = vsyncpa [#allocation8], 1
    %s5512 = scalar_lea.sflag [#allocation8], 1
    %5513 = vsyncpa %s5512, 1

</llo_original>
